<compile_context>
chip_gen: v7x
topology: tpu7x:2x2x1
jax: 0.10.0
libtpu: 0.0.40
codegen_flags: <defaults>
</compile_context>

<pallas_src>
import functools

import jax
import jax.numpy as jnp
from jax.experimental import pallas as pl
from jax.experimental.pallas import tpu as pltpu


def _aspp_kernel(xp_hbm, w0_ref, w1_ref, w2_ref, w3_ref, wp_ref, o_ref,
                 band, sem, *, rates, dmax, tile_h, tiles_per_group):
    # xp_hbm : (N, Hp, Wp, Cin)  raw HBM ref (memory_space=pl.ANY)
    # w0_ref : (Cin, Cout)       1x1 branch
    # w{1,2,3}_ref : (9, Cin, Cout)  dilated 3x3 branches (tap index ky*3+kx)
    # wp_ref : (4, Cout, Cout)   1x1 projection, slab i belongs to branch i
    # o_ref  : (1, TH, W, Cout)  output row tile
    # band   : (2, TH + 2*dmax, Wp, Cin) VMEM halo-band double buffer
    # sem    : (2,) DMA semaphores
    n = pl.program_id(0)
    g = pl.program_id(1)
    t = pl.program_id(2)
    T = tiles_per_group
    TH = tile_h
    band_h = TH + 2 * dmax
    W = o_ref.shape[2]
    Cin = band.shape[3]
    Cout = o_ref.shape[3]

    row_tile = g * T + t          # which TH-row tile of this image
    slot = t % 2

    def band_copy(rt, s):
        # Halo band: padded rows [rt*TH, rt*TH + TH + 2*dmax), all Wp cols.
        r0 = pl.multiple_of(rt * TH, TH)
        return pltpu.make_async_copy(
            xp_hbm.at[n, pl.ds(r0, band_h)], band.at[s], sem.at[s])

    # Prime: the first tile of this (n, g) run fetches its own band.
    @pl.when(t == 0)
    def _():
        band_copy(row_tile, slot).start()

    # Wait for this tile's band (started above, or prefetched by step t-1).
    band_copy(row_tile, slot).wait()

    # Prefetch the next tile's band of the same (n, g) run into the other slot.
    if T > 1:
        @pl.when(t + 1 < T)
        def _():
            band_copy(row_tile + 1, (t + 1) % 2).start()

    bs = band.at[slot]

    def tap(ry, cx):
        # Static in-band offsets; slice straight from the scratch ref and
        # flatten once for the MXU (im2col slab).
        return bs[ry:ry + TH, cx:cx + W, :].reshape(TH * W, Cin)

    # Center tap is shared by the 1x1 branch and the (ky==1, kx==1) tap of
    # every dilated branch.
    x_center = tap(dmax, dmax)

    # ---- branch 0: 1x1 conv + ReLU, immediately projected -------------------
    b0 = jnp.maximum(
        jnp.dot(x_center, w0_ref[...], preferred_element_type=jnp.float32),
        0.0)
    y = jnp.dot(b0.astype(wp_ref.dtype), wp_ref[0],
                preferred_element_type=jnp.float32)

    # ---- branches 1..3: dilated 3x3 conv + ReLU, projected & accumulated ----
    for i, (w_ref, d) in enumerate(((w1_ref, rates[0]),
                                    (w2_ref, rates[1]),
                                    (w3_ref, rates[2]))):
        acc = None
        for ky in range(3):
            ry = dmax + (ky - 1) * d
            for kx in range(3):
                cx = dmax + (kx - 1) * d
                xt = x_center if (ky == 1 and kx == 1) else tap(ry, cx)
                part = jnp.dot(xt, w_ref[ky * 3 + kx],
                               preferred_element_type=jnp.float32)
                acc = part if acc is None else acc + part
        b = jnp.maximum(acc, 0.0)          # ReLU kept in f32 (no bf16 VPU on v5e)
        y = y + jnp.dot(b.astype(wp_ref.dtype), wp_ref[i + 1],
                        preferred_element_type=jnp.float32)

    # Final projection ReLU + lane-dense store (Cout is a multiple of 128).
    o_ref[0] = jnp.maximum(y, 0.0).reshape(TH, W, Cout).astype(o_ref.dtype)


def _vmem_footprint(th, W, Wp, Cin, Cout, dmax, esz, osz):
    """Rough per-step VMEM model for a tile height `th` (bytes)."""
    band = 2 * (th + 2 * dmax) * Wp * Cin * esz          # double-buffered halo band
    wts = (28 * Cin * Cout + 4 * Cout * Cout) * esz      # single-buffered weights
    outb = 2 * th * W * Cout * osz                       # double-buffered output block
    live = th * W * (2 * Cin * esz + 3 * Cout * 4)       # tap slabs + f32 acc / y
    return band + wts + outb + live


def _pick_tile_h(H, W, Wp, Cin, Cout, dmax, esz, osz, budget):
    """Largest divisor of H whose VMEM footprint fits `budget`, preferring x8."""
    divs = [d for d in range(1, H + 1) if H % d == 0]
    fitting = [d for d in divs
               if _vmem_footprint(d, W, Wp, Cin, Cout, dmax, esz, osz) <= budget
               and d * W <= 4096]
    if fitting:
        pref = [d for d in fitting if d % 8 == 0 or d == H]
        return max(pref) if pref else max(fitting)
    return min(divs)   # nothing fits the model; smallest tile, let the compiler try


def aspp_pallas(x_nchw, w0, w1, w2, w3, wp, rates, *, tile_h=None,
                compute_dtype=jnp.bfloat16):
    """x_nchw: (N, Cin, H, W). Returns (N, Cout, H, W) like the PyTorch module."""
    N, Cin, H, W = x_nchw.shape
    Cout = w0.shape[1]
    rates = tuple(int(r) for r in rates)
    dmax = max(rates)
    Wp = W + 2 * dmax
    Hp = H + 2 * dmax

    # Lane-dense channel padding (multiples of 128). Zero-padded channels
    # contribute exactly zero everywhere, and the wrapper slices them off.
    def _rup(v, m):
        return ((v + m - 1) // m) * m
    Cin_p = _rup(Cin, 128)
    Cout_p = _rup(Cout, 128)

    esz = jnp.dtype(compute_dtype).itemsize
    osz = esz  # kernel emits output in compute_dtype; cast happens outside

    # Per-generation VMEM budget (64 MiB/core on v7x, 128 MiB on v5e/v6e).
    try:
        info = pltpu.get_tpu_info()
        vmem_phys = int(getattr(info, "vmem_capacity_bytes", 0)) or 64 * 1024 * 1024
    except Exception:  # pragma: no cover - conservative fallback
        vmem_phys = 64 * 1024 * 1024
    budget = int(0.8 * vmem_phys)

    if tile_h is None:
        tile_h = _pick_tile_h(H, W, Wp, Cin_p, Cout_p, dmax, esz, osz, budget)
    assert H % tile_h == 0, (H, tile_h)
    n_tiles = H // tile_h

    # Split the row tiles into (groups, tiles_per_group): groups is "parallel"
    # (lets v7x use both TensorCores even for N == 1), tiles_per_group is the
    # sequential "arbitrary" axis that carries the manual DMA prefetch.
    num_groups = 2 if (n_tiles >= 2 and n_tiles % 2 == 0) else 1
    tiles_per_group = n_tiles // num_groups
    band_h = tile_h + 2 * dmax

    # NCHW -> NHWC (glue), pad spatial dims by dmax and channels to Cin_p,
    # cast activations once (bf16 halves DMA bytes).
    x = jnp.transpose(x_nchw, (0, 2, 3, 1))
    xp = jnp.pad(x, ((0, 0), (dmax, dmax), (dmax, dmax), (0, Cin_p - Cin)))
    xp = xp.astype(compute_dtype)

    # Weights: pad to (Cin_p, Cout_p) and cast once; projection split into 4
    # per-branch slabs so projection fuses into branch accumulation (no concat).
    w0c = jnp.pad(w0, ((0, Cin_p - Cin), (0, Cout_p - Cout))).astype(compute_dtype)
    w1c = jnp.pad(w1, ((0, 0), (0, Cin_p - Cin), (0, Cout_p - Cout))).astype(compute_dtype)
    w2c = jnp.pad(w2, ((0, 0), (0, Cin_p - Cin), (0, Cout_p - Cout))).astype(compute_dtype)
    w3c = jnp.pad(w3, ((0, 0), (0, Cin_p - Cin), (0, Cout_p - Cout))).astype(compute_dtype)
    wp4 = wp.reshape(4, Cout, Cout)
    wpc = jnp.pad(wp4, ((0, 0), (0, Cout_p - Cout), (0, Cout_p - Cout))).astype(compute_dtype)

    kernel = functools.partial(_aspp_kernel, rates=rates, dmax=dmax,
                               tile_h=tile_h, tiles_per_group=tiles_per_group)

    est = _vmem_footprint(tile_h, W, Wp, Cin_p, Cout_p, dmax, esz, osz)
    vmem_limit = int(min(0.9 * vmem_phys, max(2 * est, 32 * 1024 * 1024)))

    flops = (2 * N * H * W * Cin_p * Cout_p * 28            # 1x1 + 3 dilated 3x3
             + 2 * N * H * W * (4 * Cout_p) * Cout_p)       # fused projection
    weight_bytes = (w0c.size + w1c.size + w2c.size + w3c.size + wpc.size) * esz
    bytes_accessed = (N * n_tiles * band_h * Wp * Cin_p * esz   # halo re-reads
                      + weight_bytes
                      + N * H * W * Cout_p * osz)

    out_map = lambda n, g, t: (n, g * tiles_per_group + t, 0, 0)

    out_nhwc = pl.pallas_call(
        kernel,
        out_shape=jax.ShapeDtypeStruct((N, H, W, Cout_p), compute_dtype),
        grid=(N, num_groups, tiles_per_group),
        in_specs=[
            # Raw HBM ref; the kernel DMAs halo row bands itself.
            pl.BlockSpec(memory_space=pl.ANY),
            # Weights: constant index maps -> single-buffered.
            pl.BlockSpec((Cin_p, Cout_p), lambda n, g, t: (0, 0),
                         pipeline_mode=pl.Buffered(1)),
            pl.BlockSpec((9, Cin_p, Cout_p), lambda n, g, t: (0, 0, 0),
                         pipeline_mode=pl.Buffered(1)),
            pl.BlockSpec((9, Cin_p, Cout_p), lambda n, g, t: (0, 0, 0),
                         pipeline_mode=pl.Buffered(1)),
            pl.BlockSpec((9, Cin_p, Cout_p), lambda n, g, t: (0, 0, 0),
                         pipeline_mode=pl.Buffered(1)),
            pl.BlockSpec((4, Cout_p, Cout_p), lambda n, g, t: (0, 0, 0),
                         pipeline_mode=pl.Buffered(1)),
        ],
        out_specs=pl.BlockSpec((1, tile_h, W, Cout_p), out_map),
        scratch_shapes=[
            pltpu.VMEM((2, band_h, Wp, Cin_p), compute_dtype),
            pltpu.SemaphoreType.DMA((2,)),
        ],
        compiler_params=pltpu.CompilerParams(
            dimension_semantics=("parallel", "parallel", "arbitrary"),
            vmem_limit_bytes=vmem_limit),
        cost_estimate=pl.CostEstimate(
            flops=flops, transcendentals=0, bytes_accessed=bytes_accessed),
    )(xp, w0c, w1c, w2c, w3c, wpc)

    # Slice off padded channels, NHWC -> NCHW (glue), cast back to input dtype.
    out = out_nhwc[..., :Cout]
    return jnp.transpose(out, (0, 3, 1, 2)).astype(x_nchw.dtype)


def aspp_reference(x_nchw, w0, w1, w2, w3, wp, rates):
    """Pure-JAX reference using lax.conv_general_dilated (NHWC / HWIO)."""
    Cin = x_nchw.shape[1]
    Cout = w0.shape[1]
    x = jnp.transpose(x_nchw, (0, 2, 3, 1))

    def conv(x, w_hwio, d):
        return jax.lax.conv_general_dilated(
            x, w_hwio, window_strides=(1, 1),
            padding=[(d * (w_hwio.shape[0] // 2),) * 2,
                     (d * (w_hwio.shape[1] // 2),) * 2],
            rhs_dilation=(d, d),
            dimension_numbers=("NHWC", "HWIO", "NHWC"))

    b0 = jax.nn.relu(conv(x, w0.reshape(1, 1, Cin, Cout), 1))
    b1 = jax.nn.relu(conv(x, w1.reshape(3, 3, Cin, Cout), rates[0]))
    b2 = jax.nn.relu(conv(x, w2.reshape(3, 3, Cin, Cout), rates[1]))
    b3 = jax.nn.relu(conv(x, w3.reshape(3, 3, Cin, Cout), rates[2]))
    cat = jnp.concatenate([b0, b1, b2, b3], axis=-1)
    y = jax.nn.relu(conv(cat, wp.reshape(1, 1, 4 * Cout, Cout), 1))
    return jnp.transpose(y, (0, 3, 1, 2))


if __name__ == "__main__":
    key = jax.random.PRNGKey(0)
    N, Cin, H, W = 2, 4, 16, 16
    Cout = 8
    rates = (1, 2, 3)

    k = jax.random.split(key, 6)
    x = jax.random.normal(k[0], (N, Cin, H, W), jnp.float32)
    # Deterministic synthetic parameters (PyTorch shapes transposed to
    # channels-last: (Cout,Cin,kh,kw) -> (kh*kw, Cin, Cout) / (Cin, Cout)).
    w0 = 0.1 * jax.random.normal(k[1], (Cin, Cout), jnp.float32)
    w1 = 0.1 * jax.random.normal(k[2], (9, Cin, Cout), jnp.float32)
    w2 = 0.1 * jax.random.normal(k[3], (9, Cin, Cout), jnp.float32)
    w3 = 0.1 * jax.random.normal(k[4], (9, Cin, Cout), jnp.float32)
    wp = 0.1 * jax.random.normal(k[5], (4 * Cout, Cout), jnp.float32)

    ref = aspp_reference(x, w0, w1, w2, w3, wp, rates)

    # Strict numerical check in f32; tile_h=4 -> 4 row tiles = 2 groups x 2
    # tiles, exercising the halo-band DMA double-buffer + prefetch path.
    out_f32 = aspp_pallas(x, w0, w1, w2, w3, wp, rates,
                          tile_h=4, compute_dtype=jnp.float32)
    out_f32 = jax.block_until_ready(out_f32)
    assert out_f32.shape == (N, Cout, H, W), out_f32.shape
    assert jnp.allclose(out_f32, ref, atol=2e-4, rtol=2e-4), "f32 mismatch"

    # Default bf16-MXU path with auto tile selection (f32 accumulation):
    # check relative error only.
    out_bf16 = aspp_pallas(x, w0, w1, w2, w3, wp, rates)
    out_bf16 = jax.block_until_ready(out_bf16)
    rel = float(jnp.linalg.norm(out_bf16.astype(jnp.float32) - ref)
                / jnp.linalg.norm(ref))
    assert out_bf16.shape == (N, Cout, H, W), out_bf16.shape
    assert rel < 3e-2, f"bf16 relative error too large: {rel}"

    print("KERNEL_OK")
</pallas_src>

<mosaic_0001>
module attributes {stable_mosaic.version = 11 : i64} {
  func.func @_aspp_kernel(%arg0: i32, %arg1: i32, %arg2: i32, %arg3: memref<2x22x22x128xf32, #tpu.memory_space<any>>, %arg4: memref<128x128xf32, #tpu.memory_space<vmem>>, %arg5: memref<9x128x128xf32, #tpu.memory_space<vmem>>, %arg6: memref<9x128x128xf32, #tpu.memory_space<vmem>>, %arg7: memref<9x128x128xf32, #tpu.memory_space<vmem>>, %arg8: memref<4x128x128xf32, #tpu.memory_space<vmem>>, %arg9: memref<1x4x16x128xf32, #tpu.memory_space<vmem>>, %arg10: memref<2x10x22x128xf32, #tpu.memory_space<vmem>>, %arg11: memref<2x!tpu.dma_semaphore, #tpu.memory_space<semaphore_mem>>) attributes {dimension_semantics = [#tpu.dimension_semantics<parallel>, #tpu.dimension_semantics<parallel>, #tpu.dimension_semantics<arbitrary>], iteration_bounds = array<i64: 2, 2, 2>, scalar_prefetch = 0 : i64, scratch_operands = 2 : i64, tpu.core_type = #tpu.core_type<tc>, window_params = [{}, {pipeline_mode = #tpu.pipeline_mode<synchronous>, transform_indices = @transform_1, window_bounds = array<i64: 128, 128>}, {pipeline_mode = #tpu.pipeline_mode<synchronous>, transform_indices = @transform_2, window_bounds = array<i64: 9, 128, 128>}, {pipeline_mode = #tpu.pipeline_mode<synchronous>, transform_indices = @transform_3, window_bounds = array<i64: 9, 128, 128>}, {pipeline_mode = #tpu.pipeline_mode<synchronous>, transform_indices = @transform_4, window_bounds = array<i64: 9, 128, 128>}, {pipeline_mode = #tpu.pipeline_mode<synchronous>, transform_indices = @transform_5, window_bounds = array<i64: 4, 128, 128>}, {transform_indices = @transform_6, window_bounds = array<i64: 1, 4, 16, 128>}]} {
    %c2_i32 = arith.constant 2 : i32
    %0 = arith.muli %arg1, %c2_i32 : i32
    %1 = arith.addi %0, %arg2 : i32
    %c2_i32_0 = arith.constant 2 : i32
    %c0_i32 = arith.constant 0 : i32
    %2 = arith.cmpi eq, %c2_i32_0, %c0_i32 : i32
    %c1_i32 = arith.constant 1 : i32
    %3 = arith.select %2, %c1_i32, %c2_i32_0 : i32
    %4 = arith.remsi %arg2, %3 : i32
    %c0_i32_1 = arith.constant 0 : i32
    %5 = arith.cmpi ne, %4, %c0_i32_1 : i32
    %c0_i32_2 = arith.constant 0 : i32
    %6 = arith.cmpi slt, %4, %c0_i32_2 : i32
    %c0_i32_3 = arith.constant 0 : i32
    %7 = arith.cmpi slt, %3, %c0_i32_3 : i32
    %8 = arith.xori %6, %7 : i1
    %9 = arith.andi %8, %5 : i1
    %10 = arith.addi %4, %3 : i32
    %11 = arith.select %9, %10, %4 : i32
    %c0_i32_4 = arith.constant 0 : i32
    %12 = arith.cmpi eq, %arg2, %c0_i32_4 : i32
    %13 = arith.extui %12 : i1 to i32
    %c0_i32_5 = arith.constant 0 : i32
    %14 = arith.cmpi ne, %13, %c0_i32_5 : i32
    scf.if %14 {
      %c4_i32_290 = arith.constant 4 : i32
      %263 = arith.muli %1, %c4_i32_290 : i32
      %264 = tpu.assume_multiple %263, 4 : i32
      %c0_i32_291 = arith.constant 0 : i32
      %c0_i32_292 = arith.constant 0 : i32
      %265 = tpu.memref_slice %arg3[%arg0, %264, %c0_i32_291, %c0_i32_292] : memref<2x22x22x128xf32, #tpu.memory_space<any>> -> memref<1x10x22x128xf32, #tpu.memory_space<any>>
      %266 = tpu.memref_squeeze %265 : memref<1x10x22x128xf32, #tpu.memory_space<any>> -> memref<10x22x128xf32, #tpu.memory_space<any>>
      %c0_i32_293 = arith.constant 0 : i32
      %c0_i32_294 = arith.constant 0 : i32
      %c0_i32_295 = arith.constant 0 : i32
      %267 = tpu.memref_slice %arg10[%11, %c0_i32_293, %c0_i32_294, %c0_i32_295] : memref<2x10x22x128xf32, #tpu.memory_space<vmem>> -> memref<1x10x22x128xf32, #tpu.memory_space<vmem>>
      %268 = tpu.memref_squeeze %267 : memref<1x10x22x128xf32, #tpu.memory_space<vmem>> -> memref<10x22x128xf32, #tpu.memory_space<vmem>>
      %269 = tpu.memref_slice %arg11[%11] : memref<2x!tpu.dma_semaphore, #tpu.memory_space<semaphore_mem>> -> memref<1x!tpu.dma_semaphore, #tpu.memory_space<semaphore_mem>>
      %270 = tpu.memref_squeeze %269 : memref<1x!tpu.dma_semaphore, #tpu.memory_space<semaphore_mem>> -> memref<!tpu.dma_semaphore, #tpu.memory_space<semaphore_mem>>
      tpu.enqueue_dma source(%266 : memref<10x22x128xf32, #tpu.memory_space<any>>) target(%268 : memref<10x22x128xf32, #tpu.memory_space<vmem>>) target_semaphore(%270 : memref<!tpu.dma_semaphore, #tpu.memory_space<semaphore_mem>>)
    } else {
    }
    %c4_i32 = arith.constant 4 : i32
    %15 = arith.muli %1, %c4_i32 : i32
    %16 = tpu.assume_multiple %15, 4 : i32
    %c0_i32_6 = arith.constant 0 : i32
    %c0_i32_7 = arith.constant 0 : i32
    %17 = tpu.memref_slice %arg3[%arg0, %16, %c0_i32_6, %c0_i32_7] : memref<2x22x22x128xf32, #tpu.memory_space<any>> -> memref<1x10x22x128xf32, #tpu.memory_space<any>>
    %18 = tpu.memref_squeeze %17 : memref<1x10x22x128xf32, #tpu.memory_space<any>> -> memref<10x22x128xf32, #tpu.memory_space<any>>
    %c0_i32_8 = arith.constant 0 : i32
    %c0_i32_9 = arith.constant 0 : i32
    %c0_i32_10 = arith.constant 0 : i32
    %19 = tpu.memref_slice %arg10[%11, %c0_i32_8, %c0_i32_9, %c0_i32_10] : memref<2x10x22x128xf32, #tpu.memory_space<vmem>> -> memref<1x10x22x128xf32, #tpu.memory_space<vmem>>
    %20 = tpu.memref_squeeze %19 : memref<1x10x22x128xf32, #tpu.memory_space<vmem>> -> memref<10x22x128xf32, #tpu.memory_space<vmem>>
    %21 = tpu.memref_slice %arg11[%11] : memref<2x!tpu.dma_semaphore, #tpu.memory_space<semaphore_mem>> -> memref<1x!tpu.dma_semaphore, #tpu.memory_space<semaphore_mem>>
    %22 = tpu.memref_squeeze %21 : memref<1x!tpu.dma_semaphore, #tpu.memory_space<semaphore_mem>> -> memref<!tpu.dma_semaphore, #tpu.memory_space<semaphore_mem>>
    tpu.wait_dma2 semaphore(%22 : memref<!tpu.dma_semaphore, #tpu.memory_space<semaphore_mem>>) src(%18 : memref<10x22x128xf32, #tpu.memory_space<any>>) dst(%20 : memref<10x22x128xf32, #tpu.memory_space<vmem>>)
    %c1_i32_11 = arith.constant 1 : i32
    %23 = arith.addi %arg2, %c1_i32_11 : i32
    %c2_i32_12 = arith.constant 2 : i32
    %24 = arith.cmpi slt, %23, %c2_i32_12 : i32
    %25 = arith.extui %24 : i1 to i32
    %c0_i32_13 = arith.constant 0 : i32
    %26 = arith.cmpi ne, %25, %c0_i32_13 : i32
    scf.if %26 {
      %c1_i32_290 = arith.constant 1 : i32
      %263 = arith.addi %1, %c1_i32_290 : i32
      %c1_i32_291 = arith.constant 1 : i32
      %264 = arith.addi %arg2, %c1_i32_291 : i32
      %c2_i32_292 = arith.constant 2 : i32
      %c0_i32_293 = arith.constant 0 : i32
      %265 = arith.cmpi eq, %c2_i32_292, %c0_i32_293 : i32
      %c1_i32_294 = arith.constant 1 : i32
      %266 = arith.select %265, %c1_i32_294, %c2_i32_292 : i32
      %267 = arith.remsi %264, %266 : i32
      %c0_i32_295 = arith.constant 0 : i32
      %268 = arith.cmpi ne, %267, %c0_i32_295 : i32
      %c0_i32_296 = arith.constant 0 : i32
      %269 = arith.cmpi slt, %267, %c0_i32_296 : i32
      %c0_i32_297 = arith.constant 0 : i32
      %270 = arith.cmpi slt, %266, %c0_i32_297 : i32
      %271 = arith.xori %269, %270 : i1
      %272 = arith.andi %271, %268 : i1
      %273 = arith.addi %267, %266 : i32
      %274 = arith.select %272, %273, %267 : i32
      %c4_i32_298 = arith.constant 4 : i32
      %275 = arith.muli %263, %c4_i32_298 : i32
      %276 = tpu.assume_multiple %275, 4 : i32
      %c0_i32_299 = arith.constant 0 : i32
      %c0_i32_300 = arith.constant 0 : i32
      %277 = tpu.memref_slice %arg3[%arg0, %276, %c0_i32_299, %c0_i32_300] : memref<2x22x22x128xf32, #tpu.memory_space<any>> -> memref<1x10x22x128xf32, #tpu.memory_space<any>>
      %278 = tpu.memref_squeeze %277 : memref<1x10x22x128xf32, #tpu.memory_space<any>> -> memref<10x22x128xf32, #tpu.memory_space<any>>
      %c0_i32_301 = arith.constant 0 : i32
      %c0_i32_302 = arith.constant 0 : i32
      %c0_i32_303 = arith.constant 0 : i32
      %279 = tpu.memref_slice %arg10[%274, %c0_i32_301, %c0_i32_302, %c0_i32_303] : memref<2x10x22x128xf32, #tpu.memory_space<vmem>> -> memref<1x10x22x128xf32, #tpu.memory_space<vmem>>
      %280 = tpu.memref_squeeze %279 : memref<1x10x22x128xf32, #tpu.memory_space<vmem>> -> memref<10x22x128xf32, #tpu.memory_space<vmem>>
      %281 = tpu.memref_slice %arg11[%274] : memref<2x!tpu.dma_semaphore, #tpu.memory_space<semaphore_mem>> -> memref<1x!tpu.dma_semaphore, #tpu.memory_space<semaphore_mem>>
      %282 = tpu.memref_squeeze %281 : memref<1x!tpu.dma_semaphore, #tpu.memory_space<semaphore_mem>> -> memref<!tpu.dma_semaphore, #tpu.memory_space<semaphore_mem>>
      tpu.enqueue_dma source(%278 : memref<10x22x128xf32, #tpu.memory_space<any>>) target(%280 : memref<10x22x128xf32, #tpu.memory_space<vmem>>) target_semaphore(%282 : memref<!tpu.dma_semaphore, #tpu.memory_space<semaphore_mem>>)
    } else {
    }
    %c0_i32_14 = arith.constant 0 : i32
    %c0_i32_15 = arith.constant 0 : i32
    %c0_i32_16 = arith.constant 0 : i32
    %27 = tpu.memref_slice %arg10[%11, %c0_i32_14, %c0_i32_15, %c0_i32_16] : memref<2x10x22x128xf32, #tpu.memory_space<vmem>> -> memref<1x10x22x128xf32, #tpu.memory_space<vmem>>
    %28 = tpu.memref_squeeze %27 : memref<1x10x22x128xf32, #tpu.memory_space<vmem>> -> memref<10x22x128xf32, #tpu.memory_space<vmem>>
    %c3 = arith.constant 3 : index
    %c3_17 = arith.constant 3 : index
    %c0 = arith.constant 0 : index
    %29 = vector.load %28[%c3, %c3_17, %c0] : memref<10x22x128xf32, #tpu.memory_space<vmem>>, vector<4x16x128xf32>
    %30 = vector.shape_cast %29 : vector<4x16x128xf32> to vector<64x128xf32>
    %c0_18 = arith.constant 0 : index
    %c0_19 = arith.constant 0 : index
    %31 = vector.load %arg4[%c0_18, %c0_19] : memref<128x128xf32, #tpu.memory_space<vmem>>, vector<128x128xf32>
    %cst = arith.constant dense<0.000000e+00> : vector<64x128xf32>
    %32 = tpu.matmul %30, %31, %cst {dimension_numbers = #tpu.dot_dimension_numbers<[1], [0], [0], [1], [0, 0, 1, 1], [], []>} : vector<64x128xf32>, vector<128x128xf32>, vector<64x128xf32> -> vector<64x128xf32>
    %cst_20 = arith.constant 0.000000e+00 : f32
    %33 = vector.broadcast %cst_20 : f32 to vector<64x128xf32>
    %34 = arith.maximumf %32, %33 : vector<64x128xf32>
    %c0_21 = arith.constant 0 : index
    %c0_22 = arith.constant 0 : index
    %c0_23 = arith.constant 0 : index
    %35 = vector.load %arg8[%c0_21, %c0_22, %c0_23] : memref<4x128x128xf32, #tpu.memory_space<vmem>>, vector<1x128x128xf32>
    %36 = vector.shape_cast %35 : vector<1x128x128xf32> to vector<128x128xf32>
    %cst_24 = arith.constant dense<0.000000e+00> : vector<64x128xf32>
    %37 = tpu.matmul %34, %36, %cst_24 {dimension_numbers = #tpu.dot_dimension_numbers<[1], [0], [0], [1], [0, 0, 1, 1], [], []>} : vector<64x128xf32>, vector<128x128xf32>, vector<64x128xf32> -> vector<64x128xf32>
    %c0_i32_25 = arith.constant 0 : i32
    %c0_i32_26 = arith.constant 0 : i32
    %c0_i32_27 = arith.constant 0 : i32
    %38 = tpu.memref_slice %arg10[%11, %c0_i32_25, %c0_i32_26, %c0_i32_27] : memref<2x10x22x128xf32, #tpu.memory_space<vmem>> -> memref<1x10x22x128xf32, #tpu.memory_space<vmem>>
    %39 = tpu.memref_squeeze %38 : memref<1x10x22x128xf32, #tpu.memory_space<vmem>> -> memref<10x22x128xf32, #tpu.memory_space<vmem>>
    %c2 = arith.constant 2 : index
    %c2_28 = arith.constant 2 : index
    %c0_29 = arith.constant 0 : index
    %40 = vector.load %39[%c2, %c2_28, %c0_29] : memref<10x22x128xf32, #tpu.memory_space<vmem>>, vector<4x16x128xf32>
    %41 = vector.shape_cast %40 : vector<4x16x128xf32> to vector<64x128xf32>
    %c0_30 = arith.constant 0 : index
    %c0_31 = arith.constant 0 : index
    %c0_32 = arith.constant 0 : index
    %42 = vector.load %arg5[%c0_30, %c0_31, %c0_32] : memref<9x128x128xf32, #tpu.memory_space<vmem>>, vector<1x128x128xf32>
    %43 = vector.shape_cast %42 : vector<1x128x128xf32> to vector<128x128xf32>
    %cst_33 = arith.constant dense<0.000000e+00> : vector<64x128xf32>
    %44 = tpu.matmul %41, %43, %cst_33 {dimension_numbers = #tpu.dot_dimension_numbers<[1], [0], [0], [1], [0, 0, 1, 1], [], []>} : vector<64x128xf32>, vector<128x128xf32>, vector<64x128xf32> -> vector<64x128xf32>
    %c0_i32_34 = arith.constant 0 : i32
    %c0_i32_35 = arith.constant 0 : i32
    %c0_i32_36 = arith.constant 0 : i32
    %45 = tpu.memref_slice %arg10[%11, %c0_i32_34, %c0_i32_35, %c0_i32_36] : memref<2x10x22x128xf32, #tpu.memory_space<vmem>> -> memref<1x10x22x128xf32, #tpu.memory_space<vmem>>
    %46 = tpu.memref_squeeze %45 : memref<1x10x22x128xf32, #tpu.memory_space<vmem>> -> memref<10x22x128xf32, #tpu.memory_space<vmem>>
    %c2_37 = arith.constant 2 : index
    %c3_38 = arith.constant 3 : index
    %c0_39 = arith.constant 0 : index
    %47 = vector.load %46[%c2_37, %c3_38, %c0_39] : memref<10x22x128xf32, #tpu.memory_space<vmem>>, vector<4x16x128xf32>
    %48 = vector.shape_cast %47 : vector<4x16x128xf32> to vector<64x128xf32>
    %c1 = arith.constant 1 : index
    %c0_40 = arith.constant 0 : index
    %c0_41 = arith.constant 0 : index
    %49 = vector.load %arg5[%c1, %c0_40, %c0_41] : memref<9x128x128xf32, #tpu.memory_space<vmem>>, vector<1x128x128xf32>
    %50 = vector.shape_cast %49 : vector<1x128x128xf32> to vector<128x128xf32>
    %cst_42 = arith.constant dense<0.000000e+00> : vector<64x128xf32>
    %51 = tpu.matmul %48, %50, %cst_42 {dimension_numbers = #tpu.dot_dimension_numbers<[1], [0], [0], [1], [0, 0, 1, 1], [], []>} : vector<64x128xf32>, vector<128x128xf32>, vector<64x128xf32> -> vector<64x128xf32>
    %52 = arith.addf %44, %51 : vector<64x128xf32>
    %c0_i32_43 = arith.constant 0 : i32
    %c0_i32_44 = arith.constant 0 : i32
    %c0_i32_45 = arith.constant 0 : i32
    %53 = tpu.memref_slice %arg10[%11, %c0_i32_43, %c0_i32_44, %c0_i32_45] : memref<2x10x22x128xf32, #tpu.memory_space<vmem>> -> memref<1x10x22x128xf32, #tpu.memory_space<vmem>>
    %54 = tpu.memref_squeeze %53 : memref<1x10x22x128xf32, #tpu.memory_space<vmem>> -> memref<10x22x128xf32, #tpu.memory_space<vmem>>
    %c2_46 = arith.constant 2 : index
    %c4 = arith.constant 4 : index
    %c0_47 = arith.constant 0 : index
    %55 = vector.load %54[%c2_46, %c4, %c0_47] : memref<10x22x128xf32, #tpu.memory_space<vmem>>, vector<4x16x128xf32>
    %56 = vector.shape_cast %55 : vector<4x16x128xf32> to vector<64x128xf32>
    %c2_48 = arith.constant 2 : index
    %c0_49 = arith.constant 0 : index
    %c0_50 = arith.constant 0 : index
    %57 = vector.load %arg5[%c2_48, %c0_49, %c0_50] : memref<9x128x128xf32, #tpu.memory_space<vmem>>, vector<1x128x128xf32>
    %58 = vector.shape_cast %57 : vector<1x128x128xf32> to vector<128x128xf32>
    %cst_51 = arith.constant dense<0.000000e+00> : vector<64x128xf32>
    %59 = tpu.matmul %56, %58, %cst_51 {dimension_numbers = #tpu.dot_dimension_numbers<[1], [0], [0], [1], [0, 0, 1, 1], [], []>} : vector<64x128xf32>, vector<128x128xf32>, vector<64x128xf32> -> vector<64x128xf32>
    %60 = arith.addf %52, %59 : vector<64x128xf32>
    %c0_i32_52 = arith.constant 0 : i32
    %c0_i32_53 = arith.constant 0 : i32
    %c0_i32_54 = arith.constant 0 : i32
    %61 = tpu.memref_slice %arg10[%11, %c0_i32_52, %c0_i32_53, %c0_i32_54] : memref<2x10x22x128xf32, #tpu.memory_space<vmem>> -> memref<1x10x22x128xf32, #tpu.memory_space<vmem>>
    %62 = tpu.memref_squeeze %61 : memref<1x10x22x128xf32, #tpu.memory_space<vmem>> -> memref<10x22x128xf32, #tpu.memory_space<vmem>>
    %c3_55 = arith.constant 3 : index
    %c2_56 = arith.constant 2 : index
    %c0_57 = arith.constant 0 : index
    %63 = vector.load %62[%c3_55, %c2_56, %c0_57] : memref<10x22x128xf32, #tpu.memory_space<vmem>>, vector<4x16x128xf32>
    %64 = vector.shape_cast %63 : vector<4x16x128xf32> to vector<64x128xf32>
    %c3_58 = arith.constant 3 : index
    %c0_59 = arith.constant 0 : index
    %c0_60 = arith.constant 0 : index
    %65 = vector.load %arg5[%c3_58, %c0_59, %c0_60] : memref<9x128x128xf32, #tpu.memory_space<vmem>>, vector<1x128x128xf32>
    %66 = vector.shape_cast %65 : vector<1x128x128xf32> to vector<128x128xf32>
    %cst_61 = arith.constant dense<0.000000e+00> : vector<64x128xf32>
    %67 = tpu.matmul %64, %66, %cst_61 {dimension_numbers = #tpu.dot_dimension_numbers<[1], [0], [0], [1], [0, 0, 1, 1], [], []>} : vector<64x128xf32>, vector<128x128xf32>, vector<64x128xf32> -> vector<64x128xf32>
    %68 = arith.addf %60, %67 : vector<64x128xf32>
    %c4_62 = arith.constant 4 : index
    %c0_63 = arith.constant 0 : index
    %c0_64 = arith.constant 0 : index
    %69 = vector.load %arg5[%c4_62, %c0_63, %c0_64] : memref<9x128x128xf32, #tpu.memory_space<vmem>>, vector<1x128x128xf32>
    %70 = vector.shape_cast %69 : vector<1x128x128xf32> to vector<128x128xf32>
    %cst_65 = arith.constant dense<0.000000e+00> : vector<64x128xf32>
    %71 = tpu.matmul %30, %70, %cst_65 {dimension_numbers = #tpu.dot_dimension_numbers<[1], [0], [0], [1], [0, 0, 1, 1], [], []>} : vector<64x128xf32>, vector<128x128xf32>, vector<64x128xf32> -> vector<64x128xf32>
    %72 = arith.addf %68, %71 : vector<64x128xf32>
    %c0_i32_66 = arith.constant 0 : i32
    %c0_i32_67 = arith.constant 0 : i32
    %c0_i32_68 = arith.constant 0 : i32
    %73 = tpu.memref_slice %arg10[%11, %c0_i32_66, %c0_i32_67, %c0_i32_68] : memref<2x10x22x128xf32, #tpu.memory_space<vmem>> -> memref<1x10x22x128xf32, #tpu.memory_space<vmem>>
    %74 = tpu.memref_squeeze %73 : memref<1x10x22x128xf32, #tpu.memory_space<vmem>> -> memref<10x22x128xf32, #tpu.memory_space<vmem>>
    %c3_69 = arith.constant 3 : index
    %c4_70 = arith.constant 4 : index
    %c0_71 = arith.constant 0 : index
    %75 = vector.load %74[%c3_69, %c4_70, %c0_71] : memref<10x22x128xf32, #tpu.memory_space<vmem>>, vector<4x16x128xf32>
    %76 = vector.shape_cast %75 : vector<4x16x128xf32> to vector<64x128xf32>
    %c5 = arith.constant 5 : index
    %c0_72 = arith.constant 0 : index
    %c0_73 = arith.constant 0 : index
    %77 = vector.load %arg5[%c5, %c0_72, %c0_73] : memref<9x128x128xf32, #tpu.memory_space<vmem>>, vector<1x128x128xf32>
    %78 = vector.shape_cast %77 : vector<1x128x128xf32> to vector<128x128xf32>
    %cst_74 = arith.constant dense<0.000000e+00> : vector<64x128xf32>
    %79 = tpu.matmul %76, %78, %cst_74 {dimension_numbers = #tpu.dot_dimension_numbers<[1], [0], [0], [1], [0, 0, 1, 1], [], []>} : vector<64x128xf32>, vector<128x128xf32>, vector<64x128xf32> -> vector<64x128xf32>
    %80 = arith.addf %72, %79 : vector<64x128xf32>
    %c0_i32_75 = arith.constant 0 : i32
    %c0_i32_76 = arith.constant 0 : i32
    %c0_i32_77 = arith.constant 0 : i32
    %81 = tpu.memref_slice %arg10[%11, %c0_i32_75, %c0_i32_76, %c0_i32_77] : memref<2x10x22x128xf32, #tpu.memory_space<vmem>> -> memref<1x10x22x128xf32, #tpu.memory_space<vmem>>
    %82 = tpu.memref_squeeze %81 : memref<1x10x22x128xf32, #tpu.memory_space<vmem>> -> memref<10x22x128xf32, #tpu.memory_space<vmem>>
    %c4_78 = arith.constant 4 : index
    %c2_79 = arith.constant 2 : index
    %c0_80 = arith.constant 0 : index
    %83 = vector.load %82[%c4_78, %c2_79, %c0_80] : memref<10x22x128xf32, #tpu.memory_space<vmem>>, vector<4x16x128xf32>
    %84 = vector.shape_cast %83 : vector<4x16x128xf32> to vector<64x128xf32>
    %c6 = arith.constant 6 : index
    %c0_81 = arith.constant 0 : index
    %c0_82 = arith.constant 0 : index
    %85 = vector.load %arg5[%c6, %c0_81, %c0_82] : memref<9x128x128xf32, #tpu.memory_space<vmem>>, vector<1x128x128xf32>
    %86 = vector.shape_cast %85 : vector<1x128x128xf32> to vector<128x128xf32>
    %cst_83 = arith.constant dense<0.000000e+00> : vector<64x128xf32>
    %87 = tpu.matmul %84, %86, %cst_83 {dimension_numbers = #tpu.dot_dimension_numbers<[1], [0], [0], [1], [0, 0, 1, 1], [], []>} : vector<64x128xf32>, vector<128x128xf32>, vector<64x128xf32> -> vector<64x128xf32>
    %88 = arith.addf %80, %87 : vector<64x128xf32>
    %c0_i32_84 = arith.constant 0 : i32
    %c0_i32_85 = arith.constant 0 : i32
    %c0_i32_86 = arith.constant 0 : i32
    %89 = tpu.memref_slice %arg10[%11, %c0_i32_84, %c0_i32_85, %c0_i32_86] : memref<2x10x22x128xf32, #tpu.memory_space<vmem>> -> memref<1x10x22x128xf32, #tpu.memory_space<vmem>>
    %90 = tpu.memref_squeeze %89 : memref<1x10x22x128xf32, #tpu.memory_space<vmem>> -> memref<10x22x128xf32, #tpu.memory_space<vmem>>
    %c4_87 = arith.constant 4 : index
    %c3_88 = arith.constant 3 : index
    %c0_89 = arith.constant 0 : index
    %91 = vector.load %90[%c4_87, %c3_88, %c0_89] : memref<10x22x128xf32, #tpu.memory_space<vmem>>, vector<4x16x128xf32>
    %92 = vector.shape_cast %91 : vector<4x16x128xf32> to vector<64x128xf32>
    %c7 = arith.constant 7 : index
    %c0_90 = arith.constant 0 : index
    %c0_91 = arith.constant 0 : index
    %93 = vector.load %arg5[%c7, %c0_90, %c0_91] : memref<9x128x128xf32, #tpu.memory_space<vmem>>, vector<1x128x128xf32>
    %94 = vector.shape_cast %93 : vector<1x128x128xf32> to vector<128x128xf32>
    %cst_92 = arith.constant dense<0.000000e+00> : vector<64x128xf32>
    %95 = tpu.matmul %92, %94, %cst_92 {dimension_numbers = #tpu.dot_dimension_numbers<[1], [0], [0], [1], [0, 0, 1, 1], [], []>} : vector<64x128xf32>, vector<128x128xf32>, vector<64x128xf32> -> vector<64x128xf32>
    %96 = arith.addf %88, %95 : vector<64x128xf32>
    %c0_i32_93 = arith.constant 0 : i32
    %c0_i32_94 = arith.constant 0 : i32
    %c0_i32_95 = arith.constant 0 : i32
    %97 = tpu.memref_slice %arg10[%11, %c0_i32_93, %c0_i32_94, %c0_i32_95] : memref<2x10x22x128xf32, #tpu.memory_space<vmem>> -> memref<1x10x22x128xf32, #tpu.memory_space<vmem>>
    %98 = tpu.memref_squeeze %97 : memref<1x10x22x128xf32, #tpu.memory_space<vmem>> -> memref<10x22x128xf32, #tpu.memory_space<vmem>>
    %c4_96 = arith.constant 4 : index
    %c4_97 = arith.constant 4 : index
    %c0_98 = arith.constant 0 : index
    %99 = vector.load %98[%c4_96, %c4_97, %c0_98] : memref<10x22x128xf32, #tpu.memory_space<vmem>>, vector<4x16x128xf32>
    %100 = vector.shape_cast %99 : vector<4x16x128xf32> to vector<64x128xf32>
    %c8 = arith.constant 8 : index
    %c0_99 = arith.constant 0 : index
    %c0_100 = arith.constant 0 : index
    %101 = vector.load %arg5[%c8, %c0_99, %c0_100] : memref<9x128x128xf32, #tpu.memory_space<vmem>>, vector<1x128x128xf32>
    %102 = vector.shape_cast %101 : vector<1x128x128xf32> to vector<128x128xf32>
    %cst_101 = arith.constant dense<0.000000e+00> : vector<64x128xf32>
    %103 = tpu.matmul %100, %102, %cst_101 {dimension_numbers = #tpu.dot_dimension_numbers<[1], [0], [0], [1], [0, 0, 1, 1], [], []>} : vector<64x128xf32>, vector<128x128xf32>, vector<64x128xf32> -> vector<64x128xf32>
    %104 = arith.addf %96, %103 : vector<64x128xf32>
    %cst_102 = arith.constant 0.000000e+00 : f32
    %105 = vector.broadcast %cst_102 : f32 to vector<64x128xf32>
    %106 = arith.maximumf %104, %105 : vector<64x128xf32>
    %c1_103 = arith.constant 1 : index
    %c0_104 = arith.constant 0 : index
    %c0_105 = arith.constant 0 : index
    %107 = vector.load %arg8[%c1_103, %c0_104, %c0_105] : memref<4x128x128xf32, #tpu.memory_space<vmem>>, vector<1x128x128xf32>
    %108 = vector.shape_cast %107 : vector<1x128x128xf32> to vector<128x128xf32>
    %cst_106 = arith.constant dense<0.000000e+00> : vector<64x128xf32>
    %109 = tpu.matmul %106, %108, %cst_106 {dimension_numbers = #tpu.dot_dimension_numbers<[1], [0], [0], [1], [0, 0, 1, 1], [], []>} : vector<64x128xf32>, vector<128x128xf32>, vector<64x128xf32> -> vector<64x128xf32>
    %110 = arith.addf %37, %109 : vector<64x128xf32>
    %c0_i32_107 = arith.constant 0 : i32
    %c0_i32_108 = arith.constant 0 : i32
    %c0_i32_109 = arith.constant 0 : i32
    %111 = tpu.memref_slice %arg10[%11, %c0_i32_107, %c0_i32_108, %c0_i32_109] : memref<2x10x22x128xf32, #tpu.memory_space<vmem>> -> memref<1x10x22x128xf32, #tpu.memory_space<vmem>>
    %112 = tpu.memref_squeeze %111 : memref<1x10x22x128xf32, #tpu.memory_space<vmem>> -> memref<10x22x128xf32, #tpu.memory_space<vmem>>
    %c1_110 = arith.constant 1 : index
    %c1_111 = arith.constant 1 : index
    %c0_112 = arith.constant 0 : index
    %113 = vector.load %112[%c1_110, %c1_111, %c0_112] : memref<10x22x128xf32, #tpu.memory_space<vmem>>, vector<4x16x128xf32>
    %114 = vector.shape_cast %113 : vector<4x16x128xf32> to vector<64x128xf32>
    %c0_113 = arith.constant 0 : index
    %c0_114 = arith.constant 0 : index
    %c0_115 = arith.constant 0 : index
    %115 = vector.load %arg6[%c0_113, %c0_114, %c0_115] : memref<9x128x128xf32, #tpu.memory_space<vmem>>, vector<1x128x128xf32>
    %116 = vector.shape_cast %115 : vector<1x128x128xf32> to vector<128x128xf32>
    %cst_116 = arith.constant dense<0.000000e+00> : vector<64x128xf32>
    %117 = tpu.matmul %114, %116, %cst_116 {dimension_numbers = #tpu.dot_dimension_numbers<[1], [0], [0], [1], [0, 0, 1, 1], [], []>} : vector<64x128xf32>, vector<128x128xf32>, vector<64x128xf32> -> vector<64x128xf32>
    %c0_i32_117 = arith.constant 0 : i32
    %c0_i32_118 = arith.constant 0 : i32
    %c0_i32_119 = arith.constant 0 : i32
    %118 = tpu.memref_slice %arg10[%11, %c0_i32_117, %c0_i32_118, %c0_i32_119] : memref<2x10x22x128xf32, #tpu.memory_space<vmem>> -> memref<1x10x22x128xf32, #tpu.memory_space<vmem>>
    %119 = tpu.memref_squeeze %118 : memref<1x10x22x128xf32, #tpu.memory_space<vmem>> -> memref<10x22x128xf32, #tpu.memory_space<vmem>>
    %c1_120 = arith.constant 1 : index
    %c3_121 = arith.constant 3 : index
    %c0_122 = arith.constant 0 : index
    %120 = vector.load %119[%c1_120, %c3_121, %c0_122] : memref<10x22x128xf32, #tpu.memory_space<vmem>>, vector<4x16x128xf32>
    %121 = vector.shape_cast %120 : vector<4x16x128xf32> to vector<64x128xf32>
    %c1_123 = arith.constant 1 : index
    %c0_124 = arith.constant 0 : index
    %c0_125 = arith.constant 0 : index
    %122 = vector.load %arg6[%c1_123, %c0_124, %c0_125] : memref<9x128x128xf32, #tpu.memory_space<vmem>>, vector<1x128x128xf32>
    %123 = vector.shape_cast %122 : vector<1x128x128xf32> to vector<128x128xf32>
    %cst_126 = arith.constant dense<0.000000e+00> : vector<64x128xf32>
    %124 = tpu.matmul %121, %123, %cst_126 {dimension_numbers = #tpu.dot_dimension_numbers<[1], [0], [0], [1], [0, 0, 1, 1], [], []>} : vector<64x128xf32>, vector<128x128xf32>, vector<64x128xf32> -> vector<64x128xf32>
    %125 = arith.addf %117, %124 : vector<64x128xf32>
    %c0_i32_127 = arith.constant 0 : i32
    %c0_i32_128 = arith.constant 0 : i32
    %c0_i32_129 = arith.constant 0 : i32
    %126 = tpu.memref_slice %arg10[%11, %c0_i32_127, %c0_i32_128, %c0_i32_129] : memref<2x10x22x128xf32, #tpu.memory_space<vmem>> -> memref<1x10x22x128xf32, #tpu.memory_space<vmem>>
    %127 = tpu.memref_squeeze %126 : memref<1x10x22x128xf32, #tpu.memory_space<vmem>> -> memref<10x22x128xf32, #tpu.memory_space<vmem>>
    %c1_130 = arith.constant 1 : index
    %c5_131 = arith.constant 5 : index
    %c0_132 = arith.constant 0 : index
    %128 = vector.load %127[%c1_130, %c5_131, %c0_132] : memref<10x22x128xf32, #tpu.memory_space<vmem>>, vector<4x16x128xf32>
    %129 = vector.shape_cast %128 : vector<4x16x128xf32> to vector<64x128xf32>
    %c2_133 = arith.constant 2 : index
    %c0_134 = arith.constant 0 : index
    %c0_135 = arith.constant 0 : index
    %130 = vector.load %arg6[%c2_133, %c0_134, %c0_135] : memref<9x128x128xf32, #tpu.memory_space<vmem>>, vector<1x128x128xf32>
    %131 = vector.shape_cast %130 : vector<1x128x128xf32> to vector<128x128xf32>
    %cst_136 = arith.constant dense<0.000000e+00> : vector<64x128xf32>
    %132 = tpu.matmul %129, %131, %cst_136 {dimension_numbers = #tpu.dot_dimension_numbers<[1], [0], [0], [1], [0, 0, 1, 1], [], []>} : vector<64x128xf32>, vector<128x128xf32>, vector<64x128xf32> -> vector<64x128xf32>
    %133 = arith.addf %125, %132 : vector<64x128xf32>
    %c0_i32_137 = arith.constant 0 : i32
    %c0_i32_138 = arith.constant 0 : i32
    %c0_i32_139 = arith.constant 0 : i32
    %134 = tpu.memref_slice %arg10[%11, %c0_i32_137, %c0_i32_138, %c0_i32_139] : memref<2x10x22x128xf32, #tpu.memory_space<vmem>> -> memref<1x10x22x128xf32, #tpu.memory_space<vmem>>
    %135 = tpu.memref_squeeze %134 : memref<1x10x22x128xf32, #tpu.memory_space<vmem>> -> memref<10x22x128xf32, #tpu.memory_space<vmem>>
    %c3_140 = arith.constant 3 : index
    %c1_141 = arith.constant 1 : index
    %c0_142 = arith.constant 0 : index
    %136 = vector.load %135[%c3_140, %c1_141, %c0_142] : memref<10x22x128xf32, #tpu.memory_space<vmem>>, vector<4x16x128xf32>
    %137 = vector.shape_cast %136 : vector<4x16x128xf32> to vector<64x128xf32>
    %c3_143 = arith.constant 3 : index
    %c0_144 = arith.constant 0 : index
    %c0_145 = arith.constant 0 : index
    %138 = vector.load %arg6[%c3_143, %c0_144, %c0_145] : memref<9x128x128xf32, #tpu.memory_space<vmem>>, vector<1x128x128xf32>
    %139 = vector.shape_cast %138 : vector<1x128x128xf32> to vector<128x128xf32>
    %cst_146 = arith.constant dense<0.000000e+00> : vector<64x128xf32>
    %140 = tpu.matmul %137, %139, %cst_146 {dimension_numbers = #tpu.dot_dimension_numbers<[1], [0], [0], [1], [0, 0, 1, 1], [], []>} : vector<64x128xf32>, vector<128x128xf32>, vector<64x128xf32> -> vector<64x128xf32>
    %141 = arith.addf %133, %140 : vector<64x128xf32>
    %c4_147 = arith.constant 4 : index
    %c0_148 = arith.constant 0 : index
    %c0_149 = arith.constant 0 : index
    %142 = vector.load %arg6[%c4_147, %c0_148, %c0_149] : memref<9x128x128xf32, #tpu.memory_space<vmem>>, vector<1x128x128xf32>
    %143 = vector.shape_cast %142 : vector<1x128x128xf32> to vector<128x128xf32>
    %cst_150 = arith.constant dense<0.000000e+00> : vector<64x128xf32>
    %144 = tpu.matmul %30, %143, %cst_150 {dimension_numbers = #tpu.dot_dimension_numbers<[1], [0], [0], [1], [0, 0, 1, 1], [], []>} : vector<64x128xf32>, vector<128x128xf32>, vector<64x128xf32> -> vector<64x128xf32>
    %145 = arith.addf %141, %144 : vector<64x128xf32>
    %c0_i32_151 = arith.constant 0 : i32
    %c0_i32_152 = arith.constant 0 : i32
    %c0_i32_153 = arith.constant 0 : i32
    %146 = tpu.memref_slice %arg10[%11, %c0_i32_151, %c0_i32_152, %c0_i32_153] : memref<2x10x22x128xf32, #tpu.memory_space<vmem>> -> memref<1x10x22x128xf32, #tpu.memory_space<vmem>>
    %147 = tpu.memref_squeeze %146 : memref<1x10x22x128xf32, #tpu.memory_space<vmem>> -> memref<10x22x128xf32, #tpu.memory_space<vmem>>
    %c3_154 = arith.constant 3 : index
    %c5_155 = arith.constant 5 : index
    %c0_156 = arith.constant 0 : index
    %148 = vector.load %147[%c3_154, %c5_155, %c0_156] : memref<10x22x128xf32, #tpu.memory_space<vmem>>, vector<4x16x128xf32>
    %149 = vector.shape_cast %148 : vector<4x16x128xf32> to vector<64x128xf32>
    %c5_157 = arith.constant 5 : index
    %c0_158 = arith.constant 0 : index
    %c0_159 = arith.constant 0 : index
    %150 = vector.load %arg6[%c5_157, %c0_158, %c0_159] : memref<9x128x128xf32, #tpu.memory_space<vmem>>, vector<1x128x128xf32>
    %151 = vector.shape_cast %150 : vector<1x128x128xf32> to vector<128x128xf32>
    %cst_160 = arith.constant dense<0.000000e+00> : vector<64x128xf32>
    %152 = tpu.matmul %149, %151, %cst_160 {dimension_numbers = #tpu.dot_dimension_numbers<[1], [0], [0], [1], [0, 0, 1, 1], [], []>} : vector<64x128xf32>, vector<128x128xf32>, vector<64x128xf32> -> vector<64x128xf32>
    %153 = arith.addf %145, %152 : vector<64x128xf32>
    %c0_i32_161 = arith.constant 0 : i32
    %c0_i32_162 = arith.constant 0 : i32
    %c0_i32_163 = arith.constant 0 : i32
    %154 = tpu.memref_slice %arg10[%11, %c0_i32_161, %c0_i32_162, %c0_i32_163] : memref<2x10x22x128xf32, #tpu.memory_space<vmem>> -> memref<1x10x22x128xf32, #tpu.memory_space<vmem>>
    %155 = tpu.memref_squeeze %154 : memref<1x10x22x128xf32, #tpu.memory_space<vmem>> -> memref<10x22x128xf32, #tpu.memory_space<vmem>>
    %c5_164 = arith.constant 5 : index
    %c1_165 = arith.constant 1 : index
    %c0_166 = arith.constant 0 : index
    %156 = vector.load %155[%c5_164, %c1_165, %c0_166] : memref<10x22x128xf32, #tpu.memory_space<vmem>>, vector<4x16x128xf32>
    %157 = vector.shape_cast %156 : vector<4x16x128xf32> to vector<64x128xf32>
    %c6_167 = arith.constant 6 : index
    %c0_168 = arith.constant 0 : index
    %c0_169 = arith.constant 0 : index
    %158 = vector.load %arg6[%c6_167, %c0_168, %c0_169] : memref<9x128x128xf32, #tpu.memory_space<vmem>>, vector<1x128x128xf32>
    %159 = vector.shape_cast %158 : vector<1x128x128xf32> to vector<128x128xf32>
    %cst_170 = arith.constant dense<0.000000e+00> : vector<64x128xf32>
    %160 = tpu.matmul %157, %159, %cst_170 {dimension_numbers = #tpu.dot_dimension_numbers<[1], [0], [0], [1], [0, 0, 1, 1], [], []>} : vector<64x128xf32>, vector<128x128xf32>, vector<64x128xf32> -> vector<64x128xf32>
    %161 = arith.addf %153, %160 : vector<64x128xf32>
    %c0_i32_171 = arith.constant 0 : i32
    %c0_i32_172 = arith.constant 0 : i32
    %c0_i32_173 = arith.constant 0 : i32
    %162 = tpu.memref_slice %arg10[%11, %c0_i32_171, %c0_i32_172, %c0_i32_173] : memref<2x10x22x128xf32, #tpu.memory_space<vmem>> -> memref<1x10x22x128xf32, #tpu.memory_space<vmem>>
    %163 = tpu.memref_squeeze %162 : memref<1x10x22x128xf32, #tpu.memory_space<vmem>> -> memref<10x22x128xf32, #tpu.memory_space<vmem>>
    %c5_174 = arith.constant 5 : index
    %c3_175 = arith.constant 3 : index
    %c0_176 = arith.constant 0 : index
    %164 = vector.load %163[%c5_174, %c3_175, %c0_176] : memref<10x22x128xf32, #tpu.memory_space<vmem>>, vector<4x16x128xf32>
    %165 = vector.shape_cast %164 : vector<4x16x128xf32> to vector<64x128xf32>
    %c7_177 = arith.constant 7 : index
    %c0_178 = arith.constant 0 : index
    %c0_179 = arith.constant 0 : index
    %166 = vector.load %arg6[%c7_177, %c0_178, %c0_179] : memref<9x128x128xf32, #tpu.memory_space<vmem>>, vector<1x128x128xf32>
    %167 = vector.shape_cast %166 : vector<1x128x128xf32> to vector<128x128xf32>
    %cst_180 = arith.constant dense<0.000000e+00> : vector<64x128xf32>
    %168 = tpu.matmul %165, %167, %cst_180 {dimension_numbers = #tpu.dot_dimension_numbers<[1], [0], [0], [1], [0, 0, 1, 1], [], []>} : vector<64x128xf32>, vector<128x128xf32>, vector<64x128xf32> -> vector<64x128xf32>
    %169 = arith.addf %161, %168 : vector<64x128xf32>
    %c0_i32_181 = arith.constant 0 : i32
    %c0_i32_182 = arith.constant 0 : i32
    %c0_i32_183 = arith.constant 0 : i32
    %170 = tpu.memref_slice %arg10[%11, %c0_i32_181, %c0_i32_182, %c0_i32_183] : memref<2x10x22x128xf32, #tpu.memory_space<vmem>> -> memref<1x10x22x128xf32, #tpu.memory_space<vmem>>
    %171 = tpu.memref_squeeze %170 : memref<1x10x22x128xf32, #tpu.memory_space<vmem>> -> memref<10x22x128xf32, #tpu.memory_space<vmem>>
    %c5_184 = arith.constant 5 : index
    %c5_185 = arith.constant 5 : index
    %c0_186 = arith.constant 0 : index
    %172 = vector.load %171[%c5_184, %c5_185, %c0_186] : memref<10x22x128xf32, #tpu.memory_space<vmem>>, vector<4x16x128xf32>
    %173 = vector.shape_cast %172 : vector<4x16x128xf32> to vector<64x128xf32>
    %c8_187 = arith.constant 8 : index
    %c0_188 = arith.constant 0 : index
    %c0_189 = arith.constant 0 : index
    %174 = vector.load %arg6[%c8_187, %c0_188, %c0_189] : memref<9x128x128xf32, #tpu.memory_space<vmem>>, vector<1x128x128xf32>
    %175 = vector.shape_cast %174 : vector<1x128x128xf32> to vector<128x128xf32>
    %cst_190 = arith.constant dense<0.000000e+00> : vector<64x128xf32>
    %176 = tpu.matmul %173, %175, %cst_190 {dimension_numbers = #tpu.dot_dimension_numbers<[1], [0], [0], [1], [0, 0, 1, 1], [], []>} : vector<64x128xf32>, vector<128x128xf32>, vector<64x128xf32> -> vector<64x128xf32>
    %177 = arith.addf %169, %176 : vector<64x128xf32>
    %cst_191 = arith.constant 0.000000e+00 : f32
    %178 = vector.broadcast %cst_191 : f32 to vector<64x128xf32>
    %179 = arith.maximumf %177, %178 : vector<64x128xf32>
    %c2_192 = arith.constant 2 : index
    %c0_193 = arith.constant 0 : index
    %c0_194 = arith.constant 0 : index
    %180 = vector.load %arg8[%c2_192, %c0_193, %c0_194] : memref<4x128x128xf32, #tpu.memory_space<vmem>>, vector<1x128x128xf32>
    %181 = vector.shape_cast %180 : vector<1x128x128xf32> to vector<128x128xf32>
    %cst_195 = arith.constant dense<0.000000e+00> : vector<64x128xf32>
    %182 = tpu.matmul %179, %181, %cst_195 {dimension_numbers = #tpu.dot_dimension_numbers<[1], [0], [0], [1], [0, 0, 1, 1], [], []>} : vector<64x128xf32>, vector<128x128xf32>, vector<64x128xf32> -> vector<64x128xf32>
    %183 = arith.addf %110, %182 : vector<64x128xf32>
    %c0_i32_196 = arith.constant 0 : i32
    %c0_i32_197 = arith.constant 0 : i32
    %c0_i32_198 = arith.constant 0 : i32
    %184 = tpu.memref_slice %arg10[%11, %c0_i32_196, %c0_i32_197, %c0_i32_198] : memref<2x10x22x128xf32, #tpu.memory_space<vmem>> -> memref<1x10x22x128xf32, #tpu.memory_space<vmem>>
    %185 = tpu.memref_squeeze %184 : memref<1x10x22x128xf32, #tpu.memory_space<vmem>> -> memref<10x22x128xf32, #tpu.memory_space<vmem>>
    %c0_199 = arith.constant 0 : index
    %c0_200 = arith.constant 0 : index
    %c0_201 = arith.constant 0 : index
    %186 = vector.load %185[%c0_199, %c0_200, %c0_201] : memref<10x22x128xf32, #tpu.memory_space<vmem>>, vector<4x16x128xf32>
    %187 = vector.shape_cast %186 : vector<4x16x128xf32> to vector<64x128xf32>
    %c0_202 = arith.constant 0 : index
    %c0_203 = arith.constant 0 : index
    %c0_204 = arith.constant 0 : index
    %188 = vector.load %arg7[%c0_202, %c0_203, %c0_204] : memref<9x128x128xf32, #tpu.memory_space<vmem>>, vector<1x128x128xf32>
    %189 = vector.shape_cast %188 : vector<1x128x128xf32> to vector<128x128xf32>
    %cst_205 = arith.constant dense<0.000000e+00> : vector<64x128xf32>
    %190 = tpu.matmul %187, %189, %cst_205 {dimension_numbers = #tpu.dot_dimension_numbers<[1], [0], [0], [1], [0, 0, 1, 1], [], []>} : vector<64x128xf32>, vector<128x128xf32>, vector<64x128xf32> -> vector<64x128xf32>
    %c0_i32_206 = arith.constant 0 : i32
    %c0_i32_207 = arith.constant 0 : i32
    %c0_i32_208 = arith.constant 0 : i32
    %191 = tpu.memref_slice %arg10[%11, %c0_i32_206, %c0_i32_207, %c0_i32_208] : memref<2x10x22x128xf32, #tpu.memory_space<vmem>> -> memref<1x10x22x128xf32, #tpu.memory_space<vmem>>
    %192 = tpu.memref_squeeze %191 : memref<1x10x22x128xf32, #tpu.memory_space<vmem>> -> memref<10x22x128xf32, #tpu.memory_space<vmem>>
    %c0_209 = arith.constant 0 : index
    %c3_210 = arith.constant 3 : index
    %c0_211 = arith.constant 0 : index
    %193 = vector.load %192[%c0_209, %c3_210, %c0_211] : memref<10x22x128xf32, #tpu.memory_space<vmem>>, vector<4x16x128xf32>
    %194 = vector.shape_cast %193 : vector<4x16x128xf32> to vector<64x128xf32>
    %c1_212 = arith.constant 1 : index
    %c0_213 = arith.constant 0 : index
    %c0_214 = arith.constant 0 : index
    %195 = vector.load %arg7[%c1_212, %c0_213, %c0_214] : memref<9x128x128xf32, #tpu.memory_space<vmem>>, vector<1x128x128xf32>
    %196 = vector.shape_cast %195 : vector<1x128x128xf32> to vector<128x128xf32>
    %cst_215 = arith.constant dense<0.000000e+00> : vector<64x128xf32>
    %197 = tpu.matmul %194, %196, %cst_215 {dimension_numbers = #tpu.dot_dimension_numbers<[1], [0], [0], [1], [0, 0, 1, 1], [], []>} : vector<64x128xf32>, vector<128x128xf32>, vector<64x128xf32> -> vector<64x128xf32>
    %198 = arith.addf %190, %197 : vector<64x128xf32>
    %c0_i32_216 = arith.constant 0 : i32
    %c0_i32_217 = arith.constant 0 : i32
    %c0_i32_218 = arith.constant 0 : i32
    %199 = tpu.memref_slice %arg10[%11, %c0_i32_216, %c0_i32_217, %c0_i32_218] : memref<2x10x22x128xf32, #tpu.memory_space<vmem>> -> memref<1x10x22x128xf32, #tpu.memory_space<vmem>>
    %200 = tpu.memref_squeeze %199 : memref<1x10x22x128xf32, #tpu.memory_space<vmem>> -> memref<10x22x128xf32, #tpu.memory_space<vmem>>
    %c0_219 = arith.constant 0 : index
    %c6_220 = arith.constant 6 : index
    %c0_221 = arith.constant 0 : index
    %201 = vector.load %200[%c0_219, %c6_220, %c0_221] : memref<10x22x128xf32, #tpu.memory_space<vmem>>, vector<4x16x128xf32>
    %202 = vector.shape_cast %201 : vector<4x16x128xf32> to vector<64x128xf32>
    %c2_222 = arith.constant 2 : index
    %c0_223 = arith.constant 0 : index
    %c0_224 = arith.constant 0 : index
    %203 = vector.load %arg7[%c2_222, %c0_223, %c0_224] : memref<9x128x128xf32, #tpu.memory_space<vmem>>, vector<1x128x128xf32>
    %204 = vector.shape_cast %203 : vector<1x128x128xf32> to vector<128x128xf32>
    %cst_225 = arith.constant dense<0.000000e+00> : vector<64x128xf32>
    %205 = tpu.matmul %202, %204, %cst_225 {dimension_numbers = #tpu.dot_dimension_numbers<[1], [0], [0], [1], [0, 0, 1, 1], [], []>} : vector<64x128xf32>, vector<128x128xf32>, vector<64x128xf32> -> vector<64x128xf32>
    %206 = arith.addf %198, %205 : vector<64x128xf32>
    %c0_i32_226 = arith.constant 0 : i32
    %c0_i32_227 = arith.constant 0 : i32
    %c0_i32_228 = arith.constant 0 : i32
    %207 = tpu.memref_slice %arg10[%11, %c0_i32_226, %c0_i32_227, %c0_i32_228] : memref<2x10x22x128xf32, #tpu.memory_space<vmem>> -> memref<1x10x22x128xf32, #tpu.memory_space<vmem>>
    %208 = tpu.memref_squeeze %207 : memref<1x10x22x128xf32, #tpu.memory_space<vmem>> -> memref<10x22x128xf32, #tpu.memory_space<vmem>>
    %c3_229 = arith.constant 3 : index
    %c0_230 = arith.constant 0 : index
    %c0_231 = arith.constant 0 : index
    %209 = vector.load %208[%c3_229, %c0_230, %c0_231] : memref<10x22x128xf32, #tpu.memory_space<vmem>>, vector<4x16x128xf32>
    %210 = vector.shape_cast %209 : vector<4x16x128xf32> to vector<64x128xf32>
    %c3_232 = arith.constant 3 : index
    %c0_233 = arith.constant 0 : index
    %c0_234 = arith.constant 0 : index
    %211 = vector.load %arg7[%c3_232, %c0_233, %c0_234] : memref<9x128x128xf32, #tpu.memory_space<vmem>>, vector<1x128x128xf32>
    %212 = vector.shape_cast %211 : vector<1x128x128xf32> to vector<128x128xf32>
    %cst_235 = arith.constant dense<0.000000e+00> : vector<64x128xf32>
    %213 = tpu.matmul %210, %212, %cst_235 {dimension_numbers = #tpu.dot_dimension_numbers<[1], [0], [0], [1], [0, 0, 1, 1], [], []>} : vector<64x128xf32>, vector<128x128xf32>, vector<64x128xf32> -> vector<64x128xf32>
    %214 = arith.addf %206, %213 : vector<64x128xf32>
    %c4_236 = arith.constant 4 : index
    %c0_237 = arith.constant 0 : index
    %c0_238 = arith.constant 0 : index
    %215 = vector.load %arg7[%c4_236, %c0_237, %c0_238] : memref<9x128x128xf32, #tpu.memory_space<vmem>>, vector<1x128x128xf32>
    %216 = vector.shape_cast %215 : vector<1x128x128xf32> to vector<128x128xf32>
    %cst_239 = arith.constant dense<0.000000e+00> : vector<64x128xf32>
    %217 = tpu.matmul %30, %216, %cst_239 {dimension_numbers = #tpu.dot_dimension_numbers<[1], [0], [0], [1], [0, 0, 1, 1], [], []>} : vector<64x128xf32>, vector<128x128xf32>, vector<64x128xf32> -> vector<64x128xf32>
    %218 = arith.addf %214, %217 : vector<64x128xf32>
    %c0_i32_240 = arith.constant 0 : i32
    %c0_i32_241 = arith.constant 0 : i32
    %c0_i32_242 = arith.constant 0 : i32
    %219 = tpu.memref_slice %arg10[%11, %c0_i32_240, %c0_i32_241, %c0_i32_242] : memref<2x10x22x128xf32, #tpu.memory_space<vmem>> -> memref<1x10x22x128xf32, #tpu.memory_space<vmem>>
    %220 = tpu.memref_squeeze %219 : memref<1x10x22x128xf32, #tpu.memory_space<vmem>> -> memref<10x22x128xf32, #tpu.memory_space<vmem>>
    %c3_243 = arith.constant 3 : index
    %c6_244 = arith.constant 6 : index
    %c0_245 = arith.constant 0 : index
    %221 = vector.load %220[%c3_243, %c6_244, %c0_245] : memref<10x22x128xf32, #tpu.memory_space<vmem>>, vector<4x16x128xf32>
    %222 = vector.shape_cast %221 : vector<4x16x128xf32> to vector<64x128xf32>
    %c5_246 = arith.constant 5 : index
    %c0_247 = arith.constant 0 : index
    %c0_248 = arith.constant 0 : index
    %223 = vector.load %arg7[%c5_246, %c0_247, %c0_248] : memref<9x128x128xf32, #tpu.memory_space<vmem>>, vector<1x128x128xf32>
    %224 = vector.shape_cast %223 : vector<1x128x128xf32> to vector<128x128xf32>
    %cst_249 = arith.constant dense<0.000000e+00> : vector<64x128xf32>
    %225 = tpu.matmul %222, %224, %cst_249 {dimension_numbers = #tpu.dot_dimension_numbers<[1], [0], [0], [1], [0, 0, 1, 1], [], []>} : vector<64x128xf32>, vector<128x128xf32>, vector<64x128xf32> -> vector<64x128xf32>
    %226 = arith.addf %218, %225 : vector<64x128xf32>
    %c0_i32_250 = arith.constant 0 : i32
    %c0_i32_251 = arith.constant 0 : i32
    %c0_i32_252 = arith.constant 0 : i32
    %227 = tpu.memref_slice %arg10[%11, %c0_i32_250, %c0_i32_251, %c0_i32_252] : memref<2x10x22x128xf32, #tpu.memory_space<vmem>> -> memref<1x10x22x128xf32, #tpu.memory_space<vmem>>
    %228 = tpu.memref_squeeze %227 : memref<1x10x22x128xf32, #tpu.memory_space<vmem>> -> memref<10x22x128xf32, #tpu.memory_space<vmem>>
    %c6_253 = arith.constant 6 : index
    %c0_254 = arith.constant 0 : index
    %c0_255 = arith.constant 0 : index
    %229 = vector.load %228[%c6_253, %c0_254, %c0_255] : memref<10x22x128xf32, #tpu.memory_space<vmem>>, vector<4x16x128xf32>
    %230 = vector.shape_cast %229 : vector<4x16x128xf32> to vector<64x128xf32>
    %c6_256 = arith.constant 6 : index
    %c0_257 = arith.constant 0 : index
    %c0_258 = arith.constant 0 : index
    %231 = vector.load %arg7[%c6_256, %c0_257, %c0_258] : memref<9x128x128xf32, #tpu.memory_space<vmem>>, vector<1x128x128xf32>
    %232 = vector.shape_cast %231 : vector<1x128x128xf32> to vector<128x128xf32>
    %cst_259 = arith.constant dense<0.000000e+00> : vector<64x128xf32>
    %233 = tpu.matmul %230, %232, %cst_259 {dimension_numbers = #tpu.dot_dimension_numbers<[1], [0], [0], [1], [0, 0, 1, 1], [], []>} : vector<64x128xf32>, vector<128x128xf32>, vector<64x128xf32> -> vector<64x128xf32>
    %234 = arith.addf %226, %233 : vector<64x128xf32>
    %c0_i32_260 = arith.constant 0 : i32
    %c0_i32_261 = arith.constant 0 : i32
    %c0_i32_262 = arith.constant 0 : i32
    %235 = tpu.memref_slice %arg10[%11, %c0_i32_260, %c0_i32_261, %c0_i32_262] : memref<2x10x22x128xf32, #tpu.memory_space<vmem>> -> memref<1x10x22x128xf32, #tpu.memory_space<vmem>>
    %236 = tpu.memref_squeeze %235 : memref<1x10x22x128xf32, #tpu.memory_space<vmem>> -> memref<10x22x128xf32, #tpu.memory_space<vmem>>
    %c6_263 = arith.constant 6 : index
    %c3_264 = arith.constant 3 : index
    %c0_265 = arith.constant 0 : index
    %237 = vector.load %236[%c6_263, %c3_264, %c0_265] : memref<10x22x128xf32, #tpu.memory_space<vmem>>, vector<4x16x128xf32>
    %238 = vector.shape_cast %237 : vector<4x16x128xf32> to vector<64x128xf32>
    %c7_266 = arith.constant 7 : index
    %c0_267 = arith.constant 0 : index
    %c0_268 = arith.constant 0 : index
    %239 = vector.load %arg7[%c7_266, %c0_267, %c0_268] : memref<9x128x128xf32, #tpu.memory_space<vmem>>, vector<1x128x128xf32>
    %240 = vector.shape_cast %239 : vector<1x128x128xf32> to vector<128x128xf32>
    %cst_269 = arith.constant dense<0.000000e+00> : vector<64x128xf32>
    %241 = tpu.matmul %238, %240, %cst_269 {dimension_numbers = #tpu.dot_dimension_numbers<[1], [0], [0], [1], [0, 0, 1, 1], [], []>} : vector<64x128xf32>, vector<128x128xf32>, vector<64x128xf32> -> vector<64x128xf32>
    %242 = arith.addf %234, %241 : vector<64x128xf32>
    %c0_i32_270 = arith.constant 0 : i32
    %c0_i32_271 = arith.constant 0 : i32
    %c0_i32_272 = arith.constant 0 : i32
    %243 = tpu.memref_slice %arg10[%11, %c0_i32_270, %c0_i32_271, %c0_i32_272] : memref<2x10x22x128xf32, #tpu.memory_space<vmem>> -> memref<1x10x22x128xf32, #tpu.memory_space<vmem>>
    %244 = tpu.memref_squeeze %243 : memref<1x10x22x128xf32, #tpu.memory_space<vmem>> -> memref<10x22x128xf32, #tpu.memory_space<vmem>>
    %c6_273 = arith.constant 6 : index
    %c6_274 = arith.constant 6 : index
    %c0_275 = arith.constant 0 : index
    %245 = vector.load %244[%c6_273, %c6_274, %c0_275] : memref<10x22x128xf32, #tpu.memory_space<vmem>>, vector<4x16x128xf32>
    %246 = vector.shape_cast %245 : vector<4x16x128xf32> to vector<64x128xf32>
    %c8_276 = arith.constant 8 : index
    %c0_277 = arith.constant 0 : index
    %c0_278 = arith.constant 0 : index
    %247 = vector.load %arg7[%c8_276, %c0_277, %c0_278] : memref<9x128x128xf32, #tpu.memory_space<vmem>>, vector<1x128x128xf32>
    %248 = vector.shape_cast %247 : vector<1x128x128xf32> to vector<128x128xf32>
    %cst_279 = arith.constant dense<0.000000e+00> : vector<64x128xf32>
    %249 = tpu.matmul %246, %248, %cst_279 {dimension_numbers = #tpu.dot_dimension_numbers<[1], [0], [0], [1], [0, 0, 1, 1], [], []>} : vector<64x128xf32>, vector<128x128xf32>, vector<64x128xf32> -> vector<64x128xf32>
    %250 = arith.addf %242, %249 : vector<64x128xf32>
    %cst_280 = arith.constant 0.000000e+00 : f32
    %251 = vector.broadcast %cst_280 : f32 to vector<64x128xf32>
    %252 = arith.maximumf %250, %251 : vector<64x128xf32>
    %c3_281 = arith.constant 3 : index
    %c0_282 = arith.constant 0 : index
    %c0_283 = arith.constant 0 : index
    %253 = vector.load %arg8[%c3_281, %c0_282, %c0_283] : memref<4x128x128xf32, #tpu.memory_space<vmem>>, vector<1x128x128xf32>
    %254 = vector.shape_cast %253 : vector<1x128x128xf32> to vector<128x128xf32>
    %cst_284 = arith.constant dense<0.000000e+00> : vector<64x128xf32>
    %255 = tpu.matmul %252, %254, %cst_284 {dimension_numbers = #tpu.dot_dimension_numbers<[1], [0], [0], [1], [0, 0, 1, 1], [], []>} : vector<64x128xf32>, vector<128x128xf32>, vector<64x128xf32> -> vector<64x128xf32>
    %256 = arith.addf %183, %255 : vector<64x128xf32>
    %cst_285 = arith.constant 0.000000e+00 : f32
    %257 = vector.broadcast %cst_285 : f32 to vector<64x128xf32>
    %258 = arith.maximumf %256, %257 : vector<64x128xf32>
    %259 = vector.shape_cast %258 : vector<64x128xf32> to vector<4x16x128xf32>
    %c0_286 = arith.constant 0 : index
    %c0_287 = arith.constant 0 : index
    %c0_288 = arith.constant 0 : index
    %c0_289 = arith.constant 0 : index
    %260 = vector.load %arg9[%c0_286, %c0_287, %c0_288, %c0_289] : memref<1x4x16x128xf32, #tpu.memory_space<vmem>>, vector<1x4x16x128xf32>
    %261 = vector.shape_cast %260 : vector<1x4x16x128xf32> to vector<4x16x128xf32>
    %262 = vector.shape_cast %259 : vector<4x16x128xf32> to vector<1x4x16x128xf32>
    tpu.vector_store %arg9[%c0_286, %c0_287, %c0_288, %c0_289], %262 {strides = array<i32>} : memref<1x4x16x128xf32, #tpu.memory_space<vmem>>, vector<1x4x16x128xf32>,
    return
  }
  func.func @transform_1(%arg0: i32, %arg1: i32, %arg2: i32) -> (i32, i32) {
    %c0_i32 = arith.constant 0 : i32
    %c0_i32_0 = arith.constant 0 : i32
    %c0_i32_1 = arith.constant 0 : i32
    return %c0_i32, %c0_i32_0 : i32, i32
  }
  func.func @transform_2(%arg0: i32, %arg1: i32, %arg2: i32) -> (i32, i32, i32) {
    %c0_i32 = arith.constant 0 : i32
    %c0_i32_0 = arith.constant 0 : i32
    %c0_i32_1 = arith.constant 0 : i32
    %c0_i32_2 = arith.constant 0 : i32
    return %c0_i32, %c0_i32_0, %c0_i32_1 : i32, i32, i32
  }
  func.func @transform_3(%arg0: i32, %arg1: i32, %arg2: i32) -> (i32, i32, i32) {
    %c0_i32 = arith.constant 0 : i32
    %c0_i32_0 = arith.constant 0 : i32
    %c0_i32_1 = arith.constant 0 : i32
    %c0_i32_2 = arith.constant 0 : i32
    return %c0_i32, %c0_i32_0, %c0_i32_1 : i32, i32, i32
  }
  func.func @transform_4(%arg0: i32, %arg1: i32, %arg2: i32) -> (i32, i32, i32) {
    %c0_i32 = arith.constant 0 : i32
    %c0_i32_0 = arith.constant 0 : i32
    %c0_i32_1 = arith.constant 0 : i32
    %c0_i32_2 = arith.constant 0 : i32
    return %c0_i32, %c0_i32_0, %c0_i32_1 : i32, i32, i32
  }
  func.func @transform_5(%arg0: i32, %arg1: i32, %arg2: i32) -> (i32, i32, i32) {
    %c0_i32 = arith.constant 0 : i32
    %c0_i32_0 = arith.constant 0 : i32
    %c0_i32_1 = arith.constant 0 : i32
    %c0_i32_2 = arith.constant 0 : i32
    return %c0_i32, %c0_i32_0, %c0_i32_1 : i32, i32, i32
  }
  func.func @transform_6(%arg0: i32, %arg1: i32, %arg2: i32) -> (i32, i32, i32, i32) {
    %c2_i32 = arith.constant 2 : i32
    %0 = arith.muli %arg1, %c2_i32 : i32
    %1 = arith.addi %0, %arg2 : i32
    %c0_i32 = arith.constant 0 : i32
    %c0_i32_0 = arith.constant 0 : i32
    %c0_i32_1 = arith.constant 0 : i32
    return %arg0, %1, %c0_i32, %c0_i32_0 : i32, i32, i32, i32
  }
}

</mosaic_0001>

<llo_original>
// kernel: tpu_custom_call.1
$region0: #{tpu_custom_call.1}
  #allocation0 [shape = 'u32[]', space=smem, size = 0x4, offset = 0x4, fixed_abs, tag = 'smem constant byte address 0x4 - core index']
  #allocation1 [shape = 'u32[144,128]{1,0:T(1,128)}', space=vmem, size = 0x12000, scoped, tag = 'internal scratch']
  #allocation2 [shape = 'f32[2,10,22,128]{3,2,1,0:T(8,128)}', space=vmem, size = 0x3c000, scoped, tag = 'scratch operand']
  #allocation3 [shape = 's32[2]{0}', space=sflag, size = 0x8, scoped, tag = 'scratch operand']
  #allocation10 [shape = 's32[]', space=sflag, size = 0x4, offset = 0, fixed_abs, tag = 'sflag constant byte address 0x0 - dummy sync flag']
  #allocation11 [shape = 's32[]', space=sflag, size = 0x4, offset = 0, fixed_abs, tag = 'sflag constant byte address 0x0 - dummy sync flag']
  %s0 = inlined_call_operand.vmem [shape: f32[2,22,22,128], index: 0, kind: input, shape index: {}]
  %s1 = inlined_call_operand.vmem [shape: f32[128,128], index: 1, kind: input, shape index: {}]
  %s2 = inlined_call_operand.vmem [shape: f32[9,128,128], index: 2, kind: input, shape index: {}]
  %s3 = inlined_call_operand.hbm [shape: f32[9,128,128], index: 3, kind: input, shape index: {}]
  %s4 = inlined_call_operand.hbm [shape: f32[9,128,128], index: 4, kind: input, shape index: {}]
  %s5 = inlined_call_operand.vmem [shape: f32[4,128,128], index: 5, kind: input, shape index: {}]
  %s6 = inlined_call_operand.hbm [shape: f32[2,16,16,128], index: 6, kind: output, shape index: {}]
  %s7 = sld [smem:[#allocation0]]
  $region143: #{tpu_custom_call.1} parent=0
    _
  %s9 = ssub.s32 1, %s7
  %s10 = scalar_select 0, %s9, %s7
  $region1: #{tpu_custom_call.1} parent=0
    #allocation4 [shape = 'u8[589824]{0}', space=vmem, size = 0x90000, scoped, tag = 'input window, operand 3, single buffered']
    #allocation5 [shape = 's32[2]{0}', space=sflag, size = 0x8, scoped, tag = 'scoped memory for tpu_custom_call.1']
    #allocation6 [shape = 's32[2]{0}', space=sflag, size = 0x8, scoped, tag = 'scoped memory for tpu_custom_call.1']
    #allocation7 [shape = 'u8[589824]{0}', space=vmem, size = 0x90000, scoped, tag = 'input window, operand 4, single buffered']
    #allocation8 [shape = 's32[1]{0}', space=sflag, size = 0x4, scoped, tag = 'scoped memory for tpu_custom_call.1']
    #allocation9 [shape = 'u8[65536]{0}', space=vmem, size = 0x10000, scoped, tag = 'output window, operand 0']
    %11 = vsyncpa [#allocation5], 0
    %12 = vsyncpa [#allocation8], 0
    %13 = vsyncpa [#allocation6], 0
    %s14 = scalar_lea.sflag [#allocation6], 1
    %15 = vsyncpa %s14, 0
    loop: start=0, step=1, limit=10
    $region2: #{tpu_custom_call.1} parent=1 // loop_pre_header
      _
    $region3: #{tpu_custom_call.1} parent=1 // loop_header
      %s17 = sphi 0, %s21
      %p18 = scmp.ge.s32.totalorder %s17, 10
      %s24 = sphi 0, %s43
      %s25 = sphi 0, %s39
      %s26 = sphi 0, %s35
      %s27 = sphi 0, %s24
      %s28 = sphi 0, %s25
      %s29 = sphi 0, %s26
      %s30 = sphi 0, %s27
      %s31 = sphi 0, %s28
      %s32 = sphi 0, %s29
      %s44 = sphi 0, %s44
      %s46 = sphi 0, %s44
      %s47 = sphi 0, %s46
      %s61 = sphi 0, %s47
      %s65 = sphi 0, %s65
      %s67 = sphi 0, %s65
      %s68 = sphi 0, %s67
      %s82 = sphi 0, %s68
      %s86 = sphi 0, %s86
      %s88 = sphi 0, %s86
      %s89 = sphi 0, %s88
      %s103 = sphi 0, %s89
      %s107 = sphi 0, %s107
      %s109 = sphi 0, %s107
      %s110 = sphi 0, %s109
      %s124 = sphi 0, %s110
      %s128 = sphi 0, %s128
      %s130 = sphi 0, %s128
      %s131 = sphi 0, %s130
      %s145 = sphi 0, %s131
      %s157 = sphi 0, %s159
      %s160 = sphi 0, %s157
      %s161 = sphi 0, %s160
      %s177 = sphi 0, %s161
    $region4: #{tpu_custom_call.1} parent=1 // loop_header_branch
      %20 = sbr.rel (%p18) target = $region8
    $region5: #{tpu_custom_call.1} parent=1 // loop_body
      %s22 = ssub.s32 %s17, 1
      %s23 = ssub.s32 %s17, 2
      %s33 = sadd.s32 1, %s26
      %p34 = scmp.ge.s32.totalorder %s33, 2
      %s35 = scalar_select %p34, 0, %s33
      %s36 = sadd.s32 1, %s25
      %s37 = scalar_select %p34, %s36, %s25
      %p38 = scmp.ge.s32.totalorder %s37, 2
      %s39 = scalar_select %p38, 0, %s37
      %s40 = sadd.s32 1, %s24
      %s41 = scalar_select %p38, %s40, %s24
      %p42 = scmp.ge.s32.totalorder %s41, 2
      %s43 = scalar_select %p42, 0, %s41
      %s45 = sadd.s32 %s44, 1
      %p48 = scmp.eq.s32.totalorder %s17, 7
      %p49 = scmp.ne.s32.totalorder %s44, %s46
      %p50 = scmp.eq.s32.totalorder %s17, 0
      %p51 = por %p49, %p50
      %p52 = scmp.ne.s32.totalorder %s44, %s46
      %p53 = scmp.eq.s32.totalorder %s22, 7
      %p54 = por %p52, %p53
      %p55 = scmp.ne.s32.totalorder %s46, %s47
      %p56 = scmp.eq.s32.totalorder %s22, 0
      %p57 = por %p55, %p56
      %p58 = scmp.ne.s32.totalorder %s46, %s47
      %p59 = scmp.eq.s32.totalorder %s23, 7
      %p60 = por %p58, %p59
      %p62 = scmp.ne.s32.totalorder %s47, %s61
      %p63 = scmp.eq.s32.totalorder %s23, 0
      %p64 = por %p62, %p63
      %s66 = sadd.s32 %s65, 1
      %p69 = scmp.eq.s32.totalorder %s17, 7
      %p70 = scmp.ne.s32.totalorder %s65, %s67
      %p71 = scmp.eq.s32.totalorder %s17, 0
      %p72 = por %p70, %p71
      %p73 = scmp.ne.s32.totalorder %s65, %s67
      %p74 = scmp.eq.s32.totalorder %s22, 7
      %p75 = por %p73, %p74
      %p76 = scmp.ne.s32.totalorder %s67, %s68
      %p77 = scmp.eq.s32.totalorder %s22, 0
      %p78 = por %p76, %p77
      %p79 = scmp.ne.s32.totalorder %s67, %s68
      %p80 = scmp.eq.s32.totalorder %s23, 7
      %p81 = por %p79, %p80
      %p83 = scmp.ne.s32.totalorder %s68, %s82
      %p84 = scmp.eq.s32.totalorder %s23, 0
      %p85 = por %p83, %p84
      %s87 = sadd.s32 %s86, 1
      %p90 = scmp.eq.s32.totalorder %s17, 7
      %p91 = scmp.ne.s32.totalorder %s86, %s88
      %p92 = scmp.eq.s32.totalorder %s17, 0
      %p93 = por %p91, %p92
      %p94 = scmp.ne.s32.totalorder %s86, %s88
      %p95 = scmp.eq.s32.totalorder %s22, 7
      %p96 = por %p94, %p95
      %p97 = scmp.ne.s32.totalorder %s88, %s89
      %p98 = scmp.eq.s32.totalorder %s22, 0
      %p99 = por %p97, %p98
      %p100 = scmp.ne.s32.totalorder %s88, %s89
      %p101 = scmp.eq.s32.totalorder %s23, 7
      %p102 = por %p100, %p101
      %p104 = scmp.ne.s32.totalorder %s89, %s103
      %p105 = scmp.eq.s32.totalorder %s23, 0
      %p106 = por %p104, %p105
      %s108 = sadd.s32 %s107, 1
      %p111 = scmp.eq.s32.totalorder %s17, 7
      %p112 = scmp.ne.s32.totalorder %s107, %s109
      %p113 = scmp.eq.s32.totalorder %s17, 0
      %p114 = por %p112, %p113
      %p115 = scmp.ne.s32.totalorder %s107, %s109
      %p116 = scmp.eq.s32.totalorder %s22, 7
      %p117 = por %p115, %p116
      %p118 = scmp.ne.s32.totalorder %s109, %s110
      %p119 = scmp.eq.s32.totalorder %s22, 0
      %p120 = por %p118, %p119
      %p121 = scmp.ne.s32.totalorder %s109, %s110
      %p122 = scmp.eq.s32.totalorder %s23, 7
      %p123 = por %p121, %p122
      %p125 = scmp.ne.s32.totalorder %s110, %s124
      %p126 = scmp.eq.s32.totalorder %s23, 0
      %p127 = por %p125, %p126
      %s129 = sadd.s32 %s128, 1
      %p132 = scmp.eq.s32.totalorder %s17, 7
      %p133 = scmp.ne.s32.totalorder %s128, %s130
      %p134 = scmp.eq.s32.totalorder %s17, 0
      %p135 = por %p133, %p134
      %p136 = scmp.ne.s32.totalorder %s128, %s130
      %p137 = scmp.eq.s32.totalorder %s22, 7
      %p138 = por %p136, %p137
      %p139 = scmp.ne.s32.totalorder %s130, %s131
      %p140 = scmp.eq.s32.totalorder %s22, 0
      %p141 = por %p139, %p140
      %p142 = scmp.ne.s32.totalorder %s130, %s131
      %p143 = scmp.eq.s32.totalorder %s23, 7
      %p144 = por %p142, %p143
      %p146 = scmp.ne.s32.totalorder %s131, %s145
      %p147 = scmp.eq.s32.totalorder %s23, 0
      %p148 = por %p146, %p147
      %s149 = smul.u32 %s25, 2
      %s150 = sadd.s32 %s149, %s26
      %s151 = smul.u32 %s39, 2
      %s152 = sadd.s32 %s151, %s35
      %s153 = ssub.s32 %s24, %s43
      %s154 = ssub.s32 %s150, %s152
      %s155 = sor.u32 %s153, %s154
      %p156 = scmp.eq.s32.totalorder %s155, 0
      %s158 = sadd.s32 %s157, 1
      %s159 = scalar_select %p156, %s157, %s158
      %p162 = pneg %p156
      %p163 = scmp.eq.s32.totalorder %s17, 7
      %p164 = por %p162, %p163
      %p165 = scmp.ne.s32.totalorder %s157, %s160
      %p166 = scmp.eq.s32.totalorder %s17, 0
      %p167 = por %p165, %p166
      %p168 = scmp.ne.s32.totalorder %s157, %s160
      %p169 = scmp.eq.s32.totalorder %s22, 7
      %p170 = por %p168, %p169
      %p171 = scmp.ne.s32.totalorder %s160, %s161
      %p172 = scmp.eq.s32.totalorder %s22, 0
      %p173 = por %p171, %p172
      %p174 = scmp.ne.s32.totalorder %s160, %s161
      %p175 = scmp.eq.s32.totalorder %s23, 7
      %p176 = por %p174, %p175
      %p178 = scmp.ne.s32.totalorder %s161, %s177
      %p179 = scmp.eq.s32.totalorder %s23, 0
      %p180 = por %p178, %p179
      %p181 = scmp.le.s32.totalorder 1, %s17
      %p182 = scmp.lt.s32.totalorder %s17, 9
      %p183 = pnand %p181, %p182
      %p184 = pneg %p183
      // Predicated region
      $region9: #{tpu_custom_call.1} parent=5 // pred_check
        _
      $region10: #{tpu_custom_call.1} parent=5 // pred_check_branch
        %186 = sbr.rel (%p183) target = $region12
      $region11: #{tpu_custom_call.1} parent=5 // pred_region
        %s187 = ssub.s32 %s17, 1
        // Predicated region
        $region13: #{tpu_custom_call.1} parent=11 // pred_check
          %p188 = pneg %p57
        $region14: #{tpu_custom_call.1} parent=11 // pred_check_branch
          %190 = sbr.rel (%p188) target = $region16
        $region15: #{tpu_custom_call.1} parent=11 // pred_region
          _
        $region16: #{tpu_custom_call.1} parent=11 // pred_fallthru
          _
        // Predicated region
        $region17: #{tpu_custom_call.1} parent=11 // pred_check
          %p191 = pneg %p78
        $region18: #{tpu_custom_call.1} parent=11 // pred_check_branch
          %193 = sbr.rel (%p191) target = $region20
        $region19: #{tpu_custom_call.1} parent=11 // pred_region
          _
        $region20: #{tpu_custom_call.1} parent=11 // pred_fallthru
          _
        // Predicated region
        $region21: #{tpu_custom_call.1} parent=11 // pred_check
          %p194 = pneg %p99
        $region22: #{tpu_custom_call.1} parent=11 // pred_check_branch
          %196 = sbr.rel (%p194) target = $region24
        $region23: #{tpu_custom_call.1} parent=11 // pred_region
          %s198 = ssub.s32 18432, 18432
          %199 = vsyncadd [#allocation5], %s198
          %s200 = sshll.u32 [#allocation4], 4
          %s201 = int_to_ptr.vmem [resolvable:$true] %s200
          %206 = dma.hbm_to_vmem [thread:$0]  %s3, 18432, %s201, [#allocation5], 128, 128, 8
        $region24: #{tpu_custom_call.1} parent=11 // pred_fallthru
          _
        // Predicated region
        $region25: #{tpu_custom_call.1} parent=11 // pred_check
          %p207 = pneg %p120
        $region26: #{tpu_custom_call.1} parent=11 // pred_check_branch
          %209 = sbr.rel (%p207) target = $region28
        $region27: #{tpu_custom_call.1} parent=11 // pred_region
          %s211 = ssub.s32 18432, 18432
          %212 = vsyncadd [#allocation8], %s211
          %s213 = sshll.u32 [#allocation7], 4
          %s214 = int_to_ptr.vmem [resolvable:$true] %s213
          %219 = dma.hbm_to_vmem [thread:$0]  %s4, 18432, %s214, [#allocation8], 128, 128, 8
        $region28: #{tpu_custom_call.1} parent=11 // pred_fallthru
          _
        // Predicated region
        $region29: #{tpu_custom_call.1} parent=11 // pred_check
          %p220 = pneg %p141
        $region30: #{tpu_custom_call.1} parent=11 // pred_check_branch
          %222 = sbr.rel (%p220) target = $region32
        $region31: #{tpu_custom_call.1} parent=11 // pred_region
          _
        $region32: #{tpu_custom_call.1} parent=11 // pred_fallthru
          _
      $region12: #{tpu_custom_call.1} parent=5 // pred_fallthru
        _
      %p223 = scmp.lt.s32.totalorder %s17, 8
      // Predicated region
      $region33: #{tpu_custom_call.1} parent=5 // pred_check
        %p224 = pneg %p223
      $region34: #{tpu_custom_call.1} parent=5 // pred_check_branch
        %226 = sbr.rel (%p224) target = $region36
      $region35: #{tpu_custom_call.1} parent=5 // pred_region
        _
      $region36: #{tpu_custom_call.1} parent=5 // pred_fallthru
        _
      %p227 = scmp.le.s32.totalorder 1, %s17
      %p228 = scmp.lt.s32.totalorder %s17, 9
      %p229 = pnand %p227, %p228
      %p230 = pneg %p229
      // Predicated region
      $region37: #{tpu_custom_call.1} parent=5 // pred_check
        _
      $region38: #{tpu_custom_call.1} parent=5 // pred_check_branch
        %232 = sbr.rel (%p229) target = $region40
      $region39: #{tpu_custom_call.1} parent=5 // pred_region
        %s233 = ssub.s32 %s17, 1
        // Predicated region
        $region41: #{tpu_custom_call.1} parent=39 // pred_check
          %p234 = pneg %p99
        $region42: #{tpu_custom_call.1} parent=39 // pred_check_branch
          %236 = sbr.rel (%p234) target = $region44
        $region43: #{tpu_custom_call.1} parent=39 // pred_region
          %237 = dma.done [#allocation5], 18432
        $region44: #{tpu_custom_call.1} parent=39 // pred_fallthru
          _
        // Predicated region
        $region45: #{tpu_custom_call.1} parent=39 // pred_check
          %p238 = pneg %p120
        $region46: #{tpu_custom_call.1} parent=39 // pred_check_branch
          %240 = sbr.rel (%p238) target = $region48
        $region47: #{tpu_custom_call.1} parent=39 // pred_region
          %241 = dma.done [#allocation8], 18432
        $region48: #{tpu_custom_call.1} parent=39 // pred_fallthru
          _
        %p242 = pneg %p57
        %p243 = pneg %p54
        %p244 = pneg %p78
        %p245 = pneg %p75
        %p246 = pneg %p99
        %p247 = pneg %p96
        %p248 = pneg %p120
        %p249 = pneg %p117
        %p250 = pneg %p141
        %p251 = pneg %p138
        %p252 = pneg %p173
        %p253 = pneg %p170
        %s254 = sand.u32 %s160, 1
        %s255 = scalar_lea.sflag [#allocation6], %s254
        %s256 = sand.u32 %s160, 1
        %s257 = smul.addr %s256, 64
        %s258 = scalar_lea.vmem [#allocation9], %s257
        %s259 = smul.u32 %s28, 2
        %s260 = sadd.s32 %s259, %s29
        %s261 = smul.u32 4, %s260
        %s262 = smul.u32 %s28, 2
        %s263 = sadd.s32 %s262, %s29
        %p264 = scmp.lt.s32.totalorder %s29, 0
        %s265 = ssub.s32 0, %s29
        %s266 = scalar_select %p264, %s265, %s29
        %s267 = sand.u32 %s266, 1
        %s268 = ssub.s32 0, %s267
        %s269 = scalar_select %p264, %s268, %s267
        %p270 = scmp.ne.s32.totalorder %s269, 0
        %p271 = scmp.lt.s32.totalorder %s269, 0
        %p272 = pnand %p271, %p270
        %p273 = pneg %p272
        %s274 = sadd.s32 %s269, 2
        %s275 = scalar_select %p273, %s274, %s269
        %p276 = scmp.eq.s32.totalorder %s29, 0
        // Predicated region
        $region49: #{tpu_custom_call.1} parent=39 // pred_check
          %p277 = pneg %p276
        $region50: #{tpu_custom_call.1} parent=39 // pred_check_branch
          %279 = sbr.rel (%p277) target = $region52
        $region51: #{tpu_custom_call.1} parent=39 // pred_region
          %s280 = smul.u32 %s263, 4
          %s281 = smul.u32 %s280, 24
          %s282 = smul.u32 %s27, 528
          %s283 = sadd.s32 %s281, %s282
          %s284 = scalar_lea.vmem %s0, %s283
          %s285 = smul.u32 %s275, 240
          %s286 = scalar_lea.vmem [#allocation2], %s285
          %s287 = scalar_lea.sflag [#allocation3], %s275
          %p289 = scmp.lt.u32.totalorder 22, 8
          %p290 = pneg %p289
          // Predicated region
          $region53: #{tpu_custom_call.1} parent=51 // pred_check
            _
          $region54: #{tpu_custom_call.1} parent=51 // pred_check_branch
            %292 = sbr.rel (%p289) target = $region56
          $region55: #{tpu_custom_call.1} parent=51 // pred_region
            %s325 = sand.u32 22, 7
            %p326 = scmp.eq.s32.totalorder %s325, 0
            %p327 = pneg %p326
            // Predicated region
            $region68: #{tpu_custom_call.1} parent=55 // pred_check
              _
            $region69: #{tpu_custom_call.1} parent=55 // pred_check_branch
              %329 = sbr.rel (%p326) target = $region71
            $region70: #{tpu_custom_call.1} parent=55 // pred_region
              %s330 = sand.u32 22, 7
              %s331 = ssub.s32 22, %s330
              %s332 = scalar_lea.vmem %s284, %s331
              %s333 = ssub.s32 22, %s330
              %s334 = scalar_lea.vmem %s286, %s333 [#allocation2]
              loop: start=0, step=1, limit=1
              $region72: #{tpu_custom_call.1} parent=70 // loop_pre_header
                _
              $region73: #{tpu_custom_call.1} parent=70 // loop_header
                %s336 = sphi 0, %s340
                %p337 = scmp.ge.s32.totalorder %s336, 1
                %s341 = sphi %s284, %s284
                %s342 = sphi %s286, %s286
              $region74: #{tpu_custom_call.1} parent=70 // loop_header_branch
                %339 = sbr.rel (%p337) target = $region78
              $region75: #{tpu_custom_call.1} parent=70 // loop_body
                %v343 = vld [vmem:[%s341] sm:$0xff]
                %344 = vst [vmem:[%s342] sm:$0xff] %v343
                %v345 = vld [vmem:[%s341 + $0x8] sm:$0xff]
                %346 = vst [vmem:[%s342 + $0x8] sm:$0xff] %v345
                %v347 = vld [vmem:[%s341 + $0x18] sm:$0xff]
                %348 = vst [vmem:[%s342 + $0x18] sm:$0xff] %v347
                %v349 = vld [vmem:[%s341 + $0x20] sm:$0xff]
                %350 = vst [vmem:[%s342 + $0x20] sm:$0xff] %v349
                %v351 = vld [vmem:[%s341 + $0x30] sm:$0xff]
                %352 = vst [vmem:[%s342 + $0x30] sm:$0xff] %v351
                %v353 = vld [vmem:[%s341 + $0x38] sm:$0xff]
                %354 = vst [vmem:[%s342 + $0x38] sm:$0xff] %v353
                %v355 = vld [vmem:[%s341 + $0x48] sm:$0xff]
                %356 = vst [vmem:[%s342 + $0x48] sm:$0xff] %v355
                %v357 = vld [vmem:[%s341 + $0x50] sm:$0xff]
                %358 = vst [vmem:[%s342 + $0x50] sm:$0xff] %v357
                %v359 = vld [vmem:[%s341 + $0x60] sm:$0xff]
                %360 = vst [vmem:[%s342 + $0x60] sm:$0xff] %v359
                %v361 = vld [vmem:[%s341 + $0x68] sm:$0xff]
                %362 = vst [vmem:[%s342 + $0x68] sm:$0xff] %v361
                %v363 = vld [vmem:[%s341 + $0x78] sm:$0xff]
                %364 = vst [vmem:[%s342 + $0x78] sm:$0xff] %v363
                %v365 = vld [vmem:[%s341 + $0x80] sm:$0xff]
                %366 = vst [vmem:[%s342 + $0x80] sm:$0xff] %v365
                %v367 = vld [vmem:[%s341 + $0x90] sm:$0xff]
                %368 = vst [vmem:[%s342 + $0x90] sm:$0xff] %v367
                %v369 = vld [vmem:[%s341 + $0x98] sm:$0xff]
                %370 = vst [vmem:[%s342 + $0x98] sm:$0xff] %v369
                %v371 = vld [vmem:[%s341 + $0xa8] sm:$0xff]
                %372 = vst [vmem:[%s342 + $0xa8] sm:$0xff] %v371
                %v373 = vld [vmem:[%s341 + $0xb0] sm:$0xff]
                %374 = vst [vmem:[%s342 + $0xb0] sm:$0xff] %v373
                %v375 = vld [vmem:[%s341 + $0xc0] sm:$0xff]
                %376 = vst [vmem:[%s342 + $0xc0] sm:$0xff] %v375
                %v377 = vld [vmem:[%s341 + $0xc8] sm:$0xff]
                %378 = vst [vmem:[%s342 + $0xc8] sm:$0xff] %v377
                %v379 = vld [vmem:[%s341 + $0xd8] sm:$0xff]
                %380 = vst [vmem:[%s342 + $0xd8] sm:$0xff] %v379
                %v381 = vld [vmem:[%s341 + $0xe0] sm:$0xff]
                %382 = vst [vmem:[%s342 + $0xe0] sm:$0xff] %v381
              $region76: #{tpu_custom_call.1} parent=70 // loop_footer
                %s340 = sadd.s32 1, %s336
              $region77: #{tpu_custom_call.1} parent=70 // loop_footer_branch
                %335 = sbr.rel target = $region73
              $region78: #{tpu_custom_call.1} parent=70 // loop_exit
                _
              %s383 = sshllo.u32 0, %s330
              loop: start=0, step=1, limit=1
              $region79: #{tpu_custom_call.1} parent=70 // loop_pre_header
                _
              $region80: #{tpu_custom_call.1} parent=70 // loop_header
                %s385 = sphi 0, %s389
                %p386 = scmp.ge.s32.totalorder %s385, 1
                %s390 = sphi %s332, %s332
                %s391 = sphi %s334, %s334
              $region81: #{tpu_custom_call.1} parent=70 // loop_header_branch
                %388 = sbr.rel (%p386) target = $region85
              $region82: #{tpu_custom_call.1} parent=70 // loop_body
                %v392 = vld [vmem:[%s390] sm:%s383]
                %393 = vst [vmem:[%s391] sm:%s383] %v392
                %v394 = vld [vmem:[%s390 + $0x18] sm:%s383]
                %395 = vst [vmem:[%s391 + $0x18] sm:%s383] %v394
                %v396 = vld [vmem:[%s390 + $0x30] sm:%s383]
                %397 = vst [vmem:[%s391 + $0x30] sm:%s383] %v396
                %v398 = vld [vmem:[%s390 + $0x48] sm:%s383]
                %399 = vst [vmem:[%s391 + $0x48] sm:%s383] %v398
                %v400 = vld [vmem:[%s390 + $0x60] sm:%s383]
                %401 = vst [vmem:[%s391 + $0x60] sm:%s383] %v400
                %v402 = vld [vmem:[%s390 + $0x78] sm:%s383]
                %403 = vst [vmem:[%s391 + $0x78] sm:%s383] %v402
                %v404 = vld [vmem:[%s390 + $0x90] sm:%s383]
                %405 = vst [vmem:[%s391 + $0x90] sm:%s383] %v404
                %v406 = vld [vmem:[%s390 + $0xa8] sm:%s383]
                %407 = vst [vmem:[%s391 + $0xa8] sm:%s383] %v406
                %v408 = vld [vmem:[%s390 + $0xc0] sm:%s383]
                %409 = vst [vmem:[%s391 + $0xc0] sm:%s383] %v408
                %v410 = vld [vmem:[%s390 + $0xd8] sm:%s383]
                %411 = vst [vmem:[%s391 + $0xd8] sm:%s383] %v410
              $region83: #{tpu_custom_call.1} parent=70 // loop_footer
                %s389 = sadd.s32 1, %s385
              $region84: #{tpu_custom_call.1} parent=70 // loop_footer_branch
                %384 = sbr.rel target = $region80
              $region85: #{tpu_custom_call.1} parent=70 // loop_exit
                _
            $region71: #{tpu_custom_call.1} parent=55 // pred_fallthru
              _
          $region56: #{tpu_custom_call.1} parent=51 // pred_fallthru
            _
          // Predicated region
          $region57: #{tpu_custom_call.1} parent=51 // pred_check
            %p293 = pneg %p289
          $region58: #{tpu_custom_call.1} parent=51 // pred_check_branch
            %295 = sbr.rel (%p293) target = $region60
          $region59: #{tpu_custom_call.1} parent=51 // pred_region
            %s296 = sshllo.u32 0, 22
            loop: start=0, step=1, limit=1
            $region61: #{tpu_custom_call.1} parent=59 // loop_pre_header
              _
            $region62: #{tpu_custom_call.1} parent=59 // loop_header
              %s298 = sphi 0, %s302
              %p299 = scmp.ge.s32.totalorder %s298, 1
              %s303 = sphi %s284, %s284
              %s304 = sphi %s286, %s286
            $region63: #{tpu_custom_call.1} parent=59 // loop_header_branch
              %301 = sbr.rel (%p299) target = $region67
            $region64: #{tpu_custom_call.1} parent=59 // loop_body
              %v305 = vld [vmem:[%s303] sm:%s296]
              %306 = vst [vmem:[%s304] sm:%s296] %v305
              %v307 = vld [vmem:[%s303 + $0x18] sm:%s296]
              %308 = vst [vmem:[%s304 + $0x18] sm:%s296] %v307
              %v309 = vld [vmem:[%s303 + $0x30] sm:%s296]
              %310 = vst [vmem:[%s304 + $0x30] sm:%s296] %v309
              %v311 = vld [vmem:[%s303 + $0x48] sm:%s296]
              %312 = vst [vmem:[%s304 + $0x48] sm:%s296] %v311
              %v313 = vld [vmem:[%s303 + $0x60] sm:%s296]
              %314 = vst [vmem:[%s304 + $0x60] sm:%s296] %v313
              %v315 = vld [vmem:[%s303 + $0x78] sm:%s296]
              %316 = vst [vmem:[%s304 + $0x78] sm:%s296] %v315
              %v317 = vld [vmem:[%s303 + $0x90] sm:%s296]
              %318 = vst [vmem:[%s304 + $0x90] sm:%s296] %v317
              %v319 = vld [vmem:[%s303 + $0xa8] sm:%s296]
              %320 = vst [vmem:[%s304 + $0xa8] sm:%s296] %v319
              %v321 = vld [vmem:[%s303 + $0xc0] sm:%s296]
              %322 = vst [vmem:[%s304 + $0xc0] sm:%s296] %v321
              %v323 = vld [vmem:[%s303 + $0xd8] sm:%s296]
              %324 = vst [vmem:[%s304 + $0xd8] sm:%s296] %v323
            $region65: #{tpu_custom_call.1} parent=59 // loop_footer
              %s302 = sadd.s32 1, %s298
            $region66: #{tpu_custom_call.1} parent=59 // loop_footer_branch
              %297 = sbr.rel target = $region62
            $region67: #{tpu_custom_call.1} parent=59 // loop_exit
              _
          $region60: #{tpu_custom_call.1} parent=51 // pred_fallthru
            _
          // Predicated region
          $region86: #{tpu_custom_call.1} parent=51 // pred_check
            _
          $region87: #{tpu_custom_call.1} parent=51 // pred_check_branch
            %414 = sbr.rel (0) target = $region89
          $region88: #{tpu_custom_call.1} parent=51 // pred_region
            %415 = vsyncadd %s287, 3520
          $region89: #{tpu_custom_call.1} parent=51 // pred_fallthru
            _
        $region52: #{tpu_custom_call.1} parent=39 // pred_fallthru
          _
        %s416 = smul.u32 %s263, 4
        %s417 = smul.u32 %s275, 240
        %s418 = scalar_lea.vmem [#allocation2], %s417
        %s419 = scalar_lea.sflag [#allocation3], %s275
        %s420 = smul.u32 10, 22
        %s421 = smul.u32 %s420, 1
        %s422 = sshll.u32 %s421, 4
        %423 = dma.done %s419, %s422
        %s424 = sadd.s32 %s29, 1
        %p425 = scmp.lt.s32.totalorder %s424, 2
        // Predicated region
        $region90: #{tpu_custom_call.1} parent=39 // pred_check
          %p426 = pneg %p425
        $region91: #{tpu_custom_call.1} parent=39 // pred_check_branch
          %428 = sbr.rel (%p426) target = $region93
        $region92: #{tpu_custom_call.1} parent=39 // pred_region
          %s429 = sadd.s32 %s263, 1
          %p430 = scmp.lt.s32.totalorder %s424, 0
          %s431 = ssub.s32 0, %s424
          %s432 = scalar_select %p430, %s431, %s424
          %s433 = sand.u32 %s432, 1
          %s434 = ssub.s32 0, %s433
          %s435 = scalar_select %p430, %s434, %s433
          %p436 = scmp.ne.s32.totalorder %s435, 0
          %p437 = scmp.lt.s32.totalorder %s435, 0
          %p438 = pnand %p437, %p436
          %p439 = pneg %p438
          %s440 = sadd.s32 %s435, 2
          %s441 = scalar_select %p439, %s440, %s435
          %s442 = smul.u32 %s429, 4
          %s443 = smul.u32 %s442, 24
          %s444 = smul.u32 %s27, 528
          %s445 = sadd.s32 %s443, %s444
          %s446 = scalar_lea.vmem %s0, %s445
          %s447 = smul.u32 %s441, 240
          %s448 = scalar_lea.vmem [#allocation2], %s447
          %s449 = scalar_lea.sflag [#allocation3], %s441
          %p451 = scmp.lt.u32.totalorder 22, 8
          %p452 = pneg %p451
          // Predicated region
          $region94: #{tpu_custom_call.1} parent=92 // pred_check
            _
          $region95: #{tpu_custom_call.1} parent=92 // pred_check_branch
            %454 = sbr.rel (%p451) target = $region97
          $region96: #{tpu_custom_call.1} parent=92 // pred_region
            %s487 = sand.u32 22, 7
            %p488 = scmp.eq.s32.totalorder %s487, 0
            %p489 = pneg %p488
            // Predicated region
            $region109: #{tpu_custom_call.1} parent=96 // pred_check
              _
            $region110: #{tpu_custom_call.1} parent=96 // pred_check_branch
              %491 = sbr.rel (%p488) target = $region112
            $region111: #{tpu_custom_call.1} parent=96 // pred_region
              %s492 = sand.u32 22, 7
              %s493 = ssub.s32 22, %s492
              %s494 = scalar_lea.vmem %s446, %s493
              %s495 = ssub.s32 22, %s492
              %s496 = scalar_lea.vmem %s448, %s495 [#allocation2]
              loop: start=0, step=1, limit=1
              $region113: #{tpu_custom_call.1} parent=111 // loop_pre_header
                _
              $region114: #{tpu_custom_call.1} parent=111 // loop_header
                %s498 = sphi 0, %s502
                %p499 = scmp.ge.s32.totalorder %s498, 1
                %s503 = sphi %s446, %s446
                %s504 = sphi %s448, %s448
              $region115: #{tpu_custom_call.1} parent=111 // loop_header_branch
                %501 = sbr.rel (%p499) target = $region119
              $region116: #{tpu_custom_call.1} parent=111 // loop_body
                %v505 = vld [vmem:[%s503] sm:$0xff]
                %506 = vst [vmem:[%s504] sm:$0xff] %v505
                %v507 = vld [vmem:[%s503 + $0x8] sm:$0xff]
                %508 = vst [vmem:[%s504 + $0x8] sm:$0xff] %v507
                %v509 = vld [vmem:[%s503 + $0x18] sm:$0xff]
                %510 = vst [vmem:[%s504 + $0x18] sm:$0xff] %v509
                %v511 = vld [vmem:[%s503 + $0x20] sm:$0xff]
                %512 = vst [vmem:[%s504 + $0x20] sm:$0xff] %v511
                %v513 = vld [vmem:[%s503 + $0x30] sm:$0xff]
                %514 = vst [vmem:[%s504 + $0x30] sm:$0xff] %v513
                %v515 = vld [vmem:[%s503 + $0x38] sm:$0xff]
                %516 = vst [vmem:[%s504 + $0x38] sm:$0xff] %v515
                %v517 = vld [vmem:[%s503 + $0x48] sm:$0xff]
                %518 = vst [vmem:[%s504 + $0x48] sm:$0xff] %v517
                %v519 = vld [vmem:[%s503 + $0x50] sm:$0xff]
                %520 = vst [vmem:[%s504 + $0x50] sm:$0xff] %v519
                %v521 = vld [vmem:[%s503 + $0x60] sm:$0xff]
                %522 = vst [vmem:[%s504 + $0x60] sm:$0xff] %v521
                %v523 = vld [vmem:[%s503 + $0x68] sm:$0xff]
                %524 = vst [vmem:[%s504 + $0x68] sm:$0xff] %v523
                %v525 = vld [vmem:[%s503 + $0x78] sm:$0xff]
                %526 = vst [vmem:[%s504 + $0x78] sm:$0xff] %v525
                %v527 = vld [vmem:[%s503 + $0x80] sm:$0xff]
                %528 = vst [vmem:[%s504 + $0x80] sm:$0xff] %v527
                %v529 = vld [vmem:[%s503 + $0x90] sm:$0xff]
                %530 = vst [vmem:[%s504 + $0x90] sm:$0xff] %v529
                %v531 = vld [vmem:[%s503 + $0x98] sm:$0xff]
                %532 = vst [vmem:[%s504 + $0x98] sm:$0xff] %v531
                %v533 = vld [vmem:[%s503 + $0xa8] sm:$0xff]
                %534 = vst [vmem:[%s504 + $0xa8] sm:$0xff] %v533
                %v535 = vld [vmem:[%s503 + $0xb0] sm:$0xff]
                %536 = vst [vmem:[%s504 + $0xb0] sm:$0xff] %v535
                %v537 = vld [vmem:[%s503 + $0xc0] sm:$0xff]
                %538 = vst [vmem:[%s504 + $0xc0] sm:$0xff] %v537
                %v539 = vld [vmem:[%s503 + $0xc8] sm:$0xff]
                %540 = vst [vmem:[%s504 + $0xc8] sm:$0xff] %v539
                %v541 = vld [vmem:[%s503 + $0xd8] sm:$0xff]
                %542 = vst [vmem:[%s504 + $0xd8] sm:$0xff] %v541
                %v543 = vld [vmem:[%s503 + $0xe0] sm:$0xff]
                %544 = vst [vmem:[%s504 + $0xe0] sm:$0xff] %v543
              $region117: #{tpu_custom_call.1} parent=111 // loop_footer
                %s502 = sadd.s32 1, %s498
              $region118: #{tpu_custom_call.1} parent=111 // loop_footer_branch
                %497 = sbr.rel target = $region114
              $region119: #{tpu_custom_call.1} parent=111 // loop_exit
                _
              %s545 = sshllo.u32 0, %s492
              loop: start=0, step=1, limit=1
              $region120: #{tpu_custom_call.1} parent=111 // loop_pre_header
                _
              $region121: #{tpu_custom_call.1} parent=111 // loop_header
                %s547 = sphi 0, %s551
                %p548 = scmp.ge.s32.totalorder %s547, 1
                %s552 = sphi %s494, %s494
                %s553 = sphi %s496, %s496
              $region122: #{tpu_custom_call.1} parent=111 // loop_header_branch
                %550 = sbr.rel (%p548) target = $region126
              $region123: #{tpu_custom_call.1} parent=111 // loop_body
                %v554 = vld [vmem:[%s552] sm:%s545]
                %555 = vst [vmem:[%s553] sm:%s545] %v554
                %v556 = vld [vmem:[%s552 + $0x18] sm:%s545]
                %557 = vst [vmem:[%s553 + $0x18] sm:%s545] %v556
                %v558 = vld [vmem:[%s552 + $0x30] sm:%s545]
                %559 = vst [vmem:[%s553 + $0x30] sm:%s545] %v558
                %v560 = vld [vmem:[%s552 + $0x48] sm:%s545]
                %561 = vst [vmem:[%s553 + $0x48] sm:%s545] %v560
                %v562 = vld [vmem:[%s552 + $0x60] sm:%s545]
                %563 = vst [vmem:[%s553 + $0x60] sm:%s545] %v562
                %v564 = vld [vmem:[%s552 + $0x78] sm:%s545]
                %565 = vst [vmem:[%s553 + $0x78] sm:%s545] %v564
                %v566 = vld [vmem:[%s552 + $0x90] sm:%s545]
                %567 = vst [vmem:[%s553 + $0x90] sm:%s545] %v566
                %v568 = vld [vmem:[%s552 + $0xa8] sm:%s545]
                %569 = vst [vmem:[%s553 + $0xa8] sm:%s545] %v568
                %v570 = vld [vmem:[%s552 + $0xc0] sm:%s545]
                %571 = vst [vmem:[%s553 + $0xc0] sm:%s545] %v570
                %v572 = vld [vmem:[%s552 + $0xd8] sm:%s545]
                %573 = vst [vmem:[%s553 + $0xd8] sm:%s545] %v572
              $region124: #{tpu_custom_call.1} parent=111 // loop_footer
                %s551 = sadd.s32 1, %s547
              $region125: #{tpu_custom_call.1} parent=111 // loop_footer_branch
                %546 = sbr.rel target = $region121
              $region126: #{tpu_custom_call.1} parent=111 // loop_exit
                _
            $region112: #{tpu_custom_call.1} parent=96 // pred_fallthru
              _
          $region97: #{tpu_custom_call.1} parent=92 // pred_fallthru
            _
          // Predicated region
          $region98: #{tpu_custom_call.1} parent=92 // pred_check
            %p455 = pneg %p451
          $region99: #{tpu_custom_call.1} parent=92 // pred_check_branch
            %457 = sbr.rel (%p455) target = $region101
          $region100: #{tpu_custom_call.1} parent=92 // pred_region
            %s458 = sshllo.u32 0, 22
            loop: start=0, step=1, limit=1
            $region102: #{tpu_custom_call.1} parent=100 // loop_pre_header
              _
            $region103: #{tpu_custom_call.1} parent=100 // loop_header
              %s460 = sphi 0, %s464
              %p461 = scmp.ge.s32.totalorder %s460, 1
              %s465 = sphi %s446, %s446
              %s466 = sphi %s448, %s448
            $region104: #{tpu_custom_call.1} parent=100 // loop_header_branch
              %463 = sbr.rel (%p461) target = $region108
            $region105: #{tpu_custom_call.1} parent=100 // loop_body
              %v467 = vld [vmem:[%s465] sm:%s458]
              %468 = vst [vmem:[%s466] sm:%s458] %v467
              %v469 = vld [vmem:[%s465 + $0x18] sm:%s458]
              %470 = vst [vmem:[%s466 + $0x18] sm:%s458] %v469
              %v471 = vld [vmem:[%s465 + $0x30] sm:%s458]
              %472 = vst [vmem:[%s466 + $0x30] sm:%s458] %v471
              %v473 = vld [vmem:[%s465 + $0x48] sm:%s458]
              %474 = vst [vmem:[%s466 + $0x48] sm:%s458] %v473
              %v475 = vld [vmem:[%s465 + $0x60] sm:%s458]
              %476 = vst [vmem:[%s466 + $0x60] sm:%s458] %v475
              %v477 = vld [vmem:[%s465 + $0x78] sm:%s458]
              %478 = vst [vmem:[%s466 + $0x78] sm:%s458] %v477
              %v479 = vld [vmem:[%s465 + $0x90] sm:%s458]
              %480 = vst [vmem:[%s466 + $0x90] sm:%s458] %v479
              %v481 = vld [vmem:[%s465 + $0xa8] sm:%s458]
              %482 = vst [vmem:[%s466 + $0xa8] sm:%s458] %v481
              %v483 = vld [vmem:[%s465 + $0xc0] sm:%s458]
              %484 = vst [vmem:[%s466 + $0xc0] sm:%s458] %v483
              %v485 = vld [vmem:[%s465 + $0xd8] sm:%s458]
              %486 = vst [vmem:[%s466 + $0xd8] sm:%s458] %v485
            $region106: #{tpu_custom_call.1} parent=100 // loop_footer
              %s464 = sadd.s32 1, %s460
            $region107: #{tpu_custom_call.1} parent=100 // loop_footer_branch
              %459 = sbr.rel target = $region103
            $region108: #{tpu_custom_call.1} parent=100 // loop_exit
              _
          $region101: #{tpu_custom_call.1} parent=92 // pred_fallthru
            _
          // Predicated region
          $region127: #{tpu_custom_call.1} parent=92 // pred_check
            _
          $region128: #{tpu_custom_call.1} parent=92 // pred_check_branch
            %576 = sbr.rel (0) target = $region130
          $region129: #{tpu_custom_call.1} parent=92 // pred_region
            %577 = vsyncadd %s449, 3520
          $region130: #{tpu_custom_call.1} parent=92 // pred_fallthru
            _
        $region93: #{tpu_custom_call.1} parent=39 // pred_fallthru
          _
        %s578 = scalar_lea.vmem %s418, 72 [#allocation2]
        %v579 = vld [vmem:[%s578 + $0x3] sm:$0xff]
        %v580 = vld [vmem:[%s578 + $0xb] sm:$0xff]
        %v581 = vld [vmem:[%s578 + $0x1b] sm:$0xff]
        %v582 = vld [vmem:[%s578 + $0x23] sm:$0xff]
        %v583 = vld [vmem:[%s578 + $0x33] sm:$0xff]
        %v584 = vld [vmem:[%s578 + $0x3b] sm:$0xff]
        %v585 = vld [vmem:[%s578 + $0x4b] sm:$0xff]
        %v586 = vld [vmem:[%s578 + $0x53] sm:$0xff]
        %v587 = vld [vmem:[%s1] sm:$0xff]
        %v588 = vld [vmem:[%s1 + $0x8] sm:$0xff]
        %v589 = vld [vmem:[%s1 + $0x10] sm:$0xff]
        %v590 = vld [vmem:[%s1 + $0x18] sm:$0xff]
        %v591 = vld [vmem:[%s1 + $0x20] sm:$0xff]
        %v592 = vld [vmem:[%s1 + $0x28] sm:$0xff]
        %v593 = vld [vmem:[%s1 + $0x30] sm:$0xff]
        %v594 = vld [vmem:[%s1 + $0x38] sm:$0xff]
        %v595 = vld [vmem:[%s1 + $0x40] sm:$0xff]
        %v596 = vld [vmem:[%s1 + $0x48] sm:$0xff]
        %v597 = vld [vmem:[%s1 + $0x50] sm:$0xff]
        %v598 = vld [vmem:[%s1 + $0x58] sm:$0xff]
        %v599 = vld [vmem:[%s1 + $0x60] sm:$0xff]
        %v600 = vld [vmem:[%s1 + $0x68] sm:$0xff]
        %v601 = vld [vmem:[%s1 + $0x70] sm:$0xff]
        %v602 = vld [vmem:[%s1 + $0x78] sm:$0xff]
        %603 = vmatprep.subr.mxu0 0.0
        %604 = vmatpush1.msra.mxu0 %v587
        %605 = vmatprep.subr.mxu0 0.0
        %606 = vmatpush1.msra.mxu0 %v588
        %607 = vmatprep.subr.mxu0 0.0
        %608 = vmatpush1.msra.mxu0 %v589
        %609 = vmatprep.subr.mxu0 0.0
        %610 = vmatpush1.msra.mxu0 %v590
        %611 = vmatprep.subr.mxu0 0.0
        %612 = vmatpush1.msra.mxu0 %v591
        %613 = vmatprep.subr.mxu0 0.0
        %614 = vmatpush1.msra.mxu0 %v592
        %615 = vmatprep.subr.mxu0 0.0
        %616 = vmatpush1.msra.mxu0 %v593
        %617 = vmatprep.subr.mxu0 0.0
        %618 = vmatpush1.msra.mxu0 %v594
        %619 = vmatprep.subr.mxu0 0.0
        %620 = vmatpush1.msra.mxu0 %v595
        %621 = vmatprep.subr.mxu0 0.0
        %622 = vmatpush1.msra.mxu0 %v596
        %623 = vmatprep.subr.mxu0 0.0
        %624 = vmatpush1.msra.mxu0 %v597
        %625 = vmatprep.subr.mxu0 0.0
        %626 = vmatpush1.msra.mxu0 %v598
        %627 = vmatprep.subr.mxu0 0.0
        %628 = vmatpush1.msra.mxu0 %v599
        %629 = vmatprep.subr.mxu0 0.0
        %630 = vmatpush1.msra.mxu0 %v600
        %631 = vmatprep.subr.mxu0 0.0
        %632 = vmatpush1.msra.mxu0 %v601
        %633 = vmatprep.subr.mxu0 0.0
        %634 = vmatpush1.msra.mxu0 %v602
        %635 = vmatprep.subr.mxu0 0.0
        %636 = vmatpush1.msra.mxu0 0.0
        %637 = vmatprep.subr.mxu0 0.0
        %638 = vmatpush1.msra.mxu0 0.0
        %639 = vmatprep.subr.mxu0 0.0
        %640 = vmatpush1.msra.mxu0 0.0
        %641 = vmatprep.subr.mxu0 0.0
        %642 = vmatpush1.msra.mxu0 0.0
        %643 = vmatprep.subr.mxu0 0.0
        %644 = vmatpush1.msra.mxu0 0.0
        %645 = vmatprep.subr.mxu0 0.0
        %646 = vmatpush1.msra.mxu0 0.0
        %647 = vmatprep.subr.mxu0 0.0
        %648 = vmatpush1.msra.mxu0 0.0
        %649 = vmatprep.subr.mxu0 0.0
        %650 = vmatpush1.msra.mxu0 0.0
        %651 = vmatprep.subr.mxu0 0.0
        %652 = vmatpush1.msra.mxu0 0.0
        %653 = vmatprep.subr.mxu0 0.0
        %654 = vmatpush1.msra.mxu0 0.0
        %655 = vmatprep.subr.mxu0 0.0
        %656 = vmatpush1.msra.mxu0 0.0
        %657 = vmatprep.subr.mxu0 0.0
        %658 = vmatpush1.msra.mxu0 0.0
        %659 = vmatprep.subr.mxu0 0.0
        %660 = vmatpush1.msra.mxu0 0.0
        %661 = vmatprep.subr.mxu0 0.0
        %662 = vmatpush1.msra.mxu0 0.0
        %663 = vmatprep.subr.mxu0 0.0
        %664 = vmatpush1.msra.mxu0 0.0
        %665 = vmatprep.subr.mxu0 0.0
        %666 = vmatpush1.msra.mxu0 0.0
        %667 = vmatprep.mubr.f32.mxu0 0.0
        %668 = vmatmul.mubr.f32.gmra.mrb[0].mxu0 %v579
        %v669 = vpop.f32.mrb[0].mxu0
        %v670 = vadd.f32 0.0, %v669
        %v671 = vpop.f32.mrb[0].mxu0
        %672 = vmatprep.mubr.f32.mxu0 0.0
        %673 = vmatmul.mubr.f32.gmra.mrb[0].mxu0 %v580
        %v674 = vpop.f32.mrb[0].mxu0
        %v675 = vadd.f32 0.0, %v674
        %v676 = vpop.f32.mrb[0].mxu0
        %677 = vmatprep.mubr.f32.mxu0 0.0
        %678 = vmatmul.mubr.f32.gmra.mrb[0].mxu0 %v581
        %v679 = vpop.f32.mrb[0].mxu0
        %v680 = vadd.f32 0.0, %v679
        %v681 = vpop.f32.mrb[0].mxu0
        %682 = vmatprep.mubr.f32.mxu0 0.0
        %683 = vmatmul.mubr.f32.gmra.mrb[0].mxu0 %v582
        %v684 = vpop.f32.mrb[0].mxu0
        %v685 = vadd.f32 0.0, %v684
        %v686 = vpop.f32.mrb[0].mxu0
        %687 = vmatprep.mubr.f32.mxu0 0.0
        %688 = vmatmul.mubr.f32.gmra.mrb[0].mxu0 %v583
        %v689 = vpop.f32.mrb[0].mxu0
        %v690 = vadd.f32 0.0, %v689
        %v691 = vpop.f32.mrb[0].mxu0
        %692 = vmatprep.mubr.f32.mxu0 0.0
        %693 = vmatmul.mubr.f32.gmra.mrb[0].mxu0 %v584
        %v694 = vpop.f32.mrb[0].mxu0
        %v695 = vadd.f32 0.0, %v694
        %v696 = vpop.f32.mrb[0].mxu0
        %697 = vmatprep.mubr.f32.mxu0 0.0
        %698 = vmatmul.mubr.f32.gmra.mrb[0].mxu0 %v585
        %v699 = vpop.f32.mrb[0].mxu0
        %v700 = vadd.f32 0.0, %v699
        %v701 = vpop.f32.mrb[0].mxu0
        %702 = vmatprep.mubr.f32.mxu0 0.0
        %703 = vmatmul.mubr.f32.gmra.mrb[0].mxu0 %v586
        %v704 = vpop.f32.mrb[0].mxu0
        %v705 = vadd.f32 0.0, %v704
        %v706 = vpop.f32.mrb[0].mxu0
        %707 = vdwg.mxu0
        %v708 = vmax.f32 %v670, 0.0
        %v709 = vmax.f32 %v675, 0.0
        %v710 = vmax.f32 %v680, 0.0
        %v711 = vmax.f32 %v685, 0.0
        %v712 = vmax.f32 %v690, 0.0
        %v713 = vmax.f32 %v695, 0.0
        %v714 = vmax.f32 %v700, 0.0
        %v715 = vmax.f32 %v705, 0.0
        %v716 = vld [vmem:[%s5] sm:$0xff]
        %v717 = vld [vmem:[%s5 + $0x8] sm:$0xff]
        %v718 = vld [vmem:[%s5 + $0x10] sm:$0xff]
        %v719 = vld [vmem:[%s5 + $0x18] sm:$0xff]
        %v720 = vld [vmem:[%s5 + $0x20] sm:$0xff]
        %v721 = vld [vmem:[%s5 + $0x28] sm:$0xff]
        %v722 = vld [vmem:[%s5 + $0x30] sm:$0xff]
        %v723 = vld [vmem:[%s5 + $0x38] sm:$0xff]
        %v724 = vld [vmem:[%s5 + $0x40] sm:$0xff]
        %v725 = vld [vmem:[%s5 + $0x48] sm:$0xff]
        %v726 = vld [vmem:[%s5 + $0x50] sm:$0xff]
        %v727 = vld [vmem:[%s5 + $0x58] sm:$0xff]
        %v728 = vld [vmem:[%s5 + $0x60] sm:$0xff]
        %v729 = vld [vmem:[%s5 + $0x68] sm:$0xff]
        %v730 = vld [vmem:[%s5 + $0x70] sm:$0xff]
        %v731 = vld [vmem:[%s5 + $0x78] sm:$0xff]
        %s732 = scalar_lea.vmem %s418, 48 [#allocation2]
        %v733 = vld [vmem:[%s732 + $0x2] sm:$0xff]
        %v734 = vld [vmem:[%s732 + $0xa] sm:$0xff]
        %v735 = vld [vmem:[%s732 + $0x1a] sm:$0xff]
        %v736 = vld [vmem:[%s732 + $0x22] sm:$0xff]
        %v737 = vld [vmem:[%s732 + $0x32] sm:$0xff]
        %v738 = vld [vmem:[%s732 + $0x3a] sm:$0xff]
        %v739 = vld [vmem:[%s732 + $0x4a] sm:$0xff]
        %v740 = vld [vmem:[%s732 + $0x52] sm:$0xff]
        %v741 = vld [vmem:[%s2] sm:$0xff]
        %v742 = vld [vmem:[%s2 + $0x8] sm:$0xff]
        %v743 = vld [vmem:[%s2 + $0x10] sm:$0xff]
        %v744 = vld [vmem:[%s2 + $0x18] sm:$0xff]
        %v745 = vld [vmem:[%s2 + $0x20] sm:$0xff]
        %v746 = vld [vmem:[%s2 + $0x28] sm:$0xff]
        %v747 = vld [vmem:[%s2 + $0x30] sm:$0xff]
        %v748 = vld [vmem:[%s2 + $0x38] sm:$0xff]
        %v749 = vld [vmem:[%s2 + $0x40] sm:$0xff]
        %v750 = vld [vmem:[%s2 + $0x48] sm:$0xff]
        %v751 = vld [vmem:[%s2 + $0x50] sm:$0xff]
        %v752 = vld [vmem:[%s2 + $0x58] sm:$0xff]
        %v753 = vld [vmem:[%s2 + $0x60] sm:$0xff]
        %v754 = vld [vmem:[%s2 + $0x68] sm:$0xff]
        %v755 = vld [vmem:[%s2 + $0x70] sm:$0xff]
        %v756 = vld [vmem:[%s2 + $0x78] sm:$0xff]
        %v757 = vld [vmem:[%s732 + $0x3] sm:$0xff]
        %v758 = vld [vmem:[%s732 + $0xb] sm:$0xff]
        %v759 = vld [vmem:[%s732 + $0x1b] sm:$0xff]
        %v760 = vld [vmem:[%s732 + $0x23] sm:$0xff]
        %v761 = vld [vmem:[%s732 + $0x33] sm:$0xff]
        %v762 = vld [vmem:[%s732 + $0x3b] sm:$0xff]
        %v763 = vld [vmem:[%s732 + $0x4b] sm:$0xff]
        %v764 = vld [vmem:[%s732 + $0x53] sm:$0xff]
        %s765 = scalar_lea.vmem %s2, 128
        %v766 = vld [vmem:[%s765] sm:$0xff]
        %v767 = vld [vmem:[%s765 + $0x8] sm:$0xff]
        %v768 = vld [vmem:[%s765 + $0x10] sm:$0xff]
        %v769 = vld [vmem:[%s765 + $0x18] sm:$0xff]
        %v770 = vld [vmem:[%s765 + $0x20] sm:$0xff]
        %v771 = vld [vmem:[%s765 + $0x28] sm:$0xff]
        %v772 = vld [vmem:[%s765 + $0x30] sm:$0xff]
        %v773 = vld [vmem:[%s765 + $0x38] sm:$0xff]
        %v774 = vld [vmem:[%s765 + $0x40] sm:$0xff]
        %v775 = vld [vmem:[%s765 + $0x48] sm:$0xff]
        %v776 = vld [vmem:[%s765 + $0x50] sm:$0xff]
        %v777 = vld [vmem:[%s765 + $0x58] sm:$0xff]
        %v778 = vld [vmem:[%s765 + $0x60] sm:$0xff]
        %v779 = vld [vmem:[%s765 + $0x68] sm:$0xff]
        %v780 = vld [vmem:[%s765 + $0x70] sm:$0xff]
        %v781 = vld [vmem:[%s765 + $0x78] sm:$0xff]
        %782 = vmatprep.subr.mxu0 0.0
        %783 = vmatpush1.msra.mxu0 %v766
        %784 = vmatprep.subr.mxu0 0.0
        %785 = vmatpush1.msra.mxu0 %v767
        %786 = vmatprep.subr.mxu0 0.0
        %787 = vmatpush1.msra.mxu0 %v768
        %788 = vmatprep.subr.mxu0 0.0
        %789 = vmatpush1.msra.mxu0 %v769
        %790 = vmatprep.subr.mxu0 0.0
        %791 = vmatpush1.msra.mxu0 %v770
        %792 = vmatprep.subr.mxu0 0.0
        %793 = vmatpush1.msra.mxu0 %v771
        %794 = vmatprep.subr.mxu0 0.0
        %795 = vmatpush1.msra.mxu0 %v772
        %796 = vmatprep.subr.mxu0 0.0
        %797 = vmatpush1.msra.mxu0 %v773
        %798 = vmatprep.subr.mxu0 0.0
        %799 = vmatpush1.msra.mxu0 %v774
        %800 = vmatprep.subr.mxu0 0.0
        %801 = vmatpush1.msra.mxu0 %v775
        %802 = vmatprep.subr.mxu0 0.0
        %803 = vmatpush1.msra.mxu0 %v776
        %804 = vmatprep.subr.mxu0 0.0
        %805 = vmatpush1.msra.mxu0 %v777
        %806 = vmatprep.subr.mxu0 0.0
        %807 = vmatpush1.msra.mxu0 %v778
        %808 = vmatprep.subr.mxu0 0.0
        %809 = vmatpush1.msra.mxu0 %v779
        %810 = vmatprep.subr.mxu0 0.0
        %811 = vmatpush1.msra.mxu0 %v780
        %812 = vmatprep.subr.mxu0 0.0
        %813 = vmatpush1.msra.mxu0 %v781
        %814 = vmatprep.subr.mxu0 0.0
        %815 = vmatpush1.msra.mxu0 0.0
        %816 = vmatprep.subr.mxu0 0.0
        %817 = vmatpush1.msra.mxu0 0.0
        %818 = vmatprep.subr.mxu0 0.0
        %819 = vmatpush1.msra.mxu0 0.0
        %820 = vmatprep.subr.mxu0 0.0
        %821 = vmatpush1.msra.mxu0 0.0
        %822 = vmatprep.subr.mxu0 0.0
        %823 = vmatpush1.msra.mxu0 0.0
        %824 = vmatprep.subr.mxu0 0.0
        %825 = vmatpush1.msra.mxu0 0.0
        %826 = vmatprep.subr.mxu0 0.0
        %827 = vmatpush1.msra.mxu0 0.0
        %828 = vmatprep.subr.mxu0 0.0
        %829 = vmatpush1.msra.mxu0 0.0
        %830 = vmatprep.subr.mxu0 0.0
        %831 = vmatpush1.msra.mxu0 0.0
        %832 = vmatprep.subr.mxu0 0.0
        %833 = vmatpush1.msra.mxu0 0.0
        %834 = vmatprep.subr.mxu0 0.0
        %835 = vmatpush1.msra.mxu0 0.0
        %836 = vmatprep.subr.mxu0 0.0
        %837 = vmatpush1.msra.mxu0 0.0
        %838 = vmatprep.subr.mxu0 0.0
        %839 = vmatpush1.msra.mxu0 0.0
        %840 = vmatprep.subr.mxu0 0.0
        %841 = vmatpush1.msra.mxu0 0.0
        %842 = vmatprep.subr.mxu0 0.0
        %843 = vmatpush1.msra.mxu0 0.0
        %844 = vmatprep.subr.mxu0 0.0
        %845 = vmatpush1.msra.mxu0 0.0
        %846 = vmatprep.mubr.f32.mxu0 0.0
        %847 = vmatmul.mubr.f32.gmra.mrb[0].mxu0 %v757
        %v848 = vpop.f32.mrb[0].mxu0
        %v849 = vadd.f32 0.0, %v848
        %v850 = vpop.f32.mrb[0].mxu0
        %851 = vmatprep.mubr.f32.mxu0 0.0
        %852 = vmatmul.mubr.f32.gmra.mrb[0].mxu0 %v758
        %v853 = vpop.f32.mrb[0].mxu0
        %v854 = vadd.f32 0.0, %v853
        %v855 = vpop.f32.mrb[0].mxu0
        %856 = vmatprep.mubr.f32.mxu0 0.0
        %857 = vmatmul.mubr.f32.gmra.mrb[0].mxu0 %v759
        %v858 = vpop.f32.mrb[0].mxu0
        %v859 = vadd.f32 0.0, %v858
        %v860 = vpop.f32.mrb[0].mxu0
        %861 = vmatprep.mubr.f32.mxu0 0.0
        %862 = vmatmul.mubr.f32.gmra.mrb[0].mxu0 %v760
        %v863 = vpop.f32.mrb[0].mxu0
        %v864 = vadd.f32 0.0, %v863
        %v865 = vpop.f32.mrb[0].mxu0
        %866 = vmatprep.mubr.f32.mxu0 0.0
        %867 = vmatmul.mubr.f32.gmra.mrb[0].mxu0 %v761
        %v868 = vpop.f32.mrb[0].mxu0
        %v869 = vadd.f32 0.0, %v868
        %v870 = vpop.f32.mrb[0].mxu0
        %871 = vmatprep.mubr.f32.mxu0 0.0
        %872 = vmatmul.mubr.f32.gmra.mrb[0].mxu0 %v762
        %v873 = vpop.f32.mrb[0].mxu0
        %v874 = vadd.f32 0.0, %v873
        %v875 = vpop.f32.mrb[0].mxu0
        %876 = vmatprep.mubr.f32.mxu0 0.0
        %877 = vmatmul.mubr.f32.gmra.mrb[0].mxu0 %v763
        %v878 = vpop.f32.mrb[0].mxu0
        %v879 = vadd.f32 0.0, %v878
        %v880 = vpop.f32.mrb[0].mxu0
        %881 = vmatprep.mubr.f32.mxu0 0.0
        %882 = vmatmul.mubr.f32.gmra.mrb[0].mxu0 %v764
        %v883 = vpop.f32.mrb[0].mxu0
        %v884 = vadd.f32 0.0, %v883
        %v885 = vpop.f32.mrb[0].mxu0
        %886 = vdwg.mxu0
        %887 = vmatprep.subr.mxu0 0.0
        %888 = vmatpush1.msra.mxu0 %v741
        %889 = vmatprep.subr.mxu0 0.0
        %890 = vmatpush1.msra.mxu0 %v742
        %891 = vmatprep.subr.mxu0 0.0
        %892 = vmatpush1.msra.mxu0 %v743
        %893 = vmatprep.subr.mxu0 0.0
        %894 = vmatpush1.msra.mxu0 %v744
        %895 = vmatprep.subr.mxu0 0.0
        %896 = vmatpush1.msra.mxu0 %v745
        %897 = vmatprep.subr.mxu0 0.0
        %898 = vmatpush1.msra.mxu0 %v746
        %899 = vmatprep.subr.mxu0 0.0
        %900 = vmatpush1.msra.mxu0 %v747
        %901 = vmatprep.subr.mxu0 0.0
        %902 = vmatpush1.msra.mxu0 %v748
        %903 = vmatprep.subr.mxu0 0.0
        %904 = vmatpush1.msra.mxu0 %v749
        %905 = vmatprep.subr.mxu0 0.0
        %906 = vmatpush1.msra.mxu0 %v750
        %907 = vmatprep.subr.mxu0 0.0
        %908 = vmatpush1.msra.mxu0 %v751
        %909 = vmatprep.subr.mxu0 0.0
        %910 = vmatpush1.msra.mxu0 %v752
        %911 = vmatprep.subr.mxu0 0.0
        %912 = vmatpush1.msra.mxu0 %v753
        %913 = vmatprep.subr.mxu0 0.0
        %914 = vmatpush1.msra.mxu0 %v754
        %915 = vmatprep.subr.mxu0 0.0
        %916 = vmatpush1.msra.mxu0 %v755
        %917 = vmatprep.subr.mxu0 0.0
        %918 = vmatpush1.msra.mxu0 %v756
        %919 = vmatprep.subr.mxu0 0.0
        %920 = vmatpush1.msra.mxu0 0.0
        %921 = vmatprep.subr.mxu0 0.0
        %922 = vmatpush1.msra.mxu0 0.0
        %923 = vmatprep.subr.mxu0 0.0
        %924 = vmatpush1.msra.mxu0 0.0
        %925 = vmatprep.subr.mxu0 0.0
        %926 = vmatpush1.msra.mxu0 0.0
        %927 = vmatprep.subr.mxu0 0.0
        %928 = vmatpush1.msra.mxu0 0.0
        %929 = vmatprep.subr.mxu0 0.0
        %930 = vmatpush1.msra.mxu0 0.0
        %931 = vmatprep.subr.mxu0 0.0
        %932 = vmatpush1.msra.mxu0 0.0
        %933 = vmatprep.subr.mxu0 0.0
        %934 = vmatpush1.msra.mxu0 0.0
        %935 = vmatprep.subr.mxu0 0.0
        %936 = vmatpush1.msra.mxu0 0.0
        %937 = vmatprep.subr.mxu0 0.0
        %938 = vmatpush1.msra.mxu0 0.0
        %939 = vmatprep.subr.mxu0 0.0
        %940 = vmatpush1.msra.mxu0 0.0
        %941 = vmatprep.subr.mxu0 0.0
        %942 = vmatpush1.msra.mxu0 0.0
        %943 = vmatprep.subr.mxu0 0.0
        %944 = vmatpush1.msra.mxu0 0.0
        %945 = vmatprep.subr.mxu0 0.0
        %946 = vmatpush1.msra.mxu0 0.0
        %947 = vmatprep.subr.mxu0 0.0
        %948 = vmatpush1.msra.mxu0 0.0
        %949 = vmatprep.subr.mxu0 0.0
        %950 = vmatpush1.msra.mxu0 0.0
        %951 = vmatprep.mubr.f32.mxu0 0.0
        %952 = vmatmul.mubr.f32.gmra.mrb[0].mxu0 %v733
        %v953 = vpop.f32.mrb[0].mxu0
        %v954 = vadd.f32 %v849, %v953
        %v955 = vpop.f32.mrb[0].mxu0
        %956 = vmatprep.mubr.f32.mxu0 0.0
        %957 = vmatmul.mubr.f32.gmra.mrb[0].mxu0 %v734
        %v958 = vpop.f32.mrb[0].mxu0
        %v959 = vadd.f32 %v854, %v958
        %v960 = vpop.f32.mrb[0].mxu0
        %961 = vmatprep.mubr.f32.mxu0 0.0
        %962 = vmatmul.mubr.f32.gmra.mrb[0].mxu0 %v735
        %v963 = vpop.f32.mrb[0].mxu0
        %v964 = vadd.f32 %v859, %v963
        %v965 = vpop.f32.mrb[0].mxu0
        %966 = vmatprep.mubr.f32.mxu0 0.0
        %967 = vmatmul.mubr.f32.gmra.mrb[0].mxu0 %v736
        %v968 = vpop.f32.mrb[0].mxu0
        %v969 = vadd.f32 %v864, %v968
        %v970 = vpop.f32.mrb[0].mxu0
        %971 = vmatprep.mubr.f32.mxu0 0.0
        %972 = vmatmul.mubr.f32.gmra.mrb[0].mxu0 %v737
        %v973 = vpop.f32.mrb[0].mxu0
        %v974 = vadd.f32 %v869, %v973
        %v975 = vpop.f32.mrb[0].mxu0
        %976 = vmatprep.mubr.f32.mxu0 0.0
        %977 = vmatmul.mubr.f32.gmra.mrb[0].mxu0 %v738
        %v978 = vpop.f32.mrb[0].mxu0
        %v979 = vadd.f32 %v874, %v978
        %v980 = vpop.f32.mrb[0].mxu0
        %981 = vmatprep.mubr.f32.mxu0 0.0
        %982 = vmatmul.mubr.f32.gmra.mrb[0].mxu0 %v739
        %v983 = vpop.f32.mrb[0].mxu0
        %v984 = vadd.f32 %v879, %v983
        %v985 = vpop.f32.mrb[0].mxu0
        %986 = vmatprep.mubr.f32.mxu0 0.0
        %987 = vmatmul.mubr.f32.gmra.mrb[0].mxu0 %v740
        %v988 = vpop.f32.mrb[0].mxu0
        %v989 = vadd.f32 %v884, %v988
        %v990 = vpop.f32.mrb[0].mxu0
        %991 = vdwg.mxu0
        %v992 = vld [vmem:[%s732 + $0x4] sm:$0xff]
        %v993 = vld [vmem:[%s732 + $0xc] sm:$0xff]
        %v994 = vld [vmem:[%s732 + $0x1c] sm:$0xff]
        %v995 = vld [vmem:[%s732 + $0x24] sm:$0xff]
        %v996 = vld [vmem:[%s732 + $0x34] sm:$0xff]
        %v997 = vld [vmem:[%s732 + $0x3c] sm:$0xff]
        %v998 = vld [vmem:[%s732 + $0x4c] sm:$0xff]
        %v999 = vld [vmem:[%s732 + $0x54] sm:$0xff]
        %s1000 = scalar_lea.vmem %s2, 256
        %v1001 = vld [vmem:[%s1000] sm:$0xff]
        %v1002 = vld [vmem:[%s1000 + $0x8] sm:$0xff]
        %v1003 = vld [vmem:[%s1000 + $0x10] sm:$0xff]
        %v1004 = vld [vmem:[%s1000 + $0x18] sm:$0xff]
        %v1005 = vld [vmem:[%s1000 + $0x20] sm:$0xff]
        %v1006 = vld [vmem:[%s1000 + $0x28] sm:$0xff]
        %v1007 = vld [vmem:[%s1000 + $0x30] sm:$0xff]
        %v1008 = vld [vmem:[%s1000 + $0x38] sm:$0xff]
        %v1009 = vld [vmem:[%s1000 + $0x40] sm:$0xff]
        %v1010 = vld [vmem:[%s1000 + $0x48] sm:$0xff]
        %v1011 = vld [vmem:[%s1000 + $0x50] sm:$0xff]
        %v1012 = vld [vmem:[%s1000 + $0x58] sm:$0xff]
        %v1013 = vld [vmem:[%s1000 + $0x60] sm:$0xff]
        %v1014 = vld [vmem:[%s1000 + $0x68] sm:$0xff]
        %v1015 = vld [vmem:[%s1000 + $0x70] sm:$0xff]
        %v1016 = vld [vmem:[%s1000 + $0x78] sm:$0xff]
        %1017 = vmatprep.subr.mxu0 0.0
        %1018 = vmatpush1.msra.mxu0 %v1001
        %1019 = vmatprep.subr.mxu0 0.0
        %1020 = vmatpush1.msra.mxu0 %v1002
        %1021 = vmatprep.subr.mxu0 0.0
        %1022 = vmatpush1.msra.mxu0 %v1003
        %1023 = vmatprep.subr.mxu0 0.0
        %1024 = vmatpush1.msra.mxu0 %v1004
        %1025 = vmatprep.subr.mxu0 0.0
        %1026 = vmatpush1.msra.mxu0 %v1005
        %1027 = vmatprep.subr.mxu0 0.0
        %1028 = vmatpush1.msra.mxu0 %v1006
        %1029 = vmatprep.subr.mxu0 0.0
        %1030 = vmatpush1.msra.mxu0 %v1007
        %1031 = vmatprep.subr.mxu0 0.0
        %1032 = vmatpush1.msra.mxu0 %v1008
        %1033 = vmatprep.subr.mxu0 0.0
        %1034 = vmatpush1.msra.mxu0 %v1009
        %1035 = vmatprep.subr.mxu0 0.0
        %1036 = vmatpush1.msra.mxu0 %v1010
        %1037 = vmatprep.subr.mxu0 0.0
        %1038 = vmatpush1.msra.mxu0 %v1011
        %1039 = vmatprep.subr.mxu0 0.0
        %1040 = vmatpush1.msra.mxu0 %v1012
        %1041 = vmatprep.subr.mxu0 0.0
        %1042 = vmatpush1.msra.mxu0 %v1013
        %1043 = vmatprep.subr.mxu0 0.0
        %1044 = vmatpush1.msra.mxu0 %v1014
        %1045 = vmatprep.subr.mxu0 0.0
        %1046 = vmatpush1.msra.mxu0 %v1015
        %1047 = vmatprep.subr.mxu0 0.0
        %1048 = vmatpush1.msra.mxu0 %v1016
        %1049 = vmatprep.subr.mxu0 0.0
        %1050 = vmatpush1.msra.mxu0 0.0
        %1051 = vmatprep.subr.mxu0 0.0
        %1052 = vmatpush1.msra.mxu0 0.0
        %1053 = vmatprep.subr.mxu0 0.0
        %1054 = vmatpush1.msra.mxu0 0.0
        %1055 = vmatprep.subr.mxu0 0.0
        %1056 = vmatpush1.msra.mxu0 0.0
        %1057 = vmatprep.subr.mxu0 0.0
        %1058 = vmatpush1.msra.mxu0 0.0
        %1059 = vmatprep.subr.mxu0 0.0
        %1060 = vmatpush1.msra.mxu0 0.0
        %1061 = vmatprep.subr.mxu0 0.0
        %1062 = vmatpush1.msra.mxu0 0.0
        %1063 = vmatprep.subr.mxu0 0.0
        %1064 = vmatpush1.msra.mxu0 0.0
        %1065 = vmatprep.subr.mxu0 0.0
        %1066 = vmatpush1.msra.mxu0 0.0
        %1067 = vmatprep.subr.mxu0 0.0
        %1068 = vmatpush1.msra.mxu0 0.0
        %1069 = vmatprep.subr.mxu0 0.0
        %1070 = vmatpush1.msra.mxu0 0.0
        %1071 = vmatprep.subr.mxu0 0.0
        %1072 = vmatpush1.msra.mxu0 0.0
        %1073 = vmatprep.subr.mxu0 0.0
        %1074 = vmatpush1.msra.mxu0 0.0
        %1075 = vmatprep.subr.mxu0 0.0
        %1076 = vmatpush1.msra.mxu0 0.0
        %1077 = vmatprep.subr.mxu0 0.0
        %1078 = vmatpush1.msra.mxu0 0.0
        %1079 = vmatprep.subr.mxu0 0.0
        %1080 = vmatpush1.msra.mxu0 0.0
        %1081 = vmatprep.mubr.f32.mxu0 0.0
        %1082 = vmatmul.mubr.f32.gmra.mrb[0].mxu0 %v992
        %v1083 = vpop.f32.mrb[0].mxu0
        %v1084 = vadd.f32 0.0, %v1083
        %v1085 = vpop.f32.mrb[0].mxu0
        %1086 = vmatprep.mubr.f32.mxu0 0.0
        %1087 = vmatmul.mubr.f32.gmra.mrb[0].mxu0 %v993
        %v1088 = vpop.f32.mrb[0].mxu0
        %v1089 = vadd.f32 0.0, %v1088
        %v1090 = vpop.f32.mrb[0].mxu0
        %1091 = vmatprep.mubr.f32.mxu0 0.0
        %1092 = vmatmul.mubr.f32.gmra.mrb[0].mxu0 %v994
        %v1093 = vpop.f32.mrb[0].mxu0
        %v1094 = vadd.f32 0.0, %v1093
        %v1095 = vpop.f32.mrb[0].mxu0
        %1096 = vmatprep.mubr.f32.mxu0 0.0
        %1097 = vmatmul.mubr.f32.gmra.mrb[0].mxu0 %v995
        %v1098 = vpop.f32.mrb[0].mxu0
        %v1099 = vadd.f32 0.0, %v1098
        %v1100 = vpop.f32.mrb[0].mxu0
        %1101 = vmatprep.mubr.f32.mxu0 0.0
        %1102 = vmatmul.mubr.f32.gmra.mrb[0].mxu0 %v996
        %v1103 = vpop.f32.mrb[0].mxu0
        %v1104 = vadd.f32 0.0, %v1103
        %v1105 = vpop.f32.mrb[0].mxu0
        %1106 = vmatprep.mubr.f32.mxu0 0.0
        %1107 = vmatmul.mubr.f32.gmra.mrb[0].mxu0 %v997
        %v1108 = vpop.f32.mrb[0].mxu0
        %v1109 = vadd.f32 0.0, %v1108
        %v1110 = vpop.f32.mrb[0].mxu0
        %1111 = vmatprep.mubr.f32.mxu0 0.0
        %1112 = vmatmul.mubr.f32.gmra.mrb[0].mxu0 %v998
        %v1113 = vpop.f32.mrb[0].mxu0
        %v1114 = vadd.f32 0.0, %v1113
        %v1115 = vpop.f32.mrb[0].mxu0
        %1116 = vmatprep.mubr.f32.mxu0 0.0
        %1117 = vmatmul.mubr.f32.gmra.mrb[0].mxu0 %v999
        %v1118 = vpop.f32.mrb[0].mxu0
        %v1119 = vadd.f32 0.0, %v1118
        %v1120 = vpop.f32.mrb[0].mxu0
        %1121 = vdwg.mxu0
        %v1122 = vadd.f32 %v954, %v1084
        %v1123 = vadd.f32 %v959, %v1089
        %v1124 = vadd.f32 %v964, %v1094
        %v1125 = vadd.f32 %v969, %v1099
        %v1126 = vadd.f32 %v974, %v1104
        %v1127 = vadd.f32 %v979, %v1109
        %v1128 = vadd.f32 %v984, %v1114
        %v1129 = vadd.f32 %v989, %v1119
        %v1130 = vld [vmem:[%s578 + $0x2] sm:$0xff]
        %v1131 = vld [vmem:[%s578 + $0xa] sm:$0xff]
        %v1132 = vld [vmem:[%s578 + $0x1a] sm:$0xff]
        %v1133 = vld [vmem:[%s578 + $0x22] sm:$0xff]
        %v1134 = vld [vmem:[%s578 + $0x32] sm:$0xff]
        %v1135 = vld [vmem:[%s578 + $0x3a] sm:$0xff]
        %v1136 = vld [vmem:[%s578 + $0x4a] sm:$0xff]
        %v1137 = vld [vmem:[%s578 + $0x52] sm:$0xff]
        %s1138 = scalar_lea.vmem %s2, 384
        %v1139 = vld [vmem:[%s1138] sm:$0xff]
        %v1140 = vld [vmem:[%s1138 + $0x8] sm:$0xff]
        %v1141 = vld [vmem:[%s1138 + $0x10] sm:$0xff]
        %v1142 = vld [vmem:[%s1138 + $0x18] sm:$0xff]
        %v1143 = vld [vmem:[%s1138 + $0x20] sm:$0xff]
        %v1144 = vld [vmem:[%s1138 + $0x28] sm:$0xff]
        %v1145 = vld [vmem:[%s1138 + $0x30] sm:$0xff]
        %v1146 = vld [vmem:[%s1138 + $0x38] sm:$0xff]
        %v1147 = vld [vmem:[%s1138 + $0x40] sm:$0xff]
        %v1148 = vld [vmem:[%s1138 + $0x48] sm:$0xff]
        %v1149 = vld [vmem:[%s1138 + $0x50] sm:$0xff]
        %v1150 = vld [vmem:[%s1138 + $0x58] sm:$0xff]
        %v1151 = vld [vmem:[%s1138 + $0x60] sm:$0xff]
        %v1152 = vld [vmem:[%s1138 + $0x68] sm:$0xff]
        %v1153 = vld [vmem:[%s1138 + $0x70] sm:$0xff]
        %v1154 = vld [vmem:[%s1138 + $0x78] sm:$0xff]
        %1155 = vmatprep.subr.mxu0 0.0
        %1156 = vmatpush1.msra.mxu0 %v1139
        %1157 = vmatprep.subr.mxu0 0.0
        %1158 = vmatpush1.msra.mxu0 %v1140
        %1159 = vmatprep.subr.mxu0 0.0
        %1160 = vmatpush1.msra.mxu0 %v1141
        %1161 = vmatprep.subr.mxu0 0.0
        %1162 = vmatpush1.msra.mxu0 %v1142
        %1163 = vmatprep.subr.mxu0 0.0
        %1164 = vmatpush1.msra.mxu0 %v1143
        %1165 = vmatprep.subr.mxu0 0.0
        %1166 = vmatpush1.msra.mxu0 %v1144
        %1167 = vmatprep.subr.mxu0 0.0
        %1168 = vmatpush1.msra.mxu0 %v1145
        %1169 = vmatprep.subr.mxu0 0.0
        %1170 = vmatpush1.msra.mxu0 %v1146
        %1171 = vmatprep.subr.mxu0 0.0
        %1172 = vmatpush1.msra.mxu0 %v1147
        %1173 = vmatprep.subr.mxu0 0.0
        %1174 = vmatpush1.msra.mxu0 %v1148
        %1175 = vmatprep.subr.mxu0 0.0
        %1176 = vmatpush1.msra.mxu0 %v1149
        %1177 = vmatprep.subr.mxu0 0.0
        %1178 = vmatpush1.msra.mxu0 %v1150
        %1179 = vmatprep.subr.mxu0 0.0
        %1180 = vmatpush1.msra.mxu0 %v1151
        %1181 = vmatprep.subr.mxu0 0.0
        %1182 = vmatpush1.msra.mxu0 %v1152
        %1183 = vmatprep.subr.mxu0 0.0
        %1184 = vmatpush1.msra.mxu0 %v1153
        %1185 = vmatprep.subr.mxu0 0.0
        %1186 = vmatpush1.msra.mxu0 %v1154
        %1187 = vmatprep.subr.mxu0 0.0
        %1188 = vmatpush1.msra.mxu0 0.0
        %1189 = vmatprep.subr.mxu0 0.0
        %1190 = vmatpush1.msra.mxu0 0.0
        %1191 = vmatprep.subr.mxu0 0.0
        %1192 = vmatpush1.msra.mxu0 0.0
        %1193 = vmatprep.subr.mxu0 0.0
        %1194 = vmatpush1.msra.mxu0 0.0
        %1195 = vmatprep.subr.mxu0 0.0
        %1196 = vmatpush1.msra.mxu0 0.0
        %1197 = vmatprep.subr.mxu0 0.0
        %1198 = vmatpush1.msra.mxu0 0.0
        %1199 = vmatprep.subr.mxu0 0.0
        %1200 = vmatpush1.msra.mxu0 0.0
        %1201 = vmatprep.subr.mxu0 0.0
        %1202 = vmatpush1.msra.mxu0 0.0
        %1203 = vmatprep.subr.mxu0 0.0
        %1204 = vmatpush1.msra.mxu0 0.0
        %1205 = vmatprep.subr.mxu0 0.0
        %1206 = vmatpush1.msra.mxu0 0.0
        %1207 = vmatprep.subr.mxu0 0.0
        %1208 = vmatpush1.msra.mxu0 0.0
        %1209 = vmatprep.subr.mxu0 0.0
        %1210 = vmatpush1.msra.mxu0 0.0
        %1211 = vmatprep.subr.mxu0 0.0
        %1212 = vmatpush1.msra.mxu0 0.0
        %1213 = vmatprep.subr.mxu0 0.0
        %1214 = vmatpush1.msra.mxu0 0.0
        %1215 = vmatprep.subr.mxu0 0.0
        %1216 = vmatpush1.msra.mxu0 0.0
        %1217 = vmatprep.subr.mxu0 0.0
        %1218 = vmatpush1.msra.mxu0 0.0
        %1219 = vmatprep.mubr.f32.mxu0 0.0
        %1220 = vmatmul.mubr.f32.gmra.mrb[0].mxu0 %v1130
        %v1221 = vpop.f32.mrb[0].mxu0
        %v1222 = vadd.f32 0.0, %v1221
        %v1223 = vpop.f32.mrb[0].mxu0
        %1224 = vmatprep.mubr.f32.mxu0 0.0
        %1225 = vmatmul.mubr.f32.gmra.mrb[0].mxu0 %v1131
        %v1226 = vpop.f32.mrb[0].mxu0
        %v1227 = vadd.f32 0.0, %v1226
        %v1228 = vpop.f32.mrb[0].mxu0
        %1229 = vmatprep.mubr.f32.mxu0 0.0
        %1230 = vmatmul.mubr.f32.gmra.mrb[0].mxu0 %v1132
        %v1231 = vpop.f32.mrb[0].mxu0
        %v1232 = vadd.f32 0.0, %v1231
        %v1233 = vpop.f32.mrb[0].mxu0
        %1234 = vmatprep.mubr.f32.mxu0 0.0
        %1235 = vmatmul.mubr.f32.gmra.mrb[0].mxu0 %v1133
        %v1236 = vpop.f32.mrb[0].mxu0
        %v1237 = vadd.f32 0.0, %v1236
        %v1238 = vpop.f32.mrb[0].mxu0
        %1239 = vmatprep.mubr.f32.mxu0 0.0
        %1240 = vmatmul.mubr.f32.gmra.mrb[0].mxu0 %v1134
        %v1241 = vpop.f32.mrb[0].mxu0
        %v1242 = vadd.f32 0.0, %v1241
        %v1243 = vpop.f32.mrb[0].mxu0
        %1244 = vmatprep.mubr.f32.mxu0 0.0
        %1245 = vmatmul.mubr.f32.gmra.mrb[0].mxu0 %v1135
        %v1246 = vpop.f32.mrb[0].mxu0
        %v1247 = vadd.f32 0.0, %v1246
        %v1248 = vpop.f32.mrb[0].mxu0
        %1249 = vmatprep.mubr.f32.mxu0 0.0
        %1250 = vmatmul.mubr.f32.gmra.mrb[0].mxu0 %v1136
        %v1251 = vpop.f32.mrb[0].mxu0
        %v1252 = vadd.f32 0.0, %v1251
        %v1253 = vpop.f32.mrb[0].mxu0
        %1254 = vmatprep.mubr.f32.mxu0 0.0
        %1255 = vmatmul.mubr.f32.gmra.mrb[0].mxu0 %v1137
        %v1256 = vpop.f32.mrb[0].mxu0
        %v1257 = vadd.f32 0.0, %v1256
        %v1258 = vpop.f32.mrb[0].mxu0
        %1259 = vdwg.mxu0
        %v1260 = vadd.f32 %v1122, %v1222
        %v1261 = vadd.f32 %v1123, %v1227
        %v1262 = vadd.f32 %v1124, %v1232
        %v1263 = vadd.f32 %v1125, %v1237
        %v1264 = vadd.f32 %v1126, %v1242
        %v1265 = vadd.f32 %v1127, %v1247
        %v1266 = vadd.f32 %v1128, %v1252
        %v1267 = vadd.f32 %v1129, %v1257
        %s1268 = scalar_lea.vmem %s2, 512
        %v1269 = vld [vmem:[%s1268] sm:$0xff]
        %v1270 = vld [vmem:[%s1268 + $0x8] sm:$0xff]
        %v1271 = vld [vmem:[%s1268 + $0x10] sm:$0xff]
        %v1272 = vld [vmem:[%s1268 + $0x18] sm:$0xff]
        %v1273 = vld [vmem:[%s1268 + $0x20] sm:$0xff]
        %v1274 = vld [vmem:[%s1268 + $0x28] sm:$0xff]
        %v1275 = vld [vmem:[%s1268 + $0x30] sm:$0xff]
        %v1276 = vld [vmem:[%s1268 + $0x38] sm:$0xff]
        %v1277 = vld [vmem:[%s1268 + $0x40] sm:$0xff]
        %v1278 = vld [vmem:[%s1268 + $0x48] sm:$0xff]
        %v1279 = vld [vmem:[%s1268 + $0x50] sm:$0xff]
        %v1280 = vld [vmem:[%s1268 + $0x58] sm:$0xff]
        %v1281 = vld [vmem:[%s1268 + $0x60] sm:$0xff]
        %v1282 = vld [vmem:[%s1268 + $0x68] sm:$0xff]
        %v1283 = vld [vmem:[%s1268 + $0x70] sm:$0xff]
        %v1284 = vld [vmem:[%s1268 + $0x78] sm:$0xff]
        %1285 = vmatprep.subr.mxu0 0.0
        %1286 = vmatpush1.msra.mxu0 %v1269
        %1287 = vmatprep.subr.mxu0 0.0
        %1288 = vmatpush1.msra.mxu0 %v1270
        %1289 = vmatprep.subr.mxu0 0.0
        %1290 = vmatpush1.msra.mxu0 %v1271
        %1291 = vmatprep.subr.mxu0 0.0
        %1292 = vmatpush1.msra.mxu0 %v1272
        %1293 = vmatprep.subr.mxu0 0.0
        %1294 = vmatpush1.msra.mxu0 %v1273
        %1295 = vmatprep.subr.mxu0 0.0
        %1296 = vmatpush1.msra.mxu0 %v1274
        %1297 = vmatprep.subr.mxu0 0.0
        %1298 = vmatpush1.msra.mxu0 %v1275
        %1299 = vmatprep.subr.mxu0 0.0
        %1300 = vmatpush1.msra.mxu0 %v1276
        %1301 = vmatprep.subr.mxu0 0.0
        %1302 = vmatpush1.msra.mxu0 %v1277
        %1303 = vmatprep.subr.mxu0 0.0
        %1304 = vmatpush1.msra.mxu0 %v1278
        %1305 = vmatprep.subr.mxu0 0.0
        %1306 = vmatpush1.msra.mxu0 %v1279
        %1307 = vmatprep.subr.mxu0 0.0
        %1308 = vmatpush1.msra.mxu0 %v1280
        %1309 = vmatprep.subr.mxu0 0.0
        %1310 = vmatpush1.msra.mxu0 %v1281
        %1311 = vmatprep.subr.mxu0 0.0
        %1312 = vmatpush1.msra.mxu0 %v1282
        %1313 = vmatprep.subr.mxu0 0.0
        %1314 = vmatpush1.msra.mxu0 %v1283
        %1315 = vmatprep.subr.mxu0 0.0
        %1316 = vmatpush1.msra.mxu0 %v1284
        %1317 = vmatprep.subr.mxu0 0.0
        %1318 = vmatpush1.msra.mxu0 0.0
        %1319 = vmatprep.subr.mxu0 0.0
        %1320 = vmatpush1.msra.mxu0 0.0
        %1321 = vmatprep.subr.mxu0 0.0
        %1322 = vmatpush1.msra.mxu0 0.0
        %1323 = vmatprep.subr.mxu0 0.0
        %1324 = vmatpush1.msra.mxu0 0.0
        %1325 = vmatprep.subr.mxu0 0.0
        %1326 = vmatpush1.msra.mxu0 0.0
        %1327 = vmatprep.subr.mxu0 0.0
        %1328 = vmatpush1.msra.mxu0 0.0
        %1329 = vmatprep.subr.mxu0 0.0
        %1330 = vmatpush1.msra.mxu0 0.0
        %1331 = vmatprep.subr.mxu0 0.0
        %1332 = vmatpush1.msra.mxu0 0.0
        %1333 = vmatprep.subr.mxu0 0.0
        %1334 = vmatpush1.msra.mxu0 0.0
        %1335 = vmatprep.subr.mxu0 0.0
        %1336 = vmatpush1.msra.mxu0 0.0
        %1337 = vmatprep.subr.mxu0 0.0
        %1338 = vmatpush1.msra.mxu0 0.0
        %1339 = vmatprep.subr.mxu0 0.0
        %1340 = vmatpush1.msra.mxu0 0.0
        %1341 = vmatprep.subr.mxu0 0.0
        %1342 = vmatpush1.msra.mxu0 0.0
        %1343 = vmatprep.subr.mxu0 0.0
        %1344 = vmatpush1.msra.mxu0 0.0
        %1345 = vmatprep.subr.mxu0 0.0
        %1346 = vmatpush1.msra.mxu0 0.0
        %1347 = vmatprep.subr.mxu0 0.0
        %1348 = vmatpush1.msra.mxu0 0.0
        %1349 = vmatprep.mubr.f32.mxu0 0.0
        %1350 = vmatmul.mubr.f32.gmra.mrb[0].mxu0 %v579
        %v1351 = vpop.f32.mrb[0].mxu0
        %v1352 = vadd.f32 0.0, %v1351
        %v1353 = vpop.f32.mrb[0].mxu0
        %1354 = vmatprep.mubr.f32.mxu0 0.0
        %1355 = vmatmul.mubr.f32.gmra.mrb[0].mxu0 %v580
        %v1356 = vpop.f32.mrb[0].mxu0
        %v1357 = vadd.f32 0.0, %v1356
        %v1358 = vpop.f32.mrb[0].mxu0
        %1359 = vmatprep.mubr.f32.mxu0 0.0
        %1360 = vmatmul.mubr.f32.gmra.mrb[0].mxu0 %v581
        %v1361 = vpop.f32.mrb[0].mxu0
        %v1362 = vadd.f32 0.0, %v1361
        %v1363 = vpop.f32.mrb[0].mxu0
        %1364 = vmatprep.mubr.f32.mxu0 0.0
        %1365 = vmatmul.mubr.f32.gmra.mrb[0].mxu0 %v582
        %v1366 = vpop.f32.mrb[0].mxu0
        %v1367 = vadd.f32 0.0, %v1366
        %v1368 = vpop.f32.mrb[0].mxu0
        %1369 = vmatprep.mubr.f32.mxu0 0.0
        %1370 = vmatmul.mubr.f32.gmra.mrb[0].mxu0 %v583
        %v1371 = vpop.f32.mrb[0].mxu0
        %v1372 = vadd.f32 0.0, %v1371
        %v1373 = vpop.f32.mrb[0].mxu0
        %1374 = vmatprep.mubr.f32.mxu0 0.0
        %1375 = vmatmul.mubr.f32.gmra.mrb[0].mxu0 %v584
        %v1376 = vpop.f32.mrb[0].mxu0
        %v1377 = vadd.f32 0.0, %v1376
        %v1378 = vpop.f32.mrb[0].mxu0
        %1379 = vmatprep.mubr.f32.mxu0 0.0
        %1380 = vmatmul.mubr.f32.gmra.mrb[0].mxu0 %v585
        %v1381 = vpop.f32.mrb[0].mxu0
        %v1382 = vadd.f32 0.0, %v1381
        %v1383 = vpop.f32.mrb[0].mxu0
        %1384 = vmatprep.mubr.f32.mxu0 0.0
        %1385 = vmatmul.mubr.f32.gmra.mrb[0].mxu0 %v586
        %v1386 = vpop.f32.mrb[0].mxu0
        %v1387 = vadd.f32 0.0, %v1386
        %v1388 = vpop.f32.mrb[0].mxu0
        %1389 = vdwg.mxu0
        %v1390 = vadd.f32 %v1260, %v1352
        %v1391 = vadd.f32 %v1261, %v1357
        %v1392 = vadd.f32 %v1262, %v1362
        %v1393 = vadd.f32 %v1263, %v1367
        %v1394 = vadd.f32 %v1264, %v1372
        %v1395 = vadd.f32 %v1265, %v1377
        %v1396 = vadd.f32 %v1266, %v1382
        %v1397 = vadd.f32 %v1267, %v1387
        %v1398 = vld [vmem:[%s578 + $0x4] sm:$0xff]
        %v1399 = vld [vmem:[%s578 + $0xc] sm:$0xff]
        %v1400 = vld [vmem:[%s578 + $0x1c] sm:$0xff]
        %v1401 = vld [vmem:[%s578 + $0x24] sm:$0xff]
        %v1402 = vld [vmem:[%s578 + $0x34] sm:$0xff]
        %v1403 = vld [vmem:[%s578 + $0x3c] sm:$0xff]
        %v1404 = vld [vmem:[%s578 + $0x4c] sm:$0xff]
        %v1405 = vld [vmem:[%s578 + $0x54] sm:$0xff]
        %s1406 = scalar_lea.vmem %s2, 640
        %v1407 = vld [vmem:[%s1406] sm:$0xff]
        %v1408 = vld [vmem:[%s1406 + $0x8] sm:$0xff]
        %v1409 = vld [vmem:[%s1406 + $0x10] sm:$0xff]
        %v1410 = vld [vmem:[%s1406 + $0x18] sm:$0xff]
        %v1411 = vld [vmem:[%s1406 + $0x20] sm:$0xff]
        %v1412 = vld [vmem:[%s1406 + $0x28] sm:$0xff]
        %v1413 = vld [vmem:[%s1406 + $0x30] sm:$0xff]
        %v1414 = vld [vmem:[%s1406 + $0x38] sm:$0xff]
        %v1415 = vld [vmem:[%s1406 + $0x40] sm:$0xff]
        %v1416 = vld [vmem:[%s1406 + $0x48] sm:$0xff]
        %v1417 = vld [vmem:[%s1406 + $0x50] sm:$0xff]
        %v1418 = vld [vmem:[%s1406 + $0x58] sm:$0xff]
        %v1419 = vld [vmem:[%s1406 + $0x60] sm:$0xff]
        %v1420 = vld [vmem:[%s1406 + $0x68] sm:$0xff]
        %v1421 = vld [vmem:[%s1406 + $0x70] sm:$0xff]
        %v1422 = vld [vmem:[%s1406 + $0x78] sm:$0xff]
        %1423 = vmatprep.subr.mxu0 0.0
        %1424 = vmatpush1.msra.mxu0 %v1407
        %1425 = vmatprep.subr.mxu0 0.0
        %1426 = vmatpush1.msra.mxu0 %v1408
        %1427 = vmatprep.subr.mxu0 0.0
        %1428 = vmatpush1.msra.mxu0 %v1409
        %1429 = vmatprep.subr.mxu0 0.0
        %1430 = vmatpush1.msra.mxu0 %v1410
        %1431 = vmatprep.subr.mxu0 0.0
        %1432 = vmatpush1.msra.mxu0 %v1411
        %1433 = vmatprep.subr.mxu0 0.0
        %1434 = vmatpush1.msra.mxu0 %v1412
        %1435 = vmatprep.subr.mxu0 0.0
        %1436 = vmatpush1.msra.mxu0 %v1413
        %1437 = vmatprep.subr.mxu0 0.0
        %1438 = vmatpush1.msra.mxu0 %v1414
        %1439 = vmatprep.subr.mxu0 0.0
        %1440 = vmatpush1.msra.mxu0 %v1415
        %1441 = vmatprep.subr.mxu0 0.0
        %1442 = vmatpush1.msra.mxu0 %v1416
        %1443 = vmatprep.subr.mxu0 0.0
        %1444 = vmatpush1.msra.mxu0 %v1417
        %1445 = vmatprep.subr.mxu0 0.0
        %1446 = vmatpush1.msra.mxu0 %v1418
        %1447 = vmatprep.subr.mxu0 0.0
        %1448 = vmatpush1.msra.mxu0 %v1419
        %1449 = vmatprep.subr.mxu0 0.0
        %1450 = vmatpush1.msra.mxu0 %v1420
        %1451 = vmatprep.subr.mxu0 0.0
        %1452 = vmatpush1.msra.mxu0 %v1421
        %1453 = vmatprep.subr.mxu0 0.0
        %1454 = vmatpush1.msra.mxu0 %v1422
        %1455 = vmatprep.subr.mxu0 0.0
        %1456 = vmatpush1.msra.mxu0 0.0
        %1457 = vmatprep.subr.mxu0 0.0
        %1458 = vmatpush1.msra.mxu0 0.0
        %1459 = vmatprep.subr.mxu0 0.0
        %1460 = vmatpush1.msra.mxu0 0.0
        %1461 = vmatprep.subr.mxu0 0.0
        %1462 = vmatpush1.msra.mxu0 0.0
        %1463 = vmatprep.subr.mxu0 0.0
        %1464 = vmatpush1.msra.mxu0 0.0
        %1465 = vmatprep.subr.mxu0 0.0
        %1466 = vmatpush1.msra.mxu0 0.0
        %1467 = vmatprep.subr.mxu0 0.0
        %1468 = vmatpush1.msra.mxu0 0.0
        %1469 = vmatprep.subr.mxu0 0.0
        %1470 = vmatpush1.msra.mxu0 0.0
        %1471 = vmatprep.subr.mxu0 0.0
        %1472 = vmatpush1.msra.mxu0 0.0
        %1473 = vmatprep.subr.mxu0 0.0
        %1474 = vmatpush1.msra.mxu0 0.0
        %1475 = vmatprep.subr.mxu0 0.0
        %1476 = vmatpush1.msra.mxu0 0.0
        %1477 = vmatprep.subr.mxu0 0.0
        %1478 = vmatpush1.msra.mxu0 0.0
        %1479 = vmatprep.subr.mxu0 0.0
        %1480 = vmatpush1.msra.mxu0 0.0
        %1481 = vmatprep.subr.mxu0 0.0
        %1482 = vmatpush1.msra.mxu0 0.0
        %1483 = vmatprep.subr.mxu0 0.0
        %1484 = vmatpush1.msra.mxu0 0.0
        %1485 = vmatprep.subr.mxu0 0.0
        %1486 = vmatpush1.msra.mxu0 0.0
        %1487 = vmatprep.mubr.f32.mxu0 0.0
        %1488 = vmatmul.mubr.f32.gmra.mrb[0].mxu0 %v1398
        %v1489 = vpop.f32.mrb[0].mxu0
        %v1490 = vadd.f32 0.0, %v1489
        %v1491 = vpop.f32.mrb[0].mxu0
        %1492 = vmatprep.mubr.f32.mxu0 0.0
        %1493 = vmatmul.mubr.f32.gmra.mrb[0].mxu0 %v1399
        %v1494 = vpop.f32.mrb[0].mxu0
        %v1495 = vadd.f32 0.0, %v1494
        %v1496 = vpop.f32.mrb[0].mxu0
        %1497 = vmatprep.mubr.f32.mxu0 0.0
        %1498 = vmatmul.mubr.f32.gmra.mrb[0].mxu0 %v1400
        %v1499 = vpop.f32.mrb[0].mxu0
        %v1500 = vadd.f32 0.0, %v1499
        %v1501 = vpop.f32.mrb[0].mxu0
        %1502 = vmatprep.mubr.f32.mxu0 0.0
        %1503 = vmatmul.mubr.f32.gmra.mrb[0].mxu0 %v1401
        %v1504 = vpop.f32.mrb[0].mxu0
        %v1505 = vadd.f32 0.0, %v1504
        %v1506 = vpop.f32.mrb[0].mxu0
        %1507 = vmatprep.mubr.f32.mxu0 0.0
        %1508 = vmatmul.mubr.f32.gmra.mrb[0].mxu0 %v1402
        %v1509 = vpop.f32.mrb[0].mxu0
        %v1510 = vadd.f32 0.0, %v1509
        %v1511 = vpop.f32.mrb[0].mxu0
        %1512 = vmatprep.mubr.f32.mxu0 0.0
        %1513 = vmatmul.mubr.f32.gmra.mrb[0].mxu0 %v1403
        %v1514 = vpop.f32.mrb[0].mxu0
        %v1515 = vadd.f32 0.0, %v1514
        %v1516 = vpop.f32.mrb[0].mxu0
        %1517 = vmatprep.mubr.f32.mxu0 0.0
        %1518 = vmatmul.mubr.f32.gmra.mrb[0].mxu0 %v1404
        %v1519 = vpop.f32.mrb[0].mxu0
        %v1520 = vadd.f32 0.0, %v1519
        %v1521 = vpop.f32.mrb[0].mxu0
        %1522 = vmatprep.mubr.f32.mxu0 0.0
        %1523 = vmatmul.mubr.f32.gmra.mrb[0].mxu0 %v1405
        %v1524 = vpop.f32.mrb[0].mxu0
        %v1525 = vadd.f32 0.0, %v1524
        %v1526 = vpop.f32.mrb[0].mxu0
        %1527 = vdwg.mxu0
        %v1528 = vadd.f32 %v1390, %v1490
        %v1529 = vadd.f32 %v1391, %v1495
        %v1530 = vadd.f32 %v1392, %v1500
        %v1531 = vadd.f32 %v1393, %v1505
        %v1532 = vadd.f32 %v1394, %v1510
        %v1533 = vadd.f32 %v1395, %v1515
        %v1534 = vadd.f32 %v1396, %v1520
        %v1535 = vadd.f32 %v1397, %v1525
        %s1536 = scalar_lea.vmem %s418, 96 [#allocation2]
        %v1537 = vld [vmem:[%s1536 + $0x2] sm:$0xff]
        %v1538 = vld [vmem:[%s1536 + $0xa] sm:$0xff]
        %v1539 = vld [vmem:[%s1536 + $0x1a] sm:$0xff]
        %v1540 = vld [vmem:[%s1536 + $0x22] sm:$0xff]
        %v1541 = vld [vmem:[%s1536 + $0x32] sm:$0xff]
        %v1542 = vld [vmem:[%s1536 + $0x3a] sm:$0xff]
        %v1543 = vld [vmem:[%s1536 + $0x4a] sm:$0xff]
        %v1544 = vld [vmem:[%s1536 + $0x52] sm:$0xff]
        %s1545 = scalar_lea.vmem %s2, 768
        %v1546 = vld [vmem:[%s1545] sm:$0xff]
        %v1547 = vld [vmem:[%s1545 + $0x8] sm:$0xff]
        %v1548 = vld [vmem:[%s1545 + $0x10] sm:$0xff]
        %v1549 = vld [vmem:[%s1545 + $0x18] sm:$0xff]
        %v1550 = vld [vmem:[%s1545 + $0x20] sm:$0xff]
        %v1551 = vld [vmem:[%s1545 + $0x28] sm:$0xff]
        %v1552 = vld [vmem:[%s1545 + $0x30] sm:$0xff]
        %v1553 = vld [vmem:[%s1545 + $0x38] sm:$0xff]
        %v1554 = vld [vmem:[%s1545 + $0x40] sm:$0xff]
        %v1555 = vld [vmem:[%s1545 + $0x48] sm:$0xff]
        %v1556 = vld [vmem:[%s1545 + $0x50] sm:$0xff]
        %v1557 = vld [vmem:[%s1545 + $0x58] sm:$0xff]
        %v1558 = vld [vmem:[%s1545 + $0x60] sm:$0xff]
        %v1559 = vld [vmem:[%s1545 + $0x68] sm:$0xff]
        %v1560 = vld [vmem:[%s1545 + $0x70] sm:$0xff]
        %v1561 = vld [vmem:[%s1545 + $0x78] sm:$0xff]
        %1562 = vmatprep.subr.mxu0 0.0
        %1563 = vmatpush1.msra.mxu0 %v1546
        %1564 = vmatprep.subr.mxu0 0.0
        %1565 = vmatpush1.msra.mxu0 %v1547
        %1566 = vmatprep.subr.mxu0 0.0
        %1567 = vmatpush1.msra.mxu0 %v1548
        %1568 = vmatprep.subr.mxu0 0.0
        %1569 = vmatpush1.msra.mxu0 %v1549
        %1570 = vmatprep.subr.mxu0 0.0
        %1571 = vmatpush1.msra.mxu0 %v1550
        %1572 = vmatprep.subr.mxu0 0.0
        %1573 = vmatpush1.msra.mxu0 %v1551
        %1574 = vmatprep.subr.mxu0 0.0
        %1575 = vmatpush1.msra.mxu0 %v1552
        %1576 = vmatprep.subr.mxu0 0.0
        %1577 = vmatpush1.msra.mxu0 %v1553
        %1578 = vmatprep.subr.mxu0 0.0
        %1579 = vmatpush1.msra.mxu0 %v1554
        %1580 = vmatprep.subr.mxu0 0.0
        %1581 = vmatpush1.msra.mxu0 %v1555
        %1582 = vmatprep.subr.mxu0 0.0
        %1583 = vmatpush1.msra.mxu0 %v1556
        %1584 = vmatprep.subr.mxu0 0.0
        %1585 = vmatpush1.msra.mxu0 %v1557
        %1586 = vmatprep.subr.mxu0 0.0
        %1587 = vmatpush1.msra.mxu0 %v1558
        %1588 = vmatprep.subr.mxu0 0.0
        %1589 = vmatpush1.msra.mxu0 %v1559
        %1590 = vmatprep.subr.mxu0 0.0
        %1591 = vmatpush1.msra.mxu0 %v1560
        %1592 = vmatprep.subr.mxu0 0.0
        %1593 = vmatpush1.msra.mxu0 %v1561
        %1594 = vmatprep.subr.mxu0 0.0
        %1595 = vmatpush1.msra.mxu0 0.0
        %1596 = vmatprep.subr.mxu0 0.0
        %1597 = vmatpush1.msra.mxu0 0.0
        %1598 = vmatprep.subr.mxu0 0.0
        %1599 = vmatpush1.msra.mxu0 0.0
        %1600 = vmatprep.subr.mxu0 0.0
        %1601 = vmatpush1.msra.mxu0 0.0
        %1602 = vmatprep.subr.mxu0 0.0
        %1603 = vmatpush1.msra.mxu0 0.0
        %1604 = vmatprep.subr.mxu0 0.0
        %1605 = vmatpush1.msra.mxu0 0.0
        %1606 = vmatprep.subr.mxu0 0.0
        %1607 = vmatpush1.msra.mxu0 0.0
        %1608 = vmatprep.subr.mxu0 0.0
        %1609 = vmatpush1.msra.mxu0 0.0
        %1610 = vmatprep.subr.mxu0 0.0
        %1611 = vmatpush1.msra.mxu0 0.0
        %1612 = vmatprep.subr.mxu0 0.0
        %1613 = vmatpush1.msra.mxu0 0.0
        %1614 = vmatprep.subr.mxu0 0.0
        %1615 = vmatpush1.msra.mxu0 0.0
        %1616 = vmatprep.subr.mxu0 0.0
        %1617 = vmatpush1.msra.mxu0 0.0
        %1618 = vmatprep.subr.mxu0 0.0
        %1619 = vmatpush1.msra.mxu0 0.0
        %1620 = vmatprep.subr.mxu0 0.0
        %1621 = vmatpush1.msra.mxu0 0.0
        %1622 = vmatprep.subr.mxu0 0.0
        %1623 = vmatpush1.msra.mxu0 0.0
        %1624 = vmatprep.subr.mxu0 0.0
        %1625 = vmatpush1.msra.mxu0 0.0
        %1626 = vmatprep.mubr.f32.mxu0 0.0
        %1627 = vmatmul.mubr.f32.gmra.mrb[0].mxu0 %v1537
        %v1628 = vpop.f32.mrb[0].mxu0
        %v1629 = vadd.f32 0.0, %v1628
        %v1630 = vpop.f32.mrb[0].mxu0
        %1631 = vmatprep.mubr.f32.mxu0 0.0
        %1632 = vmatmul.mubr.f32.gmra.mrb[0].mxu0 %v1538
        %v1633 = vpop.f32.mrb[0].mxu0
        %v1634 = vadd.f32 0.0, %v1633
        %v1635 = vpop.f32.mrb[0].mxu0
        %1636 = vmatprep.mubr.f32.mxu0 0.0
        %1637 = vmatmul.mubr.f32.gmra.mrb[0].mxu0 %v1539
        %v1638 = vpop.f32.mrb[0].mxu0
        %v1639 = vadd.f32 0.0, %v1638
        %v1640 = vpop.f32.mrb[0].mxu0
        %1641 = vmatprep.mubr.f32.mxu0 0.0
        %1642 = vmatmul.mubr.f32.gmra.mrb[0].mxu0 %v1540
        %v1643 = vpop.f32.mrb[0].mxu0
        %v1644 = vadd.f32 0.0, %v1643
        %v1645 = vpop.f32.mrb[0].mxu0
        %1646 = vmatprep.mubr.f32.mxu0 0.0
        %1647 = vmatmul.mubr.f32.gmra.mrb[0].mxu0 %v1541
        %v1648 = vpop.f32.mrb[0].mxu0
        %v1649 = vadd.f32 0.0, %v1648
        %v1650 = vpop.f32.mrb[0].mxu0
        %1651 = vmatprep.mubr.f32.mxu0 0.0
        %1652 = vmatmul.mubr.f32.gmra.mrb[0].mxu0 %v1542
        %v1653 = vpop.f32.mrb[0].mxu0
        %v1654 = vadd.f32 0.0, %v1653
        %v1655 = vpop.f32.mrb[0].mxu0
        %1656 = vmatprep.mubr.f32.mxu0 0.0
        %1657 = vmatmul.mubr.f32.gmra.mrb[0].mxu0 %v1543
        %v1658 = vpop.f32.mrb[0].mxu0
        %v1659 = vadd.f32 0.0, %v1658
        %v1660 = vpop.f32.mrb[0].mxu0
        %1661 = vmatprep.mubr.f32.mxu0 0.0
        %1662 = vmatmul.mubr.f32.gmra.mrb[0].mxu0 %v1544
        %v1663 = vpop.f32.mrb[0].mxu0
        %v1664 = vadd.f32 0.0, %v1663
        %v1665 = vpop.f32.mrb[0].mxu0
        %1666 = vdwg.mxu0
        %v1667 = vadd.f32 %v1528, %v1629
        %v1668 = vadd.f32 %v1529, %v1634
        %v1669 = vadd.f32 %v1530, %v1639
        %v1670 = vadd.f32 %v1531, %v1644
        %v1671 = vadd.f32 %v1532, %v1649
        %v1672 = vadd.f32 %v1533, %v1654
        %v1673 = vadd.f32 %v1534, %v1659
        %v1674 = vadd.f32 %v1535, %v1664
        %v1675 = vld [vmem:[%s1536 + $0x3] sm:$0xff]
        %v1676 = vld [vmem:[%s1536 + $0xb] sm:$0xff]
        %v1677 = vld [vmem:[%s1536 + $0x1b] sm:$0xff]
        %v1678 = vld [vmem:[%s1536 + $0x23] sm:$0xff]
        %v1679 = vld [vmem:[%s1536 + $0x33] sm:$0xff]
        %v1680 = vld [vmem:[%s1536 + $0x3b] sm:$0xff]
        %v1681 = vld [vmem:[%s1536 + $0x4b] sm:$0xff]
        %v1682 = vld [vmem:[%s1536 + $0x53] sm:$0xff]
        %s1683 = scalar_lea.vmem %s2, 896
        %v1684 = vld [vmem:[%s1683] sm:$0xff]
        %v1685 = vld [vmem:[%s1683 + $0x8] sm:$0xff]
        %v1686 = vld [vmem:[%s1683 + $0x10] sm:$0xff]
        %v1687 = vld [vmem:[%s1683 + $0x18] sm:$0xff]
        %v1688 = vld [vmem:[%s1683 + $0x20] sm:$0xff]
        %v1689 = vld [vmem:[%s1683 + $0x28] sm:$0xff]
        %v1690 = vld [vmem:[%s1683 + $0x30] sm:$0xff]
        %v1691 = vld [vmem:[%s1683 + $0x38] sm:$0xff]
        %v1692 = vld [vmem:[%s1683 + $0x40] sm:$0xff]
        %v1693 = vld [vmem:[%s1683 + $0x48] sm:$0xff]
        %v1694 = vld [vmem:[%s1683 + $0x50] sm:$0xff]
        %v1695 = vld [vmem:[%s1683 + $0x58] sm:$0xff]
        %v1696 = vld [vmem:[%s1683 + $0x60] sm:$0xff]
        %v1697 = vld [vmem:[%s1683 + $0x68] sm:$0xff]
        %v1698 = vld [vmem:[%s1683 + $0x70] sm:$0xff]
        %v1699 = vld [vmem:[%s1683 + $0x78] sm:$0xff]
        %1700 = vmatprep.subr.mxu0 0.0
        %1701 = vmatpush1.msra.mxu0 %v1684
        %1702 = vmatprep.subr.mxu0 0.0
        %1703 = vmatpush1.msra.mxu0 %v1685
        %1704 = vmatprep.subr.mxu0 0.0
        %1705 = vmatpush1.msra.mxu0 %v1686
        %1706 = vmatprep.subr.mxu0 0.0
        %1707 = vmatpush1.msra.mxu0 %v1687
        %1708 = vmatprep.subr.mxu0 0.0
        %1709 = vmatpush1.msra.mxu0 %v1688
        %1710 = vmatprep.subr.mxu0 0.0
        %1711 = vmatpush1.msra.mxu0 %v1689
        %1712 = vmatprep.subr.mxu0 0.0
        %1713 = vmatpush1.msra.mxu0 %v1690
        %1714 = vmatprep.subr.mxu0 0.0
        %1715 = vmatpush1.msra.mxu0 %v1691
        %1716 = vmatprep.subr.mxu0 0.0
        %1717 = vmatpush1.msra.mxu0 %v1692
        %1718 = vmatprep.subr.mxu0 0.0
        %1719 = vmatpush1.msra.mxu0 %v1693
        %1720 = vmatprep.subr.mxu0 0.0
        %1721 = vmatpush1.msra.mxu0 %v1694
        %1722 = vmatprep.subr.mxu0 0.0
        %1723 = vmatpush1.msra.mxu0 %v1695
        %1724 = vmatprep.subr.mxu0 0.0
        %1725 = vmatpush1.msra.mxu0 %v1696
        %1726 = vmatprep.subr.mxu0 0.0
        %1727 = vmatpush1.msra.mxu0 %v1697
        %1728 = vmatprep.subr.mxu0 0.0
        %1729 = vmatpush1.msra.mxu0 %v1698
        %1730 = vmatprep.subr.mxu0 0.0
        %1731 = vmatpush1.msra.mxu0 %v1699
        %1732 = vmatprep.subr.mxu0 0.0
        %1733 = vmatpush1.msra.mxu0 0.0
        %1734 = vmatprep.subr.mxu0 0.0
        %1735 = vmatpush1.msra.mxu0 0.0
        %1736 = vmatprep.subr.mxu0 0.0
        %1737 = vmatpush1.msra.mxu0 0.0
        %1738 = vmatprep.subr.mxu0 0.0
        %1739 = vmatpush1.msra.mxu0 0.0
        %1740 = vmatprep.subr.mxu0 0.0
        %1741 = vmatpush1.msra.mxu0 0.0
        %1742 = vmatprep.subr.mxu0 0.0
        %1743 = vmatpush1.msra.mxu0 0.0
        %1744 = vmatprep.subr.mxu0 0.0
        %1745 = vmatpush1.msra.mxu0 0.0
        %1746 = vmatprep.subr.mxu0 0.0
        %1747 = vmatpush1.msra.mxu0 0.0
        %1748 = vmatprep.subr.mxu0 0.0
        %1749 = vmatpush1.msra.mxu0 0.0
        %1750 = vmatprep.subr.mxu0 0.0
        %1751 = vmatpush1.msra.mxu0 0.0
        %1752 = vmatprep.subr.mxu0 0.0
        %1753 = vmatpush1.msra.mxu0 0.0
        %1754 = vmatprep.subr.mxu0 0.0
        %1755 = vmatpush1.msra.mxu0 0.0
        %1756 = vmatprep.subr.mxu0 0.0
        %1757 = vmatpush1.msra.mxu0 0.0
        %1758 = vmatprep.subr.mxu0 0.0
        %1759 = vmatpush1.msra.mxu0 0.0
        %1760 = vmatprep.subr.mxu0 0.0
        %1761 = vmatpush1.msra.mxu0 0.0
        %1762 = vmatprep.subr.mxu0 0.0
        %1763 = vmatpush1.msra.mxu0 0.0
        %1764 = vmatprep.mubr.f32.mxu0 0.0
        %1765 = vmatmul.mubr.f32.gmra.mrb[0].mxu0 %v1675
        %v1766 = vpop.f32.mrb[0].mxu0
        %v1767 = vadd.f32 0.0, %v1766
        %v1768 = vpop.f32.mrb[0].mxu0
        %1769 = vmatprep.mubr.f32.mxu0 0.0
        %1770 = vmatmul.mubr.f32.gmra.mrb[0].mxu0 %v1676
        %v1771 = vpop.f32.mrb[0].mxu0
        %v1772 = vadd.f32 0.0, %v1771
        %v1773 = vpop.f32.mrb[0].mxu0
        %1774 = vmatprep.mubr.f32.mxu0 0.0
        %1775 = vmatmul.mubr.f32.gmra.mrb[0].mxu0 %v1677
        %v1776 = vpop.f32.mrb[0].mxu0
        %v1777 = vadd.f32 0.0, %v1776
        %v1778 = vpop.f32.mrb[0].mxu0
        %1779 = vmatprep.mubr.f32.mxu0 0.0
        %1780 = vmatmul.mubr.f32.gmra.mrb[0].mxu0 %v1678
        %v1781 = vpop.f32.mrb[0].mxu0
        %v1782 = vadd.f32 0.0, %v1781
        %v1783 = vpop.f32.mrb[0].mxu0
        %1784 = vmatprep.mubr.f32.mxu0 0.0
        %1785 = vmatmul.mubr.f32.gmra.mrb[0].mxu0 %v1679
        %v1786 = vpop.f32.mrb[0].mxu0
        %v1787 = vadd.f32 0.0, %v1786
        %v1788 = vpop.f32.mrb[0].mxu0
        %1789 = vmatprep.mubr.f32.mxu0 0.0
        %1790 = vmatmul.mubr.f32.gmra.mrb[0].mxu0 %v1680
        %v1791 = vpop.f32.mrb[0].mxu0
        %v1792 = vadd.f32 0.0, %v1791
        %v1793 = vpop.f32.mrb[0].mxu0
        %1794 = vmatprep.mubr.f32.mxu0 0.0
        %1795 = vmatmul.mubr.f32.gmra.mrb[0].mxu0 %v1681
        %v1796 = vpop.f32.mrb[0].mxu0
        %v1797 = vadd.f32 0.0, %v1796
        %v1798 = vpop.f32.mrb[0].mxu0
        %1799 = vmatprep.mubr.f32.mxu0 0.0
        %1800 = vmatmul.mubr.f32.gmra.mrb[0].mxu0 %v1682
        %v1801 = vpop.f32.mrb[0].mxu0
        %v1802 = vadd.f32 0.0, %v1801
        %v1803 = vpop.f32.mrb[0].mxu0
        %1804 = vdwg.mxu0
        %v1805 = vadd.f32 %v1667, %v1767
        %v1806 = vadd.f32 %v1668, %v1772
        %v1807 = vadd.f32 %v1669, %v1777
        %v1808 = vadd.f32 %v1670, %v1782
        %v1809 = vadd.f32 %v1671, %v1787
        %v1810 = vadd.f32 %v1672, %v1792
        %v1811 = vadd.f32 %v1673, %v1797
        %v1812 = vadd.f32 %v1674, %v1802
        %v1813 = vld [vmem:[%s1536 + $0x4] sm:$0xff]
        %v1814 = vld [vmem:[%s1536 + $0xc] sm:$0xff]
        %v1815 = vld [vmem:[%s1536 + $0x1c] sm:$0xff]
        %v1816 = vld [vmem:[%s1536 + $0x24] sm:$0xff]
        %v1817 = vld [vmem:[%s1536 + $0x34] sm:$0xff]
        %v1818 = vld [vmem:[%s1536 + $0x3c] sm:$0xff]
        %v1819 = vld [vmem:[%s1536 + $0x4c] sm:$0xff]
        %v1820 = vld [vmem:[%s1536 + $0x54] sm:$0xff]
        %s1821 = scalar_lea.vmem %s2, 1024
        %v1822 = vld [vmem:[%s1821] sm:$0xff]
        %v1823 = vld [vmem:[%s1821 + $0x8] sm:$0xff]
        %v1824 = vld [vmem:[%s1821 + $0x10] sm:$0xff]
        %v1825 = vld [vmem:[%s1821 + $0x18] sm:$0xff]
        %v1826 = vld [vmem:[%s1821 + $0x20] sm:$0xff]
        %v1827 = vld [vmem:[%s1821 + $0x28] sm:$0xff]
        %v1828 = vld [vmem:[%s1821 + $0x30] sm:$0xff]
        %v1829 = vld [vmem:[%s1821 + $0x38] sm:$0xff]
        %v1830 = vld [vmem:[%s1821 + $0x40] sm:$0xff]
        %v1831 = vld [vmem:[%s1821 + $0x48] sm:$0xff]
        %v1832 = vld [vmem:[%s1821 + $0x50] sm:$0xff]
        %v1833 = vld [vmem:[%s1821 + $0x58] sm:$0xff]
        %v1834 = vld [vmem:[%s1821 + $0x60] sm:$0xff]
        %v1835 = vld [vmem:[%s1821 + $0x68] sm:$0xff]
        %v1836 = vld [vmem:[%s1821 + $0x70] sm:$0xff]
        %v1837 = vld [vmem:[%s1821 + $0x78] sm:$0xff]
        %1838 = vmatprep.subr.mxu0 0.0
        %1839 = vmatpush1.msra.mxu0 %v1822
        %1840 = vmatprep.subr.mxu0 0.0
        %1841 = vmatpush1.msra.mxu0 %v1823
        %1842 = vmatprep.subr.mxu0 0.0
        %1843 = vmatpush1.msra.mxu0 %v1824
        %1844 = vmatprep.subr.mxu0 0.0
        %1845 = vmatpush1.msra.mxu0 %v1825
        %1846 = vmatprep.subr.mxu0 0.0
        %1847 = vmatpush1.msra.mxu0 %v1826
        %1848 = vmatprep.subr.mxu0 0.0
        %1849 = vmatpush1.msra.mxu0 %v1827
        %1850 = vmatprep.subr.mxu0 0.0
        %1851 = vmatpush1.msra.mxu0 %v1828
        %1852 = vmatprep.subr.mxu0 0.0
        %1853 = vmatpush1.msra.mxu0 %v1829
        %1854 = vmatprep.subr.mxu0 0.0
        %1855 = vmatpush1.msra.mxu0 %v1830
        %1856 = vmatprep.subr.mxu0 0.0
        %1857 = vmatpush1.msra.mxu0 %v1831
        %1858 = vmatprep.subr.mxu0 0.0
        %1859 = vmatpush1.msra.mxu0 %v1832
        %1860 = vmatprep.subr.mxu0 0.0
        %1861 = vmatpush1.msra.mxu0 %v1833
        %1862 = vmatprep.subr.mxu0 0.0
        %1863 = vmatpush1.msra.mxu0 %v1834
        %1864 = vmatprep.subr.mxu0 0.0
        %1865 = vmatpush1.msra.mxu0 %v1835
        %1866 = vmatprep.subr.mxu0 0.0
        %1867 = vmatpush1.msra.mxu0 %v1836
        %1868 = vmatprep.subr.mxu0 0.0
        %1869 = vmatpush1.msra.mxu0 %v1837
        %1870 = vmatprep.subr.mxu0 0.0
        %1871 = vmatpush1.msra.mxu0 0.0
        %1872 = vmatprep.subr.mxu0 0.0
        %1873 = vmatpush1.msra.mxu0 0.0
        %1874 = vmatprep.subr.mxu0 0.0
        %1875 = vmatpush1.msra.mxu0 0.0
        %1876 = vmatprep.subr.mxu0 0.0
        %1877 = vmatpush1.msra.mxu0 0.0
        %1878 = vmatprep.subr.mxu0 0.0
        %1879 = vmatpush1.msra.mxu0 0.0
        %1880 = vmatprep.subr.mxu0 0.0
        %1881 = vmatpush1.msra.mxu0 0.0
        %1882 = vmatprep.subr.mxu0 0.0
        %1883 = vmatpush1.msra.mxu0 0.0
        %1884 = vmatprep.subr.mxu0 0.0
        %1885 = vmatpush1.msra.mxu0 0.0
        %1886 = vmatprep.subr.mxu0 0.0
        %1887 = vmatpush1.msra.mxu0 0.0
        %1888 = vmatprep.subr.mxu0 0.0
        %1889 = vmatpush1.msra.mxu0 0.0
        %1890 = vmatprep.subr.mxu0 0.0
        %1891 = vmatpush1.msra.mxu0 0.0
        %1892 = vmatprep.subr.mxu0 0.0
        %1893 = vmatpush1.msra.mxu0 0.0
        %1894 = vmatprep.subr.mxu0 0.0
        %1895 = vmatpush1.msra.mxu0 0.0
        %1896 = vmatprep.subr.mxu0 0.0
        %1897 = vmatpush1.msra.mxu0 0.0
        %1898 = vmatprep.subr.mxu0 0.0
        %1899 = vmatpush1.msra.mxu0 0.0
        %1900 = vmatprep.subr.mxu0 0.0
        %1901 = vmatpush1.msra.mxu0 0.0
        %1902 = vmatprep.mubr.f32.mxu0 0.0
        %1903 = vmatmul.mubr.f32.gmra.mrb[0].mxu0 %v1813
        %v1904 = vpop.f32.mrb[0].mxu0
        %v1905 = vadd.f32 0.0, %v1904
        %v1906 = vpop.f32.mrb[0].mxu0
        %1907 = vmatprep.mubr.f32.mxu0 0.0
        %1908 = vmatmul.mubr.f32.gmra.mrb[0].mxu0 %v1814
        %v1909 = vpop.f32.mrb[0].mxu0
        %v1910 = vadd.f32 0.0, %v1909
        %v1911 = vpop.f32.mrb[0].mxu0
        %1912 = vmatprep.mubr.f32.mxu0 0.0
        %1913 = vmatmul.mubr.f32.gmra.mrb[0].mxu0 %v1815
        %v1914 = vpop.f32.mrb[0].mxu0
        %v1915 = vadd.f32 0.0, %v1914
        %v1916 = vpop.f32.mrb[0].mxu0
        %1917 = vmatprep.mubr.f32.mxu0 0.0
        %1918 = vmatmul.mubr.f32.gmra.mrb[0].mxu0 %v1816
        %v1919 = vpop.f32.mrb[0].mxu0
        %v1920 = vadd.f32 0.0, %v1919
        %v1921 = vpop.f32.mrb[0].mxu0
        %1922 = vmatprep.mubr.f32.mxu0 0.0
        %1923 = vmatmul.mubr.f32.gmra.mrb[0].mxu0 %v1817
        %v1924 = vpop.f32.mrb[0].mxu0
        %v1925 = vadd.f32 0.0, %v1924
        %v1926 = vpop.f32.mrb[0].mxu0
        %1927 = vmatprep.mubr.f32.mxu0 0.0
        %1928 = vmatmul.mubr.f32.gmra.mrb[0].mxu0 %v1818
        %v1929 = vpop.f32.mrb[0].mxu0
        %v1930 = vadd.f32 0.0, %v1929
        %v1931 = vpop.f32.mrb[0].mxu0
        %1932 = vmatprep.mubr.f32.mxu0 0.0
        %1933 = vmatmul.mubr.f32.gmra.mrb[0].mxu0 %v1819
        %v1934 = vpop.f32.mrb[0].mxu0
        %v1935 = vadd.f32 0.0, %v1934
        %v1936 = vpop.f32.mrb[0].mxu0
        %1937 = vmatprep.mubr.f32.mxu0 0.0
        %1938 = vmatmul.mubr.f32.gmra.mrb[0].mxu0 %v1820
        %v1939 = vpop.f32.mrb[0].mxu0
        %v1940 = vadd.f32 0.0, %v1939
        %v1941 = vpop.f32.mrb[0].mxu0
        %1942 = vdwg.mxu0
        %v1943 = vadd.f32 %v1805, %v1905
        %v1944 = vadd.f32 %v1806, %v1910
        %v1945 = vadd.f32 %v1807, %v1915
        %v1946 = vadd.f32 %v1808, %v1920
        %v1947 = vadd.f32 %v1809, %v1925
        %v1948 = vadd.f32 %v1810, %v1930
        %v1949 = vadd.f32 %v1811, %v1935
        %v1950 = vadd.f32 %v1812, %v1940
        %v1951 = vmax.f32 %v1943, 0.0
        %v1952 = vmax.f32 %v1944, 0.0
        %v1953 = vmax.f32 %v1945, 0.0
        %v1954 = vmax.f32 %v1946, 0.0
        %v1955 = vmax.f32 %v1947, 0.0
        %v1956 = vmax.f32 %v1948, 0.0
        %v1957 = vmax.f32 %v1949, 0.0
        %v1958 = vmax.f32 %v1950, 0.0
        %s1959 = scalar_lea.vmem %s5, 128
        %v1960 = vld [vmem:[%s1959] sm:$0xff]
        %v1961 = vld [vmem:[%s1959 + $0x8] sm:$0xff]
        %v1962 = vld [vmem:[%s1959 + $0x10] sm:$0xff]
        %v1963 = vld [vmem:[%s1959 + $0x18] sm:$0xff]
        %v1964 = vld [vmem:[%s1959 + $0x20] sm:$0xff]
        %v1965 = vld [vmem:[%s1959 + $0x28] sm:$0xff]
        %v1966 = vld [vmem:[%s1959 + $0x30] sm:$0xff]
        %v1967 = vld [vmem:[%s1959 + $0x38] sm:$0xff]
        %v1968 = vld [vmem:[%s1959 + $0x40] sm:$0xff]
        %v1969 = vld [vmem:[%s1959 + $0x48] sm:$0xff]
        %v1970 = vld [vmem:[%s1959 + $0x50] sm:$0xff]
        %v1971 = vld [vmem:[%s1959 + $0x58] sm:$0xff]
        %v1972 = vld [vmem:[%s1959 + $0x60] sm:$0xff]
        %v1973 = vld [vmem:[%s1959 + $0x68] sm:$0xff]
        %v1974 = vld [vmem:[%s1959 + $0x70] sm:$0xff]
        %v1975 = vld [vmem:[%s1959 + $0x78] sm:$0xff]
        %1976 = vmatprep.subr.mxu0 0.0
        %1977 = vmatpush1.msra.mxu0 %v1960
        %1978 = vmatprep.subr.mxu0 0.0
        %1979 = vmatpush1.msra.mxu0 %v1961
        %1980 = vmatprep.subr.mxu0 0.0
        %1981 = vmatpush1.msra.mxu0 %v1962
        %1982 = vmatprep.subr.mxu0 0.0
        %1983 = vmatpush1.msra.mxu0 %v1963
        %1984 = vmatprep.subr.mxu0 0.0
        %1985 = vmatpush1.msra.mxu0 %v1964
        %1986 = vmatprep.subr.mxu0 0.0
        %1987 = vmatpush1.msra.mxu0 %v1965
        %1988 = vmatprep.subr.mxu0 0.0
        %1989 = vmatpush1.msra.mxu0 %v1966
        %1990 = vmatprep.subr.mxu0 0.0
        %1991 = vmatpush1.msra.mxu0 %v1967
        %1992 = vmatprep.subr.mxu0 0.0
        %1993 = vmatpush1.msra.mxu0 %v1968
        %1994 = vmatprep.subr.mxu0 0.0
        %1995 = vmatpush1.msra.mxu0 %v1969
        %1996 = vmatprep.subr.mxu0 0.0
        %1997 = vmatpush1.msra.mxu0 %v1970
        %1998 = vmatprep.subr.mxu0 0.0
        %1999 = vmatpush1.msra.mxu0 %v1971
        %2000 = vmatprep.subr.mxu0 0.0
        %2001 = vmatpush1.msra.mxu0 %v1972
        %2002 = vmatprep.subr.mxu0 0.0
        %2003 = vmatpush1.msra.mxu0 %v1973
        %2004 = vmatprep.subr.mxu0 0.0
        %2005 = vmatpush1.msra.mxu0 %v1974
        %2006 = vmatprep.subr.mxu0 0.0
        %2007 = vmatpush1.msra.mxu0 %v1975
        %2008 = vmatprep.subr.mxu0 0.0
        %2009 = vmatpush1.msra.mxu0 0.0
        %2010 = vmatprep.subr.mxu0 0.0
        %2011 = vmatpush1.msra.mxu0 0.0
        %2012 = vmatprep.subr.mxu0 0.0
        %2013 = vmatpush1.msra.mxu0 0.0
        %2014 = vmatprep.subr.mxu0 0.0
        %2015 = vmatpush1.msra.mxu0 0.0
        %2016 = vmatprep.subr.mxu0 0.0
        %2017 = vmatpush1.msra.mxu0 0.0
        %2018 = vmatprep.subr.mxu0 0.0
        %2019 = vmatpush1.msra.mxu0 0.0
        %2020 = vmatprep.subr.mxu0 0.0
        %2021 = vmatpush1.msra.mxu0 0.0
        %2022 = vmatprep.subr.mxu0 0.0
        %2023 = vmatpush1.msra.mxu0 0.0
        %2024 = vmatprep.subr.mxu0 0.0
        %2025 = vmatpush1.msra.mxu0 0.0
        %2026 = vmatprep.subr.mxu0 0.0
        %2027 = vmatpush1.msra.mxu0 0.0
        %2028 = vmatprep.subr.mxu0 0.0
        %2029 = vmatpush1.msra.mxu0 0.0
        %2030 = vmatprep.subr.mxu0 0.0
        %2031 = vmatpush1.msra.mxu0 0.0
        %2032 = vmatprep.subr.mxu0 0.0
        %2033 = vmatpush1.msra.mxu0 0.0
        %2034 = vmatprep.subr.mxu0 0.0
        %2035 = vmatpush1.msra.mxu0 0.0
        %2036 = vmatprep.subr.mxu0 0.0
        %2037 = vmatpush1.msra.mxu0 0.0
        %2038 = vmatprep.subr.mxu0 0.0
        %2039 = vmatpush1.msra.mxu0 0.0
        %2040 = vmatprep.mubr.f32.mxu0 0.0
        %2041 = vmatmul.mubr.f32.gmra.mrb[0].mxu0 %v1951
        %v2042 = vpop.f32.mrb[0].mxu0
        %v2043 = vadd.f32 0.0, %v2042
        %v2044 = vpop.f32.mrb[0].mxu0
        %2045 = vmatprep.mubr.f32.mxu0 0.0
        %2046 = vmatmul.mubr.f32.gmra.mrb[0].mxu0 %v1952
        %v2047 = vpop.f32.mrb[0].mxu0
        %v2048 = vadd.f32 0.0, %v2047
        %v2049 = vpop.f32.mrb[0].mxu0
        %2050 = vmatprep.mubr.f32.mxu0 0.0
        %2051 = vmatmul.mubr.f32.gmra.mrb[0].mxu0 %v1953
        %v2052 = vpop.f32.mrb[0].mxu0
        %v2053 = vadd.f32 0.0, %v2052
        %v2054 = vpop.f32.mrb[0].mxu0
        %2055 = vmatprep.mubr.f32.mxu0 0.0
        %2056 = vmatmul.mubr.f32.gmra.mrb[0].mxu0 %v1954
        %v2057 = vpop.f32.mrb[0].mxu0
        %v2058 = vadd.f32 0.0, %v2057
        %v2059 = vpop.f32.mrb[0].mxu0
        %2060 = vmatprep.mubr.f32.mxu0 0.0
        %2061 = vmatmul.mubr.f32.gmra.mrb[0].mxu0 %v1955
        %v2062 = vpop.f32.mrb[0].mxu0
        %v2063 = vadd.f32 0.0, %v2062
        %v2064 = vpop.f32.mrb[0].mxu0
        %2065 = vmatprep.mubr.f32.mxu0 0.0
        %2066 = vmatmul.mubr.f32.gmra.mrb[0].mxu0 %v1956
        %v2067 = vpop.f32.mrb[0].mxu0
        %v2068 = vadd.f32 0.0, %v2067
        %v2069 = vpop.f32.mrb[0].mxu0
        %2070 = vmatprep.mubr.f32.mxu0 0.0
        %2071 = vmatmul.mubr.f32.gmra.mrb[0].mxu0 %v1957
        %v2072 = vpop.f32.mrb[0].mxu0
        %v2073 = vadd.f32 0.0, %v2072
        %v2074 = vpop.f32.mrb[0].mxu0
        %2075 = vmatprep.mubr.f32.mxu0 0.0
        %2076 = vmatmul.mubr.f32.gmra.mrb[0].mxu0 %v1958
        %v2077 = vpop.f32.mrb[0].mxu0
        %v2078 = vadd.f32 0.0, %v2077
        %v2079 = vpop.f32.mrb[0].mxu0
        %2080 = vdwg.mxu0
        %2081 = vmatprep.subr.mxu0 0.0
        %2082 = vmatpush1.msra.mxu0 %v716
        %2083 = vmatprep.subr.mxu0 0.0
        %2084 = vmatpush1.msra.mxu0 %v717
        %2085 = vmatprep.subr.mxu0 0.0
        %2086 = vmatpush1.msra.mxu0 %v718
        %2087 = vmatprep.subr.mxu0 0.0
        %2088 = vmatpush1.msra.mxu0 %v719
        %2089 = vmatprep.subr.mxu0 0.0
        %2090 = vmatpush1.msra.mxu0 %v720
        %2091 = vmatprep.subr.mxu0 0.0
        %2092 = vmatpush1.msra.mxu0 %v721
        %2093 = vmatprep.subr.mxu0 0.0
        %2094 = vmatpush1.msra.mxu0 %v722
        %2095 = vmatprep.subr.mxu0 0.0
        %2096 = vmatpush1.msra.mxu0 %v723
        %2097 = vmatprep.subr.mxu0 0.0
        %2098 = vmatpush1.msra.mxu0 %v724
        %2099 = vmatprep.subr.mxu0 0.0
        %2100 = vmatpush1.msra.mxu0 %v725
        %2101 = vmatprep.subr.mxu0 0.0
        %2102 = vmatpush1.msra.mxu0 %v726
        %2103 = vmatprep.subr.mxu0 0.0
        %2104 = vmatpush1.msra.mxu0 %v727
        %2105 = vmatprep.subr.mxu0 0.0
        %2106 = vmatpush1.msra.mxu0 %v728
        %2107 = vmatprep.subr.mxu0 0.0
        %2108 = vmatpush1.msra.mxu0 %v729
        %2109 = vmatprep.subr.mxu0 0.0
        %2110 = vmatpush1.msra.mxu0 %v730
        %2111 = vmatprep.subr.mxu0 0.0
        %2112 = vmatpush1.msra.mxu0 %v731
        %2113 = vmatprep.subr.mxu0 0.0
        %2114 = vmatpush1.msra.mxu0 0.0
        %2115 = vmatprep.subr.mxu0 0.0
        %2116 = vmatpush1.msra.mxu0 0.0
        %2117 = vmatprep.subr.mxu0 0.0
        %2118 = vmatpush1.msra.mxu0 0.0
        %2119 = vmatprep.subr.mxu0 0.0
        %2120 = vmatpush1.msra.mxu0 0.0
        %2121 = vmatprep.subr.mxu0 0.0
        %2122 = vmatpush1.msra.mxu0 0.0
        %2123 = vmatprep.subr.mxu0 0.0
        %2124 = vmatpush1.msra.mxu0 0.0
        %2125 = vmatprep.subr.mxu0 0.0
        %2126 = vmatpush1.msra.mxu0 0.0
        %2127 = vmatprep.subr.mxu0 0.0
        %2128 = vmatpush1.msra.mxu0 0.0
        %2129 = vmatprep.subr.mxu0 0.0
        %2130 = vmatpush1.msra.mxu0 0.0
        %2131 = vmatprep.subr.mxu0 0.0
        %2132 = vmatpush1.msra.mxu0 0.0
        %2133 = vmatprep.subr.mxu0 0.0
        %2134 = vmatpush1.msra.mxu0 0.0
        %2135 = vmatprep.subr.mxu0 0.0
        %2136 = vmatpush1.msra.mxu0 0.0
        %2137 = vmatprep.subr.mxu0 0.0
        %2138 = vmatpush1.msra.mxu0 0.0
        %2139 = vmatprep.subr.mxu0 0.0
        %2140 = vmatpush1.msra.mxu0 0.0
        %2141 = vmatprep.subr.mxu0 0.0
        %2142 = vmatpush1.msra.mxu0 0.0
        %2143 = vmatprep.subr.mxu0 0.0
        %2144 = vmatpush1.msra.mxu0 0.0
        %2145 = vmatprep.mubr.f32.mxu0 0.0
        %2146 = vmatmul.mubr.f32.gmra.mrb[0].mxu0 %v708
        %v2147 = vpop.f32.mrb[0].mxu0
        %v2148 = vadd.f32 %v2043, %v2147
        %v2149 = vpop.f32.mrb[0].mxu0
        %2150 = vmatprep.mubr.f32.mxu0 0.0
        %2151 = vmatmul.mubr.f32.gmra.mrb[0].mxu0 %v709
        %v2152 = vpop.f32.mrb[0].mxu0
        %v2153 = vadd.f32 %v2048, %v2152
        %v2154 = vpop.f32.mrb[0].mxu0
        %2155 = vmatprep.mubr.f32.mxu0 0.0
        %2156 = vmatmul.mubr.f32.gmra.mrb[0].mxu0 %v710
        %v2157 = vpop.f32.mrb[0].mxu0
        %v2158 = vadd.f32 %v2053, %v2157
        %v2159 = vpop.f32.mrb[0].mxu0
        %2160 = vmatprep.mubr.f32.mxu0 0.0
        %2161 = vmatmul.mubr.f32.gmra.mrb[0].mxu0 %v711
        %v2162 = vpop.f32.mrb[0].mxu0
        %v2163 = vadd.f32 %v2058, %v2162
        %v2164 = vpop.f32.mrb[0].mxu0
        %2165 = vmatprep.mubr.f32.mxu0 0.0
        %2166 = vmatmul.mubr.f32.gmra.mrb[0].mxu0 %v712
        %v2167 = vpop.f32.mrb[0].mxu0
        %v2168 = vadd.f32 %v2063, %v2167
        %v2169 = vpop.f32.mrb[0].mxu0
        %2170 = vmatprep.mubr.f32.mxu0 0.0
        %2171 = vmatmul.mubr.f32.gmra.mrb[0].mxu0 %v713
        %v2172 = vpop.f32.mrb[0].mxu0
        %v2173 = vadd.f32 %v2068, %v2172
        %v2174 = vpop.f32.mrb[0].mxu0
        %2175 = vmatprep.mubr.f32.mxu0 0.0
        %2176 = vmatmul.mubr.f32.gmra.mrb[0].mxu0 %v714
        %v2177 = vpop.f32.mrb[0].mxu0
        %v2178 = vadd.f32 %v2073, %v2177
        %v2179 = vpop.f32.mrb[0].mxu0
        %2180 = vmatprep.mubr.f32.mxu0 0.0
        %2181 = vmatmul.mubr.f32.gmra.mrb[0].mxu0 %v715
        %v2182 = vpop.f32.mrb[0].mxu0
        %v2183 = vadd.f32 %v2078, %v2182
        %v2184 = vpop.f32.mrb[0].mxu0
        %2185 = vdwg.mxu0
        %s2186 = scalar_lea.vmem %s418, 24 [#allocation2]
        %v2187 = vld [vmem:[%s2186 + $0x1] sm:$0xff]
        %v2188 = vld [vmem:[%s2186 + $0x9] sm:$0xff]
        %v2189 = vld [vmem:[%s2186 + $0x19] sm:$0xff]
        %v2190 = vld [vmem:[%s2186 + $0x21] sm:$0xff]
        %v2191 = vld [vmem:[%s2186 + $0x31] sm:$0xff]
        %v2192 = vld [vmem:[%s2186 + $0x39] sm:$0xff]
        %v2193 = vld [vmem:[%s2186 + $0x49] sm:$0xff]
        %v2194 = vld [vmem:[%s2186 + $0x51] sm:$0xff]
        %v2195 = vld [vmem:[#allocation4] sm:$0xff]
        %v2196 = vld [vmem:[#allocation4 + $0x8] sm:$0xff]
        %v2197 = vld [vmem:[#allocation4 + $0x10] sm:$0xff]
        %v2198 = vld [vmem:[#allocation4 + $0x18] sm:$0xff]
        %v2199 = vld [vmem:[#allocation4 + $0x20] sm:$0xff]
        %v2200 = vld [vmem:[#allocation4 + $0x28] sm:$0xff]
        %v2201 = vld [vmem:[#allocation4 + $0x30] sm:$0xff]
        %v2202 = vld [vmem:[#allocation4 + $0x38] sm:$0xff]
        %v2203 = vld [vmem:[#allocation4 + $0x40] sm:$0xff]
        %v2204 = vld [vmem:[#allocation4 + $0x48] sm:$0xff]
        %v2205 = vld [vmem:[#allocation4 + $0x50] sm:$0xff]
        %v2206 = vld [vmem:[#allocation4 + $0x58] sm:$0xff]
        %v2207 = vld [vmem:[#allocation4 + $0x60] sm:$0xff]
        %v2208 = vld [vmem:[#allocation4 + $0x68] sm:$0xff]
        %v2209 = vld [vmem:[#allocation4 + $0x70] sm:$0xff]
        %v2210 = vld [vmem:[#allocation4 + $0x78] sm:$0xff]
        %v2211 = vld [vmem:[%s2186 + $0x3] sm:$0xff]
        %v2212 = vld [vmem:[%s2186 + $0xb] sm:$0xff]
        %v2213 = vld [vmem:[%s2186 + $0x1b] sm:$0xff]
        %v2214 = vld [vmem:[%s2186 + $0x23] sm:$0xff]
        %v2215 = vld [vmem:[%s2186 + $0x33] sm:$0xff]
        %v2216 = vld [vmem:[%s2186 + $0x3b] sm:$0xff]
        %v2217 = vld [vmem:[%s2186 + $0x4b] sm:$0xff]
        %v2218 = vld [vmem:[%s2186 + $0x53] sm:$0xff]
        %s2219 = scalar_lea.vmem [#allocation4], 128
        %v2220 = vld [vmem:[%s2219] sm:$0xff]
        %v2221 = vld [vmem:[%s2219 + $0x8] sm:$0xff]
        %v2222 = vld [vmem:[%s2219 + $0x10] sm:$0xff]
        %v2223 = vld [vmem:[%s2219 + $0x18] sm:$0xff]
        %v2224 = vld [vmem:[%s2219 + $0x20] sm:$0xff]
        %v2225 = vld [vmem:[%s2219 + $0x28] sm:$0xff]
        %v2226 = vld [vmem:[%s2219 + $0x30] sm:$0xff]
        %v2227 = vld [vmem:[%s2219 + $0x38] sm:$0xff]
        %v2228 = vld [vmem:[%s2219 + $0x40] sm:$0xff]
        %v2229 = vld [vmem:[%s2219 + $0x48] sm:$0xff]
        %v2230 = vld [vmem:[%s2219 + $0x50] sm:$0xff]
        %v2231 = vld [vmem:[%s2219 + $0x58] sm:$0xff]
        %v2232 = vld [vmem:[%s2219 + $0x60] sm:$0xff]
        %v2233 = vld [vmem:[%s2219 + $0x68] sm:$0xff]
        %v2234 = vld [vmem:[%s2219 + $0x70] sm:$0xff]
        %v2235 = vld [vmem:[%s2219 + $0x78] sm:$0xff]
        %2236 = vmatprep.subr.mxu0 0.0
        %2237 = vmatpush1.msra.mxu0 %v2220
        %2238 = vmatprep.subr.mxu0 0.0
        %2239 = vmatpush1.msra.mxu0 %v2221
        %2240 = vmatprep.subr.mxu0 0.0
        %2241 = vmatpush1.msra.mxu0 %v2222
        %2242 = vmatprep.subr.mxu0 0.0
        %2243 = vmatpush1.msra.mxu0 %v2223
        %2244 = vmatprep.subr.mxu0 0.0
        %2245 = vmatpush1.msra.mxu0 %v2224
        %2246 = vmatprep.subr.mxu0 0.0
        %2247 = vmatpush1.msra.mxu0 %v2225
        %2248 = vmatprep.subr.mxu0 0.0
        %2249 = vmatpush1.msra.mxu0 %v2226
        %2250 = vmatprep.subr.mxu0 0.0
        %2251 = vmatpush1.msra.mxu0 %v2227
        %2252 = vmatprep.subr.mxu0 0.0
        %2253 = vmatpush1.msra.mxu0 %v2228
        %2254 = vmatprep.subr.mxu0 0.0
        %2255 = vmatpush1.msra.mxu0 %v2229
        %2256 = vmatprep.subr.mxu0 0.0
        %2257 = vmatpush1.msra.mxu0 %v2230
        %2258 = vmatprep.subr.mxu0 0.0
        %2259 = vmatpush1.msra.mxu0 %v2231
        %2260 = vmatprep.subr.mxu0 0.0
        %2261 = vmatpush1.msra.mxu0 %v2232
        %2262 = vmatprep.subr.mxu0 0.0
        %2263 = vmatpush1.msra.mxu0 %v2233
        %2264 = vmatprep.subr.mxu0 0.0
        %2265 = vmatpush1.msra.mxu0 %v2234
        %2266 = vmatprep.subr.mxu0 0.0
        %2267 = vmatpush1.msra.mxu0 %v2235
        %2268 = vmatprep.subr.mxu0 0.0
        %2269 = vmatpush1.msra.mxu0 0.0
        %2270 = vmatprep.subr.mxu0 0.0
        %2271 = vmatpush1.msra.mxu0 0.0
        %2272 = vmatprep.subr.mxu0 0.0
        %2273 = vmatpush1.msra.mxu0 0.0
        %2274 = vmatprep.subr.mxu0 0.0
        %2275 = vmatpush1.msra.mxu0 0.0
        %2276 = vmatprep.subr.mxu0 0.0
        %2277 = vmatpush1.msra.mxu0 0.0
        %2278 = vmatprep.subr.mxu0 0.0
        %2279 = vmatpush1.msra.mxu0 0.0
        %2280 = vmatprep.subr.mxu0 0.0
        %2281 = vmatpush1.msra.mxu0 0.0
        %2282 = vmatprep.subr.mxu0 0.0
        %2283 = vmatpush1.msra.mxu0 0.0
        %2284 = vmatprep.subr.mxu0 0.0
        %2285 = vmatpush1.msra.mxu0 0.0
        %2286 = vmatprep.subr.mxu0 0.0
        %2287 = vmatpush1.msra.mxu0 0.0
        %2288 = vmatprep.subr.mxu0 0.0
        %2289 = vmatpush1.msra.mxu0 0.0
        %2290 = vmatprep.subr.mxu0 0.0
        %2291 = vmatpush1.msra.mxu0 0.0
        %2292 = vmatprep.subr.mxu0 0.0
        %2293 = vmatpush1.msra.mxu0 0.0
        %2294 = vmatprep.subr.mxu0 0.0
        %2295 = vmatpush1.msra.mxu0 0.0
        %2296 = vmatprep.subr.mxu0 0.0
        %2297 = vmatpush1.msra.mxu0 0.0
        %2298 = vmatprep.subr.mxu0 0.0
        %2299 = vmatpush1.msra.mxu0 0.0
        %2300 = vmatprep.mubr.f32.mxu0 0.0
        %2301 = vmatmul.mubr.f32.gmra.mrb[0].mxu0 %v2211
        %v2302 = vpop.f32.mrb[0].mxu0
        %v2303 = vadd.f32 0.0, %v2302
        %v2304 = vpop.f32.mrb[0].mxu0
        %2305 = vmatprep.mubr.f32.mxu0 0.0
        %2306 = vmatmul.mubr.f32.gmra.mrb[0].mxu0 %v2212
        %v2307 = vpop.f32.mrb[0].mxu0
        %v2308 = vadd.f32 0.0, %v2307
        %v2309 = vpop.f32.mrb[0].mxu0
        %2310 = vmatprep.mubr.f32.mxu0 0.0
        %2311 = vmatmul.mubr.f32.gmra.mrb[0].mxu0 %v2213
        %v2312 = vpop.f32.mrb[0].mxu0
        %v2313 = vadd.f32 0.0, %v2312
        %v2314 = vpop.f32.mrb[0].mxu0
        %2315 = vmatprep.mubr.f32.mxu0 0.0
        %2316 = vmatmul.mubr.f32.gmra.mrb[0].mxu0 %v2214
        %v2317 = vpop.f32.mrb[0].mxu0
        %v2318 = vadd.f32 0.0, %v2317
        %v2319 = vpop.f32.mrb[0].mxu0
        %2320 = vmatprep.mubr.f32.mxu0 0.0
        %2321 = vmatmul.mubr.f32.gmra.mrb[0].mxu0 %v2215
        %v2322 = vpop.f32.mrb[0].mxu0
        %v2323 = vadd.f32 0.0, %v2322
        %v2324 = vpop.f32.mrb[0].mxu0
        %2325 = vmatprep.mubr.f32.mxu0 0.0
        %2326 = vmatmul.mubr.f32.gmra.mrb[0].mxu0 %v2216
        %v2327 = vpop.f32.mrb[0].mxu0
        %v2328 = vadd.f32 0.0, %v2327
        %v2329 = vpop.f32.mrb[0].mxu0
        %2330 = vmatprep.mubr.f32.mxu0 0.0
        %2331 = vmatmul.mubr.f32.gmra.mrb[0].mxu0 %v2217
        %v2332 = vpop.f32.mrb[0].mxu0
        %v2333 = vadd.f32 0.0, %v2332
        %v2334 = vpop.f32.mrb[0].mxu0
        %2335 = vmatprep.mubr.f32.mxu0 0.0
        %2336 = vmatmul.mubr.f32.gmra.mrb[0].mxu0 %v2218
        %v2337 = vpop.f32.mrb[0].mxu0
        %v2338 = vadd.f32 0.0, %v2337
        %v2339 = vpop.f32.mrb[0].mxu0
        %2340 = vdwg.mxu0
        %2341 = vmatprep.subr.mxu0 0.0
        %2342 = vmatpush1.msra.mxu0 %v2195
        %2343 = vmatprep.subr.mxu0 0.0
        %2344 = vmatpush1.msra.mxu0 %v2196
        %2345 = vmatprep.subr.mxu0 0.0
        %2346 = vmatpush1.msra.mxu0 %v2197
        %2347 = vmatprep.subr.mxu0 0.0
        %2348 = vmatpush1.msra.mxu0 %v2198
        %2349 = vmatprep.subr.mxu0 0.0
        %2350 = vmatpush1.msra.mxu0 %v2199
        %2351 = vmatprep.subr.mxu0 0.0
        %2352 = vmatpush1.msra.mxu0 %v2200
        %2353 = vmatprep.subr.mxu0 0.0
        %2354 = vmatpush1.msra.mxu0 %v2201
        %2355 = vmatprep.subr.mxu0 0.0
        %2356 = vmatpush1.msra.mxu0 %v2202
        %2357 = vmatprep.subr.mxu0 0.0
        %2358 = vmatpush1.msra.mxu0 %v2203
        %2359 = vmatprep.subr.mxu0 0.0
        %2360 = vmatpush1.msra.mxu0 %v2204
        %2361 = vmatprep.subr.mxu0 0.0
        %2362 = vmatpush1.msra.mxu0 %v2205
        %2363 = vmatprep.subr.mxu0 0.0
        %2364 = vmatpush1.msra.mxu0 %v2206
        %2365 = vmatprep.subr.mxu0 0.0
        %2366 = vmatpush1.msra.mxu0 %v2207
        %2367 = vmatprep.subr.mxu0 0.0
        %2368 = vmatpush1.msra.mxu0 %v2208
        %2369 = vmatprep.subr.mxu0 0.0
        %2370 = vmatpush1.msra.mxu0 %v2209
        %2371 = vmatprep.subr.mxu0 0.0
        %2372 = vmatpush1.msra.mxu0 %v2210
        %2373 = vmatprep.subr.mxu0 0.0
        %2374 = vmatpush1.msra.mxu0 0.0
        %2375 = vmatprep.subr.mxu0 0.0
        %2376 = vmatpush1.msra.mxu0 0.0
        %2377 = vmatprep.subr.mxu0 0.0
        %2378 = vmatpush1.msra.mxu0 0.0
        %2379 = vmatprep.subr.mxu0 0.0
        %2380 = vmatpush1.msra.mxu0 0.0
        %2381 = vmatprep.subr.mxu0 0.0
        %2382 = vmatpush1.msra.mxu0 0.0
        %2383 = vmatprep.subr.mxu0 0.0
        %2384 = vmatpush1.msra.mxu0 0.0
        %2385 = vmatprep.subr.mxu0 0.0
        %2386 = vmatpush1.msra.mxu0 0.0
        %2387 = vmatprep.subr.mxu0 0.0
        %2388 = vmatpush1.msra.mxu0 0.0
        %2389 = vmatprep.subr.mxu0 0.0
        %2390 = vmatpush1.msra.mxu0 0.0
        %2391 = vmatprep.subr.mxu0 0.0
        %2392 = vmatpush1.msra.mxu0 0.0
        %2393 = vmatprep.subr.mxu0 0.0
        %2394 = vmatpush1.msra.mxu0 0.0
        %2395 = vmatprep.subr.mxu0 0.0
        %2396 = vmatpush1.msra.mxu0 0.0
        %2397 = vmatprep.subr.mxu0 0.0
        %2398 = vmatpush1.msra.mxu0 0.0
        %2399 = vmatprep.subr.mxu0 0.0
        %2400 = vmatpush1.msra.mxu0 0.0
        %2401 = vmatprep.subr.mxu0 0.0
        %2402 = vmatpush1.msra.mxu0 0.0
        %2403 = vmatprep.subr.mxu0 0.0
        %2404 = vmatpush1.msra.mxu0 0.0
        %2405 = vmatprep.mubr.f32.mxu0 0.0
        %2406 = vmatmul.mubr.f32.gmra.mrb[0].mxu0 %v2187
        %v2407 = vpop.f32.mrb[0].mxu0
        %v2408 = vadd.f32 %v2303, %v2407
        %v2409 = vpop.f32.mrb[0].mxu0
        %2410 = vmatprep.mubr.f32.mxu0 0.0
        %2411 = vmatmul.mubr.f32.gmra.mrb[0].mxu0 %v2188
        %v2412 = vpop.f32.mrb[0].mxu0
        %v2413 = vadd.f32 %v2308, %v2412
        %v2414 = vpop.f32.mrb[0].mxu0
        %2415 = vmatprep.mubr.f32.mxu0 0.0
        %2416 = vmatmul.mubr.f32.gmra.mrb[0].mxu0 %v2189
        %v2417 = vpop.f32.mrb[0].mxu0
        %v2418 = vadd.f32 %v2313, %v2417
        %v2419 = vpop.f32.mrb[0].mxu0
        %2420 = vmatprep.mubr.f32.mxu0 0.0
        %2421 = vmatmul.mubr.f32.gmra.mrb[0].mxu0 %v2190
        %v2422 = vpop.f32.mrb[0].mxu0
        %v2423 = vadd.f32 %v2318, %v2422
        %v2424 = vpop.f32.mrb[0].mxu0
        %2425 = vmatprep.mubr.f32.mxu0 0.0
        %2426 = vmatmul.mubr.f32.gmra.mrb[0].mxu0 %v2191
        %v2427 = vpop.f32.mrb[0].mxu0
        %v2428 = vadd.f32 %v2323, %v2427
        %v2429 = vpop.f32.mrb[0].mxu0
        %2430 = vmatprep.mubr.f32.mxu0 0.0
        %2431 = vmatmul.mubr.f32.gmra.mrb[0].mxu0 %v2192
        %v2432 = vpop.f32.mrb[0].mxu0
        %v2433 = vadd.f32 %v2328, %v2432
        %v2434 = vpop.f32.mrb[0].mxu0
        %2435 = vmatprep.mubr.f32.mxu0 0.0
        %2436 = vmatmul.mubr.f32.gmra.mrb[0].mxu0 %v2193
        %v2437 = vpop.f32.mrb[0].mxu0
        %v2438 = vadd.f32 %v2333, %v2437
        %v2439 = vpop.f32.mrb[0].mxu0
        %2440 = vmatprep.mubr.f32.mxu0 0.0
        %2441 = vmatmul.mubr.f32.gmra.mrb[0].mxu0 %v2194
        %v2442 = vpop.f32.mrb[0].mxu0
        %v2443 = vadd.f32 %v2338, %v2442
        %v2444 = vpop.f32.mrb[0].mxu0
        %2445 = vdwg.mxu0
        %v2446 = vld [vmem:[%s2186 + $0x5] sm:$0xff]
        %v2447 = vld [vmem:[%s2186 + $0xd] sm:$0xff]
        %v2448 = vld [vmem:[%s2186 + $0x1d] sm:$0xff]
        %v2449 = vld [vmem:[%s2186 + $0x25] sm:$0xff]
        %v2450 = vld [vmem:[%s2186 + $0x35] sm:$0xff]
        %v2451 = vld [vmem:[%s2186 + $0x3d] sm:$0xff]
        %v2452 = vld [vmem:[%s2186 + $0x4d] sm:$0xff]
        %v2453 = vld [vmem:[%s2186 + $0x55] sm:$0xff]
        %s2454 = scalar_lea.vmem [#allocation4], 256
        %v2455 = vld [vmem:[%s2454] sm:$0xff]
        %v2456 = vld [vmem:[%s2454 + $0x8] sm:$0xff]
        %v2457 = vld [vmem:[%s2454 + $0x10] sm:$0xff]
        %v2458 = vld [vmem:[%s2454 + $0x18] sm:$0xff]
        %v2459 = vld [vmem:[%s2454 + $0x20] sm:$0xff]
        %v2460 = vld [vmem:[%s2454 + $0x28] sm:$0xff]
        %v2461 = vld [vmem:[%s2454 + $0x30] sm:$0xff]
        %v2462 = vld [vmem:[%s2454 + $0x38] sm:$0xff]
        %v2463 = vld [vmem:[%s2454 + $0x40] sm:$0xff]
        %v2464 = vld [vmem:[%s2454 + $0x48] sm:$0xff]
        %v2465 = vld [vmem:[%s2454 + $0x50] sm:$0xff]
        %v2466 = vld [vmem:[%s2454 + $0x58] sm:$0xff]
        %v2467 = vld [vmem:[%s2454 + $0x60] sm:$0xff]
        %v2468 = vld [vmem:[%s2454 + $0x68] sm:$0xff]
        %v2469 = vld [vmem:[%s2454 + $0x70] sm:$0xff]
        %v2470 = vld [vmem:[%s2454 + $0x78] sm:$0xff]
        %2471 = vmatprep.subr.mxu0 0.0
        %2472 = vmatpush1.msra.mxu0 %v2455
        %2473 = vmatprep.subr.mxu0 0.0
        %2474 = vmatpush1.msra.mxu0 %v2456
        %2475 = vmatprep.subr.mxu0 0.0
        %2476 = vmatpush1.msra.mxu0 %v2457
        %2477 = vmatprep.subr.mxu0 0.0
        %2478 = vmatpush1.msra.mxu0 %v2458
        %2479 = vmatprep.subr.mxu0 0.0
        %2480 = vmatpush1.msra.mxu0 %v2459
        %2481 = vmatprep.subr.mxu0 0.0
        %2482 = vmatpush1.msra.mxu0 %v2460
        %2483 = vmatprep.subr.mxu0 0.0
        %2484 = vmatpush1.msra.mxu0 %v2461
        %2485 = vmatprep.subr.mxu0 0.0
        %2486 = vmatpush1.msra.mxu0 %v2462
        %2487 = vmatprep.subr.mxu0 0.0
        %2488 = vmatpush1.msra.mxu0 %v2463
        %2489 = vmatprep.subr.mxu0 0.0
        %2490 = vmatpush1.msra.mxu0 %v2464
        %2491 = vmatprep.subr.mxu0 0.0
        %2492 = vmatpush1.msra.mxu0 %v2465
        %2493 = vmatprep.subr.mxu0 0.0
        %2494 = vmatpush1.msra.mxu0 %v2466
        %2495 = vmatprep.subr.mxu0 0.0
        %2496 = vmatpush1.msra.mxu0 %v2467
        %2497 = vmatprep.subr.mxu0 0.0
        %2498 = vmatpush1.msra.mxu0 %v2468
        %2499 = vmatprep.subr.mxu0 0.0
        %2500 = vmatpush1.msra.mxu0 %v2469
        %2501 = vmatprep.subr.mxu0 0.0
        %2502 = vmatpush1.msra.mxu0 %v2470
        %2503 = vmatprep.subr.mxu0 0.0
        %2504 = vmatpush1.msra.mxu0 0.0
        %2505 = vmatprep.subr.mxu0 0.0
        %2506 = vmatpush1.msra.mxu0 0.0
        %2507 = vmatprep.subr.mxu0 0.0
        %2508 = vmatpush1.msra.mxu0 0.0
        %2509 = vmatprep.subr.mxu0 0.0
        %2510 = vmatpush1.msra.mxu0 0.0
        %2511 = vmatprep.subr.mxu0 0.0
        %2512 = vmatpush1.msra.mxu0 0.0
        %2513 = vmatprep.subr.mxu0 0.0
        %2514 = vmatpush1.msra.mxu0 0.0
        %2515 = vmatprep.subr.mxu0 0.0
        %2516 = vmatpush1.msra.mxu0 0.0
        %2517 = vmatprep.subr.mxu0 0.0
        %2518 = vmatpush1.msra.mxu0 0.0
        %2519 = vmatprep.subr.mxu0 0.0
        %2520 = vmatpush1.msra.mxu0 0.0
        %2521 = vmatprep.subr.mxu0 0.0
        %2522 = vmatpush1.msra.mxu0 0.0
        %2523 = vmatprep.subr.mxu0 0.0
        %2524 = vmatpush1.msra.mxu0 0.0
        %2525 = vmatprep.subr.mxu0 0.0
        %2526 = vmatpush1.msra.mxu0 0.0
        %2527 = vmatprep.subr.mxu0 0.0
        %2528 = vmatpush1.msra.mxu0 0.0
        %2529 = vmatprep.subr.mxu0 0.0
        %2530 = vmatpush1.msra.mxu0 0.0
        %2531 = vmatprep.subr.mxu0 0.0
        %2532 = vmatpush1.msra.mxu0 0.0
        %2533 = vmatprep.subr.mxu0 0.0
        %2534 = vmatpush1.msra.mxu0 0.0
        %2535 = vmatprep.mubr.f32.mxu0 0.0
        %2536 = vmatmul.mubr.f32.gmra.mrb[0].mxu0 %v2446
        %v2537 = vpop.f32.mrb[0].mxu0
        %v2538 = vadd.f32 0.0, %v2537
        %v2539 = vpop.f32.mrb[0].mxu0
        %2540 = vmatprep.mubr.f32.mxu0 0.0
        %2541 = vmatmul.mubr.f32.gmra.mrb[0].mxu0 %v2447
        %v2542 = vpop.f32.mrb[0].mxu0
        %v2543 = vadd.f32 0.0, %v2542
        %v2544 = vpop.f32.mrb[0].mxu0
        %2545 = vmatprep.mubr.f32.mxu0 0.0
        %2546 = vmatmul.mubr.f32.gmra.mrb[0].mxu0 %v2448
        %v2547 = vpop.f32.mrb[0].mxu0
        %v2548 = vadd.f32 0.0, %v2547
        %v2549 = vpop.f32.mrb[0].mxu0
        %2550 = vmatprep.mubr.f32.mxu0 0.0
        %2551 = vmatmul.mubr.f32.gmra.mrb[0].mxu0 %v2449
        %v2552 = vpop.f32.mrb[0].mxu0
        %v2553 = vadd.f32 0.0, %v2552
        %v2554 = vpop.f32.mrb[0].mxu0
        %2555 = vmatprep.mubr.f32.mxu0 0.0
        %2556 = vmatmul.mubr.f32.gmra.mrb[0].mxu0 %v2450
        %v2557 = vpop.f32.mrb[0].mxu0
        %v2558 = vadd.f32 0.0, %v2557
        %v2559 = vpop.f32.mrb[0].mxu0
        %2560 = vmatprep.mubr.f32.mxu0 0.0
        %2561 = vmatmul.mubr.f32.gmra.mrb[0].mxu0 %v2451
        %v2562 = vpop.f32.mrb[0].mxu0
        %v2563 = vadd.f32 0.0, %v2562
        %v2564 = vpop.f32.mrb[0].mxu0
        %2565 = vmatprep.mubr.f32.mxu0 0.0
        %2566 = vmatmul.mubr.f32.gmra.mrb[0].mxu0 %v2452
        %v2567 = vpop.f32.mrb[0].mxu0
        %v2568 = vadd.f32 0.0, %v2567
        %v2569 = vpop.f32.mrb[0].mxu0
        %2570 = vmatprep.mubr.f32.mxu0 0.0
        %2571 = vmatmul.mubr.f32.gmra.mrb[0].mxu0 %v2453
        %v2572 = vpop.f32.mrb[0].mxu0
        %v2573 = vadd.f32 0.0, %v2572
        %v2574 = vpop.f32.mrb[0].mxu0
        %2575 = vdwg.mxu0
        %v2576 = vadd.f32 %v2408, %v2538
        %v2577 = vadd.f32 %v2413, %v2543
        %v2578 = vadd.f32 %v2418, %v2548
        %v2579 = vadd.f32 %v2423, %v2553
        %v2580 = vadd.f32 %v2428, %v2558
        %v2581 = vadd.f32 %v2433, %v2563
        %v2582 = vadd.f32 %v2438, %v2568
        %v2583 = vadd.f32 %v2443, %v2573
        %v2584 = vld [vmem:[%s578 + $0x1] sm:$0xff]
        %v2585 = vld [vmem:[%s578 + $0x9] sm:$0xff]
        %v2586 = vld [vmem:[%s578 + $0x19] sm:$0xff]
        %v2587 = vld [vmem:[%s578 + $0x21] sm:$0xff]
        %v2588 = vld [vmem:[%s578 + $0x31] sm:$0xff]
        %v2589 = vld [vmem:[%s578 + $0x39] sm:$0xff]
        %v2590 = vld [vmem:[%s578 + $0x49] sm:$0xff]
        %v2591 = vld [vmem:[%s578 + $0x51] sm:$0xff]
        %s2592 = scalar_lea.vmem [#allocation4], 384
        %v2593 = vld [vmem:[%s2592] sm:$0xff]
        %v2594 = vld [vmem:[%s2592 + $0x8] sm:$0xff]
        %v2595 = vld [vmem:[%s2592 + $0x10] sm:$0xff]
        %v2596 = vld [vmem:[%s2592 + $0x18] sm:$0xff]
        %v2597 = vld [vmem:[%s2592 + $0x20] sm:$0xff]
        %v2598 = vld [vmem:[%s2592 + $0x28] sm:$0xff]
        %v2599 = vld [vmem:[%s2592 + $0x30] sm:$0xff]
        %v2600 = vld [vmem:[%s2592 + $0x38] sm:$0xff]
        %v2601 = vld [vmem:[%s2592 + $0x40] sm:$0xff]
        %v2602 = vld [vmem:[%s2592 + $0x48] sm:$0xff]
        %v2603 = vld [vmem:[%s2592 + $0x50] sm:$0xff]
        %v2604 = vld [vmem:[%s2592 + $0x58] sm:$0xff]
        %v2605 = vld [vmem:[%s2592 + $0x60] sm:$0xff]
        %v2606 = vld [vmem:[%s2592 + $0x68] sm:$0xff]
        %v2607 = vld [vmem:[%s2592 + $0x70] sm:$0xff]
        %v2608 = vld [vmem:[%s2592 + $0x78] sm:$0xff]
        %2609 = vmatprep.subr.mxu0 0.0
        %2610 = vmatpush1.msra.mxu0 %v2593
        %2611 = vmatprep.subr.mxu0 0.0
        %2612 = vmatpush1.msra.mxu0 %v2594
        %2613 = vmatprep.subr.mxu0 0.0
        %2614 = vmatpush1.msra.mxu0 %v2595
        %2615 = vmatprep.subr.mxu0 0.0
        %2616 = vmatpush1.msra.mxu0 %v2596
        %2617 = vmatprep.subr.mxu0 0.0
        %2618 = vmatpush1.msra.mxu0 %v2597
        %2619 = vmatprep.subr.mxu0 0.0
        %2620 = vmatpush1.msra.mxu0 %v2598
        %2621 = vmatprep.subr.mxu0 0.0
        %2622 = vmatpush1.msra.mxu0 %v2599
        %2623 = vmatprep.subr.mxu0 0.0
        %2624 = vmatpush1.msra.mxu0 %v2600
        %2625 = vmatprep.subr.mxu0 0.0
        %2626 = vmatpush1.msra.mxu0 %v2601
        %2627 = vmatprep.subr.mxu0 0.0
        %2628 = vmatpush1.msra.mxu0 %v2602
        %2629 = vmatprep.subr.mxu0 0.0
        %2630 = vmatpush1.msra.mxu0 %v2603
        %2631 = vmatprep.subr.mxu0 0.0
        %2632 = vmatpush1.msra.mxu0 %v2604
        %2633 = vmatprep.subr.mxu0 0.0
        %2634 = vmatpush1.msra.mxu0 %v2605
        %2635 = vmatprep.subr.mxu0 0.0
        %2636 = vmatpush1.msra.mxu0 %v2606
        %2637 = vmatprep.subr.mxu0 0.0
        %2638 = vmatpush1.msra.mxu0 %v2607
        %2639 = vmatprep.subr.mxu0 0.0
        %2640 = vmatpush1.msra.mxu0 %v2608
        %2641 = vmatprep.subr.mxu0 0.0
        %2642 = vmatpush1.msra.mxu0 0.0
        %2643 = vmatprep.subr.mxu0 0.0
        %2644 = vmatpush1.msra.mxu0 0.0
        %2645 = vmatprep.subr.mxu0 0.0
        %2646 = vmatpush1.msra.mxu0 0.0
        %2647 = vmatprep.subr.mxu0 0.0
        %2648 = vmatpush1.msra.mxu0 0.0
        %2649 = vmatprep.subr.mxu0 0.0
        %2650 = vmatpush1.msra.mxu0 0.0
        %2651 = vmatprep.subr.mxu0 0.0
        %2652 = vmatpush1.msra.mxu0 0.0
        %2653 = vmatprep.subr.mxu0 0.0
        %2654 = vmatpush1.msra.mxu0 0.0
        %2655 = vmatprep.subr.mxu0 0.0
        %2656 = vmatpush1.msra.mxu0 0.0
        %2657 = vmatprep.subr.mxu0 0.0
        %2658 = vmatpush1.msra.mxu0 0.0
        %2659 = vmatprep.subr.mxu0 0.0
        %2660 = vmatpush1.msra.mxu0 0.0
        %2661 = vmatprep.subr.mxu0 0.0
        %2662 = vmatpush1.msra.mxu0 0.0
        %2663 = vmatprep.subr.mxu0 0.0
        %2664 = vmatpush1.msra.mxu0 0.0
        %2665 = vmatprep.subr.mxu0 0.0
        %2666 = vmatpush1.msra.mxu0 0.0
        %2667 = vmatprep.subr.mxu0 0.0
        %2668 = vmatpush1.msra.mxu0 0.0
        %2669 = vmatprep.subr.mxu0 0.0
        %2670 = vmatpush1.msra.mxu0 0.0
        %2671 = vmatprep.subr.mxu0 0.0
        %2672 = vmatpush1.msra.mxu0 0.0
        %2673 = vmatprep.mubr.f32.mxu0 0.0
        %2674 = vmatmul.mubr.f32.gmra.mrb[0].mxu0 %v2584
        %v2675 = vpop.f32.mrb[0].mxu0
        %v2676 = vadd.f32 0.0, %v2675
        %v2677 = vpop.f32.mrb[0].mxu0
        %2678 = vmatprep.mubr.f32.mxu0 0.0
        %2679 = vmatmul.mubr.f32.gmra.mrb[0].mxu0 %v2585
        %v2680 = vpop.f32.mrb[0].mxu0
        %v2681 = vadd.f32 0.0, %v2680
        %v2682 = vpop.f32.mrb[0].mxu0
        %2683 = vmatprep.mubr.f32.mxu0 0.0
        %2684 = vmatmul.mubr.f32.gmra.mrb[0].mxu0 %v2586
        %v2685 = vpop.f32.mrb[0].mxu0
        %v2686 = vadd.f32 0.0, %v2685
        %v2687 = vpop.f32.mrb[0].mxu0
        %2688 = vmatprep.mubr.f32.mxu0 0.0
        %2689 = vmatmul.mubr.f32.gmra.mrb[0].mxu0 %v2587
        %v2690 = vpop.f32.mrb[0].mxu0
        %v2691 = vadd.f32 0.0, %v2690
        %v2692 = vpop.f32.mrb[0].mxu0
        %2693 = vmatprep.mubr.f32.mxu0 0.0
        %2694 = vmatmul.mubr.f32.gmra.mrb[0].mxu0 %v2588
        %v2695 = vpop.f32.mrb[0].mxu0
        %v2696 = vadd.f32 0.0, %v2695
        %v2697 = vpop.f32.mrb[0].mxu0
        %2698 = vmatprep.mubr.f32.mxu0 0.0
        %2699 = vmatmul.mubr.f32.gmra.mrb[0].mxu0 %v2589
        %v2700 = vpop.f32.mrb[0].mxu0
        %v2701 = vadd.f32 0.0, %v2700
        %v2702 = vpop.f32.mrb[0].mxu0
        %2703 = vmatprep.mubr.f32.mxu0 0.0
        %2704 = vmatmul.mubr.f32.gmra.mrb[0].mxu0 %v2590
        %v2705 = vpop.f32.mrb[0].mxu0
        %v2706 = vadd.f32 0.0, %v2705
        %v2707 = vpop.f32.mrb[0].mxu0
        %2708 = vmatprep.mubr.f32.mxu0 0.0
        %2709 = vmatmul.mubr.f32.gmra.mrb[0].mxu0 %v2591
        %v2710 = vpop.f32.mrb[0].mxu0
        %v2711 = vadd.f32 0.0, %v2710
        %v2712 = vpop.f32.mrb[0].mxu0
        %2713 = vdwg.mxu0
        %v2714 = vadd.f32 %v2576, %v2676
        %v2715 = vadd.f32 %v2577, %v2681
        %v2716 = vadd.f32 %v2578, %v2686
        %v2717 = vadd.f32 %v2579, %v2691
        %v2718 = vadd.f32 %v2580, %v2696
        %v2719 = vadd.f32 %v2581, %v2701
        %v2720 = vadd.f32 %v2582, %v2706
        %v2721 = vadd.f32 %v2583, %v2711
        %s2722 = scalar_lea.vmem [#allocation4], 512
        %v2723 = vld [vmem:[%s2722] sm:$0xff]
        %v2724 = vld [vmem:[%s2722 + $0x8] sm:$0xff]
        %v2725 = vld [vmem:[%s2722 + $0x10] sm:$0xff]
        %v2726 = vld [vmem:[%s2722 + $0x18] sm:$0xff]
        %v2727 = vld [vmem:[%s2722 + $0x20] sm:$0xff]
        %v2728 = vld [vmem:[%s2722 + $0x28] sm:$0xff]
        %v2729 = vld [vmem:[%s2722 + $0x30] sm:$0xff]
        %v2730 = vld [vmem:[%s2722 + $0x38] sm:$0xff]
        %v2731 = vld [vmem:[%s2722 + $0x40] sm:$0xff]
        %v2732 = vld [vmem:[%s2722 + $0x48] sm:$0xff]
        %v2733 = vld [vmem:[%s2722 + $0x50] sm:$0xff]
        %v2734 = vld [vmem:[%s2722 + $0x58] sm:$0xff]
        %v2735 = vld [vmem:[%s2722 + $0x60] sm:$0xff]
        %v2736 = vld [vmem:[%s2722 + $0x68] sm:$0xff]
        %v2737 = vld [vmem:[%s2722 + $0x70] sm:$0xff]
        %v2738 = vld [vmem:[%s2722 + $0x78] sm:$0xff]
        %2739 = vmatprep.subr.mxu0 0.0
        %2740 = vmatpush1.msra.mxu0 %v2723
        %2741 = vmatprep.subr.mxu0 0.0
        %2742 = vmatpush1.msra.mxu0 %v2724
        %2743 = vmatprep.subr.mxu0 0.0
        %2744 = vmatpush1.msra.mxu0 %v2725
        %2745 = vmatprep.subr.mxu0 0.0
        %2746 = vmatpush1.msra.mxu0 %v2726
        %2747 = vmatprep.subr.mxu0 0.0
        %2748 = vmatpush1.msra.mxu0 %v2727
        %2749 = vmatprep.subr.mxu0 0.0
        %2750 = vmatpush1.msra.mxu0 %v2728
        %2751 = vmatprep.subr.mxu0 0.0
        %2752 = vmatpush1.msra.mxu0 %v2729
        %2753 = vmatprep.subr.mxu0 0.0
        %2754 = vmatpush1.msra.mxu0 %v2730
        %2755 = vmatprep.subr.mxu0 0.0
        %2756 = vmatpush1.msra.mxu0 %v2731
        %2757 = vmatprep.subr.mxu0 0.0
        %2758 = vmatpush1.msra.mxu0 %v2732
        %2759 = vmatprep.subr.mxu0 0.0
        %2760 = vmatpush1.msra.mxu0 %v2733
        %2761 = vmatprep.subr.mxu0 0.0
        %2762 = vmatpush1.msra.mxu0 %v2734
        %2763 = vmatprep.subr.mxu0 0.0
        %2764 = vmatpush1.msra.mxu0 %v2735
        %2765 = vmatprep.subr.mxu0 0.0
        %2766 = vmatpush1.msra.mxu0 %v2736
        %2767 = vmatprep.subr.mxu0 0.0
        %2768 = vmatpush1.msra.mxu0 %v2737
        %2769 = vmatprep.subr.mxu0 0.0
        %2770 = vmatpush1.msra.mxu0 %v2738
        %2771 = vmatprep.subr.mxu0 0.0
        %2772 = vmatpush1.msra.mxu0 0.0
        %2773 = vmatprep.subr.mxu0 0.0
        %2774 = vmatpush1.msra.mxu0 0.0
        %2775 = vmatprep.subr.mxu0 0.0
        %2776 = vmatpush1.msra.mxu0 0.0
        %2777 = vmatprep.subr.mxu0 0.0
        %2778 = vmatpush1.msra.mxu0 0.0
        %2779 = vmatprep.subr.mxu0 0.0
        %2780 = vmatpush1.msra.mxu0 0.0
        %2781 = vmatprep.subr.mxu0 0.0
        %2782 = vmatpush1.msra.mxu0 0.0
        %2783 = vmatprep.subr.mxu0 0.0
        %2784 = vmatpush1.msra.mxu0 0.0
        %2785 = vmatprep.subr.mxu0 0.0
        %2786 = vmatpush1.msra.mxu0 0.0
        %2787 = vmatprep.subr.mxu0 0.0
        %2788 = vmatpush1.msra.mxu0 0.0
        %2789 = vmatprep.subr.mxu0 0.0
        %2790 = vmatpush1.msra.mxu0 0.0
        %2791 = vmatprep.subr.mxu0 0.0
        %2792 = vmatpush1.msra.mxu0 0.0
        %2793 = vmatprep.subr.mxu0 0.0
        %2794 = vmatpush1.msra.mxu0 0.0
        %2795 = vmatprep.subr.mxu0 0.0
        %2796 = vmatpush1.msra.mxu0 0.0
        %2797 = vmatprep.subr.mxu0 0.0
        %2798 = vmatpush1.msra.mxu0 0.0
        %2799 = vmatprep.subr.mxu0 0.0
        %2800 = vmatpush1.msra.mxu0 0.0
        %2801 = vmatprep.subr.mxu0 0.0
        %2802 = vmatpush1.msra.mxu0 0.0
        %2803 = vmatprep.mubr.f32.mxu0 0.0
        %2804 = vmatmul.mubr.f32.gmra.mrb[0].mxu0 %v579
        %v2805 = vpop.f32.mrb[0].mxu0
        %v2806 = vadd.f32 0.0, %v2805
        %v2807 = vpop.f32.mrb[0].mxu0
        %2808 = vmatprep.mubr.f32.mxu0 0.0
        %2809 = vmatmul.mubr.f32.gmra.mrb[0].mxu0 %v580
        %v2810 = vpop.f32.mrb[0].mxu0
        %v2811 = vadd.f32 0.0, %v2810
        %v2812 = vpop.f32.mrb[0].mxu0
        %2813 = vmatprep.mubr.f32.mxu0 0.0
        %2814 = vmatmul.mubr.f32.gmra.mrb[0].mxu0 %v581
        %v2815 = vpop.f32.mrb[0].mxu0
        %v2816 = vadd.f32 0.0, %v2815
        %v2817 = vpop.f32.mrb[0].mxu0
        %2818 = vmatprep.mubr.f32.mxu0 0.0
        %2819 = vmatmul.mubr.f32.gmra.mrb[0].mxu0 %v582
        %v2820 = vpop.f32.mrb[0].mxu0
        %v2821 = vadd.f32 0.0, %v2820
        %v2822 = vpop.f32.mrb[0].mxu0
        %2823 = vmatprep.mubr.f32.mxu0 0.0
        %2824 = vmatmul.mubr.f32.gmra.mrb[0].mxu0 %v583
        %v2825 = vpop.f32.mrb[0].mxu0
        %v2826 = vadd.f32 0.0, %v2825
        %v2827 = vpop.f32.mrb[0].mxu0
        %2828 = vmatprep.mubr.f32.mxu0 0.0
        %2829 = vmatmul.mubr.f32.gmra.mrb[0].mxu0 %v584
        %v2830 = vpop.f32.mrb[0].mxu0
        %v2831 = vadd.f32 0.0, %v2830
        %v2832 = vpop.f32.mrb[0].mxu0
        %2833 = vmatprep.mubr.f32.mxu0 0.0
        %2834 = vmatmul.mubr.f32.gmra.mrb[0].mxu0 %v585
        %v2835 = vpop.f32.mrb[0].mxu0
        %v2836 = vadd.f32 0.0, %v2835
        %v2837 = vpop.f32.mrb[0].mxu0
        %2838 = vmatprep.mubr.f32.mxu0 0.0
        %2839 = vmatmul.mubr.f32.gmra.mrb[0].mxu0 %v586
        %v2840 = vpop.f32.mrb[0].mxu0
        %v2841 = vadd.f32 0.0, %v2840
        %v2842 = vpop.f32.mrb[0].mxu0
        %2843 = vdwg.mxu0
        %v2844 = vadd.f32 %v2714, %v2806
        %v2845 = vadd.f32 %v2715, %v2811
        %v2846 = vadd.f32 %v2716, %v2816
        %v2847 = vadd.f32 %v2717, %v2821
        %v2848 = vadd.f32 %v2718, %v2826
        %v2849 = vadd.f32 %v2719, %v2831
        %v2850 = vadd.f32 %v2720, %v2836
        %v2851 = vadd.f32 %v2721, %v2841
        %v2852 = vld [vmem:[%s578 + $0x5] sm:$0xff]
        %v2853 = vld [vmem:[%s578 + $0xd] sm:$0xff]
        %v2854 = vld [vmem:[%s578 + $0x1d] sm:$0xff]
        %v2855 = vld [vmem:[%s578 + $0x25] sm:$0xff]
        %v2856 = vld [vmem:[%s578 + $0x35] sm:$0xff]
        %v2857 = vld [vmem:[%s578 + $0x3d] sm:$0xff]
        %v2858 = vld [vmem:[%s578 + $0x4d] sm:$0xff]
        %v2859 = vld [vmem:[%s578 + $0x55] sm:$0xff]
        %s2860 = scalar_lea.vmem [#allocation4], 640
        %v2861 = vld [vmem:[%s2860] sm:$0xff]
        %v2862 = vld [vmem:[%s2860 + $0x8] sm:$0xff]
        %v2863 = vld [vmem:[%s2860 + $0x10] sm:$0xff]
        %v2864 = vld [vmem:[%s2860 + $0x18] sm:$0xff]
        %v2865 = vld [vmem:[%s2860 + $0x20] sm:$0xff]
        %v2866 = vld [vmem:[%s2860 + $0x28] sm:$0xff]
        %v2867 = vld [vmem:[%s2860 + $0x30] sm:$0xff]
        %v2868 = vld [vmem:[%s2860 + $0x38] sm:$0xff]
        %v2869 = vld [vmem:[%s2860 + $0x40] sm:$0xff]
        %v2870 = vld [vmem:[%s2860 + $0x48] sm:$0xff]
        %v2871 = vld [vmem:[%s2860 + $0x50] sm:$0xff]
        %v2872 = vld [vmem:[%s2860 + $0x58] sm:$0xff]
        %v2873 = vld [vmem:[%s2860 + $0x60] sm:$0xff]
        %v2874 = vld [vmem:[%s2860 + $0x68] sm:$0xff]
        %v2875 = vld [vmem:[%s2860 + $0x70] sm:$0xff]
        %v2876 = vld [vmem:[%s2860 + $0x78] sm:$0xff]
        %2877 = vmatprep.subr.mxu0 0.0
        %2878 = vmatpush1.msra.mxu0 %v2861
        %2879 = vmatprep.subr.mxu0 0.0
        %2880 = vmatpush1.msra.mxu0 %v2862
        %2881 = vmatprep.subr.mxu0 0.0
        %2882 = vmatpush1.msra.mxu0 %v2863
        %2883 = vmatprep.subr.mxu0 0.0
        %2884 = vmatpush1.msra.mxu0 %v2864
        %2885 = vmatprep.subr.mxu0 0.0
        %2886 = vmatpush1.msra.mxu0 %v2865
        %2887 = vmatprep.subr.mxu0 0.0
        %2888 = vmatpush1.msra.mxu0 %v2866
        %2889 = vmatprep.subr.mxu0 0.0
        %2890 = vmatpush1.msra.mxu0 %v2867
        %2891 = vmatprep.subr.mxu0 0.0
        %2892 = vmatpush1.msra.mxu0 %v2868
        %2893 = vmatprep.subr.mxu0 0.0
        %2894 = vmatpush1.msra.mxu0 %v2869
        %2895 = vmatprep.subr.mxu0 0.0
        %2896 = vmatpush1.msra.mxu0 %v2870
        %2897 = vmatprep.subr.mxu0 0.0
        %2898 = vmatpush1.msra.mxu0 %v2871
        %2899 = vmatprep.subr.mxu0 0.0
        %2900 = vmatpush1.msra.mxu0 %v2872
        %2901 = vmatprep.subr.mxu0 0.0
        %2902 = vmatpush1.msra.mxu0 %v2873
        %2903 = vmatprep.subr.mxu0 0.0
        %2904 = vmatpush1.msra.mxu0 %v2874
        %2905 = vmatprep.subr.mxu0 0.0
        %2906 = vmatpush1.msra.mxu0 %v2875
        %2907 = vmatprep.subr.mxu0 0.0
        %2908 = vmatpush1.msra.mxu0 %v2876
        %2909 = vmatprep.subr.mxu0 0.0
        %2910 = vmatpush1.msra.mxu0 0.0
        %2911 = vmatprep.subr.mxu0 0.0
        %2912 = vmatpush1.msra.mxu0 0.0
        %2913 = vmatprep.subr.mxu0 0.0
        %2914 = vmatpush1.msra.mxu0 0.0
        %2915 = vmatprep.subr.mxu0 0.0
        %2916 = vmatpush1.msra.mxu0 0.0
        %2917 = vmatprep.subr.mxu0 0.0
        %2918 = vmatpush1.msra.mxu0 0.0
        %2919 = vmatprep.subr.mxu0 0.0
        %2920 = vmatpush1.msra.mxu0 0.0
        %2921 = vmatprep.subr.mxu0 0.0
        %2922 = vmatpush1.msra.mxu0 0.0
        %2923 = vmatprep.subr.mxu0 0.0
        %2924 = vmatpush1.msra.mxu0 0.0
        %2925 = vmatprep.subr.mxu0 0.0
        %2926 = vmatpush1.msra.mxu0 0.0
        %2927 = vmatprep.subr.mxu0 0.0
        %2928 = vmatpush1.msra.mxu0 0.0
        %2929 = vmatprep.subr.mxu0 0.0
        %2930 = vmatpush1.msra.mxu0 0.0
        %2931 = vmatprep.subr.mxu0 0.0
        %2932 = vmatpush1.msra.mxu0 0.0
        %2933 = vmatprep.subr.mxu0 0.0
        %2934 = vmatpush1.msra.mxu0 0.0
        %2935 = vmatprep.subr.mxu0 0.0
        %2936 = vmatpush1.msra.mxu0 0.0
        %2937 = vmatprep.subr.mxu0 0.0
        %2938 = vmatpush1.msra.mxu0 0.0
        %2939 = vmatprep.subr.mxu0 0.0
        %2940 = vmatpush1.msra.mxu0 0.0
        %2941 = vmatprep.mubr.f32.mxu0 0.0
        %2942 = vmatmul.mubr.f32.gmra.mrb[0].mxu0 %v2852
        %v2943 = vpop.f32.mrb[0].mxu0
        %v2944 = vadd.f32 0.0, %v2943
        %v2945 = vpop.f32.mrb[0].mxu0
        %2946 = vmatprep.mubr.f32.mxu0 0.0
        %2947 = vmatmul.mubr.f32.gmra.mrb[0].mxu0 %v2853
        %v2948 = vpop.f32.mrb[0].mxu0
        %v2949 = vadd.f32 0.0, %v2948
        %v2950 = vpop.f32.mrb[0].mxu0
        %2951 = vmatprep.mubr.f32.mxu0 0.0
        %2952 = vmatmul.mubr.f32.gmra.mrb[0].mxu0 %v2854
        %v2953 = vpop.f32.mrb[0].mxu0
        %v2954 = vadd.f32 0.0, %v2953
        %v2955 = vpop.f32.mrb[0].mxu0
        %2956 = vmatprep.mubr.f32.mxu0 0.0
        %2957 = vmatmul.mubr.f32.gmra.mrb[0].mxu0 %v2855
        %v2958 = vpop.f32.mrb[0].mxu0
        %v2959 = vadd.f32 0.0, %v2958
        %v2960 = vpop.f32.mrb[0].mxu0
        %2961 = vmatprep.mubr.f32.mxu0 0.0
        %2962 = vmatmul.mubr.f32.gmra.mrb[0].mxu0 %v2856
        %v2963 = vpop.f32.mrb[0].mxu0
        %v2964 = vadd.f32 0.0, %v2963
        %v2965 = vpop.f32.mrb[0].mxu0
        %2966 = vmatprep.mubr.f32.mxu0 0.0
        %2967 = vmatmul.mubr.f32.gmra.mrb[0].mxu0 %v2857
        %v2968 = vpop.f32.mrb[0].mxu0
        %v2969 = vadd.f32 0.0, %v2968
        %v2970 = vpop.f32.mrb[0].mxu0
        %2971 = vmatprep.mubr.f32.mxu0 0.0
        %2972 = vmatmul.mubr.f32.gmra.mrb[0].mxu0 %v2858
        %v2973 = vpop.f32.mrb[0].mxu0
        %v2974 = vadd.f32 0.0, %v2973
        %v2975 = vpop.f32.mrb[0].mxu0
        %2976 = vmatprep.mubr.f32.mxu0 0.0
        %2977 = vmatmul.mubr.f32.gmra.mrb[0].mxu0 %v2859
        %v2978 = vpop.f32.mrb[0].mxu0
        %v2979 = vadd.f32 0.0, %v2978
        %v2980 = vpop.f32.mrb[0].mxu0
        %2981 = vdwg.mxu0
        %v2982 = vadd.f32 %v2844, %v2944
        %v2983 = vadd.f32 %v2845, %v2949
        %v2984 = vadd.f32 %v2846, %v2954
        %v2985 = vadd.f32 %v2847, %v2959
        %v2986 = vadd.f32 %v2848, %v2964
        %v2987 = vadd.f32 %v2849, %v2969
        %v2988 = vadd.f32 %v2850, %v2974
        %v2989 = vadd.f32 %v2851, %v2979
        %s2990 = scalar_lea.vmem %s418, 120 [#allocation2]
        %v2991 = vld [vmem:[%s2990 + $0x1] sm:$0xff]
        %v2992 = vld [vmem:[%s2990 + $0x9] sm:$0xff]
        %v2993 = vld [vmem:[%s2990 + $0x19] sm:$0xff]
        %v2994 = vld [vmem:[%s2990 + $0x21] sm:$0xff]
        %v2995 = vld [vmem:[%s2990 + $0x31] sm:$0xff]
        %v2996 = vld [vmem:[%s2990 + $0x39] sm:$0xff]
        %v2997 = vld [vmem:[%s2990 + $0x49] sm:$0xff]
        %v2998 = vld [vmem:[%s2990 + $0x51] sm:$0xff]
        %s2999 = scalar_lea.vmem [#allocation4], 768
        %v3000 = vld [vmem:[%s2999] sm:$0xff]
        %v3001 = vld [vmem:[%s2999 + $0x8] sm:$0xff]
        %v3002 = vld [vmem:[%s2999 + $0x10] sm:$0xff]
        %v3003 = vld [vmem:[%s2999 + $0x18] sm:$0xff]
        %v3004 = vld [vmem:[%s2999 + $0x20] sm:$0xff]
        %v3005 = vld [vmem:[%s2999 + $0x28] sm:$0xff]
        %v3006 = vld [vmem:[%s2999 + $0x30] sm:$0xff]
        %v3007 = vld [vmem:[%s2999 + $0x38] sm:$0xff]
        %v3008 = vld [vmem:[%s2999 + $0x40] sm:$0xff]
        %v3009 = vld [vmem:[%s2999 + $0x48] sm:$0xff]
        %v3010 = vld [vmem:[%s2999 + $0x50] sm:$0xff]
        %v3011 = vld [vmem:[%s2999 + $0x58] sm:$0xff]
        %v3012 = vld [vmem:[%s2999 + $0x60] sm:$0xff]
        %v3013 = vld [vmem:[%s2999 + $0x68] sm:$0xff]
        %v3014 = vld [vmem:[%s2999 + $0x70] sm:$0xff]
        %v3015 = vld [vmem:[%s2999 + $0x78] sm:$0xff]
        %3016 = vmatprep.subr.mxu0 0.0
        %3017 = vmatpush1.msra.mxu0 %v3000
        %3018 = vmatprep.subr.mxu0 0.0
        %3019 = vmatpush1.msra.mxu0 %v3001
        %3020 = vmatprep.subr.mxu0 0.0
        %3021 = vmatpush1.msra.mxu0 %v3002
        %3022 = vmatprep.subr.mxu0 0.0
        %3023 = vmatpush1.msra.mxu0 %v3003
        %3024 = vmatprep.subr.mxu0 0.0
        %3025 = vmatpush1.msra.mxu0 %v3004
        %3026 = vmatprep.subr.mxu0 0.0
        %3027 = vmatpush1.msra.mxu0 %v3005
        %3028 = vmatprep.subr.mxu0 0.0
        %3029 = vmatpush1.msra.mxu0 %v3006
        %3030 = vmatprep.subr.mxu0 0.0
        %3031 = vmatpush1.msra.mxu0 %v3007
        %3032 = vmatprep.subr.mxu0 0.0
        %3033 = vmatpush1.msra.mxu0 %v3008
        %3034 = vmatprep.subr.mxu0 0.0
        %3035 = vmatpush1.msra.mxu0 %v3009
        %3036 = vmatprep.subr.mxu0 0.0
        %3037 = vmatpush1.msra.mxu0 %v3010
        %3038 = vmatprep.subr.mxu0 0.0
        %3039 = vmatpush1.msra.mxu0 %v3011
        %3040 = vmatprep.subr.mxu0 0.0
        %3041 = vmatpush1.msra.mxu0 %v3012
        %3042 = vmatprep.subr.mxu0 0.0
        %3043 = vmatpush1.msra.mxu0 %v3013
        %3044 = vmatprep.subr.mxu0 0.0
        %3045 = vmatpush1.msra.mxu0 %v3014
        %3046 = vmatprep.subr.mxu0 0.0
        %3047 = vmatpush1.msra.mxu0 %v3015
        %3048 = vmatprep.subr.mxu0 0.0
        %3049 = vmatpush1.msra.mxu0 0.0
        %3050 = vmatprep.subr.mxu0 0.0
        %3051 = vmatpush1.msra.mxu0 0.0
        %3052 = vmatprep.subr.mxu0 0.0
        %3053 = vmatpush1.msra.mxu0 0.0
        %3054 = vmatprep.subr.mxu0 0.0
        %3055 = vmatpush1.msra.mxu0 0.0
        %3056 = vmatprep.subr.mxu0 0.0
        %3057 = vmatpush1.msra.mxu0 0.0
        %3058 = vmatprep.subr.mxu0 0.0
        %3059 = vmatpush1.msra.mxu0 0.0
        %3060 = vmatprep.subr.mxu0 0.0
        %3061 = vmatpush1.msra.mxu0 0.0
        %3062 = vmatprep.subr.mxu0 0.0
        %3063 = vmatpush1.msra.mxu0 0.0
        %3064 = vmatprep.subr.mxu0 0.0
        %3065 = vmatpush1.msra.mxu0 0.0
        %3066 = vmatprep.subr.mxu0 0.0
        %3067 = vmatpush1.msra.mxu0 0.0
        %3068 = vmatprep.subr.mxu0 0.0
        %3069 = vmatpush1.msra.mxu0 0.0
        %3070 = vmatprep.subr.mxu0 0.0
        %3071 = vmatpush1.msra.mxu0 0.0
        %3072 = vmatprep.subr.mxu0 0.0
        %3073 = vmatpush1.msra.mxu0 0.0
        %3074 = vmatprep.subr.mxu0 0.0
        %3075 = vmatpush1.msra.mxu0 0.0
        %3076 = vmatprep.subr.mxu0 0.0
        %3077 = vmatpush1.msra.mxu0 0.0
        %3078 = vmatprep.subr.mxu0 0.0
        %3079 = vmatpush1.msra.mxu0 0.0
        %3080 = vmatprep.mubr.f32.mxu0 0.0
        %3081 = vmatmul.mubr.f32.gmra.mrb[0].mxu0 %v2991
        %v3082 = vpop.f32.mrb[0].mxu0
        %v3083 = vadd.f32 0.0, %v3082
        %v3084 = vpop.f32.mrb[0].mxu0
        %3085 = vmatprep.mubr.f32.mxu0 0.0
        %3086 = vmatmul.mubr.f32.gmra.mrb[0].mxu0 %v2992
        %v3087 = vpop.f32.mrb[0].mxu0
        %v3088 = vadd.f32 0.0, %v3087
        %v3089 = vpop.f32.mrb[0].mxu0
        %3090 = vmatprep.mubr.f32.mxu0 0.0
        %3091 = vmatmul.mubr.f32.gmra.mrb[0].mxu0 %v2993
        %v3092 = vpop.f32.mrb[0].mxu0
        %v3093 = vadd.f32 0.0, %v3092
        %v3094 = vpop.f32.mrb[0].mxu0
        %3095 = vmatprep.mubr.f32.mxu0 0.0
        %3096 = vmatmul.mubr.f32.gmra.mrb[0].mxu0 %v2994
        %v3097 = vpop.f32.mrb[0].mxu0
        %v3098 = vadd.f32 0.0, %v3097
        %v3099 = vpop.f32.mrb[0].mxu0
        %3100 = vmatprep.mubr.f32.mxu0 0.0
        %3101 = vmatmul.mubr.f32.gmra.mrb[0].mxu0 %v2995
        %v3102 = vpop.f32.mrb[0].mxu0
        %v3103 = vadd.f32 0.0, %v3102
        %v3104 = vpop.f32.mrb[0].mxu0
        %3105 = vmatprep.mubr.f32.mxu0 0.0
        %3106 = vmatmul.mubr.f32.gmra.mrb[0].mxu0 %v2996
        %v3107 = vpop.f32.mrb[0].mxu0
        %v3108 = vadd.f32 0.0, %v3107
        %v3109 = vpop.f32.mrb[0].mxu0
        %3110 = vmatprep.mubr.f32.mxu0 0.0
        %3111 = vmatmul.mubr.f32.gmra.mrb[0].mxu0 %v2997
        %v3112 = vpop.f32.mrb[0].mxu0
        %v3113 = vadd.f32 0.0, %v3112
        %v3114 = vpop.f32.mrb[0].mxu0
        %3115 = vmatprep.mubr.f32.mxu0 0.0
        %3116 = vmatmul.mubr.f32.gmra.mrb[0].mxu0 %v2998
        %v3117 = vpop.f32.mrb[0].mxu0
        %v3118 = vadd.f32 0.0, %v3117
        %v3119 = vpop.f32.mrb[0].mxu0
        %3120 = vdwg.mxu0
        %v3121 = vadd.f32 %v2982, %v3083
        %v3122 = vadd.f32 %v2983, %v3088
        %v3123 = vadd.f32 %v2984, %v3093
        %v3124 = vadd.f32 %v2985, %v3098
        %v3125 = vadd.f32 %v2986, %v3103
        %v3126 = vadd.f32 %v2987, %v3108
        %v3127 = vadd.f32 %v2988, %v3113
        %v3128 = vadd.f32 %v2989, %v3118
        %v3129 = vld [vmem:[%s2990 + $0x3] sm:$0xff]
        %v3130 = vld [vmem:[%s2990 + $0xb] sm:$0xff]
        %v3131 = vld [vmem:[%s2990 + $0x1b] sm:$0xff]
        %v3132 = vld [vmem:[%s2990 + $0x23] sm:$0xff]
        %v3133 = vld [vmem:[%s2990 + $0x33] sm:$0xff]
        %v3134 = vld [vmem:[%s2990 + $0x3b] sm:$0xff]
        %v3135 = vld [vmem:[%s2990 + $0x4b] sm:$0xff]
        %v3136 = vld [vmem:[%s2990 + $0x53] sm:$0xff]
        %s3137 = scalar_lea.vmem [#allocation4], 896
        %v3138 = vld [vmem:[%s3137] sm:$0xff]
        %v3139 = vld [vmem:[%s3137 + $0x8] sm:$0xff]
        %v3140 = vld [vmem:[%s3137 + $0x10] sm:$0xff]
        %v3141 = vld [vmem:[%s3137 + $0x18] sm:$0xff]
        %v3142 = vld [vmem:[%s3137 + $0x20] sm:$0xff]
        %v3143 = vld [vmem:[%s3137 + $0x28] sm:$0xff]
        %v3144 = vld [vmem:[%s3137 + $0x30] sm:$0xff]
        %v3145 = vld [vmem:[%s3137 + $0x38] sm:$0xff]
        %v3146 = vld [vmem:[%s3137 + $0x40] sm:$0xff]
        %v3147 = vld [vmem:[%s3137 + $0x48] sm:$0xff]
        %v3148 = vld [vmem:[%s3137 + $0x50] sm:$0xff]
        %v3149 = vld [vmem:[%s3137 + $0x58] sm:$0xff]
        %v3150 = vld [vmem:[%s3137 + $0x60] sm:$0xff]
        %v3151 = vld [vmem:[%s3137 + $0x68] sm:$0xff]
        %v3152 = vld [vmem:[%s3137 + $0x70] sm:$0xff]
        %v3153 = vld [vmem:[%s3137 + $0x78] sm:$0xff]
        %3154 = vmatprep.subr.mxu0 0.0
        %3155 = vmatpush1.msra.mxu0 %v3138
        %3156 = vmatprep.subr.mxu0 0.0
        %3157 = vmatpush1.msra.mxu0 %v3139
        %3158 = vmatprep.subr.mxu0 0.0
        %3159 = vmatpush1.msra.mxu0 %v3140
        %3160 = vmatprep.subr.mxu0 0.0
        %3161 = vmatpush1.msra.mxu0 %v3141
        %3162 = vmatprep.subr.mxu0 0.0
        %3163 = vmatpush1.msra.mxu0 %v3142
        %3164 = vmatprep.subr.mxu0 0.0
        %3165 = vmatpush1.msra.mxu0 %v3143
        %3166 = vmatprep.subr.mxu0 0.0
        %3167 = vmatpush1.msra.mxu0 %v3144
        %3168 = vmatprep.subr.mxu0 0.0
        %3169 = vmatpush1.msra.mxu0 %v3145
        %3170 = vmatprep.subr.mxu0 0.0
        %3171 = vmatpush1.msra.mxu0 %v3146
        %3172 = vmatprep.subr.mxu0 0.0
        %3173 = vmatpush1.msra.mxu0 %v3147
        %3174 = vmatprep.subr.mxu0 0.0
        %3175 = vmatpush1.msra.mxu0 %v3148
        %3176 = vmatprep.subr.mxu0 0.0
        %3177 = vmatpush1.msra.mxu0 %v3149
        %3178 = vmatprep.subr.mxu0 0.0
        %3179 = vmatpush1.msra.mxu0 %v3150
        %3180 = vmatprep.subr.mxu0 0.0
        %3181 = vmatpush1.msra.mxu0 %v3151
        %3182 = vmatprep.subr.mxu0 0.0
        %3183 = vmatpush1.msra.mxu0 %v3152
        %3184 = vmatprep.subr.mxu0 0.0
        %3185 = vmatpush1.msra.mxu0 %v3153
        %3186 = vmatprep.subr.mxu0 0.0
        %3187 = vmatpush1.msra.mxu0 0.0
        %3188 = vmatprep.subr.mxu0 0.0
        %3189 = vmatpush1.msra.mxu0 0.0
        %3190 = vmatprep.subr.mxu0 0.0
        %3191 = vmatpush1.msra.mxu0 0.0
        %3192 = vmatprep.subr.mxu0 0.0
        %3193 = vmatpush1.msra.mxu0 0.0
        %3194 = vmatprep.subr.mxu0 0.0
        %3195 = vmatpush1.msra.mxu0 0.0
        %3196 = vmatprep.subr.mxu0 0.0
        %3197 = vmatpush1.msra.mxu0 0.0
        %3198 = vmatprep.subr.mxu0 0.0
        %3199 = vmatpush1.msra.mxu0 0.0
        %3200 = vmatprep.subr.mxu0 0.0
        %3201 = vmatpush1.msra.mxu0 0.0
        %3202 = vmatprep.subr.mxu0 0.0
        %3203 = vmatpush1.msra.mxu0 0.0
        %3204 = vmatprep.subr.mxu0 0.0
        %3205 = vmatpush1.msra.mxu0 0.0
        %3206 = vmatprep.subr.mxu0 0.0
        %3207 = vmatpush1.msra.mxu0 0.0
        %3208 = vmatprep.subr.mxu0 0.0
        %3209 = vmatpush1.msra.mxu0 0.0
        %3210 = vmatprep.subr.mxu0 0.0
        %3211 = vmatpush1.msra.mxu0 0.0
        %3212 = vmatprep.subr.mxu0 0.0
        %3213 = vmatpush1.msra.mxu0 0.0
        %3214 = vmatprep.subr.mxu0 0.0
        %3215 = vmatpush1.msra.mxu0 0.0
        %3216 = vmatprep.subr.mxu0 0.0
        %3217 = vmatpush1.msra.mxu0 0.0
        %3218 = vmatprep.mubr.f32.mxu0 0.0
        %3219 = vmatmul.mubr.f32.gmra.mrb[0].mxu0 %v3129
        %v3220 = vpop.f32.mrb[0].mxu0
        %v3221 = vadd.f32 0.0, %v3220
        %v3222 = vpop.f32.mrb[0].mxu0
        %3223 = vmatprep.mubr.f32.mxu0 0.0
        %3224 = vmatmul.mubr.f32.gmra.mrb[0].mxu0 %v3130
        %v3225 = vpop.f32.mrb[0].mxu0
        %v3226 = vadd.f32 0.0, %v3225
        %v3227 = vpop.f32.mrb[0].mxu0
        %3228 = vmatprep.mubr.f32.mxu0 0.0
        %3229 = vmatmul.mubr.f32.gmra.mrb[0].mxu0 %v3131
        %v3230 = vpop.f32.mrb[0].mxu0
        %v3231 = vadd.f32 0.0, %v3230
        %v3232 = vpop.f32.mrb[0].mxu0
        %3233 = vmatprep.mubr.f32.mxu0 0.0
        %3234 = vmatmul.mubr.f32.gmra.mrb[0].mxu0 %v3132
        %v3235 = vpop.f32.mrb[0].mxu0
        %v3236 = vadd.f32 0.0, %v3235
        %v3237 = vpop.f32.mrb[0].mxu0
        %3238 = vmatprep.mubr.f32.mxu0 0.0
        %3239 = vmatmul.mubr.f32.gmra.mrb[0].mxu0 %v3133
        %v3240 = vpop.f32.mrb[0].mxu0
        %v3241 = vadd.f32 0.0, %v3240
        %v3242 = vpop.f32.mrb[0].mxu0
        %3243 = vmatprep.mubr.f32.mxu0 0.0
        %3244 = vmatmul.mubr.f32.gmra.mrb[0].mxu0 %v3134
        %v3245 = vpop.f32.mrb[0].mxu0
        %v3246 = vadd.f32 0.0, %v3245
        %v3247 = vpop.f32.mrb[0].mxu0
        %3248 = vmatprep.mubr.f32.mxu0 0.0
        %3249 = vmatmul.mubr.f32.gmra.mrb[0].mxu0 %v3135
        %v3250 = vpop.f32.mrb[0].mxu0
        %v3251 = vadd.f32 0.0, %v3250
        %v3252 = vpop.f32.mrb[0].mxu0
        %3253 = vmatprep.mubr.f32.mxu0 0.0
        %3254 = vmatmul.mubr.f32.gmra.mrb[0].mxu0 %v3136
        %v3255 = vpop.f32.mrb[0].mxu0
        %v3256 = vadd.f32 0.0, %v3255
        %v3257 = vpop.f32.mrb[0].mxu0
        %3258 = vdwg.mxu0
        %v3259 = vadd.f32 %v3121, %v3221
        %v3260 = vadd.f32 %v3122, %v3226
        %v3261 = vadd.f32 %v3123, %v3231
        %v3262 = vadd.f32 %v3124, %v3236
        %v3263 = vadd.f32 %v3125, %v3241
        %v3264 = vadd.f32 %v3126, %v3246
        %v3265 = vadd.f32 %v3127, %v3251
        %v3266 = vadd.f32 %v3128, %v3256
        %v3267 = vld [vmem:[%s2990 + $0x5] sm:$0xff]
        %v3268 = vld [vmem:[%s2990 + $0xd] sm:$0xff]
        %v3269 = vld [vmem:[%s2990 + $0x1d] sm:$0xff]
        %v3270 = vld [vmem:[%s2990 + $0x25] sm:$0xff]
        %v3271 = vld [vmem:[%s2990 + $0x35] sm:$0xff]
        %v3272 = vld [vmem:[%s2990 + $0x3d] sm:$0xff]
        %v3273 = vld [vmem:[%s2990 + $0x4d] sm:$0xff]
        %v3274 = vld [vmem:[%s2990 + $0x55] sm:$0xff]
        %s3275 = scalar_lea.vmem [#allocation4], 1024
        %v3276 = vld [vmem:[%s3275] sm:$0xff]
        %v3277 = vld [vmem:[%s3275 + $0x8] sm:$0xff]
        %v3278 = vld [vmem:[%s3275 + $0x10] sm:$0xff]
        %v3279 = vld [vmem:[%s3275 + $0x18] sm:$0xff]
        %v3280 = vld [vmem:[%s3275 + $0x20] sm:$0xff]
        %v3281 = vld [vmem:[%s3275 + $0x28] sm:$0xff]
        %v3282 = vld [vmem:[%s3275 + $0x30] sm:$0xff]
        %v3283 = vld [vmem:[%s3275 + $0x38] sm:$0xff]
        %v3284 = vld [vmem:[%s3275 + $0x40] sm:$0xff]
        %v3285 = vld [vmem:[%s3275 + $0x48] sm:$0xff]
        %v3286 = vld [vmem:[%s3275 + $0x50] sm:$0xff]
        %v3287 = vld [vmem:[%s3275 + $0x58] sm:$0xff]
        %v3288 = vld [vmem:[%s3275 + $0x60] sm:$0xff]
        %v3289 = vld [vmem:[%s3275 + $0x68] sm:$0xff]
        %v3290 = vld [vmem:[%s3275 + $0x70] sm:$0xff]
        %v3291 = vld [vmem:[%s3275 + $0x78] sm:$0xff]
        %3292 = vmatprep.subr.mxu0 0.0
        %3293 = vmatpush1.msra.mxu0 %v3276
        %3294 = vmatprep.subr.mxu0 0.0
        %3295 = vmatpush1.msra.mxu0 %v3277
        %3296 = vmatprep.subr.mxu0 0.0
        %3297 = vmatpush1.msra.mxu0 %v3278
        %3298 = vmatprep.subr.mxu0 0.0
        %3299 = vmatpush1.msra.mxu0 %v3279
        %3300 = vmatprep.subr.mxu0 0.0
        %3301 = vmatpush1.msra.mxu0 %v3280
        %3302 = vmatprep.subr.mxu0 0.0
        %3303 = vmatpush1.msra.mxu0 %v3281
        %3304 = vmatprep.subr.mxu0 0.0
        %3305 = vmatpush1.msra.mxu0 %v3282
        %3306 = vmatprep.subr.mxu0 0.0
        %3307 = vmatpush1.msra.mxu0 %v3283
        %3308 = vmatprep.subr.mxu0 0.0
        %3309 = vmatpush1.msra.mxu0 %v3284
        %3310 = vmatprep.subr.mxu0 0.0
        %3311 = vmatpush1.msra.mxu0 %v3285
        %3312 = vmatprep.subr.mxu0 0.0
        %3313 = vmatpush1.msra.mxu0 %v3286
        %3314 = vmatprep.subr.mxu0 0.0
        %3315 = vmatpush1.msra.mxu0 %v3287
        %3316 = vmatprep.subr.mxu0 0.0
        %3317 = vmatpush1.msra.mxu0 %v3288
        %3318 = vmatprep.subr.mxu0 0.0
        %3319 = vmatpush1.msra.mxu0 %v3289
        %3320 = vmatprep.subr.mxu0 0.0
        %3321 = vmatpush1.msra.mxu0 %v3290
        %3322 = vmatprep.subr.mxu0 0.0
        %3323 = vmatpush1.msra.mxu0 %v3291
        %3324 = vmatprep.subr.mxu0 0.0
        %3325 = vmatpush1.msra.mxu0 0.0
        %3326 = vmatprep.subr.mxu0 0.0
        %3327 = vmatpush1.msra.mxu0 0.0
        %3328 = vmatprep.subr.mxu0 0.0
        %3329 = vmatpush1.msra.mxu0 0.0
        %3330 = vmatprep.subr.mxu0 0.0
        %3331 = vmatpush1.msra.mxu0 0.0
        %3332 = vmatprep.subr.mxu0 0.0
        %3333 = vmatpush1.msra.mxu0 0.0
        %3334 = vmatprep.subr.mxu0 0.0
        %3335 = vmatpush1.msra.mxu0 0.0
        %3336 = vmatprep.subr.mxu0 0.0
        %3337 = vmatpush1.msra.mxu0 0.0
        %3338 = vmatprep.subr.mxu0 0.0
        %3339 = vmatpush1.msra.mxu0 0.0
        %3340 = vmatprep.subr.mxu0 0.0
        %3341 = vmatpush1.msra.mxu0 0.0
        %3342 = vmatprep.subr.mxu0 0.0
        %3343 = vmatpush1.msra.mxu0 0.0
        %3344 = vmatprep.subr.mxu0 0.0
        %3345 = vmatpush1.msra.mxu0 0.0
        %3346 = vmatprep.subr.mxu0 0.0
        %3347 = vmatpush1.msra.mxu0 0.0
        %3348 = vmatprep.subr.mxu0 0.0
        %3349 = vmatpush1.msra.mxu0 0.0
        %3350 = vmatprep.subr.mxu0 0.0
        %3351 = vmatpush1.msra.mxu0 0.0
        %3352 = vmatprep.subr.mxu0 0.0
        %3353 = vmatpush1.msra.mxu0 0.0
        %3354 = vmatprep.subr.mxu0 0.0
        %3355 = vmatpush1.msra.mxu0 0.0
        %3356 = vmatprep.mubr.f32.mxu0 0.0
        %3357 = vmatmul.mubr.f32.gmra.mrb[0].mxu0 %v3267
        %v3358 = vpop.f32.mrb[0].mxu0
        %v3359 = vadd.f32 0.0, %v3358
        %v3360 = vpop.f32.mrb[0].mxu0
        %3361 = vmatprep.mubr.f32.mxu0 0.0
        %3362 = vmatmul.mubr.f32.gmra.mrb[0].mxu0 %v3268
        %v3363 = vpop.f32.mrb[0].mxu0
        %v3364 = vadd.f32 0.0, %v3363
        %v3365 = vpop.f32.mrb[0].mxu0
        %3366 = vmatprep.mubr.f32.mxu0 0.0
        %3367 = vmatmul.mubr.f32.gmra.mrb[0].mxu0 %v3269
        %v3368 = vpop.f32.mrb[0].mxu0
        %v3369 = vadd.f32 0.0, %v3368
        %v3370 = vpop.f32.mrb[0].mxu0
        %3371 = vmatprep.mubr.f32.mxu0 0.0
        %3372 = vmatmul.mubr.f32.gmra.mrb[0].mxu0 %v3270
        %v3373 = vpop.f32.mrb[0].mxu0
        %v3374 = vadd.f32 0.0, %v3373
        %v3375 = vpop.f32.mrb[0].mxu0
        %3376 = vmatprep.mubr.f32.mxu0 0.0
        %3377 = vmatmul.mubr.f32.gmra.mrb[0].mxu0 %v3271
        %v3378 = vpop.f32.mrb[0].mxu0
        %v3379 = vadd.f32 0.0, %v3378
        %v3380 = vpop.f32.mrb[0].mxu0
        %3381 = vmatprep.mubr.f32.mxu0 0.0
        %3382 = vmatmul.mubr.f32.gmra.mrb[0].mxu0 %v3272
        %v3383 = vpop.f32.mrb[0].mxu0
        %v3384 = vadd.f32 0.0, %v3383
        %v3385 = vpop.f32.mrb[0].mxu0
        %3386 = vmatprep.mubr.f32.mxu0 0.0
        %3387 = vmatmul.mubr.f32.gmra.mrb[0].mxu0 %v3273
        %v3388 = vpop.f32.mrb[0].mxu0
        %v3389 = vadd.f32 0.0, %v3388
        %v3390 = vpop.f32.mrb[0].mxu0
        %3391 = vmatprep.mubr.f32.mxu0 0.0
        %3392 = vmatmul.mubr.f32.gmra.mrb[0].mxu0 %v3274
        %v3393 = vpop.f32.mrb[0].mxu0
        %v3394 = vadd.f32 0.0, %v3393
        %v3395 = vpop.f32.mrb[0].mxu0
        %3396 = vdwg.mxu0
        %v3397 = vadd.f32 %v3259, %v3359
        %v3398 = vadd.f32 %v3260, %v3364
        %v3399 = vadd.f32 %v3261, %v3369
        %v3400 = vadd.f32 %v3262, %v3374
        %v3401 = vadd.f32 %v3263, %v3379
        %v3402 = vadd.f32 %v3264, %v3384
        %v3403 = vadd.f32 %v3265, %v3389
        %v3404 = vadd.f32 %v3266, %v3394
        %v3405 = vmax.f32 %v3397, 0.0
        %v3406 = vmax.f32 %v3398, 0.0
        %v3407 = vmax.f32 %v3399, 0.0
        %v3408 = vmax.f32 %v3400, 0.0
        %v3409 = vmax.f32 %v3401, 0.0
        %v3410 = vmax.f32 %v3402, 0.0
        %v3411 = vmax.f32 %v3403, 0.0
        %v3412 = vmax.f32 %v3404, 0.0
        %s3413 = scalar_lea.vmem %s5, 256
        %v3414 = vld [vmem:[%s3413] sm:$0xff]
        %v3415 = vld [vmem:[%s3413 + $0x8] sm:$0xff]
        %v3416 = vld [vmem:[%s3413 + $0x10] sm:$0xff]
        %v3417 = vld [vmem:[%s3413 + $0x18] sm:$0xff]
        %v3418 = vld [vmem:[%s3413 + $0x20] sm:$0xff]
        %v3419 = vld [vmem:[%s3413 + $0x28] sm:$0xff]
        %v3420 = vld [vmem:[%s3413 + $0x30] sm:$0xff]
        %v3421 = vld [vmem:[%s3413 + $0x38] sm:$0xff]
        %v3422 = vld [vmem:[%s3413 + $0x40] sm:$0xff]
        %v3423 = vld [vmem:[%s3413 + $0x48] sm:$0xff]
        %v3424 = vld [vmem:[%s3413 + $0x50] sm:$0xff]
        %v3425 = vld [vmem:[%s3413 + $0x58] sm:$0xff]
        %v3426 = vld [vmem:[%s3413 + $0x60] sm:$0xff]
        %v3427 = vld [vmem:[%s3413 + $0x68] sm:$0xff]
        %v3428 = vld [vmem:[%s3413 + $0x70] sm:$0xff]
        %v3429 = vld [vmem:[%s3413 + $0x78] sm:$0xff]
        %3430 = vmatprep.subr.mxu0 0.0
        %3431 = vmatpush1.msra.mxu0 %v3414
        %3432 = vmatprep.subr.mxu0 0.0
        %3433 = vmatpush1.msra.mxu0 %v3415
        %3434 = vmatprep.subr.mxu0 0.0
        %3435 = vmatpush1.msra.mxu0 %v3416
        %3436 = vmatprep.subr.mxu0 0.0
        %3437 = vmatpush1.msra.mxu0 %v3417
        %3438 = vmatprep.subr.mxu0 0.0
        %3439 = vmatpush1.msra.mxu0 %v3418
        %3440 = vmatprep.subr.mxu0 0.0
        %3441 = vmatpush1.msra.mxu0 %v3419
        %3442 = vmatprep.subr.mxu0 0.0
        %3443 = vmatpush1.msra.mxu0 %v3420
        %3444 = vmatprep.subr.mxu0 0.0
        %3445 = vmatpush1.msra.mxu0 %v3421
        %3446 = vmatprep.subr.mxu0 0.0
        %3447 = vmatpush1.msra.mxu0 %v3422
        %3448 = vmatprep.subr.mxu0 0.0
        %3449 = vmatpush1.msra.mxu0 %v3423
        %3450 = vmatprep.subr.mxu0 0.0
        %3451 = vmatpush1.msra.mxu0 %v3424
        %3452 = vmatprep.subr.mxu0 0.0
        %3453 = vmatpush1.msra.mxu0 %v3425
        %3454 = vmatprep.subr.mxu0 0.0
        %3455 = vmatpush1.msra.mxu0 %v3426
        %3456 = vmatprep.subr.mxu0 0.0
        %3457 = vmatpush1.msra.mxu0 %v3427
        %3458 = vmatprep.subr.mxu0 0.0
        %3459 = vmatpush1.msra.mxu0 %v3428
        %3460 = vmatprep.subr.mxu0 0.0
        %3461 = vmatpush1.msra.mxu0 %v3429
        %3462 = vmatprep.subr.mxu0 0.0
        %3463 = vmatpush1.msra.mxu0 0.0
        %3464 = vmatprep.subr.mxu0 0.0
        %3465 = vmatpush1.msra.mxu0 0.0
        %3466 = vmatprep.subr.mxu0 0.0
        %3467 = vmatpush1.msra.mxu0 0.0
        %3468 = vmatprep.subr.mxu0 0.0
        %3469 = vmatpush1.msra.mxu0 0.0
        %3470 = vmatprep.subr.mxu0 0.0
        %3471 = vmatpush1.msra.mxu0 0.0
        %3472 = vmatprep.subr.mxu0 0.0
        %3473 = vmatpush1.msra.mxu0 0.0
        %3474 = vmatprep.subr.mxu0 0.0
        %3475 = vmatpush1.msra.mxu0 0.0
        %3476 = vmatprep.subr.mxu0 0.0
        %3477 = vmatpush1.msra.mxu0 0.0
        %3478 = vmatprep.subr.mxu0 0.0
        %3479 = vmatpush1.msra.mxu0 0.0
        %3480 = vmatprep.subr.mxu0 0.0
        %3481 = vmatpush1.msra.mxu0 0.0
        %3482 = vmatprep.subr.mxu0 0.0
        %3483 = vmatpush1.msra.mxu0 0.0
        %3484 = vmatprep.subr.mxu0 0.0
        %3485 = vmatpush1.msra.mxu0 0.0
        %3486 = vmatprep.subr.mxu0 0.0
        %3487 = vmatpush1.msra.mxu0 0.0
        %3488 = vmatprep.subr.mxu0 0.0
        %3489 = vmatpush1.msra.mxu0 0.0
        %3490 = vmatprep.subr.mxu0 0.0
        %3491 = vmatpush1.msra.mxu0 0.0
        %3492 = vmatprep.subr.mxu0 0.0
        %3493 = vmatpush1.msra.mxu0 0.0
        %3494 = vmatprep.mubr.f32.mxu0 0.0
        %3495 = vmatmul.mubr.f32.gmra.mrb[0].mxu0 %v3405
        %v3496 = vpop.f32.mrb[0].mxu0
        %v3497 = vadd.f32 0.0, %v3496
        %v3498 = vpop.f32.mrb[0].mxu0
        %3499 = vmatprep.mubr.f32.mxu0 0.0
        %3500 = vmatmul.mubr.f32.gmra.mrb[0].mxu0 %v3406
        %v3501 = vpop.f32.mrb[0].mxu0
        %v3502 = vadd.f32 0.0, %v3501
        %v3503 = vpop.f32.mrb[0].mxu0
        %3504 = vmatprep.mubr.f32.mxu0 0.0
        %3505 = vmatmul.mubr.f32.gmra.mrb[0].mxu0 %v3407
        %v3506 = vpop.f32.mrb[0].mxu0
        %v3507 = vadd.f32 0.0, %v3506
        %v3508 = vpop.f32.mrb[0].mxu0
        %3509 = vmatprep.mubr.f32.mxu0 0.0
        %3510 = vmatmul.mubr.f32.gmra.mrb[0].mxu0 %v3408
        %v3511 = vpop.f32.mrb[0].mxu0
        %v3512 = vadd.f32 0.0, %v3511
        %v3513 = vpop.f32.mrb[0].mxu0
        %3514 = vmatprep.mubr.f32.mxu0 0.0
        %3515 = vmatmul.mubr.f32.gmra.mrb[0].mxu0 %v3409
        %v3516 = vpop.f32.mrb[0].mxu0
        %v3517 = vadd.f32 0.0, %v3516
        %v3518 = vpop.f32.mrb[0].mxu0
        %3519 = vmatprep.mubr.f32.mxu0 0.0
        %3520 = vmatmul.mubr.f32.gmra.mrb[0].mxu0 %v3410
        %v3521 = vpop.f32.mrb[0].mxu0
        %v3522 = vadd.f32 0.0, %v3521
        %v3523 = vpop.f32.mrb[0].mxu0
        %3524 = vmatprep.mubr.f32.mxu0 0.0
        %3525 = vmatmul.mubr.f32.gmra.mrb[0].mxu0 %v3411
        %v3526 = vpop.f32.mrb[0].mxu0
        %v3527 = vadd.f32 0.0, %v3526
        %v3528 = vpop.f32.mrb[0].mxu0
        %3529 = vmatprep.mubr.f32.mxu0 0.0
        %3530 = vmatmul.mubr.f32.gmra.mrb[0].mxu0 %v3412
        %v3531 = vpop.f32.mrb[0].mxu0
        %v3532 = vadd.f32 0.0, %v3531
        %v3533 = vpop.f32.mrb[0].mxu0
        %3534 = vdwg.mxu0
        %v3535 = vadd.f32 %v2148, %v3497
        %v3536 = vadd.f32 %v2153, %v3502
        %v3537 = vadd.f32 %v2158, %v3507
        %v3538 = vadd.f32 %v2163, %v3512
        %v3539 = vadd.f32 %v2168, %v3517
        %v3540 = vadd.f32 %v2173, %v3522
        %v3541 = vadd.f32 %v2178, %v3527
        %v3542 = vadd.f32 %v2183, %v3532
        %v3543 = vld [vmem:[%s418] sm:$0xff]
        %v3544 = vld [vmem:[%s418 + $0x8] sm:$0xff]
        %v3545 = vld [vmem:[%s418 + $0x18] sm:$0xff]
        %v3546 = vld [vmem:[%s418 + $0x20] sm:$0xff]
        %v3547 = vld [vmem:[%s418 + $0x30] sm:$0xff]
        %v3548 = vld [vmem:[%s418 + $0x38] sm:$0xff]
        %v3549 = vld [vmem:[%s418 + $0x48] sm:$0xff]
        %v3550 = vld [vmem:[%s418 + $0x50] sm:$0xff]
        %v3551 = vld [vmem:[#allocation7] sm:$0xff]
        %v3552 = vld [vmem:[#allocation7 + $0x8] sm:$0xff]
        %v3553 = vld [vmem:[#allocation7 + $0x10] sm:$0xff]
        %v3554 = vld [vmem:[#allocation7 + $0x18] sm:$0xff]
        %v3555 = vld [vmem:[#allocation7 + $0x20] sm:$0xff]
        %v3556 = vld [vmem:[#allocation7 + $0x28] sm:$0xff]
        %v3557 = vld [vmem:[#allocation7 + $0x30] sm:$0xff]
        %v3558 = vld [vmem:[#allocation7 + $0x38] sm:$0xff]
        %v3559 = vld [vmem:[#allocation7 + $0x40] sm:$0xff]
        %v3560 = vld [vmem:[#allocation7 + $0x48] sm:$0xff]
        %v3561 = vld [vmem:[#allocation7 + $0x50] sm:$0xff]
        %v3562 = vld [vmem:[#allocation7 + $0x58] sm:$0xff]
        %v3563 = vld [vmem:[#allocation7 + $0x60] sm:$0xff]
        %v3564 = vld [vmem:[#allocation7 + $0x68] sm:$0xff]
        %v3565 = vld [vmem:[#allocation7 + $0x70] sm:$0xff]
        %v3566 = vld [vmem:[#allocation7 + $0x78] sm:$0xff]
        %v3567 = vld [vmem:[%s418 + $0x3] sm:$0xff]
        %v3568 = vld [vmem:[%s418 + $0xb] sm:$0xff]
        %v3569 = vld [vmem:[%s418 + $0x1b] sm:$0xff]
        %v3570 = vld [vmem:[%s418 + $0x23] sm:$0xff]
        %v3571 = vld [vmem:[%s418 + $0x33] sm:$0xff]
        %v3572 = vld [vmem:[%s418 + $0x3b] sm:$0xff]
        %v3573 = vld [vmem:[%s418 + $0x4b] sm:$0xff]
        %v3574 = vld [vmem:[%s418 + $0x53] sm:$0xff]
        %s3575 = scalar_lea.vmem [#allocation7], 128
        %v3576 = vld [vmem:[%s3575] sm:$0xff]
        %v3577 = vld [vmem:[%s3575 + $0x8] sm:$0xff]
        %v3578 = vld [vmem:[%s3575 + $0x10] sm:$0xff]
        %v3579 = vld [vmem:[%s3575 + $0x18] sm:$0xff]
        %v3580 = vld [vmem:[%s3575 + $0x20] sm:$0xff]
        %v3581 = vld [vmem:[%s3575 + $0x28] sm:$0xff]
        %v3582 = vld [vmem:[%s3575 + $0x30] sm:$0xff]
        %v3583 = vld [vmem:[%s3575 + $0x38] sm:$0xff]
        %v3584 = vld [vmem:[%s3575 + $0x40] sm:$0xff]
        %v3585 = vld [vmem:[%s3575 + $0x48] sm:$0xff]
        %v3586 = vld [vmem:[%s3575 + $0x50] sm:$0xff]
        %v3587 = vld [vmem:[%s3575 + $0x58] sm:$0xff]
        %v3588 = vld [vmem:[%s3575 + $0x60] sm:$0xff]
        %v3589 = vld [vmem:[%s3575 + $0x68] sm:$0xff]
        %v3590 = vld [vmem:[%s3575 + $0x70] sm:$0xff]
        %v3591 = vld [vmem:[%s3575 + $0x78] sm:$0xff]
        %3592 = vmatprep.subr.mxu0 0.0
        %3593 = vmatpush1.msra.mxu0 %v3576
        %3594 = vmatprep.subr.mxu0 0.0
        %3595 = vmatpush1.msra.mxu0 %v3577
        %3596 = vmatprep.subr.mxu0 0.0
        %3597 = vmatpush1.msra.mxu0 %v3578
        %3598 = vmatprep.subr.mxu0 0.0
        %3599 = vmatpush1.msra.mxu0 %v3579
        %3600 = vmatprep.subr.mxu0 0.0
        %3601 = vmatpush1.msra.mxu0 %v3580
        %3602 = vmatprep.subr.mxu0 0.0
        %3603 = vmatpush1.msra.mxu0 %v3581
        %3604 = vmatprep.subr.mxu0 0.0
        %3605 = vmatpush1.msra.mxu0 %v3582
        %3606 = vmatprep.subr.mxu0 0.0
        %3607 = vmatpush1.msra.mxu0 %v3583
        %3608 = vmatprep.subr.mxu0 0.0
        %3609 = vmatpush1.msra.mxu0 %v3584
        %3610 = vmatprep.subr.mxu0 0.0
        %3611 = vmatpush1.msra.mxu0 %v3585
        %3612 = vmatprep.subr.mxu0 0.0
        %3613 = vmatpush1.msra.mxu0 %v3586
        %3614 = vmatprep.subr.mxu0 0.0
        %3615 = vmatpush1.msra.mxu0 %v3587
        %3616 = vmatprep.subr.mxu0 0.0
        %3617 = vmatpush1.msra.mxu0 %v3588
        %3618 = vmatprep.subr.mxu0 0.0
        %3619 = vmatpush1.msra.mxu0 %v3589
        %3620 = vmatprep.subr.mxu0 0.0
        %3621 = vmatpush1.msra.mxu0 %v3590
        %3622 = vmatprep.subr.mxu0 0.0
        %3623 = vmatpush1.msra.mxu0 %v3591
        %3624 = vmatprep.subr.mxu0 0.0
        %3625 = vmatpush1.msra.mxu0 0.0
        %3626 = vmatprep.subr.mxu0 0.0
        %3627 = vmatpush1.msra.mxu0 0.0
        %3628 = vmatprep.subr.mxu0 0.0
        %3629 = vmatpush1.msra.mxu0 0.0
        %3630 = vmatprep.subr.mxu0 0.0
        %3631 = vmatpush1.msra.mxu0 0.0
        %3632 = vmatprep.subr.mxu0 0.0
        %3633 = vmatpush1.msra.mxu0 0.0
        %3634 = vmatprep.subr.mxu0 0.0
        %3635 = vmatpush1.msra.mxu0 0.0
        %3636 = vmatprep.subr.mxu0 0.0
        %3637 = vmatpush1.msra.mxu0 0.0
        %3638 = vmatprep.subr.mxu0 0.0
        %3639 = vmatpush1.msra.mxu0 0.0
        %3640 = vmatprep.subr.mxu0 0.0
        %3641 = vmatpush1.msra.mxu0 0.0
        %3642 = vmatprep.subr.mxu0 0.0
        %3643 = vmatpush1.msra.mxu0 0.0
        %3644 = vmatprep.subr.mxu0 0.0
        %3645 = vmatpush1.msra.mxu0 0.0
        %3646 = vmatprep.subr.mxu0 0.0
        %3647 = vmatpush1.msra.mxu0 0.0
        %3648 = vmatprep.subr.mxu0 0.0
        %3649 = vmatpush1.msra.mxu0 0.0
        %3650 = vmatprep.subr.mxu0 0.0
        %3651 = vmatpush1.msra.mxu0 0.0
        %3652 = vmatprep.subr.mxu0 0.0
        %3653 = vmatpush1.msra.mxu0 0.0
        %3654 = vmatprep.subr.mxu0 0.0
        %3655 = vmatpush1.msra.mxu0 0.0
        %3656 = vmatprep.mubr.f32.mxu0 0.0
        %3657 = vmatmul.mubr.f32.gmra.mrb[0].mxu0 %v3567
        %v3658 = vpop.f32.mrb[0].mxu0
        %v3659 = vadd.f32 0.0, %v3658
        %v3660 = vpop.f32.mrb[0].mxu0
        %3661 = vmatprep.mubr.f32.mxu0 0.0
        %3662 = vmatmul.mubr.f32.gmra.mrb[0].mxu0 %v3568
        %v3663 = vpop.f32.mrb[0].mxu0
        %v3664 = vadd.f32 0.0, %v3663
        %v3665 = vpop.f32.mrb[0].mxu0
        %3666 = vmatprep.mubr.f32.mxu0 0.0
        %3667 = vmatmul.mubr.f32.gmra.mrb[0].mxu0 %v3569
        %v3668 = vpop.f32.mrb[0].mxu0
        %v3669 = vadd.f32 0.0, %v3668
        %v3670 = vpop.f32.mrb[0].mxu0
        %3671 = vmatprep.mubr.f32.mxu0 0.0
        %3672 = vmatmul.mubr.f32.gmra.mrb[0].mxu0 %v3570
        %v3673 = vpop.f32.mrb[0].mxu0
        %v3674 = vadd.f32 0.0, %v3673
        %v3675 = vpop.f32.mrb[0].mxu0
        %3676 = vmatprep.mubr.f32.mxu0 0.0
        %3677 = vmatmul.mubr.f32.gmra.mrb[0].mxu0 %v3571
        %v3678 = vpop.f32.mrb[0].mxu0
        %v3679 = vadd.f32 0.0, %v3678
        %v3680 = vpop.f32.mrb[0].mxu0
        %3681 = vmatprep.mubr.f32.mxu0 0.0
        %3682 = vmatmul.mubr.f32.gmra.mrb[0].mxu0 %v3572
        %v3683 = vpop.f32.mrb[0].mxu0
        %v3684 = vadd.f32 0.0, %v3683
        %v3685 = vpop.f32.mrb[0].mxu0
        %3686 = vmatprep.mubr.f32.mxu0 0.0
        %3687 = vmatmul.mubr.f32.gmra.mrb[0].mxu0 %v3573
        %v3688 = vpop.f32.mrb[0].mxu0
        %v3689 = vadd.f32 0.0, %v3688
        %v3690 = vpop.f32.mrb[0].mxu0
        %3691 = vmatprep.mubr.f32.mxu0 0.0
        %3692 = vmatmul.mubr.f32.gmra.mrb[0].mxu0 %v3574
        %v3693 = vpop.f32.mrb[0].mxu0
        %v3694 = vadd.f32 0.0, %v3693
        %v3695 = vpop.f32.mrb[0].mxu0
        %3696 = vdwg.mxu0
        %3697 = vmatprep.subr.mxu0 0.0
        %3698 = vmatpush1.msra.mxu0 %v3551
        %3699 = vmatprep.subr.mxu0 0.0
        %3700 = vmatpush1.msra.mxu0 %v3552
        %3701 = vmatprep.subr.mxu0 0.0
        %3702 = vmatpush1.msra.mxu0 %v3553
        %3703 = vmatprep.subr.mxu0 0.0
        %3704 = vmatpush1.msra.mxu0 %v3554
        %3705 = vmatprep.subr.mxu0 0.0
        %3706 = vmatpush1.msra.mxu0 %v3555
        %3707 = vmatprep.subr.mxu0 0.0
        %3708 = vmatpush1.msra.mxu0 %v3556
        %3709 = vmatprep.subr.mxu0 0.0
        %3710 = vmatpush1.msra.mxu0 %v3557
        %3711 = vmatprep.subr.mxu0 0.0
        %3712 = vmatpush1.msra.mxu0 %v3558
        %3713 = vmatprep.subr.mxu0 0.0
        %3714 = vmatpush1.msra.mxu0 %v3559
        %3715 = vmatprep.subr.mxu0 0.0
        %3716 = vmatpush1.msra.mxu0 %v3560
        %3717 = vmatprep.subr.mxu0 0.0
        %3718 = vmatpush1.msra.mxu0 %v3561
        %3719 = vmatprep.subr.mxu0 0.0
        %3720 = vmatpush1.msra.mxu0 %v3562
        %3721 = vmatprep.subr.mxu0 0.0
        %3722 = vmatpush1.msra.mxu0 %v3563
        %3723 = vmatprep.subr.mxu0 0.0
        %3724 = vmatpush1.msra.mxu0 %v3564
        %3725 = vmatprep.subr.mxu0 0.0
        %3726 = vmatpush1.msra.mxu0 %v3565
        %3727 = vmatprep.subr.mxu0 0.0
        %3728 = vmatpush1.msra.mxu0 %v3566
        %3729 = vmatprep.subr.mxu0 0.0
        %3730 = vmatpush1.msra.mxu0 0.0
        %3731 = vmatprep.subr.mxu0 0.0
        %3732 = vmatpush1.msra.mxu0 0.0
        %3733 = vmatprep.subr.mxu0 0.0
        %3734 = vmatpush1.msra.mxu0 0.0
        %3735 = vmatprep.subr.mxu0 0.0
        %3736 = vmatpush1.msra.mxu0 0.0
        %3737 = vmatprep.subr.mxu0 0.0
        %3738 = vmatpush1.msra.mxu0 0.0
        %3739 = vmatprep.subr.mxu0 0.0
        %3740 = vmatpush1.msra.mxu0 0.0
        %3741 = vmatprep.subr.mxu0 0.0
        %3742 = vmatpush1.msra.mxu0 0.0
        %3743 = vmatprep.subr.mxu0 0.0
        %3744 = vmatpush1.msra.mxu0 0.0
        %3745 = vmatprep.subr.mxu0 0.0
        %3746 = vmatpush1.msra.mxu0 0.0
        %3747 = vmatprep.subr.mxu0 0.0
        %3748 = vmatpush1.msra.mxu0 0.0
        %3749 = vmatprep.subr.mxu0 0.0
        %3750 = vmatpush1.msra.mxu0 0.0
        %3751 = vmatprep.subr.mxu0 0.0
        %3752 = vmatpush1.msra.mxu0 0.0
        %3753 = vmatprep.subr.mxu0 0.0
        %3754 = vmatpush1.msra.mxu0 0.0
        %3755 = vmatprep.subr.mxu0 0.0
        %3756 = vmatpush1.msra.mxu0 0.0
        %3757 = vmatprep.subr.mxu0 0.0
        %3758 = vmatpush1.msra.mxu0 0.0
        %3759 = vmatprep.subr.mxu0 0.0
        %3760 = vmatpush1.msra.mxu0 0.0
        %3761 = vmatprep.mubr.f32.mxu0 0.0
        %3762 = vmatmul.mubr.f32.gmra.mrb[0].mxu0 %v3543
        %v3763 = vpop.f32.mrb[0].mxu0
        %v3764 = vadd.f32 %v3659, %v3763
        %v3765 = vpop.f32.mrb[0].mxu0
        %3766 = vmatprep.mubr.f32.mxu0 0.0
        %3767 = vmatmul.mubr.f32.gmra.mrb[0].mxu0 %v3544
        %v3768 = vpop.f32.mrb[0].mxu0
        %v3769 = vadd.f32 %v3664, %v3768
        %v3770 = vpop.f32.mrb[0].mxu0
        %3771 = vmatprep.mubr.f32.mxu0 0.0
        %3772 = vmatmul.mubr.f32.gmra.mrb[0].mxu0 %v3545
        %v3773 = vpop.f32.mrb[0].mxu0
        %v3774 = vadd.f32 %v3669, %v3773
        %v3775 = vpop.f32.mrb[0].mxu0
        %3776 = vmatprep.mubr.f32.mxu0 0.0
        %3777 = vmatmul.mubr.f32.gmra.mrb[0].mxu0 %v3546
        %v3778 = vpop.f32.mrb[0].mxu0
        %v3779 = vadd.f32 %v3674, %v3778
        %v3780 = vpop.f32.mrb[0].mxu0
        %3781 = vmatprep.mubr.f32.mxu0 0.0
        %3782 = vmatmul.mubr.f32.gmra.mrb[0].mxu0 %v3547
        %v3783 = vpop.f32.mrb[0].mxu0
        %v3784 = vadd.f32 %v3679, %v3783
        %v3785 = vpop.f32.mrb[0].mxu0
        %3786 = vmatprep.mubr.f32.mxu0 0.0
        %3787 = vmatmul.mubr.f32.gmra.mrb[0].mxu0 %v3548
        %v3788 = vpop.f32.mrb[0].mxu0
        %v3789 = vadd.f32 %v3684, %v3788
        %v3790 = vpop.f32.mrb[0].mxu0
        %3791 = vmatprep.mubr.f32.mxu0 0.0
        %3792 = vmatmul.mubr.f32.gmra.mrb[0].mxu0 %v3549
        %v3793 = vpop.f32.mrb[0].mxu0
        %v3794 = vadd.f32 %v3689, %v3793
        %v3795 = vpop.f32.mrb[0].mxu0
        %3796 = vmatprep.mubr.f32.mxu0 0.0
        %3797 = vmatmul.mubr.f32.gmra.mrb[0].mxu0 %v3550
        %v3798 = vpop.f32.mrb[0].mxu0
        %v3799 = vadd.f32 %v3694, %v3798
        %v3800 = vpop.f32.mrb[0].mxu0
        %3801 = vdwg.mxu0
        %v3802 = vld [vmem:[%s418 + $0x6] sm:$0xff]
        %v3803 = vld [vmem:[%s418 + $0xe] sm:$0xff]
        %v3804 = vld [vmem:[%s418 + $0x1e] sm:$0xff]
        %v3805 = vld [vmem:[%s418 + $0x26] sm:$0xff]
        %v3806 = vld [vmem:[%s418 + $0x36] sm:$0xff]
        %v3807 = vld [vmem:[%s418 + $0x3e] sm:$0xff]
        %v3808 = vld [vmem:[%s418 + $0x4e] sm:$0xff]
        %v3809 = vld [vmem:[%s418 + $0x56] sm:$0xff]
        %s3810 = scalar_lea.vmem [#allocation7], 256
        %v3811 = vld [vmem:[%s3810] sm:$0xff]
        %v3812 = vld [vmem:[%s3810 + $0x8] sm:$0xff]
        %v3813 = vld [vmem:[%s3810 + $0x10] sm:$0xff]
        %v3814 = vld [vmem:[%s3810 + $0x18] sm:$0xff]
        %v3815 = vld [vmem:[%s3810 + $0x20] sm:$0xff]
        %v3816 = vld [vmem:[%s3810 + $0x28] sm:$0xff]
        %v3817 = vld [vmem:[%s3810 + $0x30] sm:$0xff]
        %v3818 = vld [vmem:[%s3810 + $0x38] sm:$0xff]
        %v3819 = vld [vmem:[%s3810 + $0x40] sm:$0xff]
        %v3820 = vld [vmem:[%s3810 + $0x48] sm:$0xff]
        %v3821 = vld [vmem:[%s3810 + $0x50] sm:$0xff]
        %v3822 = vld [vmem:[%s3810 + $0x58] sm:$0xff]
        %v3823 = vld [vmem:[%s3810 + $0x60] sm:$0xff]
        %v3824 = vld [vmem:[%s3810 + $0x68] sm:$0xff]
        %v3825 = vld [vmem:[%s3810 + $0x70] sm:$0xff]
        %v3826 = vld [vmem:[%s3810 + $0x78] sm:$0xff]
        %3827 = vmatprep.subr.mxu0 0.0
        %3828 = vmatpush1.msra.mxu0 %v3811
        %3829 = vmatprep.subr.mxu0 0.0
        %3830 = vmatpush1.msra.mxu0 %v3812
        %3831 = vmatprep.subr.mxu0 0.0
        %3832 = vmatpush1.msra.mxu0 %v3813
        %3833 = vmatprep.subr.mxu0 0.0
        %3834 = vmatpush1.msra.mxu0 %v3814
        %3835 = vmatprep.subr.mxu0 0.0
        %3836 = vmatpush1.msra.mxu0 %v3815
        %3837 = vmatprep.subr.mxu0 0.0
        %3838 = vmatpush1.msra.mxu0 %v3816
        %3839 = vmatprep.subr.mxu0 0.0
        %3840 = vmatpush1.msra.mxu0 %v3817
        %3841 = vmatprep.subr.mxu0 0.0
        %3842 = vmatpush1.msra.mxu0 %v3818
        %3843 = vmatprep.subr.mxu0 0.0
        %3844 = vmatpush1.msra.mxu0 %v3819
        %3845 = vmatprep.subr.mxu0 0.0
        %3846 = vmatpush1.msra.mxu0 %v3820
        %3847 = vmatprep.subr.mxu0 0.0
        %3848 = vmatpush1.msra.mxu0 %v3821
        %3849 = vmatprep.subr.mxu0 0.0
        %3850 = vmatpush1.msra.mxu0 %v3822
        %3851 = vmatprep.subr.mxu0 0.0
        %3852 = vmatpush1.msra.mxu0 %v3823
        %3853 = vmatprep.subr.mxu0 0.0
        %3854 = vmatpush1.msra.mxu0 %v3824
        %3855 = vmatprep.subr.mxu0 0.0
        %3856 = vmatpush1.msra.mxu0 %v3825
        %3857 = vmatprep.subr.mxu0 0.0
        %3858 = vmatpush1.msra.mxu0 %v3826
        %3859 = vmatprep.subr.mxu0 0.0
        %3860 = vmatpush1.msra.mxu0 0.0
        %3861 = vmatprep.subr.mxu0 0.0
        %3862 = vmatpush1.msra.mxu0 0.0
        %3863 = vmatprep.subr.mxu0 0.0
        %3864 = vmatpush1.msra.mxu0 0.0
        %3865 = vmatprep.subr.mxu0 0.0
        %3866 = vmatpush1.msra.mxu0 0.0
        %3867 = vmatprep.subr.mxu0 0.0
        %3868 = vmatpush1.msra.mxu0 0.0
        %3869 = vmatprep.subr.mxu0 0.0
        %3870 = vmatpush1.msra.mxu0 0.0
        %3871 = vmatprep.subr.mxu0 0.0
        %3872 = vmatpush1.msra.mxu0 0.0
        %3873 = vmatprep.subr.mxu0 0.0
        %3874 = vmatpush1.msra.mxu0 0.0
        %3875 = vmatprep.subr.mxu0 0.0
        %3876 = vmatpush1.msra.mxu0 0.0
        %3877 = vmatprep.subr.mxu0 0.0
        %3878 = vmatpush1.msra.mxu0 0.0
        %3879 = vmatprep.subr.mxu0 0.0
        %3880 = vmatpush1.msra.mxu0 0.0
        %3881 = vmatprep.subr.mxu0 0.0
        %3882 = vmatpush1.msra.mxu0 0.0
        %3883 = vmatprep.subr.mxu0 0.0
        %3884 = vmatpush1.msra.mxu0 0.0
        %3885 = vmatprep.subr.mxu0 0.0
        %3886 = vmatpush1.msra.mxu0 0.0
        %3887 = vmatprep.subr.mxu0 0.0
        %3888 = vmatpush1.msra.mxu0 0.0
        %3889 = vmatprep.subr.mxu0 0.0
        %3890 = vmatpush1.msra.mxu0 0.0
        %3891 = vmatprep.mubr.f32.mxu0 0.0
        %3892 = vmatmul.mubr.f32.gmra.mrb[0].mxu0 %v3802
        %v3893 = vpop.f32.mrb[0].mxu0
        %v3894 = vadd.f32 0.0, %v3893
        %v3895 = vpop.f32.mrb[0].mxu0
        %3896 = vmatprep.mubr.f32.mxu0 0.0
        %3897 = vmatmul.mubr.f32.gmra.mrb[0].mxu0 %v3803
        %v3898 = vpop.f32.mrb[0].mxu0
        %v3899 = vadd.f32 0.0, %v3898
        %v3900 = vpop.f32.mrb[0].mxu0
        %3901 = vmatprep.mubr.f32.mxu0 0.0
        %3902 = vmatmul.mubr.f32.gmra.mrb[0].mxu0 %v3804
        %v3903 = vpop.f32.mrb[0].mxu0
        %v3904 = vadd.f32 0.0, %v3903
        %v3905 = vpop.f32.mrb[0].mxu0
        %3906 = vmatprep.mubr.f32.mxu0 0.0
        %3907 = vmatmul.mubr.f32.gmra.mrb[0].mxu0 %v3805
        %v3908 = vpop.f32.mrb[0].mxu0
        %v3909 = vadd.f32 0.0, %v3908
        %v3910 = vpop.f32.mrb[0].mxu0
        %3911 = vmatprep.mubr.f32.mxu0 0.0
        %3912 = vmatmul.mubr.f32.gmra.mrb[0].mxu0 %v3806
        %v3913 = vpop.f32.mrb[0].mxu0
        %v3914 = vadd.f32 0.0, %v3913
        %v3915 = vpop.f32.mrb[0].mxu0
        %3916 = vmatprep.mubr.f32.mxu0 0.0
        %3917 = vmatmul.mubr.f32.gmra.mrb[0].mxu0 %v3807
        %v3918 = vpop.f32.mrb[0].mxu0
        %v3919 = vadd.f32 0.0, %v3918
        %v3920 = vpop.f32.mrb[0].mxu0
        %3921 = vmatprep.mubr.f32.mxu0 0.0
        %3922 = vmatmul.mubr.f32.gmra.mrb[0].mxu0 %v3808
        %v3923 = vpop.f32.mrb[0].mxu0
        %v3924 = vadd.f32 0.0, %v3923
        %v3925 = vpop.f32.mrb[0].mxu0
        %3926 = vmatprep.mubr.f32.mxu0 0.0
        %3927 = vmatmul.mubr.f32.gmra.mrb[0].mxu0 %v3809
        %v3928 = vpop.f32.mrb[0].mxu0
        %v3929 = vadd.f32 0.0, %v3928
        %v3930 = vpop.f32.mrb[0].mxu0
        %3931 = vdwg.mxu0
        %v3932 = vadd.f32 %v3764, %v3894
        %v3933 = vadd.f32 %v3769, %v3899
        %v3934 = vadd.f32 %v3774, %v3904
        %v3935 = vadd.f32 %v3779, %v3909
        %v3936 = vadd.f32 %v3784, %v3914
        %v3937 = vadd.f32 %v3789, %v3919
        %v3938 = vadd.f32 %v3794, %v3924
        %v3939 = vadd.f32 %v3799, %v3929
        %v3940 = vld [vmem:[%s578] sm:$0xff]
        %v3941 = vld [vmem:[%s578 + $0x8] sm:$0xff]
        %v3942 = vld [vmem:[%s578 + $0x18] sm:$0xff]
        %v3943 = vld [vmem:[%s578 + $0x20] sm:$0xff]
        %v3944 = vld [vmem:[%s578 + $0x30] sm:$0xff]
        %v3945 = vld [vmem:[%s578 + $0x38] sm:$0xff]
        %v3946 = vld [vmem:[%s578 + $0x48] sm:$0xff]
        %v3947 = vld [vmem:[%s578 + $0x50] sm:$0xff]
        %s3948 = scalar_lea.vmem [#allocation7], 384
        %v3949 = vld [vmem:[%s3948] sm:$0xff]
        %v3950 = vld [vmem:[%s3948 + $0x8] sm:$0xff]
        %v3951 = vld [vmem:[%s3948 + $0x10] sm:$0xff]
        %v3952 = vld [vmem:[%s3948 + $0x18] sm:$0xff]
        %v3953 = vld [vmem:[%s3948 + $0x20] sm:$0xff]
        %v3954 = vld [vmem:[%s3948 + $0x28] sm:$0xff]
        %v3955 = vld [vmem:[%s3948 + $0x30] sm:$0xff]
        %v3956 = vld [vmem:[%s3948 + $0x38] sm:$0xff]
        %v3957 = vld [vmem:[%s3948 + $0x40] sm:$0xff]
        %v3958 = vld [vmem:[%s3948 + $0x48] sm:$0xff]
        %v3959 = vld [vmem:[%s3948 + $0x50] sm:$0xff]
        %v3960 = vld [vmem:[%s3948 + $0x58] sm:$0xff]
        %v3961 = vld [vmem:[%s3948 + $0x60] sm:$0xff]
        %v3962 = vld [vmem:[%s3948 + $0x68] sm:$0xff]
        %v3963 = vld [vmem:[%s3948 + $0x70] sm:$0xff]
        %v3964 = vld [vmem:[%s3948 + $0x78] sm:$0xff]
        %3965 = vmatprep.subr.mxu0 0.0
        %3966 = vmatpush1.msra.mxu0 %v3949
        %3967 = vmatprep.subr.mxu0 0.0
        %3968 = vmatpush1.msra.mxu0 %v3950
        %3969 = vmatprep.subr.mxu0 0.0
        %3970 = vmatpush1.msra.mxu0 %v3951
        %3971 = vmatprep.subr.mxu0 0.0
        %3972 = vmatpush1.msra.mxu0 %v3952
        %3973 = vmatprep.subr.mxu0 0.0
        %3974 = vmatpush1.msra.mxu0 %v3953
        %3975 = vmatprep.subr.mxu0 0.0
        %3976 = vmatpush1.msra.mxu0 %v3954
        %3977 = vmatprep.subr.mxu0 0.0
        %3978 = vmatpush1.msra.mxu0 %v3955
        %3979 = vmatprep.subr.mxu0 0.0
        %3980 = vmatpush1.msra.mxu0 %v3956
        %3981 = vmatprep.subr.mxu0 0.0
        %3982 = vmatpush1.msra.mxu0 %v3957
        %3983 = vmatprep.subr.mxu0 0.0
        %3984 = vmatpush1.msra.mxu0 %v3958
        %3985 = vmatprep.subr.mxu0 0.0
        %3986 = vmatpush1.msra.mxu0 %v3959
        %3987 = vmatprep.subr.mxu0 0.0
        %3988 = vmatpush1.msra.mxu0 %v3960
        %3989 = vmatprep.subr.mxu0 0.0
        %3990 = vmatpush1.msra.mxu0 %v3961
        %3991 = vmatprep.subr.mxu0 0.0
        %3992 = vmatpush1.msra.mxu0 %v3962
        %3993 = vmatprep.subr.mxu0 0.0
        %3994 = vmatpush1.msra.mxu0 %v3963
        %3995 = vmatprep.subr.mxu0 0.0
        %3996 = vmatpush1.msra.mxu0 %v3964
        %3997 = vmatprep.subr.mxu0 0.0
        %3998 = vmatpush1.msra.mxu0 0.0
        %3999 = vmatprep.subr.mxu0 0.0
        %4000 = vmatpush1.msra.mxu0 0.0
        %4001 = vmatprep.subr.mxu0 0.0
        %4002 = vmatpush1.msra.mxu0 0.0
        %4003 = vmatprep.subr.mxu0 0.0
        %4004 = vmatpush1.msra.mxu0 0.0
        %4005 = vmatprep.subr.mxu0 0.0
        %4006 = vmatpush1.msra.mxu0 0.0
        %4007 = vmatprep.subr.mxu0 0.0
        %4008 = vmatpush1.msra.mxu0 0.0
        %4009 = vmatprep.subr.mxu0 0.0
        %4010 = vmatpush1.msra.mxu0 0.0
        %4011 = vmatprep.subr.mxu0 0.0
        %4012 = vmatpush1.msra.mxu0 0.0
        %4013 = vmatprep.subr.mxu0 0.0
        %4014 = vmatpush1.msra.mxu0 0.0
        %4015 = vmatprep.subr.mxu0 0.0
        %4016 = vmatpush1.msra.mxu0 0.0
        %4017 = vmatprep.subr.mxu0 0.0
        %4018 = vmatpush1.msra.mxu0 0.0
        %4019 = vmatprep.subr.mxu0 0.0
        %4020 = vmatpush1.msra.mxu0 0.0
        %4021 = vmatprep.subr.mxu0 0.0
        %4022 = vmatpush1.msra.mxu0 0.0
        %4023 = vmatprep.subr.mxu0 0.0
        %4024 = vmatpush1.msra.mxu0 0.0
        %4025 = vmatprep.subr.mxu0 0.0
        %4026 = vmatpush1.msra.mxu0 0.0
        %4027 = vmatprep.subr.mxu0 0.0
        %4028 = vmatpush1.msra.mxu0 0.0
        %4029 = vmatprep.mubr.f32.mxu0 0.0
        %4030 = vmatmul.mubr.f32.gmra.mrb[0].mxu0 %v3940
        %v4031 = vpop.f32.mrb[0].mxu0
        %v4032 = vadd.f32 0.0, %v4031
        %v4033 = vpop.f32.mrb[0].mxu0
        %4034 = vmatprep.mubr.f32.mxu0 0.0
        %4035 = vmatmul.mubr.f32.gmra.mrb[0].mxu0 %v3941
        %v4036 = vpop.f32.mrb[0].mxu0
        %v4037 = vadd.f32 0.0, %v4036
        %v4038 = vpop.f32.mrb[0].mxu0
        %4039 = vmatprep.mubr.f32.mxu0 0.0
        %4040 = vmatmul.mubr.f32.gmra.mrb[0].mxu0 %v3942
        %v4041 = vpop.f32.mrb[0].mxu0
        %v4042 = vadd.f32 0.0, %v4041
        %v4043 = vpop.f32.mrb[0].mxu0
        %4044 = vmatprep.mubr.f32.mxu0 0.0
        %4045 = vmatmul.mubr.f32.gmra.mrb[0].mxu0 %v3943
        %v4046 = vpop.f32.mrb[0].mxu0
        %v4047 = vadd.f32 0.0, %v4046
        %v4048 = vpop.f32.mrb[0].mxu0
        %4049 = vmatprep.mubr.f32.mxu0 0.0
        %4050 = vmatmul.mubr.f32.gmra.mrb[0].mxu0 %v3944
        %v4051 = vpop.f32.mrb[0].mxu0
        %v4052 = vadd.f32 0.0, %v4051
        %v4053 = vpop.f32.mrb[0].mxu0
        %4054 = vmatprep.mubr.f32.mxu0 0.0
        %4055 = vmatmul.mubr.f32.gmra.mrb[0].mxu0 %v3945
        %v4056 = vpop.f32.mrb[0].mxu0
        %v4057 = vadd.f32 0.0, %v4056
        %v4058 = vpop.f32.mrb[0].mxu0
        %4059 = vmatprep.mubr.f32.mxu0 0.0
        %4060 = vmatmul.mubr.f32.gmra.mrb[0].mxu0 %v3946
        %v4061 = vpop.f32.mrb[0].mxu0
        %v4062 = vadd.f32 0.0, %v4061
        %v4063 = vpop.f32.mrb[0].mxu0
        %4064 = vmatprep.mubr.f32.mxu0 0.0
        %4065 = vmatmul.mubr.f32.gmra.mrb[0].mxu0 %v3947
        %v4066 = vpop.f32.mrb[0].mxu0
        %v4067 = vadd.f32 0.0, %v4066
        %v4068 = vpop.f32.mrb[0].mxu0
        %4069 = vdwg.mxu0
        %v4070 = vadd.f32 %v3932, %v4032
        %v4071 = vadd.f32 %v3933, %v4037
        %v4072 = vadd.f32 %v3934, %v4042
        %v4073 = vadd.f32 %v3935, %v4047
        %v4074 = vadd.f32 %v3936, %v4052
        %v4075 = vadd.f32 %v3937, %v4057
        %v4076 = vadd.f32 %v3938, %v4062
        %v4077 = vadd.f32 %v3939, %v4067
        %s4078 = scalar_lea.vmem [#allocation7], 512
        %v4079 = vld [vmem:[%s4078] sm:$0xff]
        %v4080 = vld [vmem:[%s4078 + $0x8] sm:$0xff]
        %v4081 = vld [vmem:[%s4078 + $0x10] sm:$0xff]
        %v4082 = vld [vmem:[%s4078 + $0x18] sm:$0xff]
        %v4083 = vld [vmem:[%s4078 + $0x20] sm:$0xff]
        %v4084 = vld [vmem:[%s4078 + $0x28] sm:$0xff]
        %v4085 = vld [vmem:[%s4078 + $0x30] sm:$0xff]
        %v4086 = vld [vmem:[%s4078 + $0x38] sm:$0xff]
        %v4087 = vld [vmem:[%s4078 + $0x40] sm:$0xff]
        %v4088 = vld [vmem:[%s4078 + $0x48] sm:$0xff]
        %v4089 = vld [vmem:[%s4078 + $0x50] sm:$0xff]
        %v4090 = vld [vmem:[%s4078 + $0x58] sm:$0xff]
        %v4091 = vld [vmem:[%s4078 + $0x60] sm:$0xff]
        %v4092 = vld [vmem:[%s4078 + $0x68] sm:$0xff]
        %v4093 = vld [vmem:[%s4078 + $0x70] sm:$0xff]
        %v4094 = vld [vmem:[%s4078 + $0x78] sm:$0xff]
        %4095 = vmatprep.subr.mxu0 0.0
        %4096 = vmatpush1.msra.mxu0 %v4079
        %4097 = vmatprep.subr.mxu0 0.0
        %4098 = vmatpush1.msra.mxu0 %v4080
        %4099 = vmatprep.subr.mxu0 0.0
        %4100 = vmatpush1.msra.mxu0 %v4081
        %4101 = vmatprep.subr.mxu0 0.0
        %4102 = vmatpush1.msra.mxu0 %v4082
        %4103 = vmatprep.subr.mxu0 0.0
        %4104 = vmatpush1.msra.mxu0 %v4083
        %4105 = vmatprep.subr.mxu0 0.0
        %4106 = vmatpush1.msra.mxu0 %v4084
        %4107 = vmatprep.subr.mxu0 0.0
        %4108 = vmatpush1.msra.mxu0 %v4085
        %4109 = vmatprep.subr.mxu0 0.0
        %4110 = vmatpush1.msra.mxu0 %v4086
        %4111 = vmatprep.subr.mxu0 0.0
        %4112 = vmatpush1.msra.mxu0 %v4087
        %4113 = vmatprep.subr.mxu0 0.0
        %4114 = vmatpush1.msra.mxu0 %v4088
        %4115 = vmatprep.subr.mxu0 0.0
        %4116 = vmatpush1.msra.mxu0 %v4089
        %4117 = vmatprep.subr.mxu0 0.0
        %4118 = vmatpush1.msra.mxu0 %v4090
        %4119 = vmatprep.subr.mxu0 0.0
        %4120 = vmatpush1.msra.mxu0 %v4091
        %4121 = vmatprep.subr.mxu0 0.0
        %4122 = vmatpush1.msra.mxu0 %v4092
        %4123 = vmatprep.subr.mxu0 0.0
        %4124 = vmatpush1.msra.mxu0 %v4093
        %4125 = vmatprep.subr.mxu0 0.0
        %4126 = vmatpush1.msra.mxu0 %v4094
        %4127 = vmatprep.subr.mxu0 0.0
        %4128 = vmatpush1.msra.mxu0 0.0
        %4129 = vmatprep.subr.mxu0 0.0
        %4130 = vmatpush1.msra.mxu0 0.0
        %4131 = vmatprep.subr.mxu0 0.0
        %4132 = vmatpush1.msra.mxu0 0.0
        %4133 = vmatprep.subr.mxu0 0.0
        %4134 = vmatpush1.msra.mxu0 0.0
        %4135 = vmatprep.subr.mxu0 0.0
        %4136 = vmatpush1.msra.mxu0 0.0
        %4137 = vmatprep.subr.mxu0 0.0
        %4138 = vmatpush1.msra.mxu0 0.0
        %4139 = vmatprep.subr.mxu0 0.0
        %4140 = vmatpush1.msra.mxu0 0.0
        %4141 = vmatprep.subr.mxu0 0.0
        %4142 = vmatpush1.msra.mxu0 0.0
        %4143 = vmatprep.subr.mxu0 0.0
        %4144 = vmatpush1.msra.mxu0 0.0
        %4145 = vmatprep.subr.mxu0 0.0
        %4146 = vmatpush1.msra.mxu0 0.0
        %4147 = vmatprep.subr.mxu0 0.0
        %4148 = vmatpush1.msra.mxu0 0.0
        %4149 = vmatprep.subr.mxu0 0.0
        %4150 = vmatpush1.msra.mxu0 0.0
        %4151 = vmatprep.subr.mxu0 0.0
        %4152 = vmatpush1.msra.mxu0 0.0
        %4153 = vmatprep.subr.mxu0 0.0
        %4154 = vmatpush1.msra.mxu0 0.0
        %4155 = vmatprep.subr.mxu0 0.0
        %4156 = vmatpush1.msra.mxu0 0.0
        %4157 = vmatprep.subr.mxu0 0.0
        %4158 = vmatpush1.msra.mxu0 0.0
        %4159 = vmatprep.mubr.f32.mxu0 0.0
        %4160 = vmatmul.mubr.f32.gmra.mrb[0].mxu0 %v579
        %v4161 = vpop.f32.mrb[0].mxu0
        %v4162 = vadd.f32 0.0, %v4161
        %v4163 = vpop.f32.mrb[0].mxu0
        %4164 = vmatprep.mubr.f32.mxu0 0.0
        %4165 = vmatmul.mubr.f32.gmra.mrb[0].mxu0 %v580
        %v4166 = vpop.f32.mrb[0].mxu0
        %v4167 = vadd.f32 0.0, %v4166
        %v4168 = vpop.f32.mrb[0].mxu0
        %4169 = vmatprep.mubr.f32.mxu0 0.0
        %4170 = vmatmul.mubr.f32.gmra.mrb[0].mxu0 %v581
        %v4171 = vpop.f32.mrb[0].mxu0
        %v4172 = vadd.f32 0.0, %v4171
        %v4173 = vpop.f32.mrb[0].mxu0
        %4174 = vmatprep.mubr.f32.mxu0 0.0
        %4175 = vmatmul.mubr.f32.gmra.mrb[0].mxu0 %v582
        %v4176 = vpop.f32.mrb[0].mxu0
        %v4177 = vadd.f32 0.0, %v4176
        %v4178 = vpop.f32.mrb[0].mxu0
        %4179 = vmatprep.mubr.f32.mxu0 0.0
        %4180 = vmatmul.mubr.f32.gmra.mrb[0].mxu0 %v583
        %v4181 = vpop.f32.mrb[0].mxu0
        %v4182 = vadd.f32 0.0, %v4181
        %v4183 = vpop.f32.mrb[0].mxu0
        %4184 = vmatprep.mubr.f32.mxu0 0.0
        %4185 = vmatmul.mubr.f32.gmra.mrb[0].mxu0 %v584
        %v4186 = vpop.f32.mrb[0].mxu0
        %v4187 = vadd.f32 0.0, %v4186
        %v4188 = vpop.f32.mrb[0].mxu0
        %4189 = vmatprep.mubr.f32.mxu0 0.0
        %4190 = vmatmul.mubr.f32.gmra.mrb[0].mxu0 %v585
        %v4191 = vpop.f32.mrb[0].mxu0
        %v4192 = vadd.f32 0.0, %v4191
        %v4193 = vpop.f32.mrb[0].mxu0
        %4194 = vmatprep.mubr.f32.mxu0 0.0
        %4195 = vmatmul.mubr.f32.gmra.mrb[0].mxu0 %v586
        %v4196 = vpop.f32.mrb[0].mxu0
        %v4197 = vadd.f32 0.0, %v4196
        %v4198 = vpop.f32.mrb[0].mxu0
        %4199 = vdwg.mxu0
        %v4200 = vadd.f32 %v4070, %v4162
        %v4201 = vadd.f32 %v4071, %v4167
        %v4202 = vadd.f32 %v4072, %v4172
        %v4203 = vadd.f32 %v4073, %v4177
        %v4204 = vadd.f32 %v4074, %v4182
        %v4205 = vadd.f32 %v4075, %v4187
        %v4206 = vadd.f32 %v4076, %v4192
        %v4207 = vadd.f32 %v4077, %v4197
        %v4208 = vld [vmem:[%s578 + $0x6] sm:$0xff]
        %v4209 = vld [vmem:[%s578 + $0xe] sm:$0xff]
        %v4210 = vld [vmem:[%s578 + $0x1e] sm:$0xff]
        %v4211 = vld [vmem:[%s578 + $0x26] sm:$0xff]
        %v4212 = vld [vmem:[%s578 + $0x36] sm:$0xff]
        %v4213 = vld [vmem:[%s578 + $0x3e] sm:$0xff]
        %v4214 = vld [vmem:[%s578 + $0x4e] sm:$0xff]
        %v4215 = vld [vmem:[%s578 + $0x56] sm:$0xff]
        %s4216 = scalar_lea.vmem [#allocation7], 640
        %v4217 = vld [vmem:[%s4216] sm:$0xff]
        %v4218 = vld [vmem:[%s4216 + $0x8] sm:$0xff]
        %v4219 = vld [vmem:[%s4216 + $0x10] sm:$0xff]
        %v4220 = vld [vmem:[%s4216 + $0x18] sm:$0xff]
        %v4221 = vld [vmem:[%s4216 + $0x20] sm:$0xff]
        %v4222 = vld [vmem:[%s4216 + $0x28] sm:$0xff]
        %v4223 = vld [vmem:[%s4216 + $0x30] sm:$0xff]
        %v4224 = vld [vmem:[%s4216 + $0x38] sm:$0xff]
        %v4225 = vld [vmem:[%s4216 + $0x40] sm:$0xff]
        %v4226 = vld [vmem:[%s4216 + $0x48] sm:$0xff]
        %v4227 = vld [vmem:[%s4216 + $0x50] sm:$0xff]
        %v4228 = vld [vmem:[%s4216 + $0x58] sm:$0xff]
        %v4229 = vld [vmem:[%s4216 + $0x60] sm:$0xff]
        %v4230 = vld [vmem:[%s4216 + $0x68] sm:$0xff]
        %v4231 = vld [vmem:[%s4216 + $0x70] sm:$0xff]
        %v4232 = vld [vmem:[%s4216 + $0x78] sm:$0xff]
        %4233 = vmatprep.subr.mxu0 0.0
        %4234 = vmatpush1.msra.mxu0 %v4217
        %4235 = vmatprep.subr.mxu0 0.0
        %4236 = vmatpush1.msra.mxu0 %v4218
        %4237 = vmatprep.subr.mxu0 0.0
        %4238 = vmatpush1.msra.mxu0 %v4219
        %4239 = vmatprep.subr.mxu0 0.0
        %4240 = vmatpush1.msra.mxu0 %v4220
        %4241 = vmatprep.subr.mxu0 0.0
        %4242 = vmatpush1.msra.mxu0 %v4221
        %4243 = vmatprep.subr.mxu0 0.0
        %4244 = vmatpush1.msra.mxu0 %v4222
        %4245 = vmatprep.subr.mxu0 0.0
        %4246 = vmatpush1.msra.mxu0 %v4223
        %4247 = vmatprep.subr.mxu0 0.0
        %4248 = vmatpush1.msra.mxu0 %v4224
        %4249 = vmatprep.subr.mxu0 0.0
        %4250 = vmatpush1.msra.mxu0 %v4225
        %4251 = vmatprep.subr.mxu0 0.0
        %4252 = vmatpush1.msra.mxu0 %v4226
        %4253 = vmatprep.subr.mxu0 0.0
        %4254 = vmatpush1.msra.mxu0 %v4227
        %4255 = vmatprep.subr.mxu0 0.0
        %4256 = vmatpush1.msra.mxu0 %v4228
        %4257 = vmatprep.subr.mxu0 0.0
        %4258 = vmatpush1.msra.mxu0 %v4229
        %4259 = vmatprep.subr.mxu0 0.0
        %4260 = vmatpush1.msra.mxu0 %v4230
        %4261 = vmatprep.subr.mxu0 0.0
        %4262 = vmatpush1.msra.mxu0 %v4231
        %4263 = vmatprep.subr.mxu0 0.0
        %4264 = vmatpush1.msra.mxu0 %v4232
        %4265 = vmatprep.subr.mxu0 0.0
        %4266 = vmatpush1.msra.mxu0 0.0
        %4267 = vmatprep.subr.mxu0 0.0
        %4268 = vmatpush1.msra.mxu0 0.0
        %4269 = vmatprep.subr.mxu0 0.0
        %4270 = vmatpush1.msra.mxu0 0.0
        %4271 = vmatprep.subr.mxu0 0.0
        %4272 = vmatpush1.msra.mxu0 0.0
        %4273 = vmatprep.subr.mxu0 0.0
        %4274 = vmatpush1.msra.mxu0 0.0
        %4275 = vmatprep.subr.mxu0 0.0
        %4276 = vmatpush1.msra.mxu0 0.0
        %4277 = vmatprep.subr.mxu0 0.0
        %4278 = vmatpush1.msra.mxu0 0.0
        %4279 = vmatprep.subr.mxu0 0.0
        %4280 = vmatpush1.msra.mxu0 0.0
        %4281 = vmatprep.subr.mxu0 0.0
        %4282 = vmatpush1.msra.mxu0 0.0
        %4283 = vmatprep.subr.mxu0 0.0
        %4284 = vmatpush1.msra.mxu0 0.0
        %4285 = vmatprep.subr.mxu0 0.0
        %4286 = vmatpush1.msra.mxu0 0.0
        %4287 = vmatprep.subr.mxu0 0.0
        %4288 = vmatpush1.msra.mxu0 0.0
        %4289 = vmatprep.subr.mxu0 0.0
        %4290 = vmatpush1.msra.mxu0 0.0
        %4291 = vmatprep.subr.mxu0 0.0
        %4292 = vmatpush1.msra.mxu0 0.0
        %4293 = vmatprep.subr.mxu0 0.0
        %4294 = vmatpush1.msra.mxu0 0.0
        %4295 = vmatprep.subr.mxu0 0.0
        %4296 = vmatpush1.msra.mxu0 0.0
        %4297 = vmatprep.mubr.f32.mxu0 0.0
        %4298 = vmatmul.mubr.f32.gmra.mrb[0].mxu0 %v4208
        %v4299 = vpop.f32.mrb[0].mxu0
        %v4300 = vadd.f32 0.0, %v4299
        %v4301 = vpop.f32.mrb[0].mxu0
        %4302 = vmatprep.mubr.f32.mxu0 0.0
        %4303 = vmatmul.mubr.f32.gmra.mrb[0].mxu0 %v4209
        %v4304 = vpop.f32.mrb[0].mxu0
        %v4305 = vadd.f32 0.0, %v4304
        %v4306 = vpop.f32.mrb[0].mxu0
        %4307 = vmatprep.mubr.f32.mxu0 0.0
        %4308 = vmatmul.mubr.f32.gmra.mrb[0].mxu0 %v4210
        %v4309 = vpop.f32.mrb[0].mxu0
        %v4310 = vadd.f32 0.0, %v4309
        %v4311 = vpop.f32.mrb[0].mxu0
        %4312 = vmatprep.mubr.f32.mxu0 0.0
        %4313 = vmatmul.mubr.f32.gmra.mrb[0].mxu0 %v4211
        %v4314 = vpop.f32.mrb[0].mxu0
        %v4315 = vadd.f32 0.0, %v4314
        %v4316 = vpop.f32.mrb[0].mxu0
        %4317 = vmatprep.mubr.f32.mxu0 0.0
        %4318 = vmatmul.mubr.f32.gmra.mrb[0].mxu0 %v4212
        %v4319 = vpop.f32.mrb[0].mxu0
        %v4320 = vadd.f32 0.0, %v4319
        %v4321 = vpop.f32.mrb[0].mxu0
        %4322 = vmatprep.mubr.f32.mxu0 0.0
        %4323 = vmatmul.mubr.f32.gmra.mrb[0].mxu0 %v4213
        %v4324 = vpop.f32.mrb[0].mxu0
        %v4325 = vadd.f32 0.0, %v4324
        %v4326 = vpop.f32.mrb[0].mxu0
        %4327 = vmatprep.mubr.f32.mxu0 0.0
        %4328 = vmatmul.mubr.f32.gmra.mrb[0].mxu0 %v4214
        %v4329 = vpop.f32.mrb[0].mxu0
        %v4330 = vadd.f32 0.0, %v4329
        %v4331 = vpop.f32.mrb[0].mxu0
        %4332 = vmatprep.mubr.f32.mxu0 0.0
        %4333 = vmatmul.mubr.f32.gmra.mrb[0].mxu0 %v4215
        %v4334 = vpop.f32.mrb[0].mxu0
        %v4335 = vadd.f32 0.0, %v4334
        %v4336 = vpop.f32.mrb[0].mxu0
        %4337 = vdwg.mxu0
        %v4338 = vadd.f32 %v4200, %v4300
        %v4339 = vadd.f32 %v4201, %v4305
        %v4340 = vadd.f32 %v4202, %v4310
        %v4341 = vadd.f32 %v4203, %v4315
        %v4342 = vadd.f32 %v4204, %v4320
        %v4343 = vadd.f32 %v4205, %v4325
        %v4344 = vadd.f32 %v4206, %v4330
        %v4345 = vadd.f32 %v4207, %v4335
        %s4346 = scalar_lea.vmem %s418, 144 [#allocation2]
        %v4347 = vld [vmem:[%s4346] sm:$0xff]
        %v4348 = vld [vmem:[%s4346 + $0x8] sm:$0xff]
        %v4349 = vld [vmem:[%s4346 + $0x18] sm:$0xff]
        %v4350 = vld [vmem:[%s4346 + $0x20] sm:$0xff]
        %v4351 = vld [vmem:[%s4346 + $0x30] sm:$0xff]
        %v4352 = vld [vmem:[%s4346 + $0x38] sm:$0xff]
        %v4353 = vld [vmem:[%s4346 + $0x48] sm:$0xff]
        %v4354 = vld [vmem:[%s4346 + $0x50] sm:$0xff]
        %s4355 = scalar_lea.vmem [#allocation7], 768
        %v4356 = vld [vmem:[%s4355] sm:$0xff]
        %v4357 = vld [vmem:[%s4355 + $0x8] sm:$0xff]
        %v4358 = vld [vmem:[%s4355 + $0x10] sm:$0xff]
        %v4359 = vld [vmem:[%s4355 + $0x18] sm:$0xff]
        %v4360 = vld [vmem:[%s4355 + $0x20] sm:$0xff]
        %v4361 = vld [vmem:[%s4355 + $0x28] sm:$0xff]
        %v4362 = vld [vmem:[%s4355 + $0x30] sm:$0xff]
        %v4363 = vld [vmem:[%s4355 + $0x38] sm:$0xff]
        %v4364 = vld [vmem:[%s4355 + $0x40] sm:$0xff]
        %v4365 = vld [vmem:[%s4355 + $0x48] sm:$0xff]
        %v4366 = vld [vmem:[%s4355 + $0x50] sm:$0xff]
        %v4367 = vld [vmem:[%s4355 + $0x58] sm:$0xff]
        %v4368 = vld [vmem:[%s4355 + $0x60] sm:$0xff]
        %v4369 = vld [vmem:[%s4355 + $0x68] sm:$0xff]
        %v4370 = vld [vmem:[%s4355 + $0x70] sm:$0xff]
        %v4371 = vld [vmem:[%s4355 + $0x78] sm:$0xff]
        %4372 = vmatprep.subr.mxu0 0.0
        %4373 = vmatpush1.msra.mxu0 %v4356
        %4374 = vmatprep.subr.mxu0 0.0
        %4375 = vmatpush1.msra.mxu0 %v4357
        %4376 = vmatprep.subr.mxu0 0.0
        %4377 = vmatpush1.msra.mxu0 %v4358
        %4378 = vmatprep.subr.mxu0 0.0
        %4379 = vmatpush1.msra.mxu0 %v4359
        %4380 = vmatprep.subr.mxu0 0.0
        %4381 = vmatpush1.msra.mxu0 %v4360
        %4382 = vmatprep.subr.mxu0 0.0
        %4383 = vmatpush1.msra.mxu0 %v4361
        %4384 = vmatprep.subr.mxu0 0.0
        %4385 = vmatpush1.msra.mxu0 %v4362
        %4386 = vmatprep.subr.mxu0 0.0
        %4387 = vmatpush1.msra.mxu0 %v4363
        %4388 = vmatprep.subr.mxu0 0.0
        %4389 = vmatpush1.msra.mxu0 %v4364
        %4390 = vmatprep.subr.mxu0 0.0
        %4391 = vmatpush1.msra.mxu0 %v4365
        %4392 = vmatprep.subr.mxu0 0.0
        %4393 = vmatpush1.msra.mxu0 %v4366
        %4394 = vmatprep.subr.mxu0 0.0
        %4395 = vmatpush1.msra.mxu0 %v4367
        %4396 = vmatprep.subr.mxu0 0.0
        %4397 = vmatpush1.msra.mxu0 %v4368
        %4398 = vmatprep.subr.mxu0 0.0
        %4399 = vmatpush1.msra.mxu0 %v4369
        %4400 = vmatprep.subr.mxu0 0.0
        %4401 = vmatpush1.msra.mxu0 %v4370
        %4402 = vmatprep.subr.mxu0 0.0
        %4403 = vmatpush1.msra.mxu0 %v4371
        %4404 = vmatprep.subr.mxu0 0.0
        %4405 = vmatpush1.msra.mxu0 0.0
        %4406 = vmatprep.subr.mxu0 0.0
        %4407 = vmatpush1.msra.mxu0 0.0
        %4408 = vmatprep.subr.mxu0 0.0
        %4409 = vmatpush1.msra.mxu0 0.0
        %4410 = vmatprep.subr.mxu0 0.0
        %4411 = vmatpush1.msra.mxu0 0.0
        %4412 = vmatprep.subr.mxu0 0.0
        %4413 = vmatpush1.msra.mxu0 0.0
        %4414 = vmatprep.subr.mxu0 0.0
        %4415 = vmatpush1.msra.mxu0 0.0
        %4416 = vmatprep.subr.mxu0 0.0
        %4417 = vmatpush1.msra.mxu0 0.0
        %4418 = vmatprep.subr.mxu0 0.0
        %4419 = vmatpush1.msra.mxu0 0.0
        %4420 = vmatprep.subr.mxu0 0.0
        %4421 = vmatpush1.msra.mxu0 0.0
        %4422 = vmatprep.subr.mxu0 0.0
        %4423 = vmatpush1.msra.mxu0 0.0
        %4424 = vmatprep.subr.mxu0 0.0
        %4425 = vmatpush1.msra.mxu0 0.0
        %4426 = vmatprep.subr.mxu0 0.0
        %4427 = vmatpush1.msra.mxu0 0.0
        %4428 = vmatprep.subr.mxu0 0.0
        %4429 = vmatpush1.msra.mxu0 0.0
        %4430 = vmatprep.subr.mxu0 0.0
        %4431 = vmatpush1.msra.mxu0 0.0
        %4432 = vmatprep.subr.mxu0 0.0
        %4433 = vmatpush1.msra.mxu0 0.0
        %4434 = vmatprep.subr.mxu0 0.0
        %4435 = vmatpush1.msra.mxu0 0.0
        %4436 = vmatprep.mubr.f32.mxu0 0.0
        %4437 = vmatmul.mubr.f32.gmra.mrb[0].mxu0 %v4347
        %v4438 = vpop.f32.mrb[0].mxu0
        %v4439 = vadd.f32 0.0, %v4438
        %v4440 = vpop.f32.mrb[0].mxu0
        %4441 = vmatprep.mubr.f32.mxu0 0.0
        %4442 = vmatmul.mubr.f32.gmra.mrb[0].mxu0 %v4348
        %v4443 = vpop.f32.mrb[0].mxu0
        %v4444 = vadd.f32 0.0, %v4443
        %v4445 = vpop.f32.mrb[0].mxu0
        %4446 = vmatprep.mubr.f32.mxu0 0.0
        %4447 = vmatmul.mubr.f32.gmra.mrb[0].mxu0 %v4349
        %v4448 = vpop.f32.mrb[0].mxu0
        %v4449 = vadd.f32 0.0, %v4448
        %v4450 = vpop.f32.mrb[0].mxu0
        %4451 = vmatprep.mubr.f32.mxu0 0.0
        %4452 = vmatmul.mubr.f32.gmra.mrb[0].mxu0 %v4350
        %v4453 = vpop.f32.mrb[0].mxu0
        %v4454 = vadd.f32 0.0, %v4453
        %v4455 = vpop.f32.mrb[0].mxu0
        %4456 = vmatprep.mubr.f32.mxu0 0.0
        %4457 = vmatmul.mubr.f32.gmra.mrb[0].mxu0 %v4351
        %v4458 = vpop.f32.mrb[0].mxu0
        %v4459 = vadd.f32 0.0, %v4458
        %v4460 = vpop.f32.mrb[0].mxu0
        %4461 = vmatprep.mubr.f32.mxu0 0.0
        %4462 = vmatmul.mubr.f32.gmra.mrb[0].mxu0 %v4352
        %v4463 = vpop.f32.mrb[0].mxu0
        %v4464 = vadd.f32 0.0, %v4463
        %v4465 = vpop.f32.mrb[0].mxu0
        %4466 = vmatprep.mubr.f32.mxu0 0.0
        %4467 = vmatmul.mubr.f32.gmra.mrb[0].mxu0 %v4353
        %v4468 = vpop.f32.mrb[0].mxu0
        %v4469 = vadd.f32 0.0, %v4468
        %v4470 = vpop.f32.mrb[0].mxu0
        %4471 = vmatprep.mubr.f32.mxu0 0.0
        %4472 = vmatmul.mubr.f32.gmra.mrb[0].mxu0 %v4354
        %v4473 = vpop.f32.mrb[0].mxu0
        %v4474 = vadd.f32 0.0, %v4473
        %v4475 = vpop.f32.mrb[0].mxu0
        %4476 = vdwg.mxu0
        %v4477 = vadd.f32 %v4338, %v4439
        %v4478 = vadd.f32 %v4339, %v4444
        %v4479 = vadd.f32 %v4340, %v4449
        %v4480 = vadd.f32 %v4341, %v4454
        %v4481 = vadd.f32 %v4342, %v4459
        %v4482 = vadd.f32 %v4343, %v4464
        %v4483 = vadd.f32 %v4344, %v4469
        %v4484 = vadd.f32 %v4345, %v4474
        %v4485 = vld [vmem:[%s4346 + $0x3] sm:$0xff]
        %v4486 = vld [vmem:[%s4346 + $0xb] sm:$0xff]
        %v4487 = vld [vmem:[%s4346 + $0x1b] sm:$0xff]
        %v4488 = vld [vmem:[%s4346 + $0x23] sm:$0xff]
        %v4489 = vld [vmem:[%s4346 + $0x33] sm:$0xff]
        %v4490 = vld [vmem:[%s4346 + $0x3b] sm:$0xff]
        %v4491 = vld [vmem:[%s4346 + $0x4b] sm:$0xff]
        %v4492 = vld [vmem:[%s4346 + $0x53] sm:$0xff]
        %s4493 = scalar_lea.vmem [#allocation7], 896
        %v4494 = vld [vmem:[%s4493] sm:$0xff]
        %v4495 = vld [vmem:[%s4493 + $0x8] sm:$0xff]
        %v4496 = vld [vmem:[%s4493 + $0x10] sm:$0xff]
        %v4497 = vld [vmem:[%s4493 + $0x18] sm:$0xff]
        %v4498 = vld [vmem:[%s4493 + $0x20] sm:$0xff]
        %v4499 = vld [vmem:[%s4493 + $0x28] sm:$0xff]
        %v4500 = vld [vmem:[%s4493 + $0x30] sm:$0xff]
        %v4501 = vld [vmem:[%s4493 + $0x38] sm:$0xff]
        %v4502 = vld [vmem:[%s4493 + $0x40] sm:$0xff]
        %v4503 = vld [vmem:[%s4493 + $0x48] sm:$0xff]
        %v4504 = vld [vmem:[%s4493 + $0x50] sm:$0xff]
        %v4505 = vld [vmem:[%s4493 + $0x58] sm:$0xff]
        %v4506 = vld [vmem:[%s4493 + $0x60] sm:$0xff]
        %v4507 = vld [vmem:[%s4493 + $0x68] sm:$0xff]
        %v4508 = vld [vmem:[%s4493 + $0x70] sm:$0xff]
        %v4509 = vld [vmem:[%s4493 + $0x78] sm:$0xff]
        %4510 = vmatprep.subr.mxu0 0.0
        %4511 = vmatpush1.msra.mxu0 %v4494
        %4512 = vmatprep.subr.mxu0 0.0
        %4513 = vmatpush1.msra.mxu0 %v4495
        %4514 = vmatprep.subr.mxu0 0.0
        %4515 = vmatpush1.msra.mxu0 %v4496
        %4516 = vmatprep.subr.mxu0 0.0
        %4517 = vmatpush1.msra.mxu0 %v4497
        %4518 = vmatprep.subr.mxu0 0.0
        %4519 = vmatpush1.msra.mxu0 %v4498
        %4520 = vmatprep.subr.mxu0 0.0
        %4521 = vmatpush1.msra.mxu0 %v4499
        %4522 = vmatprep.subr.mxu0 0.0
        %4523 = vmatpush1.msra.mxu0 %v4500
        %4524 = vmatprep.subr.mxu0 0.0
        %4525 = vmatpush1.msra.mxu0 %v4501
        %4526 = vmatprep.subr.mxu0 0.0
        %4527 = vmatpush1.msra.mxu0 %v4502
        %4528 = vmatprep.subr.mxu0 0.0
        %4529 = vmatpush1.msra.mxu0 %v4503
        %4530 = vmatprep.subr.mxu0 0.0
        %4531 = vmatpush1.msra.mxu0 %v4504
        %4532 = vmatprep.subr.mxu0 0.0
        %4533 = vmatpush1.msra.mxu0 %v4505
        %4534 = vmatprep.subr.mxu0 0.0
        %4535 = vmatpush1.msra.mxu0 %v4506
        %4536 = vmatprep.subr.mxu0 0.0
        %4537 = vmatpush1.msra.mxu0 %v4507
        %4538 = vmatprep.subr.mxu0 0.0
        %4539 = vmatpush1.msra.mxu0 %v4508
        %4540 = vmatprep.subr.mxu0 0.0
        %4541 = vmatpush1.msra.mxu0 %v4509
        %4542 = vmatprep.subr.mxu0 0.0
        %4543 = vmatpush1.msra.mxu0 0.0
        %4544 = vmatprep.subr.mxu0 0.0
        %4545 = vmatpush1.msra.mxu0 0.0
        %4546 = vmatprep.subr.mxu0 0.0
        %4547 = vmatpush1.msra.mxu0 0.0
        %4548 = vmatprep.subr.mxu0 0.0
        %4549 = vmatpush1.msra.mxu0 0.0
        %4550 = vmatprep.subr.mxu0 0.0
        %4551 = vmatpush1.msra.mxu0 0.0
        %4552 = vmatprep.subr.mxu0 0.0
        %4553 = vmatpush1.msra.mxu0 0.0
        %4554 = vmatprep.subr.mxu0 0.0
        %4555 = vmatpush1.msra.mxu0 0.0
        %4556 = vmatprep.subr.mxu0 0.0
        %4557 = vmatpush1.msra.mxu0 0.0
        %4558 = vmatprep.subr.mxu0 0.0
        %4559 = vmatpush1.msra.mxu0 0.0
        %4560 = vmatprep.subr.mxu0 0.0
        %4561 = vmatpush1.msra.mxu0 0.0
        %4562 = vmatprep.subr.mxu0 0.0
        %4563 = vmatpush1.msra.mxu0 0.0
        %4564 = vmatprep.subr.mxu0 0.0
        %4565 = vmatpush1.msra.mxu0 0.0
        %4566 = vmatprep.subr.mxu0 0.0
        %4567 = vmatpush1.msra.mxu0 0.0
        %4568 = vmatprep.subr.mxu0 0.0
        %4569 = vmatpush1.msra.mxu0 0.0
        %4570 = vmatprep.subr.mxu0 0.0
        %4571 = vmatpush1.msra.mxu0 0.0
        %4572 = vmatprep.subr.mxu0 0.0
        %4573 = vmatpush1.msra.mxu0 0.0
        %4574 = vmatprep.mubr.f32.mxu0 0.0
        %4575 = vmatmul.mubr.f32.gmra.mrb[0].mxu0 %v4485
        %v4576 = vpop.f32.mrb[0].mxu0
        %v4577 = vadd.f32 0.0, %v4576
        %v4578 = vpop.f32.mrb[0].mxu0
        %4579 = vmatprep.mubr.f32.mxu0 0.0
        %4580 = vmatmul.mubr.f32.gmra.mrb[0].mxu0 %v4486
        %v4581 = vpop.f32.mrb[0].mxu0
        %v4582 = vadd.f32 0.0, %v4581
        %v4583 = vpop.f32.mrb[0].mxu0
        %4584 = vmatprep.mubr.f32.mxu0 0.0
        %4585 = vmatmul.mubr.f32.gmra.mrb[0].mxu0 %v4487
        %v4586 = vpop.f32.mrb[0].mxu0
        %v4587 = vadd.f32 0.0, %v4586
        %v4588 = vpop.f32.mrb[0].mxu0
        %4589 = vmatprep.mubr.f32.mxu0 0.0
        %4590 = vmatmul.mubr.f32.gmra.mrb[0].mxu0 %v4488
        %v4591 = vpop.f32.mrb[0].mxu0
        %v4592 = vadd.f32 0.0, %v4591
        %v4593 = vpop.f32.mrb[0].mxu0
        %4594 = vmatprep.mubr.f32.mxu0 0.0
        %4595 = vmatmul.mubr.f32.gmra.mrb[0].mxu0 %v4489
        %v4596 = vpop.f32.mrb[0].mxu0
        %v4597 = vadd.f32 0.0, %v4596
        %v4598 = vpop.f32.mrb[0].mxu0
        %4599 = vmatprep.mubr.f32.mxu0 0.0
        %4600 = vmatmul.mubr.f32.gmra.mrb[0].mxu0 %v4490
        %v4601 = vpop.f32.mrb[0].mxu0
        %v4602 = vadd.f32 0.0, %v4601
        %v4603 = vpop.f32.mrb[0].mxu0
        %4604 = vmatprep.mubr.f32.mxu0 0.0
        %4605 = vmatmul.mubr.f32.gmra.mrb[0].mxu0 %v4491
        %v4606 = vpop.f32.mrb[0].mxu0
        %v4607 = vadd.f32 0.0, %v4606
        %v4608 = vpop.f32.mrb[0].mxu0
        %4609 = vmatprep.mubr.f32.mxu0 0.0
        %4610 = vmatmul.mubr.f32.gmra.mrb[0].mxu0 %v4492
        %v4611 = vpop.f32.mrb[0].mxu0
        %v4612 = vadd.f32 0.0, %v4611
        %v4613 = vpop.f32.mrb[0].mxu0
        %4614 = vdwg.mxu0
        %v4615 = vadd.f32 %v4477, %v4577
        %v4616 = vadd.f32 %v4478, %v4582
        %v4617 = vadd.f32 %v4479, %v4587
        %v4618 = vadd.f32 %v4480, %v4592
        %v4619 = vadd.f32 %v4481, %v4597
        %v4620 = vadd.f32 %v4482, %v4602
        %v4621 = vadd.f32 %v4483, %v4607
        %v4622 = vadd.f32 %v4484, %v4612
        %v4623 = vld [vmem:[%s4346 + $0x6] sm:$0xff]
        %v4624 = vld [vmem:[%s4346 + $0xe] sm:$0xff]
        %v4625 = vld [vmem:[%s4346 + $0x1e] sm:$0xff]
        %v4626 = vld [vmem:[%s4346 + $0x26] sm:$0xff]
        %v4627 = vld [vmem:[%s4346 + $0x36] sm:$0xff]
        %v4628 = vld [vmem:[%s4346 + $0x3e] sm:$0xff]
        %v4629 = vld [vmem:[%s4346 + $0x4e] sm:$0xff]
        %v4630 = vld [vmem:[%s4346 + $0x56] sm:$0xff]
        %s4631 = scalar_lea.vmem [#allocation7], 1024
        %v4632 = vld [vmem:[%s4631] sm:$0xff]
        %v4633 = vld [vmem:[%s4631 + $0x8] sm:$0xff]
        %v4634 = vld [vmem:[%s4631 + $0x10] sm:$0xff]
        %v4635 = vld [vmem:[%s4631 + $0x18] sm:$0xff]
        %v4636 = vld [vmem:[%s4631 + $0x20] sm:$0xff]
        %v4637 = vld [vmem:[%s4631 + $0x28] sm:$0xff]
        %v4638 = vld [vmem:[%s4631 + $0x30] sm:$0xff]
        %v4639 = vld [vmem:[%s4631 + $0x38] sm:$0xff]
        %v4640 = vld [vmem:[%s4631 + $0x40] sm:$0xff]
        %v4641 = vld [vmem:[%s4631 + $0x48] sm:$0xff]
        %v4642 = vld [vmem:[%s4631 + $0x50] sm:$0xff]
        %v4643 = vld [vmem:[%s4631 + $0x58] sm:$0xff]
        %v4644 = vld [vmem:[%s4631 + $0x60] sm:$0xff]
        %v4645 = vld [vmem:[%s4631 + $0x68] sm:$0xff]
        %v4646 = vld [vmem:[%s4631 + $0x70] sm:$0xff]
        %v4647 = vld [vmem:[%s4631 + $0x78] sm:$0xff]
        %4648 = vmatprep.subr.mxu0 0.0
        %4649 = vmatpush1.msra.mxu0 %v4632
        %4650 = vmatprep.subr.mxu0 0.0
        %4651 = vmatpush1.msra.mxu0 %v4633
        %4652 = vmatprep.subr.mxu0 0.0
        %4653 = vmatpush1.msra.mxu0 %v4634
        %4654 = vmatprep.subr.mxu0 0.0
        %4655 = vmatpush1.msra.mxu0 %v4635
        %4656 = vmatprep.subr.mxu0 0.0
        %4657 = vmatpush1.msra.mxu0 %v4636
        %4658 = vmatprep.subr.mxu0 0.0
        %4659 = vmatpush1.msra.mxu0 %v4637
        %4660 = vmatprep.subr.mxu0 0.0
        %4661 = vmatpush1.msra.mxu0 %v4638
        %4662 = vmatprep.subr.mxu0 0.0
        %4663 = vmatpush1.msra.mxu0 %v4639
        %4664 = vmatprep.subr.mxu0 0.0
        %4665 = vmatpush1.msra.mxu0 %v4640
        %4666 = vmatprep.subr.mxu0 0.0
        %4667 = vmatpush1.msra.mxu0 %v4641
        %4668 = vmatprep.subr.mxu0 0.0
        %4669 = vmatpush1.msra.mxu0 %v4642
        %4670 = vmatprep.subr.mxu0 0.0
        %4671 = vmatpush1.msra.mxu0 %v4643
        %4672 = vmatprep.subr.mxu0 0.0
        %4673 = vmatpush1.msra.mxu0 %v4644
        %4674 = vmatprep.subr.mxu0 0.0
        %4675 = vmatpush1.msra.mxu0 %v4645
        %4676 = vmatprep.subr.mxu0 0.0
        %4677 = vmatpush1.msra.mxu0 %v4646
        %4678 = vmatprep.subr.mxu0 0.0
        %4679 = vmatpush1.msra.mxu0 %v4647
        %4680 = vmatprep.subr.mxu0 0.0
        %4681 = vmatpush1.msra.mxu0 0.0
        %4682 = vmatprep.subr.mxu0 0.0
        %4683 = vmatpush1.msra.mxu0 0.0
        %4684 = vmatprep.subr.mxu0 0.0
        %4685 = vmatpush1.msra.mxu0 0.0
        %4686 = vmatprep.subr.mxu0 0.0
        %4687 = vmatpush1.msra.mxu0 0.0
        %4688 = vmatprep.subr.mxu0 0.0
        %4689 = vmatpush1.msra.mxu0 0.0
        %4690 = vmatprep.subr.mxu0 0.0
        %4691 = vmatpush1.msra.mxu0 0.0
        %4692 = vmatprep.subr.mxu0 0.0
        %4693 = vmatpush1.msra.mxu0 0.0
        %4694 = vmatprep.subr.mxu0 0.0
        %4695 = vmatpush1.msra.mxu0 0.0
        %4696 = vmatprep.subr.mxu0 0.0
        %4697 = vmatpush1.msra.mxu0 0.0
        %4698 = vmatprep.subr.mxu0 0.0
        %4699 = vmatpush1.msra.mxu0 0.0
        %4700 = vmatprep.subr.mxu0 0.0
        %4701 = vmatpush1.msra.mxu0 0.0
        %4702 = vmatprep.subr.mxu0 0.0
        %4703 = vmatpush1.msra.mxu0 0.0
        %4704 = vmatprep.subr.mxu0 0.0
        %4705 = vmatpush1.msra.mxu0 0.0
        %4706 = vmatprep.subr.mxu0 0.0
        %4707 = vmatpush1.msra.mxu0 0.0
        %4708 = vmatprep.subr.mxu0 0.0
        %4709 = vmatpush1.msra.mxu0 0.0
        %4710 = vmatprep.subr.mxu0 0.0
        %4711 = vmatpush1.msra.mxu0 0.0
        %4712 = vmatprep.mubr.f32.mxu0 0.0
        %4713 = vmatmul.mubr.f32.gmra.mrb[0].mxu0 %v4623
        %v4714 = vpop.f32.mrb[0].mxu0
        %v4715 = vadd.f32 0.0, %v4714
        %v4716 = vpop.f32.mrb[0].mxu0
        %4717 = vmatprep.mubr.f32.mxu0 0.0
        %4718 = vmatmul.mubr.f32.gmra.mrb[0].mxu0 %v4624
        %v4719 = vpop.f32.mrb[0].mxu0
        %v4720 = vadd.f32 0.0, %v4719
        %v4721 = vpop.f32.mrb[0].mxu0
        %4722 = vmatprep.mubr.f32.mxu0 0.0
        %4723 = vmatmul.mubr.f32.gmra.mrb[0].mxu0 %v4625
        %v4724 = vpop.f32.mrb[0].mxu0
        %v4725 = vadd.f32 0.0, %v4724
        %v4726 = vpop.f32.mrb[0].mxu0
        %4727 = vmatprep.mubr.f32.mxu0 0.0
        %4728 = vmatmul.mubr.f32.gmra.mrb[0].mxu0 %v4626
        %v4729 = vpop.f32.mrb[0].mxu0
        %v4730 = vadd.f32 0.0, %v4729
        %v4731 = vpop.f32.mrb[0].mxu0
        %4732 = vmatprep.mubr.f32.mxu0 0.0
        %4733 = vmatmul.mubr.f32.gmra.mrb[0].mxu0 %v4627
        %v4734 = vpop.f32.mrb[0].mxu0
        %v4735 = vadd.f32 0.0, %v4734
        %v4736 = vpop.f32.mrb[0].mxu0
        %4737 = vmatprep.mubr.f32.mxu0 0.0
        %4738 = vmatmul.mubr.f32.gmra.mrb[0].mxu0 %v4628
        %v4739 = vpop.f32.mrb[0].mxu0
        %v4740 = vadd.f32 0.0, %v4739
        %v4741 = vpop.f32.mrb[0].mxu0
        %4742 = vmatprep.mubr.f32.mxu0 0.0
        %4743 = vmatmul.mubr.f32.gmra.mrb[0].mxu0 %v4629
        %v4744 = vpop.f32.mrb[0].mxu0
        %v4745 = vadd.f32 0.0, %v4744
        %v4746 = vpop.f32.mrb[0].mxu0
        %4747 = vmatprep.mubr.f32.mxu0 0.0
        %4748 = vmatmul.mubr.f32.gmra.mrb[0].mxu0 %v4630
        %v4749 = vpop.f32.mrb[0].mxu0
        %v4750 = vadd.f32 0.0, %v4749
        %v4751 = vpop.f32.mrb[0].mxu0
        %4752 = vdwg.mxu0
        %v4753 = vadd.f32 %v4615, %v4715
        %v4754 = vadd.f32 %v4616, %v4720
        %v4755 = vadd.f32 %v4617, %v4725
        %v4756 = vadd.f32 %v4618, %v4730
        %v4757 = vadd.f32 %v4619, %v4735
        %v4758 = vadd.f32 %v4620, %v4740
        %v4759 = vadd.f32 %v4621, %v4745
        %v4760 = vadd.f32 %v4622, %v4750
        %v4761 = vmax.f32 %v4753, 0.0
        %v4762 = vmax.f32 %v4754, 0.0
        %v4763 = vmax.f32 %v4755, 0.0
        %v4764 = vmax.f32 %v4756, 0.0
        %v4765 = vmax.f32 %v4757, 0.0
        %v4766 = vmax.f32 %v4758, 0.0
        %v4767 = vmax.f32 %v4759, 0.0
        %v4768 = vmax.f32 %v4760, 0.0
        %s4769 = scalar_lea.vmem %s5, 384
        %v4770 = vld [vmem:[%s4769] sm:$0xff]
        %v4771 = vld [vmem:[%s4769 + $0x8] sm:$0xff]
        %v4772 = vld [vmem:[%s4769 + $0x10] sm:$0xff]
        %v4773 = vld [vmem:[%s4769 + $0x18] sm:$0xff]
        %v4774 = vld [vmem:[%s4769 + $0x20] sm:$0xff]
        %v4775 = vld [vmem:[%s4769 + $0x28] sm:$0xff]
        %v4776 = vld [vmem:[%s4769 + $0x30] sm:$0xff]
        %v4777 = vld [vmem:[%s4769 + $0x38] sm:$0xff]
        %v4778 = vld [vmem:[%s4769 + $0x40] sm:$0xff]
        %v4779 = vld [vmem:[%s4769 + $0x48] sm:$0xff]
        %v4780 = vld [vmem:[%s4769 + $0x50] sm:$0xff]
        %v4781 = vld [vmem:[%s4769 + $0x58] sm:$0xff]
        %v4782 = vld [vmem:[%s4769 + $0x60] sm:$0xff]
        %v4783 = vld [vmem:[%s4769 + $0x68] sm:$0xff]
        %v4784 = vld [vmem:[%s4769 + $0x70] sm:$0xff]
        %v4785 = vld [vmem:[%s4769 + $0x78] sm:$0xff]
        %4786 = vmatprep.subr.mxu0 0.0
        %4787 = vmatpush1.msra.mxu0 %v4770
        %4788 = vmatprep.subr.mxu0 0.0
        %4789 = vmatpush1.msra.mxu0 %v4771
        %4790 = vmatprep.subr.mxu0 0.0
        %4791 = vmatpush1.msra.mxu0 %v4772
        %4792 = vmatprep.subr.mxu0 0.0
        %4793 = vmatpush1.msra.mxu0 %v4773
        %4794 = vmatprep.subr.mxu0 0.0
        %4795 = vmatpush1.msra.mxu0 %v4774
        %4796 = vmatprep.subr.mxu0 0.0
        %4797 = vmatpush1.msra.mxu0 %v4775
        %4798 = vmatprep.subr.mxu0 0.0
        %4799 = vmatpush1.msra.mxu0 %v4776
        %4800 = vmatprep.subr.mxu0 0.0
        %4801 = vmatpush1.msra.mxu0 %v4777
        %4802 = vmatprep.subr.mxu0 0.0
        %4803 = vmatpush1.msra.mxu0 %v4778
        %4804 = vmatprep.subr.mxu0 0.0
        %4805 = vmatpush1.msra.mxu0 %v4779
        %4806 = vmatprep.subr.mxu0 0.0
        %4807 = vmatpush1.msra.mxu0 %v4780
        %4808 = vmatprep.subr.mxu0 0.0
        %4809 = vmatpush1.msra.mxu0 %v4781
        %4810 = vmatprep.subr.mxu0 0.0
        %4811 = vmatpush1.msra.mxu0 %v4782
        %4812 = vmatprep.subr.mxu0 0.0
        %4813 = vmatpush1.msra.mxu0 %v4783
        %4814 = vmatprep.subr.mxu0 0.0
        %4815 = vmatpush1.msra.mxu0 %v4784
        %4816 = vmatprep.subr.mxu0 0.0
        %4817 = vmatpush1.msra.mxu0 %v4785
        %4818 = vmatprep.subr.mxu0 0.0
        %4819 = vmatpush1.msra.mxu0 0.0
        %4820 = vmatprep.subr.mxu0 0.0
        %4821 = vmatpush1.msra.mxu0 0.0
        %4822 = vmatprep.subr.mxu0 0.0
        %4823 = vmatpush1.msra.mxu0 0.0
        %4824 = vmatprep.subr.mxu0 0.0
        %4825 = vmatpush1.msra.mxu0 0.0
        %4826 = vmatprep.subr.mxu0 0.0
        %4827 = vmatpush1.msra.mxu0 0.0
        %4828 = vmatprep.subr.mxu0 0.0
        %4829 = vmatpush1.msra.mxu0 0.0
        %4830 = vmatprep.subr.mxu0 0.0
        %4831 = vmatpush1.msra.mxu0 0.0
        %4832 = vmatprep.subr.mxu0 0.0
        %4833 = vmatpush1.msra.mxu0 0.0
        %4834 = vmatprep.subr.mxu0 0.0
        %4835 = vmatpush1.msra.mxu0 0.0
        %4836 = vmatprep.subr.mxu0 0.0
        %4837 = vmatpush1.msra.mxu0 0.0
        %4838 = vmatprep.subr.mxu0 0.0
        %4839 = vmatpush1.msra.mxu0 0.0
        %4840 = vmatprep.subr.mxu0 0.0
        %4841 = vmatpush1.msra.mxu0 0.0
        %4842 = vmatprep.subr.mxu0 0.0
        %4843 = vmatpush1.msra.mxu0 0.0
        %4844 = vmatprep.subr.mxu0 0.0
        %4845 = vmatpush1.msra.mxu0 0.0
        %4846 = vmatprep.subr.mxu0 0.0
        %4847 = vmatpush1.msra.mxu0 0.0
        %4848 = vmatprep.subr.mxu0 0.0
        %4849 = vmatpush1.msra.mxu0 0.0
        %4850 = vmatprep.mubr.f32.mxu0 0.0
        %4851 = vmatmul.mubr.f32.gmra.mrb[0].mxu0 %v4761
        %v4852 = vpop.f32.mrb[0].mxu0
        %v4853 = vadd.f32 0.0, %v4852
        %v4854 = vpop.f32.mrb[0].mxu0
        %4855 = vmatprep.mubr.f32.mxu0 0.0
        %4856 = vmatmul.mubr.f32.gmra.mrb[0].mxu0 %v4762
        %v4857 = vpop.f32.mrb[0].mxu0
        %v4858 = vadd.f32 0.0, %v4857
        %v4859 = vpop.f32.mrb[0].mxu0
        %4860 = vmatprep.mubr.f32.mxu0 0.0
        %4861 = vmatmul.mubr.f32.gmra.mrb[0].mxu0 %v4763
        %v4862 = vpop.f32.mrb[0].mxu0
        %v4863 = vadd.f32 0.0, %v4862
        %v4864 = vpop.f32.mrb[0].mxu0
        %4865 = vmatprep.mubr.f32.mxu0 0.0
        %4866 = vmatmul.mubr.f32.gmra.mrb[0].mxu0 %v4764
        %v4867 = vpop.f32.mrb[0].mxu0
        %v4868 = vadd.f32 0.0, %v4867
        %v4869 = vpop.f32.mrb[0].mxu0
        %4870 = vmatprep.mubr.f32.mxu0 0.0
        %4871 = vmatmul.mubr.f32.gmra.mrb[0].mxu0 %v4765
        %v4872 = vpop.f32.mrb[0].mxu0
        %v4873 = vadd.f32 0.0, %v4872
        %v4874 = vpop.f32.mrb[0].mxu0
        %4875 = vmatprep.mubr.f32.mxu0 0.0
        %4876 = vmatmul.mubr.f32.gmra.mrb[0].mxu0 %v4766
        %v4877 = vpop.f32.mrb[0].mxu0
        %v4878 = vadd.f32 0.0, %v4877
        %v4879 = vpop.f32.mrb[0].mxu0
        %4880 = vmatprep.mubr.f32.mxu0 0.0
        %4881 = vmatmul.mubr.f32.gmra.mrb[0].mxu0 %v4767
        %v4882 = vpop.f32.mrb[0].mxu0
        %v4883 = vadd.f32 0.0, %v4882
        %v4884 = vpop.f32.mrb[0].mxu0
        %4885 = vmatprep.mubr.f32.mxu0 0.0
        %4886 = vmatmul.mubr.f32.gmra.mrb[0].mxu0 %v4768
        %v4887 = vpop.f32.mrb[0].mxu0
        %v4888 = vadd.f32 0.0, %v4887
        %v4889 = vpop.f32.mrb[0].mxu0
        %4890 = vdwg.mxu0
        %v4891 = vadd.f32 %v3535, %v4853
        %v4892 = vadd.f32 %v3536, %v4858
        %v4893 = vadd.f32 %v3537, %v4863
        %v4894 = vadd.f32 %v3538, %v4868
        %v4895 = vadd.f32 %v3539, %v4873
        %v4896 = vadd.f32 %v3540, %v4878
        %v4897 = vadd.f32 %v3541, %v4883
        %v4898 = vadd.f32 %v3542, %v4888
        %v4899 = vmax.f32 %v4891, 0.0
        %v4900 = vmax.f32 %v4892, 0.0
        %v4901 = vmax.f32 %v4893, 0.0
        %v4902 = vmax.f32 %v4894, 0.0
        %v4903 = vmax.f32 %v4895, 0.0
        %v4904 = vmax.f32 %v4896, 0.0
        %v4905 = vmax.f32 %v4897, 0.0
        %v4906 = vmax.f32 %v4898, 0.0
        %4907 = vst [vmem:[%s258] sm:$0xff] %v4899
        %4908 = vst [vmem:[%s258 + $0x8] sm:$0xff] %v4900
        %4909 = vst [vmem:[%s258 + $0x10] sm:$0xff] %v4901
        %4910 = vst [vmem:[%s258 + $0x18] sm:$0xff] %v4902
        %4911 = vst [vmem:[%s258 + $0x20] sm:$0xff] %v4903
        %4912 = vst [vmem:[%s258 + $0x28] sm:$0xff] %v4904
        %4913 = vst [vmem:[%s258 + $0x30] sm:$0xff] %v4905
        %4914 = vst [vmem:[%s258 + $0x38] sm:$0xff] %v4906
        %s4915 = sand.u32 %s160, 1
        %s4916 = scalar_lea.sflag [#allocation6], %s4915
        %s4917 = sand.u32 %s160, 1
        %s4918 = smul.addr %s4917, 64
        %s4919 = scalar_lea.vmem [#allocation9], %s4918
        // Predicated region
        $region131: #{tpu_custom_call.1} parent=39 // pred_check
          %p4920 = pneg %p170
        $region132: #{tpu_custom_call.1} parent=39 // pred_check_branch
          %4922 = sbr.rel (%p4920) target = $region134
        $region133: #{tpu_custom_call.1} parent=39 // pred_region
          %s4923 = smul.u32 %s28, 2
          %s4924 = sadd.s32 %s4923, %s29
          %s4925 = smul.u32 4, %s4924
          %s4927 = ssub.s32 1024, 1024
          %4928 = vsyncadd %s4916, %s4927
          %s4929 = smul.addr %s4925, 2
          %s4930 = smul.addr %s27, 32
          %s4931 = sadd.s32 %s4929, %s4930
          %s4932 = smul.addr %s4931, 128
          %s4933 = scalar_lea.hbm %s6, %s4932
          %s4934 = sshll.u32 %s4919, 4
          %s4935 = int_to_ptr.vmem [resolvable:$true] %s4934
          %4940 = dma.vmem_to_hbm [thread:$0]  %s4935, 1024, %s4933, %s4916, 128, 128, 8
        $region134: #{tpu_custom_call.1} parent=39 // pred_fallthru
          _
      $region40: #{tpu_custom_call.1} parent=5 // pred_fallthru
        _
      %p4941 = scmp.le.s32.totalorder 2, %s17
      // Predicated region
      $region135: #{tpu_custom_call.1} parent=5 // pred_check
        %p4942 = pneg %p4941
      $region136: #{tpu_custom_call.1} parent=5 // pred_check_branch
        %4944 = sbr.rel (%p4942) target = $region138
      $region137: #{tpu_custom_call.1} parent=5 // pred_region
        %s4945 = ssub.s32 %s17, 2
        // Predicated region
        $region139: #{tpu_custom_call.1} parent=137 // pred_check
          %p4946 = pneg %p176
        $region140: #{tpu_custom_call.1} parent=137 // pred_check_branch
          %4948 = sbr.rel (%p4946) target = $region142
        $region141: #{tpu_custom_call.1} parent=137 // pred_region
          %s4949 = sand.u32 %s161, 1
          %s4950 = scalar_lea.sflag [#allocation6], %s4949
          %s4951 = sand.u32 %s161, 1
          %s4952 = smul.addr %s4951, 64
          %s4953 = scalar_lea.vmem [#allocation9], %s4952
          %4954 = dma.done %s4950, 1024
        $region142: #{tpu_custom_call.1} parent=137 // pred_fallthru
          _
      $region138: #{tpu_custom_call.1} parent=5 // pred_fallthru
        _
    $region6: #{tpu_custom_call.1} parent=1 // loop_footer
      %s21 = sadd.s32 1, %s17
    $region7: #{tpu_custom_call.1} parent=1 // loop_footer_branch
      %16 = sbr.rel target = $region3
    $region8: #{tpu_custom_call.1} parent=1 // loop_exit
      _
    %4955 = vsyncpa [#allocation5], 1
    %s4956 = scalar_lea.sflag [#allocation5], 1
    %4957 = vsyncpa %s4956, 1
    %4958 = vsyncpa [#allocation8], 1
    %4959 = vsyncpa [#allocation6], 1
    %s4960 = scalar_lea.sflag [#allocation6], 1
    %4961 = vsyncpa %s4960, 1
  %4962 = vsyncmov [#allocation3]
  %s4963 = vpop.sfrf %4962
  %p4964 = scmp.eq.s32.totalorder %s4963, 0
  %p4965 = pneg %p4964
  %4967 = shalt.err (%p4965)
  %s4968 = scalar_lea.sflag [#allocation3], 1
  %4969 = vsyncmov %s4968
  %s4970 = vpop.sfrf %4969
  %p4971 = scmp.eq.s32.totalorder %s4970, 0
  %p4972 = pneg %p4971
  %4974 = shalt.err (%p4972)

</llo_original>
